<compile_context>
chip_gen: v5e
topology: v5e:2x2
jax: 0.10.0
libtpu: 0.0.40
codegen_flags: <defaults>
</compile_context>

<pallas_src>
import math

import jax
import jax.numpy as jnp
from jax import lax
from jax.experimental import pallas as pl
from jax.experimental.pallas import tpu as pltpu

CONVLAYERS = 2
C_OUT = 10                  # conv output channels
N_CLASSES = 10
HS = WS = 28                # spatial size fixed by fc: 7840 = 10*28*28
HP = WP = HS + 2            # zero-padded frame (pad=1) -> 30x30
P = HP * WP                 # 900 flattened frame positions per image
SLOT = 1024                 # per-image lane slot (multiple of 128, >= P + 31 slack)
TILE_B = 4                  # images per grid step (batch tiling)
TAP_OFFSETS = tuple((dy - 1) * WP + (dx - 1) for dy in range(3) for dx in range(3))


# ----------------------------------------------------------------------------
# Fused forward kernel: TILE_B images per grid step, everything stays in VMEM.
# ----------------------------------------------------------------------------
def make_fused_net_kernel(convlayers, tile_b):
    ltot = tile_b * SLOT

    def kernel(*refs):
        x_ref, mask_ref = refs[0], refs[1]
        conv_refs = refs[2:2 + 2 * convlayers]
        fcw_ref, fcb_ref, dmask_ref, fold_ref = refs[2 + 2 * convlayers:6 + 2 * convlayers]
        out_ref = refs[6 + 2 * convlayers]       # (1, tile_b, N_CLASSES)
        stack_ref = refs[7 + 2 * convlayers]     # (9*C_OUT, ltot) bf16 im2col scratch

        mask = mask_ref[...]                     # (1, ltot) f32, 1.0 on interior lanes

        act = x_ref[0]                           # (1, ltot) bf16, padded+flattened input
        h = None
        for l in range(convlayers):
            w_ref = conv_refs[2 * l]             # (C_OUT, 9*cin) bf16
            b_ref = conv_refs[2 * l + 1]         # (C_OUT, 1)     f32
            cin = act.shape[0]

            # In-VMEM im2col: row block t holds act lane-shifted by TAP_OFFSETS[t]
            # (tap value at lane j is act[j + d]).  The tiny wrapped pieces only
            # land on border / dead lanes whose conv outputs are masked or
            # zero-weighted later, but they keep every stack cell finite.
            for t, d in enumerate(TAP_OFFSETS):
                r0, r1 = t * cin, (t + 1) * cin
                if d == 0:
                    stack_ref[r0:r1, :] = act
                elif d > 0:
                    stack_ref[r0:r1, 0:ltot - d] = act[:, d:]
                    stack_ref[r0:r1, ltot - d:ltot] = act[:, 0:d]
                else:
                    s = -d
                    stack_ref[r0:r1, s:ltot] = act[:, 0:ltot - s]
                    stack_ref[r0:r1, 0:s] = act[:, ltot - s:ltot]

            # One MXU matmul per conv layer: (C_OUT, 9*cin) @ (9*cin, ltot), f32 acc.
            acc = jnp.dot(w_ref[...], stack_ref[0:9 * cin, :],
                          preferred_element_type=jnp.float32)
            h = jnp.maximum(acc + b_ref[...], 0.0)           # bias + ReLU  (C_OUT, ltot)

            if l < convlayers - 1:
                # Zero the border ring (and dead lanes) so it acts as zero padding
                # for the next layer.  Last layer needs no mask: fcw has zero rows
                # at border / dead positions.
                act = (h * mask).astype(jnp.bfloat16)

        # Fully-connected layer.  fcw is pre-permuted so that for image b:
        #   full_b[c, c'*10+n] = sum_p h_b[c, p] * fcw[p, c'*10+n]
        # and the torch result keeps only the c' == c entries:
        #   logits[b, n] = fcb[n] + sum_c full_b[c, c*10+n]
        fcw = fcw_ref[...]                       # (SLOT, C_OUT*N_CLASSES) bf16
        dmask = dmask_ref[...]                   # (C_OUT, C_OUT*N_CLASSES) block-diag mask
        fold = fold_ref[...]                     # (C_OUT*N_CLASSES, N_CLASSES) class fold
        fcb = fcb_ref[...]                       # (1, N_CLASSES)
        h_bf = h.astype(jnp.bfloat16)
        for b in range(tile_b):
            h_b = h_bf[:, b * SLOT:(b + 1) * SLOT]                      # (C_OUT, SLOT)
            full_b = jnp.dot(h_b, fcw, preferred_element_type=jnp.float32)
            diag_b = jnp.dot(full_b * dmask, fold,
                             preferred_element_type=jnp.float32)        # (C_OUT, N_CLASSES)
            out_ref[0, b:b + 1, :] = jnp.sum(diag_b, axis=0, keepdims=True) + fcb

    return kernel


def net_forward(x_nchw, conv_params, fcw_k, fcb_k, *, tile_b=TILE_B):
    """x_nchw: (B, 1, 28, 28) float32 -> logits (B, 10) float32."""
    B = x_nchw.shape[0]
    convlayers = len(conv_params)
    G = -(-B // tile_b)                  # grid steps (batch tiles)
    Bpad = G * tile_b
    ltot = tile_b * SLOT

    # Tiny input prep: pad=1 ring, flatten the 30x30 frame, pad the per-image lane
    # slot to 1024, pack TILE_B images per grid row, cast to bf16 for the MXU.
    frames = jnp.pad(x_nchw.reshape(B, HS, WS), ((0, 0), (1, 1), (1, 1)))   # (B,30,30)
    frames = frames.reshape(B, P)
    frames = jnp.pad(frames, ((0, Bpad - B), (0, SLOT - P)))                # (Bpad,1024)
    xin = frames.reshape(G, 1, ltot).astype(jnp.bfloat16)

    # Interior-lane mask (1.0 on non-border, non-dead lanes), tiled over the batch tile.
    sp = jnp.arange(SLOT)
    rr, cc = sp // WP, sp % WP
    interior = (sp < P) & (rr >= 1) & (rr <= HS) & (cc >= 1) & (cc <= WS)
    mask = jnp.tile(interior.astype(jnp.float32), tile_b).reshape(1, ltot)

    # Constant epilogue matrices: block-diagonal channel select + class fold.
    q = jnp.arange(C_OUT * N_CLASSES)
    dmask = (jnp.arange(C_OUT)[:, None] == (q[None, :] // N_CLASSES)).astype(jnp.float32)
    fold = ((q[:, None] % N_CLASSES) == jnp.arange(N_CLASSES)[None, :]).astype(jnp.float32)

    args = [xin, mask]
    in_specs = [
        pl.BlockSpec((1, 1, ltot), lambda g: (g, 0, 0)),
        pl.BlockSpec((1, ltot), lambda g: (0, 0)),
    ]
    for wk, bk in conv_params:
        args += [wk, bk]
        in_specs += [
            pl.BlockSpec(wk.shape, lambda g: (0, 0)),
            pl.BlockSpec(bk.shape, lambda g: (0, 0)),
        ]
    args += [fcw_k, fcb_k, dmask, fold]
    in_specs += [
        pl.BlockSpec(fcw_k.shape, lambda g: (0, 0)),
        pl.BlockSpec(fcb_k.shape, lambda g: (0, 0)),
        pl.BlockSpec(dmask.shape, lambda g: (0, 0)),
        pl.BlockSpec(fold.shape, lambda g: (0, 0)),
    ]

    out = pl.pallas_call(
        make_fused_net_kernel(convlayers, tile_b),
        out_shape=jax.ShapeDtypeStruct((G, tile_b, N_CLASSES), jnp.float32),
        grid=(G,),
        in_specs=in_specs,
        out_specs=pl.BlockSpec((1, tile_b, N_CLASSES), lambda g: (g, 0, 0)),
        scratch_shapes=[pltpu.VMEM((9 * C_OUT, ltot), jnp.bfloat16)],
        compiler_params=pltpu.CompilerParams(
            dimension_semantics=("parallel",)),      # batch tiles across both TCs on v7x
    )(*args)
    return out.reshape(Bpad, N_CLASSES)[:B]


net_forward_jit = jax.jit(net_forward, static_argnames=("tile_b",))


# ----------------------------------------------------------------------------
# Parameters: PyTorch layouts + one-time conversion to kernel layouts.
# ----------------------------------------------------------------------------
def init_params(key, convlayers=CONVLAYERS):
    convs = []
    cin = 1
    for _ in range(convlayers):
        key, k1, k2 = jax.random.split(key, 3)
        bound = 1.0 / math.sqrt(cin * 9.0)
        w = jax.random.uniform(k1, (C_OUT, cin, 3, 3), jnp.float32, -bound, bound)
        b = jax.random.uniform(k2, (C_OUT,), jnp.float32, -bound, bound)
        convs.append((w, b))
        cin = C_OUT
    key, k1, k2 = jax.random.split(key, 3)
    bound = 1.0 / math.sqrt(C_OUT * HS * WS)
    fc_w = jax.random.uniform(k1, (N_CLASSES, C_OUT * HS * WS), jnp.float32, -bound, bound)
    fc_b = jax.random.uniform(k2, (N_CLASSES,), jnp.float32, -bound, bound)
    return convs, fc_w, fc_b


def pack_params(convs, fc_w, fc_b):
    """One-time conversion to kernel layouts (bf16 MXU operands, f32 biases)."""
    packed = []
    for w, b in convs:
        cout, cin = w.shape[0], w.shape[1]
        # [co, ci, ky, kx] -> [co, (ky*3+kx)*cin + ci], matching the im2col row order.
        wk = jnp.transpose(w, (0, 2, 3, 1)).reshape(cout, 9 * cin).astype(jnp.bfloat16)
        packed.append((wk, b.reshape(cout, 1).astype(jnp.float32)))
    # torch fc weight (10, 7840), feature index c*784 + y*28 + x  -->
    # (SLOT, C_OUT*N_CLASSES) indexed [(y+1)*30+(x+1), c*10+n]; zero rows on the
    # padded border ring and the dead lanes [900, 1024).
    fcw = fc_w.reshape(N_CLASSES, C_OUT, HS, WS)
    fcw = jnp.transpose(fcw, (2, 3, 1, 0)).reshape(HS, WS, C_OUT * N_CLASSES)
    frame = jnp.zeros((HP, WP, C_OUT * N_CLASSES), jnp.float32)
    frame = frame.at[1:HS + 1, 1:WS + 1, :].set(fcw)
    fcw_k = frame.reshape(P, C_OUT * N_CLASSES)
    fcw_k = jnp.pad(fcw_k, ((0, SLOT - P), (0, 0))).astype(jnp.bfloat16)
    return packed, fcw_k, fc_b.reshape(1, N_CLASSES).astype(jnp.float32)


def reference_forward(x, convs, fc_w, fc_b):
    """Pure-JAX f32 reference in the original PyTorch layouts (tolerance check)."""
    y = x
    for w, b in convs:
        y = lax.conv_general_dilated(
            y, w, window_strides=(1, 1), padding="SAME",
            dimension_numbers=("NCHW", "OIHW", "NCHW"))
        y = jnp.maximum(y + b.reshape(1, -1, 1, 1), 0.0)
    y = y.reshape(x.shape[0], -1)
    return y @ fc_w.T + fc_b


if __name__ == "__main__":
    key = jax.random.PRNGKey(0)
    key, kx = jax.random.split(key)
    # batch=8, 1 input channel, 28x28 spatial (required by fc = Linear(7840, 10))
    B = 8
    x = jax.random.normal(kx, (B, 1, 28, 28), jnp.float32)

    convs, fc_w, fc_b = init_params(key)
    packed_convs, fcw_k, fcb_k = pack_params(convs, fc_w, fc_b)

    out = net_forward_jit(x, packed_convs, fcw_k, fcb_k, tile_b=TILE_B)
    out = jax.block_until_ready(out)
    assert out.shape == (B, N_CLASSES) and out.dtype == jnp.float32

    ref = reference_forward(x, convs, fc_w, fc_b)
    err = float(jnp.max(jnp.abs(out - ref)))
    # bf16 MXU operands with f32 accumulation: expected error ~1e-3 on ~0.3-scale logits.
    assert err < 2e-2, ("mismatch vs pure-JAX reference", err)
    print("KERNEL_OK")
</pallas_src>

<mosaic_0001>
module attributes {stable_mosaic.version = 11 : i64} {
  func.func @kernel(%arg0: i32, %arg1: memref<1x1x4096xbf16, #tpu.memory_space<vmem>>, %arg2: memref<1x4096xf32, #tpu.memory_space<vmem>>, %arg3: memref<10x9xbf16, #tpu.memory_space<vmem>>, %arg4: memref<10x1xf32, #tpu.memory_space<vmem>>, %arg5: memref<10x90xbf16, #tpu.memory_space<vmem>>, %arg6: memref<10x1xf32, #tpu.memory_space<vmem>>, %arg7: memref<1024x100xbf16, #tpu.memory_space<vmem>>, %arg8: memref<1x10xf32, #tpu.memory_space<vmem>>, %arg9: memref<10x100xf32, #tpu.memory_space<vmem>>, %arg10: memref<100x10xf32, #tpu.memory_space<vmem>>, %arg11: memref<1x4x10xf32, #tpu.memory_space<vmem>>, %arg12: memref<90x4096xbf16, #tpu.memory_space<vmem>>) attributes {dimension_semantics = [#tpu.dimension_semantics<parallel>], iteration_bounds = array<i64: 2>, scalar_prefetch = 0 : i64, scratch_operands = 1 : i64, tpu.core_type = #tpu.core_type<tc>, window_params = [{transform_indices = @transform_0, window_bounds = array<i64: 1, 1, 4096>}, {pipeline_mode = #tpu.pipeline_mode<synchronous>, transform_indices = @transform_1, window_bounds = array<i64: 1, 4096>}, {pipeline_mode = #tpu.pipeline_mode<synchronous>, transform_indices = @transform_2, window_bounds = array<i64: 10, 9>}, {pipeline_mode = #tpu.pipeline_mode<synchronous>, transform_indices = @transform_3, window_bounds = array<i64: 10, 1>}, {pipeline_mode = #tpu.pipeline_mode<synchronous>, transform_indices = @transform_4, window_bounds = array<i64: 10, 90>}, {pipeline_mode = #tpu.pipeline_mode<synchronous>, transform_indices = @transform_5, window_bounds = array<i64: 10, 1>}, {pipeline_mode = #tpu.pipeline_mode<synchronous>, transform_indices = @transform_6, window_bounds = array<i64: 1024, 100>}, {pipeline_mode = #tpu.pipeline_mode<synchronous>, transform_indices = @transform_7, window_bounds = array<i64: 1, 10>}, {pipeline_mode = #tpu.pipeline_mode<synchronous>, transform_indices = @transform_8, window_bounds = array<i64: 10, 100>}, {pipeline_mode = #tpu.pipeline_mode<synchronous>, transform_indices = @transform_9, window_bounds = array<i64: 100, 10>}, {transform_indices = @transform_10, window_bounds = array<i64: 1, 4, 10>}]} {
    %c0 = arith.constant 0 : index
    %c0_0 = arith.constant 0 : index
    %0 = vector.load %arg2[%c0, %c0_0] : memref<1x4096xf32, #tpu.memory_space<vmem>>, vector<1x4096xf32>
    %c0_1 = arith.constant 0 : index
    %c0_2 = arith.constant 0 : index
    %c0_3 = arith.constant 0 : index
    %1 = vector.load %arg1[%c0_1, %c0_2, %c0_3] : memref<1x1x4096xbf16, #tpu.memory_space<vmem>>, vector<1x1x4096xbf16>
    %2 = vector.shape_cast %1 : vector<1x1x4096xbf16> to vector<1x4096xbf16>
    %3 = vector.extract_strided_slice %2 {offsets = [0, 0], sizes = [1, 4065], strides = [1, 1]} : vector<1x4096xbf16> to vector<1x4065xbf16>
    %c0_4 = arith.constant 0 : index
    %c31 = arith.constant 31 : index
    %4 = vector.load %arg12[%c0_4, %c31] : memref<90x4096xbf16, #tpu.memory_space<vmem>>, vector<1x4065xbf16>
    tpu.vector_store %arg12[%c0_4, %c31], %3 {strides = array<i32>} : memref<90x4096xbf16, #tpu.memory_space<vmem>>, vector<1x4065xbf16>,
    %5 = vector.extract_strided_slice %2 {offsets = [0, 4065], sizes = [1, 31], strides = [1, 1]} : vector<1x4096xbf16> to vector<1x31xbf16>
    %c0_5 = arith.constant 0 : index
    %c0_6 = arith.constant 0 : index
    %6 = vector.load %arg12[%c0_5, %c0_6] : memref<90x4096xbf16, #tpu.memory_space<vmem>>, vector<1x31xbf16>
    tpu.vector_store %arg12[%c0_5, %c0_6], %5 {strides = array<i32>} : memref<90x4096xbf16, #tpu.memory_space<vmem>>, vector<1x31xbf16>,
    %7 = vector.extract_strided_slice %2 {offsets = [0, 0], sizes = [1, 4066], strides = [1, 1]} : vector<1x4096xbf16> to vector<1x4066xbf16>
    %c1 = arith.constant 1 : index
    %c30 = arith.constant 30 : index
    %8 = vector.load %arg12[%c1, %c30] : memref<90x4096xbf16, #tpu.memory_space<vmem>>, vector<1x4066xbf16>
    tpu.vector_store %arg12[%c1, %c30], %7 {strides = array<i32>} : memref<90x4096xbf16, #tpu.memory_space<vmem>>, vector<1x4066xbf16>,
    %9 = vector.extract_strided_slice %2 {offsets = [0, 4066], sizes = [1, 30], strides = [1, 1]} : vector<1x4096xbf16> to vector<1x30xbf16>
    %c1_7 = arith.constant 1 : index
    %c0_8 = arith.constant 0 : index
    %10 = vector.load %arg12[%c1_7, %c0_8] : memref<90x4096xbf16, #tpu.memory_space<vmem>>, vector<1x30xbf16>
    tpu.vector_store %arg12[%c1_7, %c0_8], %9 {strides = array<i32>} : memref<90x4096xbf16, #tpu.memory_space<vmem>>, vector<1x30xbf16>,
    %11 = vector.extract_strided_slice %2 {offsets = [0, 0], sizes = [1, 4067], strides = [1, 1]} : vector<1x4096xbf16> to vector<1x4067xbf16>
    %c2 = arith.constant 2 : index
    %c29 = arith.constant 29 : index
    %12 = vector.load %arg12[%c2, %c29] : memref<90x4096xbf16, #tpu.memory_space<vmem>>, vector<1x4067xbf16>
    tpu.vector_store %arg12[%c2, %c29], %11 {strides = array<i32>} : memref<90x4096xbf16, #tpu.memory_space<vmem>>, vector<1x4067xbf16>,
    %13 = vector.extract_strided_slice %2 {offsets = [0, 4067], sizes = [1, 29], strides = [1, 1]} : vector<1x4096xbf16> to vector<1x29xbf16>
    %c2_9 = arith.constant 2 : index
    %c0_10 = arith.constant 0 : index
    %14 = vector.load %arg12[%c2_9, %c0_10] : memref<90x4096xbf16, #tpu.memory_space<vmem>>, vector<1x29xbf16>
    tpu.vector_store %arg12[%c2_9, %c0_10], %13 {strides = array<i32>} : memref<90x4096xbf16, #tpu.memory_space<vmem>>, vector<1x29xbf16>,
    %15 = vector.extract_strided_slice %2 {offsets = [0, 0], sizes = [1, 4095], strides = [1, 1]} : vector<1x4096xbf16> to vector<1x4095xbf16>
    %c3 = arith.constant 3 : index
    %c1_11 = arith.constant 1 : index
    %16 = vector.load %arg12[%c3, %c1_11] : memref<90x4096xbf16, #tpu.memory_space<vmem>>, vector<1x4095xbf16>
    tpu.vector_store %arg12[%c3, %c1_11], %15 {strides = array<i32>} : memref<90x4096xbf16, #tpu.memory_space<vmem>>, vector<1x4095xbf16>,
    %17 = vector.extract_strided_slice %2 {offsets = [0, 4095], sizes = [1, 1], strides = [1, 1]} : vector<1x4096xbf16> to vector<1x1xbf16>
    %c3_12 = arith.constant 3 : index
    %c0_13 = arith.constant 0 : index
    %18 = vector.load %arg12[%c3_12, %c0_13] : memref<90x4096xbf16, #tpu.memory_space<vmem>>, vector<1x1xbf16>
    tpu.vector_store %arg12[%c3_12, %c0_13], %17 {strides = array<i32>} : memref<90x4096xbf16, #tpu.memory_space<vmem>>, vector<1x1xbf16>,
    %c4 = arith.constant 4 : index
    %c0_14 = arith.constant 0 : index
    %19 = vector.load %arg12[%c4, %c0_14] : memref<90x4096xbf16, #tpu.memory_space<vmem>>, vector<1x4096xbf16>
    tpu.vector_store %arg12[%c4, %c0_14], %2 {strides = array<i32>} : memref<90x4096xbf16, #tpu.memory_space<vmem>>, vector<1x4096xbf16>,
    %20 = vector.extract_strided_slice %2 {offsets = [0, 1], sizes = [1, 4095], strides = [1, 1]} : vector<1x4096xbf16> to vector<1x4095xbf16>
    %c5 = arith.constant 5 : index
    %c0_15 = arith.constant 0 : index
    %21 = vector.load %arg12[%c5, %c0_15] : memref<90x4096xbf16, #tpu.memory_space<vmem>>, vector<1x4095xbf16>
    tpu.vector_store %arg12[%c5, %c0_15], %20 {strides = array<i32>} : memref<90x4096xbf16, #tpu.memory_space<vmem>>, vector<1x4095xbf16>,
    %22 = vector.extract_strided_slice %2 {offsets = [0, 0], sizes = [1, 1], strides = [1, 1]} : vector<1x4096xbf16> to vector<1x1xbf16>
    %c5_16 = arith.constant 5 : index
    %c4095 = arith.constant 4095 : index
    %23 = vector.load %arg12[%c5_16, %c4095] : memref<90x4096xbf16, #tpu.memory_space<vmem>>, vector<1x1xbf16>
    tpu.vector_store %arg12[%c5_16, %c4095], %22 {strides = array<i32>} : memref<90x4096xbf16, #tpu.memory_space<vmem>>, vector<1x1xbf16>,
    %24 = vector.extract_strided_slice %2 {offsets = [0, 29], sizes = [1, 4067], strides = [1, 1]} : vector<1x4096xbf16> to vector<1x4067xbf16>
    %c6 = arith.constant 6 : index
    %c0_17 = arith.constant 0 : index
    %25 = vector.load %arg12[%c6, %c0_17] : memref<90x4096xbf16, #tpu.memory_space<vmem>>, vector<1x4067xbf16>
    tpu.vector_store %arg12[%c6, %c0_17], %24 {strides = array<i32>} : memref<90x4096xbf16, #tpu.memory_space<vmem>>, vector<1x4067xbf16>,
    %26 = vector.extract_strided_slice %2 {offsets = [0, 0], sizes = [1, 29], strides = [1, 1]} : vector<1x4096xbf16> to vector<1x29xbf16>
    %c6_18 = arith.constant 6 : index
    %c4067 = arith.constant 4067 : index
    %27 = vector.load %arg12[%c6_18, %c4067] : memref<90x4096xbf16, #tpu.memory_space<vmem>>, vector<1x29xbf16>
    tpu.vector_store %arg12[%c6_18, %c4067], %26 {strides = array<i32>} : memref<90x4096xbf16, #tpu.memory_space<vmem>>, vector<1x29xbf16>,
    %28 = vector.extract_strided_slice %2 {offsets = [0, 30], sizes = [1, 4066], strides = [1, 1]} : vector<1x4096xbf16> to vector<1x4066xbf16>
    %c7 = arith.constant 7 : index
    %c0_19 = arith.constant 0 : index
    %29 = vector.load %arg12[%c7, %c0_19] : memref<90x4096xbf16, #tpu.memory_space<vmem>>, vector<1x4066xbf16>
    tpu.vector_store %arg12[%c7, %c0_19], %28 {strides = array<i32>} : memref<90x4096xbf16, #tpu.memory_space<vmem>>, vector<1x4066xbf16>,
    %30 = vector.extract_strided_slice %2 {offsets = [0, 0], sizes = [1, 30], strides = [1, 1]} : vector<1x4096xbf16> to vector<1x30xbf16>
    %c7_20 = arith.constant 7 : index
    %c4066 = arith.constant 4066 : index
    %31 = vector.load %arg12[%c7_20, %c4066] : memref<90x4096xbf16, #tpu.memory_space<vmem>>, vector<1x30xbf16>
    tpu.vector_store %arg12[%c7_20, %c4066], %30 {strides = array<i32>} : memref<90x4096xbf16, #tpu.memory_space<vmem>>, vector<1x30xbf16>,
    %32 = vector.extract_strided_slice %2 {offsets = [0, 31], sizes = [1, 4065], strides = [1, 1]} : vector<1x4096xbf16> to vector<1x4065xbf16>
    %c8 = arith.constant 8 : index
    %c0_21 = arith.constant 0 : index
    %33 = vector.load %arg12[%c8, %c0_21] : memref<90x4096xbf16, #tpu.memory_space<vmem>>, vector<1x4065xbf16>
    tpu.vector_store %arg12[%c8, %c0_21], %32 {strides = array<i32>} : memref<90x4096xbf16, #tpu.memory_space<vmem>>, vector<1x4065xbf16>,
    %34 = vector.extract_strided_slice %2 {offsets = [0, 0], sizes = [1, 31], strides = [1, 1]} : vector<1x4096xbf16> to vector<1x31xbf16>
    %c8_22 = arith.constant 8 : index
    %c4065 = arith.constant 4065 : index
    %35 = vector.load %arg12[%c8_22, %c4065] : memref<90x4096xbf16, #tpu.memory_space<vmem>>, vector<1x31xbf16>
    tpu.vector_store %arg12[%c8_22, %c4065], %34 {strides = array<i32>} : memref<90x4096xbf16, #tpu.memory_space<vmem>>, vector<1x31xbf16>,
    %c0_23 = arith.constant 0 : index
    %c0_24 = arith.constant 0 : index
    %36 = vector.load %arg3[%c0_23, %c0_24] : memref<10x9xbf16, #tpu.memory_space<vmem>>, vector<10x9xbf16>
    %c0_25 = arith.constant 0 : index
    %c0_26 = arith.constant 0 : index
    %37 = vector.load %arg12[%c0_25, %c0_26] : memref<90x4096xbf16, #tpu.memory_space<vmem>>, vector<9x4096xbf16>
    %cst = arith.constant dense<0.000000e+00> : vector<10x4096xf32>
    %38 = tpu.matmul %36, %37, %cst {dimension_numbers = #tpu.dot_dimension_numbers<[1], [0], [0], [1], [0, 0, 1, 1], [], []>} : vector<10x9xbf16>, vector<9x4096xbf16>, vector<10x4096xf32> -> vector<10x4096xf32>
    %c0_27 = arith.constant 0 : index
    %c0_28 = arith.constant 0 : index
    %39 = vector.load %arg4[%c0_27, %c0_28] : memref<10x1xf32, #tpu.memory_space<vmem>>, vector<10x1xf32>
    %40 = vector.broadcast %39 : vector<10x1xf32> to vector<10x4096xf32>
    %41 = arith.addf %38, %40 : vector<10x4096xf32>
    %cst_29 = arith.constant 0.000000e+00 : f32
    %42 = vector.broadcast %cst_29 : f32 to vector<10x4096xf32>
    %43 = arith.maximumf %41, %42 : vector<10x4096xf32>
    %44 = vector.broadcast %0 : vector<1x4096xf32> to vector<10x4096xf32>
    %45 = arith.mulf %43, %44 : vector<10x4096xf32>
    %46 = arith.truncf %45 : vector<10x4096xf32> to vector<10x4096xbf16>
    %47 = vector.extract_strided_slice %46 {offsets = [0, 0], sizes = [10, 4065], strides = [1, 1]} : vector<10x4096xbf16> to vector<10x4065xbf16>
    %c0_30 = arith.constant 0 : index
    %c31_31 = arith.constant 31 : index
    %48 = vector.load %arg12[%c0_30, %c31_31] : memref<90x4096xbf16, #tpu.memory_space<vmem>>, vector<10x4065xbf16>
    tpu.vector_store %arg12[%c0_30, %c31_31], %47 {strides = array<i32>} : memref<90x4096xbf16, #tpu.memory_space<vmem>>, vector<10x4065xbf16>,
    %49 = vector.extract_strided_slice %46 {offsets = [0, 4065], sizes = [10, 31], strides = [1, 1]} : vector<10x4096xbf16> to vector<10x31xbf16>
    %c0_32 = arith.constant 0 : index
    %c0_33 = arith.constant 0 : index
    %50 = vector.load %arg12[%c0_32, %c0_33] : memref<90x4096xbf16, #tpu.memory_space<vmem>>, vector<10x31xbf16>
    tpu.vector_store %arg12[%c0_32, %c0_33], %49 {strides = array<i32>} : memref<90x4096xbf16, #tpu.memory_space<vmem>>, vector<10x31xbf16>,
    %51 = vector.extract_strided_slice %46 {offsets = [0, 0], sizes = [10, 4066], strides = [1, 1]} : vector<10x4096xbf16> to vector<10x4066xbf16>
    %c10 = arith.constant 10 : index
    %c30_34 = arith.constant 30 : index
    %52 = vector.load %arg12[%c10, %c30_34] : memref<90x4096xbf16, #tpu.memory_space<vmem>>, vector<10x4066xbf16>
    tpu.vector_store %arg12[%c10, %c30_34], %51 {strides = array<i32>} : memref<90x4096xbf16, #tpu.memory_space<vmem>>, vector<10x4066xbf16>,
    %53 = vector.extract_strided_slice %46 {offsets = [0, 4066], sizes = [10, 30], strides = [1, 1]} : vector<10x4096xbf16> to vector<10x30xbf16>
    %c10_35 = arith.constant 10 : index
    %c0_36 = arith.constant 0 : index
    %54 = vector.load %arg12[%c10_35, %c0_36] : memref<90x4096xbf16, #tpu.memory_space<vmem>>, vector<10x30xbf16>
    tpu.vector_store %arg12[%c10_35, %c0_36], %53 {strides = array<i32>} : memref<90x4096xbf16, #tpu.memory_space<vmem>>, vector<10x30xbf16>,
    %55 = vector.extract_strided_slice %46 {offsets = [0, 0], sizes = [10, 4067], strides = [1, 1]} : vector<10x4096xbf16> to vector<10x4067xbf16>
    %c20 = arith.constant 20 : index
    %c29_37 = arith.constant 29 : index
    %56 = vector.load %arg12[%c20, %c29_37] : memref<90x4096xbf16, #tpu.memory_space<vmem>>, vector<10x4067xbf16>
    tpu.vector_store %arg12[%c20, %c29_37], %55 {strides = array<i32>} : memref<90x4096xbf16, #tpu.memory_space<vmem>>, vector<10x4067xbf16>,
    %57 = vector.extract_strided_slice %46 {offsets = [0, 4067], sizes = [10, 29], strides = [1, 1]} : vector<10x4096xbf16> to vector<10x29xbf16>
    %c20_38 = arith.constant 20 : index
    %c0_39 = arith.constant 0 : index
    %58 = vector.load %arg12[%c20_38, %c0_39] : memref<90x4096xbf16, #tpu.memory_space<vmem>>, vector<10x29xbf16>
    tpu.vector_store %arg12[%c20_38, %c0_39], %57 {strides = array<i32>} : memref<90x4096xbf16, #tpu.memory_space<vmem>>, vector<10x29xbf16>,
    %59 = vector.extract_strided_slice %46 {offsets = [0, 0], sizes = [10, 4095], strides = [1, 1]} : vector<10x4096xbf16> to vector<10x4095xbf16>
    %c30_40 = arith.constant 30 : index
    %c1_41 = arith.constant 1 : index
    %60 = vector.load %arg12[%c30_40, %c1_41] : memref<90x4096xbf16, #tpu.memory_space<vmem>>, vector<10x4095xbf16>
    tpu.vector_store %arg12[%c30_40, %c1_41], %59 {strides = array<i32>} : memref<90x4096xbf16, #tpu.memory_space<vmem>>, vector<10x4095xbf16>,
    %61 = vector.extract_strided_slice %46 {offsets = [0, 4095], sizes = [10, 1], strides = [1, 1]} : vector<10x4096xbf16> to vector<10x1xbf16>
    %c30_42 = arith.constant 30 : index
    %c0_43 = arith.constant 0 : index
    %62 = vector.load %arg12[%c30_42, %c0_43] : memref<90x4096xbf16, #tpu.memory_space<vmem>>, vector<10x1xbf16>
    tpu.vector_store %arg12[%c30_42, %c0_43], %61 {strides = array<i32>} : memref<90x4096xbf16, #tpu.memory_space<vmem>>, vector<10x1xbf16>,
    %c40 = arith.constant 40 : index
    %c0_44 = arith.constant 0 : index
    %63 = vector.load %arg12[%c40, %c0_44] : memref<90x4096xbf16, #tpu.memory_space<vmem>>, vector<10x4096xbf16>
    tpu.vector_store %arg12[%c40, %c0_44], %46 {strides = array<i32>} : memref<90x4096xbf16, #tpu.memory_space<vmem>>, vector<10x4096xbf16>,
    %64 = vector.extract_strided_slice %46 {offsets = [0, 1], sizes = [10, 4095], strides = [1, 1]} : vector<10x4096xbf16> to vector<10x4095xbf16>
    %c50 = arith.constant 50 : index
    %c0_45 = arith.constant 0 : index
    %65 = vector.load %arg12[%c50, %c0_45] : memref<90x4096xbf16, #tpu.memory_space<vmem>>, vector<10x4095xbf16>
    tpu.vector_store %arg12[%c50, %c0_45], %64 {strides = array<i32>} : memref<90x4096xbf16, #tpu.memory_space<vmem>>, vector<10x4095xbf16>,
    %66 = vector.extract_strided_slice %46 {offsets = [0, 0], sizes = [10, 1], strides = [1, 1]} : vector<10x4096xbf16> to vector<10x1xbf16>
    %c50_46 = arith.constant 50 : index
    %c4095_47 = arith.constant 4095 : index
    %67 = vector.load %arg12[%c50_46, %c4095_47] : memref<90x4096xbf16, #tpu.memory_space<vmem>>, vector<10x1xbf16>
    tpu.vector_store %arg12[%c50_46, %c4095_47], %66 {strides = array<i32>} : memref<90x4096xbf16, #tpu.memory_space<vmem>>, vector<10x1xbf16>,
    %68 = vector.extract_strided_slice %46 {offsets = [0, 29], sizes = [10, 4067], strides = [1, 1]} : vector<10x4096xbf16> to vector<10x4067xbf16>
    %c60 = arith.constant 60 : index
    %c0_48 = arith.constant 0 : index
    %69 = vector.load %arg12[%c60, %c0_48] : memref<90x4096xbf16, #tpu.memory_space<vmem>>, vector<10x4067xbf16>
    tpu.vector_store %arg12[%c60, %c0_48], %68 {strides = array<i32>} : memref<90x4096xbf16, #tpu.memory_space<vmem>>, vector<10x4067xbf16>,
    %70 = vector.extract_strided_slice %46 {offsets = [0, 0], sizes = [10, 29], strides = [1, 1]} : vector<10x4096xbf16> to vector<10x29xbf16>
    %c60_49 = arith.constant 60 : index
    %c4067_50 = arith.constant 4067 : index
    %71 = vector.load %arg12[%c60_49, %c4067_50] : memref<90x4096xbf16, #tpu.memory_space<vmem>>, vector<10x29xbf16>
    tpu.vector_store %arg12[%c60_49, %c4067_50], %70 {strides = array<i32>} : memref<90x4096xbf16, #tpu.memory_space<vmem>>, vector<10x29xbf16>,
    %72 = vector.extract_strided_slice %46 {offsets = [0, 30], sizes = [10, 4066], strides = [1, 1]} : vector<10x4096xbf16> to vector<10x4066xbf16>
    %c70 = arith.constant 70 : index
    %c0_51 = arith.constant 0 : index
    %73 = vector.load %arg12[%c70, %c0_51] : memref<90x4096xbf16, #tpu.memory_space<vmem>>, vector<10x4066xbf16>
    tpu.vector_store %arg12[%c70, %c0_51], %72 {strides = array<i32>} : memref<90x4096xbf16, #tpu.memory_space<vmem>>, vector<10x4066xbf16>,
    %74 = vector.extract_strided_slice %46 {offsets = [0, 0], sizes = [10, 30], strides = [1, 1]} : vector<10x4096xbf16> to vector<10x30xbf16>
    %c70_52 = arith.constant 70 : index
    %c4066_53 = arith.constant 4066 : index
    %75 = vector.load %arg12[%c70_52, %c4066_53] : memref<90x4096xbf16, #tpu.memory_space<vmem>>, vector<10x30xbf16>
    tpu.vector_store %arg12[%c70_52, %c4066_53], %74 {strides = array<i32>} : memref<90x4096xbf16, #tpu.memory_space<vmem>>, vector<10x30xbf16>,
    %76 = vector.extract_strided_slice %46 {offsets = [0, 31], sizes = [10, 4065], strides = [1, 1]} : vector<10x4096xbf16> to vector<10x4065xbf16>
    %c80 = arith.constant 80 : index
    %c0_54 = arith.constant 0 : index
    %77 = vector.load %arg12[%c80, %c0_54] : memref<90x4096xbf16, #tpu.memory_space<vmem>>, vector<10x4065xbf16>
    tpu.vector_store %arg12[%c80, %c0_54], %76 {strides = array<i32>} : memref<90x4096xbf16, #tpu.memory_space<vmem>>, vector<10x4065xbf16>,
    %78 = vector.extract_strided_slice %46 {offsets = [0, 0], sizes = [10, 31], strides = [1, 1]} : vector<10x4096xbf16> to vector<10x31xbf16>
    %c80_55 = arith.constant 80 : index
    %c4065_56 = arith.constant 4065 : index
    %79 = vector.load %arg12[%c80_55, %c4065_56] : memref<90x4096xbf16, #tpu.memory_space<vmem>>, vector<10x31xbf16>
    tpu.vector_store %arg12[%c80_55, %c4065_56], %78 {strides = array<i32>} : memref<90x4096xbf16, #tpu.memory_space<vmem>>, vector<10x31xbf16>,
    %c0_57 = arith.constant 0 : index
    %c0_58 = arith.constant 0 : index
    %80 = vector.load %arg5[%c0_57, %c0_58] : memref<10x90xbf16, #tpu.memory_space<vmem>>, vector<10x90xbf16>
    %c0_59 = arith.constant 0 : index
    %c0_60 = arith.constant 0 : index
    %81 = vector.load %arg12[%c0_59, %c0_60] : memref<90x4096xbf16, #tpu.memory_space<vmem>>, vector<90x4096xbf16>
    %cst_61 = arith.constant dense<0.000000e+00> : vector<10x4096xf32>
    %82 = tpu.matmul %80, %81, %cst_61 {dimension_numbers = #tpu.dot_dimension_numbers<[1], [0], [0], [1], [0, 0, 1, 1], [], []>} : vector<10x90xbf16>, vector<90x4096xbf16>, vector<10x4096xf32> -> vector<10x4096xf32>
    %c0_62 = arith.constant 0 : index
    %c0_63 = arith.constant 0 : index
    %83 = vector.load %arg6[%c0_62, %c0_63] : memref<10x1xf32, #tpu.memory_space<vmem>>, vector<10x1xf32>
    %84 = vector.broadcast %83 : vector<10x1xf32> to vector<10x4096xf32>
    %85 = arith.addf %82, %84 : vector<10x4096xf32>
    %cst_64 = arith.constant 0.000000e+00 : f32
    %86 = vector.broadcast %cst_64 : f32 to vector<10x4096xf32>
    %87 = arith.maximumf %85, %86 : vector<10x4096xf32>
    %c0_65 = arith.constant 0 : index
    %c0_66 = arith.constant 0 : index
    %88 = vector.load %arg7[%c0_65, %c0_66] : memref<1024x100xbf16, #tpu.memory_space<vmem>>, vector<1024x100xbf16>
    %c0_67 = arith.constant 0 : index
    %c0_68 = arith.constant 0 : index
    %89 = vector.load %arg9[%c0_67, %c0_68] : memref<10x100xf32, #tpu.memory_space<vmem>>, vector<10x100xf32>
    %c0_69 = arith.constant 0 : index
    %c0_70 = arith.constant 0 : index
    %90 = vector.load %arg10[%c0_69, %c0_70] : memref<100x10xf32, #tpu.memory_space<vmem>>, vector<100x10xf32>
    %c0_71 = arith.constant 0 : index
    %c0_72 = arith.constant 0 : index
    %91 = vector.load %arg8[%c0_71, %c0_72] : memref<1x10xf32, #tpu.memory_space<vmem>>, vector<1x10xf32>
    %92 = arith.truncf %87 : vector<10x4096xf32> to vector<10x4096xbf16>
    %93 = vector.extract_strided_slice %92 {offsets = [0, 0], sizes = [10, 1024], strides = [1, 1]} : vector<10x4096xbf16> to vector<10x1024xbf16>
    %cst_73 = arith.constant dense<0.000000e+00> : vector<10x100xf32>
    %94 = tpu.matmul %93, %88, %cst_73 {dimension_numbers = #tpu.dot_dimension_numbers<[1], [0], [0], [1], [0, 0, 1, 1], [], []>} : vector<10x1024xbf16>, vector<1024x100xbf16>, vector<10x100xf32> -> vector<10x100xf32>
    %95 = arith.mulf %94, %89 : vector<10x100xf32>
    %cst_74 = arith.constant dense<0.000000e+00> : vector<10x10xf32>
    %96 = tpu.matmul %95, %90, %cst_74 {dimension_numbers = #tpu.dot_dimension_numbers<[1], [0], [0], [1], [0, 0, 1, 1], [], []>} : vector<10x100xf32>, vector<100x10xf32>, vector<10x10xf32> -> vector<10x10xf32>
    %cst_75 = arith.constant dense<0.000000e+00> : vector<10xf32>
    %97 = vector.multi_reduction <add>, %96, %cst_75 [0] : vector<10x10xf32> to vector<10xf32>
    %98 = vector.shape_cast %97 : vector<10xf32> to vector<1x10xf32>
    %99 = arith.addf %98, %91 : vector<1x10xf32>
    %c0_76 = arith.constant 0 : index
    %c0_77 = arith.constant 0 : index
    %c0_78 = arith.constant 0 : index
    %100 = vector.load %arg11[%c0_76, %c0_77, %c0_78] : memref<1x4x10xf32, #tpu.memory_space<vmem>>, vector<1x1x10xf32>
    %101 = vector.shape_cast %100 : vector<1x1x10xf32> to vector<1x10xf32>
    %102 = vector.shape_cast %99 : vector<1x10xf32> to vector<1x1x10xf32>
    tpu.vector_store %arg11[%c0_76, %c0_77, %c0_78], %102 {strides = array<i32>} : memref<1x4x10xf32, #tpu.memory_space<vmem>>, vector<1x1x10xf32>,
    %103 = vector.extract_strided_slice %92 {offsets = [0, 1024], sizes = [10, 1024], strides = [1, 1]} : vector<10x4096xbf16> to vector<10x1024xbf16>
    %cst_79 = arith.constant dense<0.000000e+00> : vector<10x100xf32>
    %104 = tpu.matmul %103, %88, %cst_79 {dimension_numbers = #tpu.dot_dimension_numbers<[1], [0], [0], [1], [0, 0, 1, 1], [], []>} : vector<10x1024xbf16>, vector<1024x100xbf16>, vector<10x100xf32> -> vector<10x100xf32>
    %105 = arith.mulf %104, %89 : vector<10x100xf32>
    %cst_80 = arith.constant dense<0.000000e+00> : vector<10x10xf32>
    %106 = tpu.matmul %105, %90, %cst_80 {dimension_numbers = #tpu.dot_dimension_numbers<[1], [0], [0], [1], [0, 0, 1, 1], [], []>} : vector<10x100xf32>, vector<100x10xf32>, vector<10x10xf32> -> vector<10x10xf32>
    %cst_81 = arith.constant dense<0.000000e+00> : vector<10xf32>
    %107 = vector.multi_reduction <add>, %106, %cst_81 [0] : vector<10x10xf32> to vector<10xf32>
    %108 = vector.shape_cast %107 : vector<10xf32> to vector<1x10xf32>
    %109 = arith.addf %108, %91 : vector<1x10xf32>
    %c0_82 = arith.constant 0 : index
    %c1_83 = arith.constant 1 : index
    %c0_84 = arith.constant 0 : index
    %110 = vector.load %arg11[%c0_82, %c1_83, %c0_84] : memref<1x4x10xf32, #tpu.memory_space<vmem>>, vector<1x1x10xf32>
    %111 = vector.shape_cast %110 : vector<1x1x10xf32> to vector<1x10xf32>
    %112 = vector.shape_cast %109 : vector<1x10xf32> to vector<1x1x10xf32>
    tpu.vector_store %arg11[%c0_82, %c1_83, %c0_84], %112 {strides = array<i32>} : memref<1x4x10xf32, #tpu.memory_space<vmem>>, vector<1x1x10xf32>,
    %113 = vector.extract_strided_slice %92 {offsets = [0, 2048], sizes = [10, 1024], strides = [1, 1]} : vector<10x4096xbf16> to vector<10x1024xbf16>
    %cst_85 = arith.constant dense<0.000000e+00> : vector<10x100xf32>
    %114 = tpu.matmul %113, %88, %cst_85 {dimension_numbers = #tpu.dot_dimension_numbers<[1], [0], [0], [1], [0, 0, 1, 1], [], []>} : vector<10x1024xbf16>, vector<1024x100xbf16>, vector<10x100xf32> -> vector<10x100xf32>
    %115 = arith.mulf %114, %89 : vector<10x100xf32>
    %cst_86 = arith.constant dense<0.000000e+00> : vector<10x10xf32>
    %116 = tpu.matmul %115, %90, %cst_86 {dimension_numbers = #tpu.dot_dimension_numbers<[1], [0], [0], [1], [0, 0, 1, 1], [], []>} : vector<10x100xf32>, vector<100x10xf32>, vector<10x10xf32> -> vector<10x10xf32>
    %cst_87 = arith.constant dense<0.000000e+00> : vector<10xf32>
    %117 = vector.multi_reduction <add>, %116, %cst_87 [0] : vector<10x10xf32> to vector<10xf32>
    %118 = vector.shape_cast %117 : vector<10xf32> to vector<1x10xf32>
    %119 = arith.addf %118, %91 : vector<1x10xf32>
    %c0_88 = arith.constant 0 : index
    %c2_89 = arith.constant 2 : index
    %c0_90 = arith.constant 0 : index
    %120 = vector.load %arg11[%c0_88, %c2_89, %c0_90] : memref<1x4x10xf32, #tpu.memory_space<vmem>>, vector<1x1x10xf32>
    %121 = vector.shape_cast %120 : vector<1x1x10xf32> to vector<1x10xf32>
    %122 = vector.shape_cast %119 : vector<1x10xf32> to vector<1x1x10xf32>
    tpu.vector_store %arg11[%c0_88, %c2_89, %c0_90], %122 {strides = array<i32>} : memref<1x4x10xf32, #tpu.memory_space<vmem>>, vector<1x1x10xf32>,
    %123 = vector.extract_strided_slice %92 {offsets = [0, 3072], sizes = [10, 1024], strides = [1, 1]} : vector<10x4096xbf16> to vector<10x1024xbf16>
    %cst_91 = arith.constant dense<0.000000e+00> : vector<10x100xf32>
    %124 = tpu.matmul %123, %88, %cst_91 {dimension_numbers = #tpu.dot_dimension_numbers<[1], [0], [0], [1], [0, 0, 1, 1], [], []>} : vector<10x1024xbf16>, vector<1024x100xbf16>, vector<10x100xf32> -> vector<10x100xf32>
    %125 = arith.mulf %124, %89 : vector<10x100xf32>
    %cst_92 = arith.constant dense<0.000000e+00> : vector<10x10xf32>
    %126 = tpu.matmul %125, %90, %cst_92 {dimension_numbers = #tpu.dot_dimension_numbers<[1], [0], [0], [1], [0, 0, 1, 1], [], []>} : vector<10x100xf32>, vector<100x10xf32>, vector<10x10xf32> -> vector<10x10xf32>
    %cst_93 = arith.constant dense<0.000000e+00> : vector<10xf32>
    %127 = vector.multi_reduction <add>, %126, %cst_93 [0] : vector<10x10xf32> to vector<10xf32>
    %128 = vector.shape_cast %127 : vector<10xf32> to vector<1x10xf32>
    %129 = arith.addf %128, %91 : vector<1x10xf32>
    %c0_94 = arith.constant 0 : index
    %c3_95 = arith.constant 3 : index
    %c0_96 = arith.constant 0 : index
    %130 = vector.load %arg11[%c0_94, %c3_95, %c0_96] : memref<1x4x10xf32, #tpu.memory_space<vmem>>, vector<1x1x10xf32>
    %131 = vector.shape_cast %130 : vector<1x1x10xf32> to vector<1x10xf32>
    %132 = vector.shape_cast %129 : vector<1x10xf32> to vector<1x1x10xf32>
    tpu.vector_store %arg11[%c0_94, %c3_95, %c0_96], %132 {strides = array<i32>} : memref<1x4x10xf32, #tpu.memory_space<vmem>>, vector<1x1x10xf32>,
    return
  }
  func.func @transform_0(%arg0: i32) -> (i32, i32, i32) {
    %c0_i32 = arith.constant 0 : i32
    %c0_i32_0 = arith.constant 0 : i32
    %c0_i32_1 = arith.constant 0 : i32
    return %arg0, %c0_i32, %c0_i32_0 : i32, i32, i32
  }
  func.func @transform_1(%arg0: i32) -> (i32, i32) {
    %c0_i32 = arith.constant 0 : i32
    %c0_i32_0 = arith.constant 0 : i32
    %c0_i32_1 = arith.constant 0 : i32
    return %c0_i32, %c0_i32_0 : i32, i32
  }
  func.func @transform_2(%arg0: i32) -> (i32, i32) {
    %c0_i32 = arith.constant 0 : i32
    %c0_i32_0 = arith.constant 0 : i32
    %c0_i32_1 = arith.constant 0 : i32
    return %c0_i32, %c0_i32_0 : i32, i32
  }
  func.func @transform_3(%arg0: i32) -> (i32, i32) {
    %c0_i32 = arith.constant 0 : i32
    %c0_i32_0 = arith.constant 0 : i32
    %c0_i32_1 = arith.constant 0 : i32
    return %c0_i32, %c0_i32_0 : i32, i32
  }
  func.func @transform_4(%arg0: i32) -> (i32, i32) {
    %c0_i32 = arith.constant 0 : i32
    %c0_i32_0 = arith.constant 0 : i32
    %c0_i32_1 = arith.constant 0 : i32
    return %c0_i32, %c0_i32_0 : i32, i32
  }
  func.func @transform_5(%arg0: i32) -> (i32, i32) {
    %c0_i32 = arith.constant 0 : i32
    %c0_i32_0 = arith.constant 0 : i32
    %c0_i32_1 = arith.constant 0 : i32
    return %c0_i32, %c0_i32_0 : i32, i32
  }
  func.func @transform_6(%arg0: i32) -> (i32, i32) {
    %c0_i32 = arith.constant 0 : i32
    %c0_i32_0 = arith.constant 0 : i32
    %c0_i32_1 = arith.constant 0 : i32
    return %c0_i32, %c0_i32_0 : i32, i32
  }
  func.func @transform_7(%arg0: i32) -> (i32, i32) {
    %c0_i32 = arith.constant 0 : i32
    %c0_i32_0 = arith.constant 0 : i32
    %c0_i32_1 = arith.constant 0 : i32
    return %c0_i32, %c0_i32_0 : i32, i32
  }
  func.func @transform_8(%arg0: i32) -> (i32, i32) {
    %c0_i32 = arith.constant 0 : i32
    %c0_i32_0 = arith.constant 0 : i32
    %c0_i32_1 = arith.constant 0 : i32
    return %c0_i32, %c0_i32_0 : i32, i32
  }
  func.func @transform_9(%arg0: i32) -> (i32, i32) {
    %c0_i32 = arith.constant 0 : i32
    %c0_i32_0 = arith.constant 0 : i32
    %c0_i32_1 = arith.constant 0 : i32
    return %c0_i32, %c0_i32_0 : i32, i32
  }
  func.func @transform_10(%arg0: i32) -> (i32, i32, i32) {
    %c0_i32 = arith.constant 0 : i32
    %c0_i32_0 = arith.constant 0 : i32
    %c0_i32_1 = arith.constant 0 : i32
    return %arg0, %c0_i32, %c0_i32_0 : i32, i32, i32
  }
}

</mosaic_0001>

<llo_original>
// kernel: net_forward.1
$region0: #{net_forward.1}
  #allocation0 [shape = 'u32[]', space=smem, size = 0x4, offset = 0x4, fixed_abs, tag = 'smem constant byte address 0x4 - core index']
  #allocation1 [shape = 'u32[72,128]{1,0:T(1,128)}', space=vmem, size = 0x9000, scoped, tag = 'internal scratch']
  #allocation2 [shape = 'bf16[90,4096]{1,0:T(8,128)(2,1)}', space=vmem, size = 0xc0000, scoped, tag = 'scratch operand']
  %s0 = inlined_call_operand.vmem [shape: bf16[2,1,4096], index: 0, kind: input, shape index: {}]
  %s1 = inlined_call_operand.vmem [shape: f32[1,4096], index: 1, kind: input, shape index: {}]
  %s2 = inlined_call_operand.vmem [shape: bf16[10,9], index: 2, kind: input, shape index: {}]
  %s3 = inlined_call_operand.vmem [shape: f32[10,1], index: 3, kind: input, shape index: {}]
  %s4 = inlined_call_operand.vmem [shape: bf16[10,90], index: 4, kind: input, shape index: {}]
  %s5 = inlined_call_operand.vmem [shape: f32[10,1], index: 5, kind: input, shape index: {}]
  %s6 = inlined_call_operand.vmem [shape: bf16[1024,100], index: 6, kind: input, shape index: {}]
  %s7 = inlined_call_operand.vmem [shape: f32[1,10], index: 7, kind: input, shape index: {}]
  %s8 = inlined_call_operand.vmem [shape: f32[10,100], index: 8, kind: input, shape index: {}]
  %s9 = inlined_call_operand.vmem [shape: f32[100,10], index: 9, kind: input, shape index: {}]
  %s10 = inlined_call_operand.hbm [shape: f32[2,4,10], index: 10, kind: output, shape index: {}]
  %s11 = sld [smem:[#allocation0]]
  $region73: #{net_forward.1} parent=0
    _
  %s13 = ssub.s32 1, %s11
  %s14 = scalar_select 0, %s13, %s11
  $region1: #{net_forward.1} parent=0
    #allocation3 [shape = 'u8[4096]{0}', space=vmem, size = 0x1000, scoped, tag = 'output window, operand 0']
    #allocation4 [shape = 's32[2]{0}', space=sflag, size = 0x8, scoped, tag = 'scoped memory for net_forward.1']
    %15 = vsyncpa [#allocation4], 0
    %s16 = scalar_lea.sflag [#allocation4], 1
    %17 = vsyncpa %s16, 0
    loop: start=0, step=1, limit=4
    $region2: #{net_forward.1} parent=1 // loop_pre_header
      _
    $region3: #{net_forward.1} parent=1 // loop_header
      %s19 = sphi 0, %s23
      %p20 = scmp.ge.s32.totalorder %s19, 4
      %s29 = sphi 0, %s31
      %s32 = sphi 0, %s29
      %s33 = sphi 0, %s32
      %s49 = sphi 0, %s33
      %s53 = sphi 0, %s53
      %s55 = sphi 0, %s53
      %s56 = sphi 0, %s55
      %s70 = sphi 0, %s56
      %s74 = sphi 0, %s74
      %s76 = sphi 0, %s74
      %s77 = sphi 0, %s76
      %s91 = sphi 0, %s77
      %s95 = sphi 0, %s95
      %s97 = sphi 0, %s95
      %s98 = sphi 0, %s97
      %s112 = sphi 0, %s98
      %s116 = sphi 0, %s116
      %s118 = sphi 0, %s116
      %s119 = sphi 0, %s118
      %s133 = sphi 0, %s119
      %s137 = sphi 0, %s137
      %s139 = sphi 0, %s137
      %s140 = sphi 0, %s139
      %s154 = sphi 0, %s140
      %s158 = sphi 0, %s158
      %s160 = sphi 0, %s158
      %s161 = sphi 0, %s160
      %s175 = sphi 0, %s161
      %s179 = sphi 0, %s179
      %s181 = sphi 0, %s179
      %s182 = sphi 0, %s181
      %s196 = sphi 0, %s182
      %s200 = sphi 0, %s200
      %s202 = sphi 0, %s200
      %s203 = sphi 0, %s202
      %s217 = sphi 0, %s203
      %s221 = sphi 0, %s221
      %s223 = sphi 0, %s221
      %s224 = sphi 0, %s223
      %s238 = sphi 0, %s224
      %s244 = sphi 0, %s246
      %s247 = sphi 0, %s244
      %s248 = sphi 0, %s247
      %s264 = sphi 0, %s248
    $region4: #{net_forward.1} parent=1 // loop_header_branch
      %22 = sbr.rel (%p20) target = $region8
    $region5: #{net_forward.1} parent=1 // loop_body
      %s24 = ssub.s32 %s19, 1
      %s25 = ssub.s32 %s19, 2
      %s26 = sadd.s32 %s19, 1
      %s27 = ssub.s32 %s19, %s26
      %p28 = scmp.eq.s32.totalorder %s27, 0
      %s30 = sadd.s32 %s29, 1
      %s31 = scalar_select %p28, %s29, %s30
      %p34 = pneg %p28
      %p35 = scmp.eq.s32.totalorder %s19, 1
      %p36 = por %p34, %p35
      %p37 = scmp.ne.s32.totalorder %s29, %s32
      %p38 = scmp.eq.s32.totalorder %s19, 0
      %p39 = por %p37, %p38
      %p40 = scmp.ne.s32.totalorder %s29, %s32
      %p41 = scmp.eq.s32.totalorder %s24, 1
      %p42 = por %p40, %p41
      %p43 = scmp.ne.s32.totalorder %s32, %s33
      %p44 = scmp.eq.s32.totalorder %s24, 0
      %p45 = por %p43, %p44
      %p46 = scmp.ne.s32.totalorder %s32, %s33
      %p47 = scmp.eq.s32.totalorder %s25, 1
      %p48 = por %p46, %p47
      %p50 = scmp.ne.s32.totalorder %s33, %s49
      %p51 = scmp.eq.s32.totalorder %s25, 0
      %p52 = por %p50, %p51
      %s54 = sadd.s32 %s53, 1
      %p57 = scmp.eq.s32.totalorder %s19, 1
      %p58 = scmp.ne.s32.totalorder %s53, %s55
      %p59 = scmp.eq.s32.totalorder %s19, 0
      %p60 = por %p58, %p59
      %p61 = scmp.ne.s32.totalorder %s53, %s55
      %p62 = scmp.eq.s32.totalorder %s24, 1
      %p63 = por %p61, %p62
      %p64 = scmp.ne.s32.totalorder %s55, %s56
      %p65 = scmp.eq.s32.totalorder %s24, 0
      %p66 = por %p64, %p65
      %p67 = scmp.ne.s32.totalorder %s55, %s56
      %p68 = scmp.eq.s32.totalorder %s25, 1
      %p69 = por %p67, %p68
      %p71 = scmp.ne.s32.totalorder %s56, %s70
      %p72 = scmp.eq.s32.totalorder %s25, 0
      %p73 = por %p71, %p72
      %s75 = sadd.s32 %s74, 1
      %p78 = scmp.eq.s32.totalorder %s19, 1
      %p79 = scmp.ne.s32.totalorder %s74, %s76
      %p80 = scmp.eq.s32.totalorder %s19, 0
      %p81 = por %p79, %p80
      %p82 = scmp.ne.s32.totalorder %s74, %s76
      %p83 = scmp.eq.s32.totalorder %s24, 1
      %p84 = por %p82, %p83
      %p85 = scmp.ne.s32.totalorder %s76, %s77
      %p86 = scmp.eq.s32.totalorder %s24, 0
      %p87 = por %p85, %p86
      %p88 = scmp.ne.s32.totalorder %s76, %s77
      %p89 = scmp.eq.s32.totalorder %s25, 1
      %p90 = por %p88, %p89
      %p92 = scmp.ne.s32.totalorder %s77, %s91
      %p93 = scmp.eq.s32.totalorder %s25, 0
      %p94 = por %p92, %p93
      %s96 = sadd.s32 %s95, 1
      %p99 = scmp.eq.s32.totalorder %s19, 1
      %p100 = scmp.ne.s32.totalorder %s95, %s97
      %p101 = scmp.eq.s32.totalorder %s19, 0
      %p102 = por %p100, %p101
      %p103 = scmp.ne.s32.totalorder %s95, %s97
      %p104 = scmp.eq.s32.totalorder %s24, 1
      %p105 = por %p103, %p104
      %p106 = scmp.ne.s32.totalorder %s97, %s98
      %p107 = scmp.eq.s32.totalorder %s24, 0
      %p108 = por %p106, %p107
      %p109 = scmp.ne.s32.totalorder %s97, %s98
      %p110 = scmp.eq.s32.totalorder %s25, 1
      %p111 = por %p109, %p110
      %p113 = scmp.ne.s32.totalorder %s98, %s112
      %p114 = scmp.eq.s32.totalorder %s25, 0
      %p115 = por %p113, %p114
      %s117 = sadd.s32 %s116, 1
      %p120 = scmp.eq.s32.totalorder %s19, 1
      %p121 = scmp.ne.s32.totalorder %s116, %s118
      %p122 = scmp.eq.s32.totalorder %s19, 0
      %p123 = por %p121, %p122
      %p124 = scmp.ne.s32.totalorder %s116, %s118
      %p125 = scmp.eq.s32.totalorder %s24, 1
      %p126 = por %p124, %p125
      %p127 = scmp.ne.s32.totalorder %s118, %s119
      %p128 = scmp.eq.s32.totalorder %s24, 0
      %p129 = por %p127, %p128
      %p130 = scmp.ne.s32.totalorder %s118, %s119
      %p131 = scmp.eq.s32.totalorder %s25, 1
      %p132 = por %p130, %p131
      %p134 = scmp.ne.s32.totalorder %s119, %s133
      %p135 = scmp.eq.s32.totalorder %s25, 0
      %p136 = por %p134, %p135
      %s138 = sadd.s32 %s137, 1
      %p141 = scmp.eq.s32.totalorder %s19, 1
      %p142 = scmp.ne.s32.totalorder %s137, %s139
      %p143 = scmp.eq.s32.totalorder %s19, 0
      %p144 = por %p142, %p143
      %p145 = scmp.ne.s32.totalorder %s137, %s139
      %p146 = scmp.eq.s32.totalorder %s24, 1
      %p147 = por %p145, %p146
      %p148 = scmp.ne.s32.totalorder %s139, %s140
      %p149 = scmp.eq.s32.totalorder %s24, 0
      %p150 = por %p148, %p149
      %p151 = scmp.ne.s32.totalorder %s139, %s140
      %p152 = scmp.eq.s32.totalorder %s25, 1
      %p153 = por %p151, %p152
      %p155 = scmp.ne.s32.totalorder %s140, %s154
      %p156 = scmp.eq.s32.totalorder %s25, 0
      %p157 = por %p155, %p156
      %s159 = sadd.s32 %s158, 1
      %p162 = scmp.eq.s32.totalorder %s19, 1
      %p163 = scmp.ne.s32.totalorder %s158, %s160
      %p164 = scmp.eq.s32.totalorder %s19, 0
      %p165 = por %p163, %p164
      %p166 = scmp.ne.s32.totalorder %s158, %s160
      %p167 = scmp.eq.s32.totalorder %s24, 1
      %p168 = por %p166, %p167
      %p169 = scmp.ne.s32.totalorder %s160, %s161
      %p170 = scmp.eq.s32.totalorder %s24, 0
      %p171 = por %p169, %p170
      %p172 = scmp.ne.s32.totalorder %s160, %s161
      %p173 = scmp.eq.s32.totalorder %s25, 1
      %p174 = por %p172, %p173
      %p176 = scmp.ne.s32.totalorder %s161, %s175
      %p177 = scmp.eq.s32.totalorder %s25, 0
      %p178 = por %p176, %p177
      %s180 = sadd.s32 %s179, 1
      %p183 = scmp.eq.s32.totalorder %s19, 1
      %p184 = scmp.ne.s32.totalorder %s179, %s181
      %p185 = scmp.eq.s32.totalorder %s19, 0
      %p186 = por %p184, %p185
      %p187 = scmp.ne.s32.totalorder %s179, %s181
      %p188 = scmp.eq.s32.totalorder %s24, 1
      %p189 = por %p187, %p188
      %p190 = scmp.ne.s32.totalorder %s181, %s182
      %p191 = scmp.eq.s32.totalorder %s24, 0
      %p192 = por %p190, %p191
      %p193 = scmp.ne.s32.totalorder %s181, %s182
      %p194 = scmp.eq.s32.totalorder %s25, 1
      %p195 = por %p193, %p194
      %p197 = scmp.ne.s32.totalorder %s182, %s196
      %p198 = scmp.eq.s32.totalorder %s25, 0
      %p199 = por %p197, %p198
      %s201 = sadd.s32 %s200, 1
      %p204 = scmp.eq.s32.totalorder %s19, 1
      %p205 = scmp.ne.s32.totalorder %s200, %s202
      %p206 = scmp.eq.s32.totalorder %s19, 0
      %p207 = por %p205, %p206
      %p208 = scmp.ne.s32.totalorder %s200, %s202
      %p209 = scmp.eq.s32.totalorder %s24, 1
      %p210 = por %p208, %p209
      %p211 = scmp.ne.s32.totalorder %s202, %s203
      %p212 = scmp.eq.s32.totalorder %s24, 0
      %p213 = por %p211, %p212
      %p214 = scmp.ne.s32.totalorder %s202, %s203
      %p215 = scmp.eq.s32.totalorder %s25, 1
      %p216 = por %p214, %p215
      %p218 = scmp.ne.s32.totalorder %s203, %s217
      %p219 = scmp.eq.s32.totalorder %s25, 0
      %p220 = por %p218, %p219
      %s222 = sadd.s32 %s221, 1
      %p225 = scmp.eq.s32.totalorder %s19, 1
      %p226 = scmp.ne.s32.totalorder %s221, %s223
      %p227 = scmp.eq.s32.totalorder %s19, 0
      %p228 = por %p226, %p227
      %p229 = scmp.ne.s32.totalorder %s221, %s223
      %p230 = scmp.eq.s32.totalorder %s24, 1
      %p231 = por %p229, %p230
      %p232 = scmp.ne.s32.totalorder %s223, %s224
      %p233 = scmp.eq.s32.totalorder %s24, 0
      %p234 = por %p232, %p233
      %p235 = scmp.ne.s32.totalorder %s223, %s224
      %p236 = scmp.eq.s32.totalorder %s25, 1
      %p237 = por %p235, %p236
      %p239 = scmp.ne.s32.totalorder %s224, %s238
      %p240 = scmp.eq.s32.totalorder %s25, 0
      %p241 = por %p239, %p240
      %s242 = ssub.s32 %s19, %s26
      %p243 = scmp.eq.s32.totalorder %s242, 0
      %s245 = sadd.s32 %s244, 1
      %s246 = scalar_select %p243, %s244, %s245
      %p249 = pneg %p243
      %p250 = scmp.eq.s32.totalorder %s19, 1
      %p251 = por %p249, %p250
      %p252 = scmp.ne.s32.totalorder %s244, %s247
      %p253 = scmp.eq.s32.totalorder %s19, 0
      %p254 = por %p252, %p253
      %p255 = scmp.ne.s32.totalorder %s244, %s247
      %p256 = scmp.eq.s32.totalorder %s24, 1
      %p257 = por %p255, %p256
      %p258 = scmp.ne.s32.totalorder %s247, %s248
      %p259 = scmp.eq.s32.totalorder %s24, 0
      %p260 = por %p258, %p259
      %p261 = scmp.ne.s32.totalorder %s247, %s248
      %p262 = scmp.eq.s32.totalorder %s25, 1
      %p263 = por %p261, %p262
      %p265 = scmp.ne.s32.totalorder %s248, %s264
      %p266 = scmp.eq.s32.totalorder %s25, 0
      %p267 = por %p265, %p266
      %p268 = scmp.le.s32.totalorder 1, %s19
      %p269 = scmp.lt.s32.totalorder %s19, 3
      %p270 = pnand %p268, %p269
      %p271 = pneg %p270
      // Predicated region
      $region9: #{net_forward.1} parent=5 // pred_check
        _
      $region10: #{net_forward.1} parent=5 // pred_check_branch
        %273 = sbr.rel (%p270) target = $region12
      $region11: #{net_forward.1} parent=5 // pred_region
        %s274 = ssub.s32 %s19, 1
        // Predicated region
        $region13: #{net_forward.1} parent=11 // pred_check
          %p275 = pneg %p66
        $region14: #{net_forward.1} parent=11 // pred_check_branch
          %277 = sbr.rel (%p275) target = $region16
        $region15: #{net_forward.1} parent=11 // pred_region
          _
        $region16: #{net_forward.1} parent=11 // pred_fallthru
          _
        // Predicated region
        $region17: #{net_forward.1} parent=11 // pred_check
          %p278 = pneg %p87
        $region18: #{net_forward.1} parent=11 // pred_check_branch
          %280 = sbr.rel (%p278) target = $region20
        $region19: #{net_forward.1} parent=11 // pred_region
          _
        $region20: #{net_forward.1} parent=11 // pred_fallthru
          _
        // Predicated region
        $region21: #{net_forward.1} parent=11 // pred_check
          %p281 = pneg %p108
        $region22: #{net_forward.1} parent=11 // pred_check_branch
          %283 = sbr.rel (%p281) target = $region24
        $region23: #{net_forward.1} parent=11 // pred_region
          _
        $region24: #{net_forward.1} parent=11 // pred_fallthru
          _
        // Predicated region
        $region25: #{net_forward.1} parent=11 // pred_check
          %p284 = pneg %p129
        $region26: #{net_forward.1} parent=11 // pred_check_branch
          %286 = sbr.rel (%p284) target = $region28
        $region27: #{net_forward.1} parent=11 // pred_region
          _
        $region28: #{net_forward.1} parent=11 // pred_fallthru
          _
        // Predicated region
        $region29: #{net_forward.1} parent=11 // pred_check
          %p287 = pneg %p150
        $region30: #{net_forward.1} parent=11 // pred_check_branch
          %289 = sbr.rel (%p287) target = $region32
        $region31: #{net_forward.1} parent=11 // pred_region
          _
        $region32: #{net_forward.1} parent=11 // pred_fallthru
          _
        // Predicated region
        $region33: #{net_forward.1} parent=11 // pred_check
          %p290 = pneg %p171
        $region34: #{net_forward.1} parent=11 // pred_check_branch
          %292 = sbr.rel (%p290) target = $region36
        $region35: #{net_forward.1} parent=11 // pred_region
          _
        $region36: #{net_forward.1} parent=11 // pred_fallthru
          _
        // Predicated region
        $region37: #{net_forward.1} parent=11 // pred_check
          %p293 = pneg %p192
        $region38: #{net_forward.1} parent=11 // pred_check_branch
          %295 = sbr.rel (%p293) target = $region40
        $region39: #{net_forward.1} parent=11 // pred_region
          _
        $region40: #{net_forward.1} parent=11 // pred_fallthru
          _
        // Predicated region
        $region41: #{net_forward.1} parent=11 // pred_check
          %p296 = pneg %p213
        $region42: #{net_forward.1} parent=11 // pred_check_branch
          %298 = sbr.rel (%p296) target = $region44
        $region43: #{net_forward.1} parent=11 // pred_region
          _
        $region44: #{net_forward.1} parent=11 // pred_fallthru
          _
        // Predicated region
        $region45: #{net_forward.1} parent=11 // pred_check
          %p299 = pneg %p234
        $region46: #{net_forward.1} parent=11 // pred_check_branch
          %301 = sbr.rel (%p299) target = $region48
        $region47: #{net_forward.1} parent=11 // pred_region
          _
        $region48: #{net_forward.1} parent=11 // pred_fallthru
          _
      $region12: #{net_forward.1} parent=5 // pred_fallthru
        _
      %p302 = scmp.lt.s32.totalorder %s19, 2
      // Predicated region
      $region49: #{net_forward.1} parent=5 // pred_check
        %p303 = pneg %p302
      $region50: #{net_forward.1} parent=5 // pred_check_branch
        %305 = sbr.rel (%p303) target = $region52
      $region51: #{net_forward.1} parent=5 // pred_region
        // Predicated region
        $region53: #{net_forward.1} parent=51 // pred_check
          %p306 = pneg %p39
        $region54: #{net_forward.1} parent=51 // pred_check_branch
          %308 = sbr.rel (%p306) target = $region56
        $region55: #{net_forward.1} parent=51 // pred_region
          %p309 = scmp.lt.s32.totalorder %s19, 1
          %s310 = scalar_select %p309, %s19, 1
          %s311 = smul.addr %s310, 32
          %s312 = scalar_lea.vmem %s0, %s311
        $region56: #{net_forward.1} parent=51 // pred_fallthru
          _
      $region52: #{net_forward.1} parent=5 // pred_fallthru
        _
      %p313 = scmp.le.s32.totalorder 1, %s19
      %p314 = scmp.lt.s32.totalorder %s19, 3
      %p315 = pnand %p313, %p314
      %p316 = pneg %p315
      // Predicated region
      $region57: #{net_forward.1} parent=5 // pred_check
        _
      $region58: #{net_forward.1} parent=5 // pred_check_branch
        %318 = sbr.rel (%p315) target = $region60
      $region59: #{net_forward.1} parent=5 // pred_region
        %s319 = ssub.s32 %s19, 1
        %p320 = scmp.lt.s32.totalorder %s24, 1
        %s321 = scalar_select %p320, %s24, 1
        %s322 = smul.addr %s321, 32
        %s323 = scalar_lea.vmem %s0, %s322
        %p324 = pneg %p45
        %p325 = pneg %p42
        %p326 = pneg %p66
        %p327 = pneg %p63
        %p328 = pneg %p87
        %p329 = pneg %p84
        %p330 = pneg %p108
        %p331 = pneg %p105
        %p332 = pneg %p129
        %p333 = pneg %p126
        %p334 = pneg %p150
        %p335 = pneg %p147
        %p336 = pneg %p171
        %p337 = pneg %p168
        %p338 = pneg %p192
        %p339 = pneg %p189
        %p340 = pneg %p213
        %p341 = pneg %p210
        %p342 = pneg %p234
        %p343 = pneg %p231
        %p344 = pneg %p260
        %p345 = pneg %p257
        %s346 = sand.u32 %s247, 1
        %s347 = scalar_lea.sflag [#allocation4], %s346
        %s348 = sand.u32 %s247, 1
        %s349 = smul.addr %s348, 4
        %s350 = scalar_lea.vmem [#allocation3], %s349
        %p351 = scmp.lt.s32.totalorder %s24, 1
        %s352 = scalar_select %p351, %s24, 1
        %s353 = smul.addr %s352, 32
        %s354 = scalar_lea.vmem %s0, %s353
        %v356 = vld [vmem:[%s1] sm:$0xff]
        %v357 = vld [vmem:[%s1 + $0x8] sm:$0xff]
        %v358 = vld [vmem:[%s1 + $0x10] sm:$0xff]
        %v359 = vld [vmem:[%s1 + $0x18] sm:$0xff]
        %v360 = vld [vmem:[%s354] sm:$0xff]
        %v361 = vld [vmem:[%s354 + $0x8] sm:$0xff]
        %v362 = vld [vmem:[%s354 + $0x10] sm:$0xff]
        %v363 = vld [vmem:[%s354 + $0x18] sm:$0xff]
        %365 = vst [vmem:[#allocation1] ss:$4 sm:$0xff] %v360
        %s367 = scalar_lea.vmem [#allocation1], 32
        %368 = vst [vmem:[%s367] ss:$4 sm:$0xff] %v361
        %v369 = vld [vmem:[#allocation1] sm:$0xff]
        %v371 = vld [vmem:[#allocation1 + $0x8] sm:$0xff]
        %v373 = vld [vmem:[#allocation1 + $0x10] sm:$0xff]
        %v375 = vld [vmem:[#allocation1 + $0x18] sm:$0xff]
        %v377 = vld [vmem:[#allocation1 + $0x20] sm:$0xff]
        %v379 = vld [vmem:[#allocation1 + $0x28] sm:$0xff]
        %v381 = vld [vmem:[#allocation1 + $0x30] sm:$0xff]
        %v383 = vld [vmem:[#allocation1 + $0x38] sm:$0xff]
        %386 = vst [vmem:[#allocation1] ss:$4 sm:$0xff] %v362
        %388 = vst [vmem:[%s367] ss:$4 sm:$0xff] %v363
        %v389 = vld [vmem:[#allocation1] sm:$0xff]
        %v391 = vld [vmem:[#allocation1 + $0x8] sm:$0xff]
        %v393 = vld [vmem:[#allocation1 + $0x10] sm:$0xff]
        %v395 = vld [vmem:[#allocation1 + $0x18] sm:$0xff]
        %v397 = vld [vmem:[#allocation1 + $0x20] sm:$0xff]
        %v399 = vld [vmem:[#allocation1 + $0x28] sm:$0xff]
        %v401 = vld [vmem:[#allocation1 + $0x30] sm:$0xff]
        %v403 = vld [vmem:[#allocation1 + $0x38] sm:$0xff]
        %405 = vrot.lane.b32.xlu0 %v369, 31
        %v406 = vpop.permute.xlu0 %405
        %407 = vrot.lane.b32.xlu0 %v371, 31
        %v408 = vpop.permute.xlu0 %407
        %409 = vrot.lane.b32.xlu0 %v373, 31
        %v410 = vpop.permute.xlu0 %409
        %411 = vrot.lane.b32.xlu0 %v375, 31
        %v412 = vpop.permute.xlu0 %411
        %413 = vrot.lane.b32.xlu0 %v377, 31
        %v414 = vpop.permute.xlu0 %413
        %415 = vrot.lane.b32.xlu0 %v379, 31
        %v416 = vpop.permute.xlu0 %415
        %417 = vrot.lane.b32.xlu0 %v381, 31
        %v418 = vpop.permute.xlu0 %417
        %419 = vrot.lane.b32.xlu0 %v383, 31
        %v420 = vpop.permute.xlu0 %419
        %421 = vrot.lane.b32.xlu0 %v389, 31
        %v422 = vpop.permute.xlu0 %421
        %423 = vrot.lane.b32.xlu0 %v391, 31
        %v424 = vpop.permute.xlu0 %423
        %425 = vrot.lane.b32.xlu0 %v393, 31
        %v426 = vpop.permute.xlu0 %425
        %427 = vrot.lane.b32.xlu0 %v395, 31
        %v428 = vpop.permute.xlu0 %427
        %429 = vrot.lane.b32.xlu0 %v397, 31
        %v430 = vpop.permute.xlu0 %429
        %431 = vrot.lane.b32.xlu0 %v399, 31
        %v432 = vpop.permute.xlu0 %431
        %433 = vrot.lane.b32.xlu0 %v401, 31
        %v434 = vpop.permute.xlu0 %433
        %435 = vrot.lane.b32.xlu0 %v403, 31
        %v436 = vpop.permute.xlu0 %435
        %v437 = vrot.slane %v406, 4
        %v438 = vrot.slane %v408, 4
        %v439 = vrot.slane %v410, 4
        %v440 = vrot.slane %v412, 4
        %v441 = vrot.slane %v414, 4
        %v442 = vrot.slane %v416, 4
        %v443 = vrot.slane %v418, 4
        %v444 = vrot.slane %v420, 4
        %v445 = vrot.slane %v422, 4
        %v446 = vrot.slane %v424, 4
        %v447 = vrot.slane %v426, 4
        %v448 = vrot.slane %v428, 4
        %v449 = vrot.slane %v430, 4
        %v450 = vrot.slane %v432, 4
        %v451 = vrot.slane %v434, 4
        %v452 = vrot.slane %v436, 4
        %vm453 = vcmask 252928
        %v454 = vsel %vm453, %v437, %v406
        %vm455 = vcmask 1043456
        %v456 = vsel %vm455, %v437, %v438
        %v457 = vsel %vm453, %v456, %v408
        %v458 = vsel %vm455, %v438, %v439
        %v459 = vsel %vm453, %v458, %v410
        %v460 = vsel %vm455, %v439, %v440
        %v461 = vsel %vm453, %v460, %v412
        %v462 = vsel %vm455, %v440, %v441
        %v463 = vsel %vm453, %v462, %v414
        %v464 = vsel %vm455, %v441, %v442
        %v465 = vsel %vm453, %v464, %v416
        %v466 = vsel %vm455, %v442, %v443
        %v467 = vsel %vm453, %v466, %v418
        %v468 = vsel %vm455, %v443, %v444
        %v469 = vsel %vm453, %v468, %v420
        %v470 = vsel %vm455, %v444, %v445
        %v471 = vsel %vm453, %v470, %v422
        %v472 = vsel %vm455, %v445, %v446
        %v473 = vsel %vm453, %v472, %v424
        %v474 = vsel %vm455, %v446, %v447
        %v475 = vsel %vm453, %v474, %v426
        %v476 = vsel %vm455, %v447, %v448
        %v477 = vsel %vm453, %v476, %v428
        %v478 = vsel %vm455, %v448, %v449
        %v479 = vsel %vm453, %v478, %v430
        %v480 = vsel %vm455, %v449, %v450
        %v481 = vsel %vm453, %v480, %v432
        %v482 = vsel %vm455, %v450, %v451
        %v483 = vsel %vm453, %v482, %v434
        %v484 = vsel %vm455, %v451, %v452
        %v485 = vsel %vm453, %v484, %v436
        %vm502 = vcmask 1040632
        %vm503 = vsmask.f32 256
        %vm504 = vmand %vm502, %vm503
        %vm505 = vcmask 1044484
        %vm506 = vsmask.f32 4352
        %vm507 = vmand %vm505, %vm506
        %vm508 = vmor %vm507, %vm504
        %v509 = vld [vmem:[#allocation2] sm:$0x11]
        %v510 = vsel %vm508, %v454, %v509
        %511 = vst [vmem:[#allocation2] sm:$0x11] %v510
        %vm512 = vcmask 1040384
        %vm513 = vmand %vm512, %vm503
        %vm514 = vmor %vm507, %vm513
        %v515 = vld [vmem:[#allocation2 + $0x8] sm:$0x11]
        %v516 = vsel %vm514, %v457, %v515
        %517 = vst [vmem:[#allocation2 + $0x8] sm:$0x11] %v516
        %v518 = vld [vmem:[#allocation2 + $0x10] sm:$0x11]
        %v519 = vsel %vm514, %v459, %v518
        %520 = vst [vmem:[#allocation2 + $0x10] sm:$0x11] %v519
        %v521 = vld [vmem:[#allocation2 + $0x18] sm:$0x11]
        %v522 = vsel %vm514, %v461, %v521
        %523 = vst [vmem:[#allocation2 + $0x18] sm:$0x11] %v522
        %v524 = vld [vmem:[#allocation2 + $0x20] sm:$0x11]
        %v525 = vsel %vm514, %v463, %v524
        %526 = vst [vmem:[#allocation2 + $0x20] sm:$0x11] %v525
        %v527 = vld [vmem:[#allocation2 + $0x28] sm:$0x11]
        %v528 = vsel %vm514, %v465, %v527
        %529 = vst [vmem:[#allocation2 + $0x28] sm:$0x11] %v528
        %v530 = vld [vmem:[#allocation2 + $0x30] sm:$0x11]
        %v531 = vsel %vm514, %v467, %v530
        %532 = vst [vmem:[#allocation2 + $0x30] sm:$0x11] %v531
        %v533 = vld [vmem:[#allocation2 + $0x38] sm:$0x11]
        %v534 = vsel %vm514, %v469, %v533
        %535 = vst [vmem:[#allocation2 + $0x38] sm:$0x11] %v534
        %v536 = vld [vmem:[#allocation2 + $0x40] sm:$0x11]
        %v537 = vsel %vm514, %v471, %v536
        %538 = vst [vmem:[#allocation2 + $0x40] sm:$0x11] %v537
        %v539 = vld [vmem:[#allocation2 + $0x48] sm:$0x11]
        %v540 = vsel %vm514, %v473, %v539
        %541 = vst [vmem:[#allocation2 + $0x48] sm:$0x11] %v540
        %v542 = vld [vmem:[#allocation2 + $0x50] sm:$0x11]
        %v543 = vsel %vm514, %v475, %v542
        %544 = vst [vmem:[#allocation2 + $0x50] sm:$0x11] %v543
        %v545 = vld [vmem:[#allocation2 + $0x58] sm:$0x11]
        %v546 = vsel %vm514, %v477, %v545
        %547 = vst [vmem:[#allocation2 + $0x58] sm:$0x11] %v546
        %v548 = vld [vmem:[#allocation2 + $0x60] sm:$0x11]
        %v549 = vsel %vm514, %v479, %v548
        %550 = vst [vmem:[#allocation2 + $0x60] sm:$0x11] %v549
        %v551 = vld [vmem:[#allocation2 + $0x68] sm:$0x11]
        %v552 = vsel %vm514, %v481, %v551
        %553 = vst [vmem:[#allocation2 + $0x68] sm:$0x11] %v552
        %v554 = vld [vmem:[#allocation2 + $0x70] sm:$0x11]
        %v555 = vsel %vm514, %v483, %v554
        %556 = vst [vmem:[#allocation2 + $0x70] sm:$0x11] %v555
        %v557 = vld [vmem:[#allocation2 + $0x78] sm:$0x11]
        %v558 = vsel %vm514, %v485, %v557
        %559 = vst [vmem:[#allocation2 + $0x78] sm:$0x11] %v558
        %560 = vst [vmem:[#allocation1] ss:$4 sm:$0xff] %v363
        %v561 = vld [vmem:[#allocation1 + $0x18] sm:$0xff]
        %563 = vrot.lane.b32.xlu0 %v561, 31
        %v564 = vpop.permute.xlu0 %563
        %v565 = vrot.slane %v564, 4
        %vm567 = vcmask 245760
        %vm568 = vmand %vm567, %vm503
        %v569 = vld [vmem:[#allocation2] sm:$0x1]
        %v570 = vsel %vm568, %v565, %v569
        %571 = vst [vmem:[#allocation2] sm:$0x1] %v570
        %572 = vst [vmem:[#allocation1] ss:$4 sm:$0xff] %v360
        %s573 = scalar_lea.vmem [#allocation1], 32
        %574 = vst [vmem:[%s573] ss:$4 sm:$0xff] %v361
        %v575 = vld [vmem:[#allocation1] sm:$0xff]
        %v576 = vld [vmem:[#allocation1 + $0x8] sm:$0xff]
        %v577 = vld [vmem:[#allocation1 + $0x10] sm:$0xff]
        %v578 = vld [vmem:[#allocation1 + $0x18] sm:$0xff]
        %v579 = vld [vmem:[#allocation1 + $0x20] sm:$0xff]
        %v580 = vld [vmem:[#allocation1 + $0x28] sm:$0xff]
        %v581 = vld [vmem:[#allocation1 + $0x30] sm:$0xff]
        %v582 = vld [vmem:[#allocation1 + $0x38] sm:$0xff]
        %583 = vst [vmem:[#allocation1] ss:$4 sm:$0xff] %v362
        %584 = vst [vmem:[%s573] ss:$4 sm:$0xff] %v363
        %v585 = vld [vmem:[#allocation1] sm:$0xff]
        %v586 = vld [vmem:[#allocation1 + $0x8] sm:$0xff]
        %v587 = vld [vmem:[#allocation1 + $0x10] sm:$0xff]
        %v588 = vld [vmem:[#allocation1 + $0x18] sm:$0xff]
        %v589 = vld [vmem:[#allocation1 + $0x20] sm:$0xff]
        %v590 = vld [vmem:[#allocation1 + $0x28] sm:$0xff]
        %v591 = vld [vmem:[#allocation1 + $0x30] sm:$0xff]
        %v592 = vld [vmem:[#allocation1 + $0x38] sm:$0xff]
        %v593 = vshll.u32 %v575, 16
        %v595 = vshll.u32 %v576, 16
        %v597 = vshll.u32 %v577, 16
        %v599 = vshll.u32 %v578, 16
        %v601 = vshll.u32 %v579, 16
        %v603 = vshll.u32 %v580, 16
        %v605 = vshll.u32 %v581, 16
        %v607 = vshll.u32 %v582, 16
        %v609 = vshll.u32 %v585, 16
        %v611 = vshll.u32 %v586, 16
        %v613 = vshll.u32 %v587, 16
        %v615 = vshll.u32 %v588, 16
        %v617 = vshll.u32 %v589, 16
        %v619 = vshll.u32 %v590, 16
        %v621 = vshll.u32 %v591, 16
        %v623 = vshll.u32 %v592, 16
        %625 = vrot.lane.b32.xlu0 %v593, 30
        %v626 = vpop.permute.xlu0 %625
        %627 = vrot.lane.b32.xlu0 %v595, 30
        %v628 = vpop.permute.xlu0 %627
        %629 = vrot.lane.b32.xlu0 %v597, 30
        %v630 = vpop.permute.xlu0 %629
        %631 = vrot.lane.b32.xlu0 %v599, 30
        %v632 = vpop.permute.xlu0 %631
        %633 = vrot.lane.b32.xlu0 %v601, 30
        %v634 = vpop.permute.xlu0 %633
        %635 = vrot.lane.b32.xlu0 %v603, 30
        %v636 = vpop.permute.xlu0 %635
        %637 = vrot.lane.b32.xlu0 %v605, 30
        %v638 = vpop.permute.xlu0 %637
        %639 = vrot.lane.b32.xlu0 %v607, 30
        %v640 = vpop.permute.xlu0 %639
        %641 = vrot.lane.b32.xlu0 %v609, 30
        %v642 = vpop.permute.xlu0 %641
        %643 = vrot.lane.b32.xlu0 %v611, 30
        %v644 = vpop.permute.xlu0 %643
        %645 = vrot.lane.b32.xlu0 %v613, 30
        %v646 = vpop.permute.xlu0 %645
        %647 = vrot.lane.b32.xlu0 %v615, 30
        %v648 = vpop.permute.xlu0 %647
        %649 = vrot.lane.b32.xlu0 %v617, 30
        %v650 = vpop.permute.xlu0 %649
        %651 = vrot.lane.b32.xlu0 %v619, 30
        %v652 = vpop.permute.xlu0 %651
        %653 = vrot.lane.b32.xlu0 %v621, 30
        %v654 = vpop.permute.xlu0 %653
        %655 = vrot.lane.b32.xlu0 %v623, 30
        %v656 = vpop.permute.xlu0 %655
        %v657 = vrot.slane %v626, 4
        %v658 = vrot.slane %v628, 4
        %v659 = vrot.slane %v630, 4
        %v660 = vrot.slane %v632, 4
        %v661 = vrot.slane %v634, 4
        %v662 = vrot.slane %v636, 4
        %v663 = vrot.slane %v638, 4
        %v664 = vrot.slane %v640, 4
        %v665 = vrot.slane %v642, 4
        %v666 = vrot.slane %v644, 4
        %v667 = vrot.slane %v646, 4
        %v668 = vrot.slane %v648, 4
        %v669 = vrot.slane %v650, 4
        %v670 = vrot.slane %v652, 4
        %v671 = vrot.slane %v654, 4
        %v672 = vrot.slane %v656, 4
        %vm673 = vcmask 244736
        %v674 = vsel %vm673, %v657, %v626
        %v675 = vsel %vm455, %v657, %v658
        %v676 = vsel %vm673, %v675, %v628
        %v677 = vsel %vm455, %v658, %v659
        %v678 = vsel %vm673, %v677, %v630
        %v679 = vsel %vm455, %v659, %v660
        %v680 = vsel %vm673, %v679, %v632
        %v681 = vsel %vm455, %v660, %v661
        %v682 = vsel %vm673, %v681, %v634
        %v683 = vsel %vm455, %v661, %v662
        %v684 = vsel %vm673, %v683, %v636
        %v685 = vsel %vm455, %v662, %v663
        %v686 = vsel %vm673, %v685, %v638
        %v687 = vsel %vm455, %v663, %v664
        %v688 = vsel %vm673, %v687, %v640
        %v689 = vsel %vm455, %v664, %v665
        %v690 = vsel %vm673, %v689, %v642
        %v691 = vsel %vm455, %v665, %v666
        %v692 = vsel %vm673, %v691, %v644
        %v693 = vsel %vm455, %v666, %v667
        %v694 = vsel %vm673, %v693, %v646
        %v695 = vsel %vm455, %v667, %v668
        %v696 = vsel %vm673, %v695, %v648
        %v697 = vsel %vm455, %v668, %v669
        %v698 = vsel %vm673, %v697, %v650
        %v699 = vsel %vm455, %v669, %v670
        %v700 = vsel %vm673, %v699, %v652
        %v701 = vsel %vm455, %v670, %v671
        %v702 = vsel %vm673, %v701, %v654
        %v703 = vsel %vm455, %v671, %v672
        %v704 = vsel %vm673, %v703, %v656
        %vm721 = vcmask 1040624
        %vm722 = vsmask.f32 7938
        %vm723 = vmand %vm721, %vm722
        %vm724 = vsmask.f32 7954
        %vm725 = vmand %vm505, %vm724
        %vm726 = vmor %vm725, %vm723
        %v727 = vld [vmem:[#allocation2] sm:$0x11]
        %v728 = vsel %vm726, %v674, %v727
        %729 = vst [vmem:[#allocation2] sm:$0x11] %v728
        %vm730 = vmand %vm512, %vm722
        %vm731 = vmor %vm725, %vm730
        %v732 = vld [vmem:[#allocation2 + $0x8] sm:$0x11]
        %v733 = vsel %vm731, %v676, %v732
        %734 = vst [vmem:[#allocation2 + $0x8] sm:$0x11] %v733
        %v735 = vld [vmem:[#allocation2 + $0x10] sm:$0x11]
        %v736 = vsel %vm731, %v678, %v735
        %737 = vst [vmem:[#allocation2 + $0x10] sm:$0x11] %v736
        %v738 = vld [vmem:[#allocation2 + $0x18] sm:$0x11]
        %v739 = vsel %vm731, %v680, %v738
        %740 = vst [vmem:[#allocation2 + $0x18] sm:$0x11] %v739
        %v741 = vld [vmem:[#allocation2 + $0x20] sm:$0x11]
        %v742 = vsel %vm731, %v682, %v741
        %743 = vst [vmem:[#allocation2 + $0x20] sm:$0x11] %v742
        %v744 = vld [vmem:[#allocation2 + $0x28] sm:$0x11]
        %v745 = vsel %vm731, %v684, %v744
        %746 = vst [vmem:[#allocation2 + $0x28] sm:$0x11] %v745
        %v747 = vld [vmem:[#allocation2 + $0x30] sm:$0x11]
        %v748 = vsel %vm731, %v686, %v747
        %749 = vst [vmem:[#allocation2 + $0x30] sm:$0x11] %v748
        %v750 = vld [vmem:[#allocation2 + $0x38] sm:$0x11]
        %v751 = vsel %vm731, %v688, %v750
        %752 = vst [vmem:[#allocation2 + $0x38] sm:$0x11] %v751
        %v753 = vld [vmem:[#allocation2 + $0x40] sm:$0x11]
        %v754 = vsel %vm731, %v690, %v753
        %755 = vst [vmem:[#allocation2 + $0x40] sm:$0x11] %v754
        %v756 = vld [vmem:[#allocation2 + $0x48] sm:$0x11]
        %v757 = vsel %vm731, %v692, %v756
        %758 = vst [vmem:[#allocation2 + $0x48] sm:$0x11] %v757
        %v759 = vld [vmem:[#allocation2 + $0x50] sm:$0x11]
        %v760 = vsel %vm731, %v694, %v759
        %761 = vst [vmem:[#allocation2 + $0x50] sm:$0x11] %v760
        %v762 = vld [vmem:[#allocation2 + $0x58] sm:$0x11]
        %v763 = vsel %vm731, %v696, %v762
        %764 = vst [vmem:[#allocation2 + $0x58] sm:$0x11] %v763
        %v765 = vld [vmem:[#allocation2 + $0x60] sm:$0x11]
        %v766 = vsel %vm731, %v698, %v765
        %767 = vst [vmem:[#allocation2 + $0x60] sm:$0x11] %v766
        %v768 = vld [vmem:[#allocation2 + $0x68] sm:$0x11]
        %v769 = vsel %vm731, %v700, %v768
        %770 = vst [vmem:[#allocation2 + $0x68] sm:$0x11] %v769
        %v771 = vld [vmem:[#allocation2 + $0x70] sm:$0x11]
        %v772 = vsel %vm731, %v702, %v771
        %773 = vst [vmem:[#allocation2 + $0x70] sm:$0x11] %v772
        %v774 = vld [vmem:[#allocation2 + $0x78] sm:$0x11]
        %v775 = vsel %vm731, %v704, %v774
        %776 = vst [vmem:[#allocation2 + $0x78] sm:$0x11] %v775
        %777 = vst [vmem:[#allocation1] ss:$4 sm:$0xff] %v363
        %v778 = vld [vmem:[#allocation1 + $0x18] sm:$0xff]
        %v779 = vshll.u32 %v778, 16
        %781 = vrot.lane.b32.xlu0 %v779, 30
        %v782 = vpop.permute.xlu0 %781
        %v783 = vrot.slane %v782, 4
        %vm785 = vcmask 237568
        %vm786 = vmand %vm785, %vm722
        %v787 = vld [vmem:[#allocation2] sm:$0x1]
        %v788 = vsel %vm786, %v783, %v787
        %789 = vst [vmem:[#allocation2] sm:$0x1] %v788
        %s790 = scalar_lea.vmem [#allocation1], 1
        %791 = vst [vmem:[%s790] ss:$4 sm:$0xff] %v360
        %s792 = scalar_lea.vmem [#allocation1], 33
        %793 = vst [vmem:[%s792] ss:$4 sm:$0xff] %v361
        %v794 = vld [vmem:[#allocation1] sm:$0xff]
        %v796 = vld [vmem:[#allocation1 + $0x8] sm:$0xff]
        %v798 = vld [vmem:[#allocation1 + $0x10] sm:$0xff]
        %v800 = vld [vmem:[#allocation1 + $0x18] sm:$0xff]
        %v802 = vld [vmem:[#allocation1 + $0x20] sm:$0xff]
        %v804 = vld [vmem:[#allocation1 + $0x28] sm:$0xff]
        %v806 = vld [vmem:[#allocation1 + $0x30] sm:$0xff]
        %v808 = vld [vmem:[#allocation1 + $0x38] sm:$0xff]
        %810 = vst [vmem:[%s790] ss:$4 sm:$0xff] %v362
        %811 = vst [vmem:[%s792] ss:$4 sm:$0xff] %v363
        %v812 = vld [vmem:[#allocation1] sm:$0xff]
        %v814 = vld [vmem:[#allocation1 + $0x8] sm:$0xff]
        %v816 = vld [vmem:[#allocation1 + $0x10] sm:$0xff]
        %v818 = vld [vmem:[#allocation1 + $0x18] sm:$0xff]
        %v820 = vld [vmem:[#allocation1 + $0x20] sm:$0xff]
        %v822 = vld [vmem:[#allocation1 + $0x28] sm:$0xff]
        %v824 = vld [vmem:[#allocation1 + $0x30] sm:$0xff]
        %v826 = vld [vmem:[#allocation1 + $0x38] sm:$0xff]
        %828 = vrot.lane.b32.xlu0 %v794, 29
        %v829 = vpop.permute.xlu0 %828
        %830 = vrot.lane.b32.xlu0 %v796, 29
        %v831 = vpop.permute.xlu0 %830
        %832 = vrot.lane.b32.xlu0 %v798, 29
        %v833 = vpop.permute.xlu0 %832
        %834 = vrot.lane.b32.xlu0 %v800, 29
        %v835 = vpop.permute.xlu0 %834
        %836 = vrot.lane.b32.xlu0 %v802, 29
        %v837 = vpop.permute.xlu0 %836
        %838 = vrot.lane.b32.xlu0 %v804, 29
        %v839 = vpop.permute.xlu0 %838
        %840 = vrot.lane.b32.xlu0 %v806, 29
        %v841 = vpop.permute.xlu0 %840
        %842 = vrot.lane.b32.xlu0 %v808, 29
        %v843 = vpop.permute.xlu0 %842
        %844 = vrot.lane.b32.xlu0 %v812, 29
        %v845 = vpop.permute.xlu0 %844
        %846 = vrot.lane.b32.xlu0 %v814, 29
        %v847 = vpop.permute.xlu0 %846
        %848 = vrot.lane.b32.xlu0 %v816, 29
        %v849 = vpop.permute.xlu0 %848
        %850 = vrot.lane.b32.xlu0 %v818, 29
        %v851 = vpop.permute.xlu0 %850
        %852 = vrot.lane.b32.xlu0 %v820, 29
        %v853 = vpop.permute.xlu0 %852
        %854 = vrot.lane.b32.xlu0 %v822, 29
        %v855 = vpop.permute.xlu0 %854
        %856 = vrot.lane.b32.xlu0 %v824, 29
        %v857 = vpop.permute.xlu0 %856
        %858 = vrot.lane.b32.xlu0 %v826, 29
        %v859 = vpop.permute.xlu0 %858
        %v860 = vrot.slane %v829, 4
        %v861 = vrot.slane %v831, 4
        %v862 = vrot.slane %v833, 4
        %v863 = vrot.slane %v835, 4
        %v864 = vrot.slane %v837, 4
        %v865 = vrot.slane %v839, 4
        %v866 = vrot.slane %v841, 4
        %v867 = vrot.slane %v843, 4
        %v868 = vrot.slane %v845, 4
        %v869 = vrot.slane %v847, 4
        %v870 = vrot.slane %v849, 4
        %v871 = vrot.slane %v851, 4
        %v872 = vrot.slane %v853, 4
        %v873 = vrot.slane %v855, 4
        %v874 = vrot.slane %v857, 4
        %v875 = vrot.slane %v859, 4
        %vm876 = vcmask 236544
        %v877 = vsel %vm876, %v860, %v829
        %v878 = vsel %vm455, %v860, %v861
        %v879 = vsel %vm876, %v878, %v831
        %v880 = vsel %vm455, %v861, %v862
        %v881 = vsel %vm876, %v880, %v833
        %v882 = vsel %vm455, %v862, %v863
        %v883 = vsel %vm876, %v882, %v835
        %v884 = vsel %vm455, %v863, %v864
        %v885 = vsel %vm876, %v884, %v837
        %v886 = vsel %vm455, %v864, %v865
        %v887 = vsel %vm876, %v886, %v839
        %v888 = vsel %vm455, %v865, %v866
        %v889 = vsel %vm876, %v888, %v841
        %v890 = vsel %vm455, %v866, %v867
        %v891 = vsel %vm876, %v890, %v843
        %v892 = vsel %vm455, %v867, %v868
        %v893 = vsel %vm876, %v892, %v845
        %v894 = vsel %vm455, %v868, %v869
        %v895 = vsel %vm876, %v894, %v847
        %v896 = vsel %vm455, %v869, %v870
        %v897 = vsel %vm876, %v896, %v849
        %v898 = vsel %vm455, %v870, %v871
        %v899 = vsel %vm876, %v898, %v851
        %v900 = vsel %vm455, %v871, %v872
        %v901 = vsel %vm876, %v900, %v853
        %v902 = vsel %vm455, %v872, %v873
        %v903 = vsel %vm876, %v902, %v855
        %v904 = vsel %vm455, %v873, %v874
        %v905 = vsel %vm876, %v904, %v857
        %v906 = vsel %vm455, %v874, %v875
        %v907 = vsel %vm876, %v906, %v859
        %vm924 = vcmask 1041641
        %vm925 = vsmask.f32 1280
        %vm926 = vmand %vm924, %vm925
        %vm927 = vcmask 1045509
        %vm928 = vsmask.f32 5376
        %vm929 = vmand %vm927, %vm928
        %vm930 = vmor %vm929, %vm926
        %v931 = vld [vmem:[#allocation2] sm:$0x22]
        %v932 = vsel %vm930, %v877, %v931
        %933 = vst [vmem:[#allocation2] sm:$0x22] %v932
        %vm934 = vcmask 1041409
        %vm935 = vmand %vm934, %vm925
        %vm936 = vmor %vm929, %vm935
        %v937 = vld [vmem:[#allocation2 + $0x8] sm:$0x22]
        %v938 = vsel %vm936, %v879, %v937
        %939 = vst [vmem:[#allocation2 + $0x8] sm:$0x22] %v938
        %v940 = vld [vmem:[#allocation2 + $0x10] sm:$0x22]
        %v941 = vsel %vm936, %v881, %v940
        %942 = vst [vmem:[#allocation2 + $0x10] sm:$0x22] %v941
        %v943 = vld [vmem:[#allocation2 + $0x18] sm:$0x22]
        %v944 = vsel %vm936, %v883, %v943
        %945 = vst [vmem:[#allocation2 + $0x18] sm:$0x22] %v944
        %v946 = vld [vmem:[#allocation2 + $0x20] sm:$0x22]
        %v947 = vsel %vm936, %v885, %v946
        %948 = vst [vmem:[#allocation2 + $0x20] sm:$0x22] %v947
        %v949 = vld [vmem:[#allocation2 + $0x28] sm:$0x22]
        %v950 = vsel %vm936, %v887, %v949
        %951 = vst [vmem:[#allocation2 + $0x28] sm:$0x22] %v950
        %v952 = vld [vmem:[#allocation2 + $0x30] sm:$0x22]
        %v953 = vsel %vm936, %v889, %v952
        %954 = vst [vmem:[#allocation2 + $0x30] sm:$0x22] %v953
        %v955 = vld [vmem:[#allocation2 + $0x38] sm:$0x22]
        %v956 = vsel %vm936, %v891, %v955
        %957 = vst [vmem:[#allocation2 + $0x38] sm:$0x22] %v956
        %v958 = vld [vmem:[#allocation2 + $0x40] sm:$0x22]
        %v959 = vsel %vm936, %v893, %v958
        %960 = vst [vmem:[#allocation2 + $0x40] sm:$0x22] %v959
        %v961 = vld [vmem:[#allocation2 + $0x48] sm:$0x22]
        %v962 = vsel %vm936, %v895, %v961
        %963 = vst [vmem:[#allocation2 + $0x48] sm:$0x22] %v962
        %v964 = vld [vmem:[#allocation2 + $0x50] sm:$0x22]
        %v965 = vsel %vm936, %v897, %v964
        %966 = vst [vmem:[#allocation2 + $0x50] sm:$0x22] %v965
        %v967 = vld [vmem:[#allocation2 + $0x58] sm:$0x22]
        %v968 = vsel %vm936, %v899, %v967
        %969 = vst [vmem:[#allocation2 + $0x58] sm:$0x22] %v968
        %v970 = vld [vmem:[#allocation2 + $0x60] sm:$0x22]
        %v971 = vsel %vm936, %v901, %v970
        %972 = vst [vmem:[#allocation2 + $0x60] sm:$0x22] %v971
        %v973 = vld [vmem:[#allocation2 + $0x68] sm:$0x22]
        %v974 = vsel %vm936, %v903, %v973
        %975 = vst [vmem:[#allocation2 + $0x68] sm:$0x22] %v974
        %v976 = vld [vmem:[#allocation2 + $0x70] sm:$0x22]
        %v977 = vsel %vm936, %v905, %v976
        %978 = vst [vmem:[#allocation2 + $0x70] sm:$0x22] %v977
        %v979 = vld [vmem:[#allocation2 + $0x78] sm:$0x22]
        %v980 = vsel %vm936, %v907, %v979
        %981 = vst [vmem:[#allocation2 + $0x78] sm:$0x22] %v980
        %s982 = scalar_lea.vmem [#allocation1], 1
        %983 = vst [vmem:[%s982] ss:$4 sm:$0xff] %v363
        %v984 = vld [vmem:[#allocation1 + $0x18] sm:$0xff]
        %986 = vrot.lane.b32.xlu0 %v984, 29
        %v987 = vpop.permute.xlu0 %986
        %v988 = vrot.slane %v987, 4
        %vm990 = vcmask 230401
        %vm991 = vmand %vm990, %vm925
        %v992 = vld [vmem:[#allocation2] sm:$0x2]
        %v993 = vsel %vm991, %v988, %v992
        %994 = vst [vmem:[#allocation2] sm:$0x2] %v993
        %995 = vst [vmem:[#allocation1] ss:$4 sm:$0xff] %v360
        %s996 = scalar_lea.vmem [#allocation1], 32
        %997 = vst [vmem:[%s996] ss:$4 sm:$0xff] %v361
        %v998 = vld [vmem:[#allocation1] sm:$0xff]
        %v999 = vld [vmem:[#allocation1 + $0x8] sm:$0xff]
        %v1000 = vld [vmem:[#allocation1 + $0x10] sm:$0xff]
        %v1001 = vld [vmem:[#allocation1 + $0x18] sm:$0xff]
        %v1002 = vld [vmem:[#allocation1 + $0x20] sm:$0xff]
        %v1003 = vld [vmem:[#allocation1 + $0x28] sm:$0xff]
        %v1004 = vld [vmem:[#allocation1 + $0x30] sm:$0xff]
        %v1005 = vld [vmem:[#allocation1 + $0x38] sm:$0xff]
        %1006 = vst [vmem:[#allocation1] ss:$4 sm:$0xff] %v362
        %1007 = vst [vmem:[%s996] ss:$4 sm:$0xff] %v363
        %v1008 = vld [vmem:[#allocation1] sm:$0xff]
        %v1009 = vld [vmem:[#allocation1 + $0x8] sm:$0xff]
        %v1010 = vld [vmem:[#allocation1 + $0x10] sm:$0xff]
        %v1011 = vld [vmem:[#allocation1 + $0x18] sm:$0xff]
        %v1012 = vld [vmem:[#allocation1 + $0x20] sm:$0xff]
        %v1013 = vld [vmem:[#allocation1 + $0x28] sm:$0xff]
        %v1014 = vld [vmem:[#allocation1 + $0x30] sm:$0xff]
        %v1015 = vld [vmem:[#allocation1 + $0x38] sm:$0xff]
        %v1016 = vshll.u32 %v998, 16
        %v1018 = vrot.slane %v1016, 7
        %v1019 = vshll.u32 %v999, 16
        %v1021 = vrot.slane %v1019, 7
        %v1022 = vshll.u32 %v1000, 16
        %v1024 = vrot.slane %v1022, 7
        %v1025 = vshll.u32 %v1001, 16
        %v1027 = vrot.slane %v1025, 7
        %v1028 = vshll.u32 %v1002, 16
        %v1030 = vrot.slane %v1028, 7
        %v1031 = vshll.u32 %v1003, 16
        %v1033 = vrot.slane %v1031, 7
        %v1034 = vshll.u32 %v1004, 16
        %v1036 = vrot.slane %v1034, 7
        %v1037 = vshll.u32 %v1005, 16
        %v1039 = vrot.slane %v1037, 7
        %v1040 = vshll.u32 %v1008, 16
        %v1042 = vrot.slane %v1040, 7
        %v1043 = vshll.u32 %v1009, 16
        %v1045 = vrot.slane %v1043, 7
        %v1046 = vshll.u32 %v1010, 16
        %v1048 = vrot.slane %v1046, 7
        %v1049 = vshll.u32 %v1011, 16
        %v1051 = vrot.slane %v1049, 7
        %v1052 = vshll.u32 %v1012, 16
        %v1054 = vrot.slane %v1052, 7
        %v1055 = vshll.u32 %v1013, 16
        %v1057 = vrot.slane %v1055, 7
        %v1058 = vshll.u32 %v1014, 16
        %v1060 = vrot.slane %v1058, 7
        %v1061 = vshll.u32 %v1015, 16
        %v1063 = vrot.slane %v1061, 7
        %1064 = vrot.lane.b32.xlu0 %v1018, 1
        %v1065 = vpop.permute.xlu0 %1064
        %1066 = vrot.lane.b32.xlu0 %v1021, 1
        %v1067 = vpop.permute.xlu0 %1066
        %1068 = vrot.lane.b32.xlu0 %v1024, 1
        %v1069 = vpop.permute.xlu0 %1068
        %1070 = vrot.lane.b32.xlu0 %v1027, 1
        %v1071 = vpop.permute.xlu0 %1070
        %1072 = vrot.lane.b32.xlu0 %v1030, 1
        %v1073 = vpop.permute.xlu0 %1072
        %1074 = vrot.lane.b32.xlu0 %v1033, 1
        %v1075 = vpop.permute.xlu0 %1074
        %1076 = vrot.lane.b32.xlu0 %v1036, 1
        %v1077 = vpop.permute.xlu0 %1076
        %1078 = vrot.lane.b32.xlu0 %v1039, 1
        %v1079 = vpop.permute.xlu0 %1078
        %1080 = vrot.lane.b32.xlu0 %v1042, 1
        %v1081 = vpop.permute.xlu0 %1080
        %1082 = vrot.lane.b32.xlu0 %v1045, 1
        %v1083 = vpop.permute.xlu0 %1082
        %1084 = vrot.lane.b32.xlu0 %v1048, 1
        %v1085 = vpop.permute.xlu0 %1084
        %1086 = vrot.lane.b32.xlu0 %v1051, 1
        %v1087 = vpop.permute.xlu0 %1086
        %1088 = vrot.lane.b32.xlu0 %v1054, 1
        %v1089 = vpop.permute.xlu0 %1088
        %1090 = vrot.lane.b32.xlu0 %v1057, 1
        %v1091 = vpop.permute.xlu0 %1090
        %1092 = vrot.lane.b32.xlu0 %v1060, 1
        %v1093 = vpop.permute.xlu0 %1092
        %1094 = vrot.lane.b32.xlu0 %v1063, 1
        %v1095 = vpop.permute.xlu0 %1094
        %v1096 = vrot.slane %v1065, 4
        %v1097 = vrot.slane %v1067, 4
        %v1098 = vrot.slane %v1069, 4
        %v1099 = vrot.slane %v1071, 4
        %v1100 = vrot.slane %v1073, 4
        %v1101 = vrot.slane %v1075, 4
        %v1102 = vrot.slane %v1077, 4
        %v1103 = vrot.slane %v1079, 4
        %v1104 = vrot.slane %v1081, 4
        %v1105 = vrot.slane %v1083, 4
        %v1106 = vrot.slane %v1085, 4
        %v1107 = vrot.slane %v1087, 4
        %v1108 = vrot.slane %v1089, 4
        %v1109 = vrot.slane %v1091, 4
        %v1110 = vrot.slane %v1093, 4
        %v1111 = vrot.slane %v1095, 4
        %vm1112 = vcmask 7168
        %v1113 = vsel %vm1112, %v1096, %v1065
        %v1114 = vsel %vm455, %v1096, %v1097
        %v1115 = vsel %vm1112, %v1114, %v1067
        %v1116 = vsel %vm455, %v1097, %v1098
        %v1117 = vsel %vm1112, %v1116, %v1069
        %v1118 = vsel %vm455, %v1098, %v1099
        %v1119 = vsel %vm1112, %v1118, %v1071
        %v1120 = vsel %vm455, %v1099, %v1100
        %v1121 = vsel %vm1112, %v1120, %v1073
        %v1122 = vsel %vm455, %v1100, %v1101
        %v1123 = vsel %vm1112, %v1122, %v1075
        %v1124 = vsel %vm455, %v1101, %v1102
        %v1125 = vsel %vm1112, %v1124, %v1077
        %v1126 = vsel %vm455, %v1102, %v1103
        %v1127 = vsel %vm1112, %v1126, %v1079
        %v1128 = vsel %vm455, %v1103, %v1104
        %v1129 = vsel %vm1112, %v1128, %v1081
        %v1130 = vsel %vm455, %v1104, %v1105
        %v1131 = vsel %vm1112, %v1130, %v1083
        %v1132 = vsel %vm455, %v1105, %v1106
        %v1133 = vsel %vm1112, %v1132, %v1085
        %v1134 = vsel %vm455, %v1106, %v1107
        %v1135 = vsel %vm1112, %v1134, %v1087
        %v1136 = vsel %vm455, %v1107, %v1108
        %v1137 = vsel %vm1112, %v1136, %v1089
        %v1138 = vsel %vm455, %v1108, %v1109
        %v1139 = vsel %vm1112, %v1138, %v1091
        %v1140 = vsel %vm455, %v1109, %v1110
        %v1141 = vsel %vm1112, %v1140, %v1093
        %v1142 = vsel %vm455, %v1110, %v1111
        %v1143 = vsel %vm1112, %v1142, %v1095
        %vm1160 = vcmask 1041417
        %vm1161 = vsmask.f32 7942
        %vm1162 = vmand %vm1160, %vm1161
        %vm1163 = vsmask.f32 7958
        %vm1164 = vmand %vm927, %vm1163
        %vm1165 = vmor %vm1164, %vm1162
        %v1166 = vld [vmem:[#allocation2] sm:$0x22]
        %v1167 = vsel %vm1165, %v1113, %v1166
        %1168 = vst [vmem:[#allocation2] sm:$0x22] %v1167
        %vm1169 = vmand %vm934, %vm1161
        %vm1170 = vmor %vm1164, %vm1169
        %v1171 = vld [vmem:[#allocation2 + $0x8] sm:$0x22]
        %v1172 = vsel %vm1170, %v1115, %v1171
        %1173 = vst [vmem:[#allocation2 + $0x8] sm:$0x22] %v1172
        %v1174 = vld [vmem:[#allocation2 + $0x10] sm:$0x22]
        %v1175 = vsel %vm1170, %v1117, %v1174
        %1176 = vst [vmem:[#allocation2 + $0x10] sm:$0x22] %v1175
        %v1177 = vld [vmem:[#allocation2 + $0x18] sm:$0x22]
        %v1178 = vsel %vm1170, %v1119, %v1177
        %1179 = vst [vmem:[#allocation2 + $0x18] sm:$0x22] %v1178
        %v1180 = vld [vmem:[#allocation2 + $0x20] sm:$0x22]
        %v1181 = vsel %vm1170, %v1121, %v1180
        %1182 = vst [vmem:[#allocation2 + $0x20] sm:$0x22] %v1181
        %v1183 = vld [vmem:[#allocation2 + $0x28] sm:$0x22]
        %v1184 = vsel %vm1170, %v1123, %v1183
        %1185 = vst [vmem:[#allocation2 + $0x28] sm:$0x22] %v1184
        %v1186 = vld [vmem:[#allocation2 + $0x30] sm:$0x22]
        %v1187 = vsel %vm1170, %v1125, %v1186
        %1188 = vst [vmem:[#allocation2 + $0x30] sm:$0x22] %v1187
        %v1189 = vld [vmem:[#allocation2 + $0x38] sm:$0x22]
        %v1190 = vsel %vm1170, %v1127, %v1189
        %1191 = vst [vmem:[#allocation2 + $0x38] sm:$0x22] %v1190
        %v1192 = vld [vmem:[#allocation2 + $0x40] sm:$0x22]
        %v1193 = vsel %vm1170, %v1129, %v1192
        %1194 = vst [vmem:[#allocation2 + $0x40] sm:$0x22] %v1193
        %v1195 = vld [vmem:[#allocation2 + $0x48] sm:$0x22]
        %v1196 = vsel %vm1170, %v1131, %v1195
        %1197 = vst [vmem:[#allocation2 + $0x48] sm:$0x22] %v1196
        %v1198 = vld [vmem:[#allocation2 + $0x50] sm:$0x22]
        %v1199 = vsel %vm1170, %v1133, %v1198
        %1200 = vst [vmem:[#allocation2 + $0x50] sm:$0x22] %v1199
        %v1201 = vld [vmem:[#allocation2 + $0x58] sm:$0x22]
        %v1202 = vsel %vm1170, %v1135, %v1201
        %1203 = vst [vmem:[#allocation2 + $0x58] sm:$0x22] %v1202
        %v1204 = vld [vmem:[#allocation2 + $0x60] sm:$0x22]
        %v1205 = vsel %vm1170, %v1137, %v1204
        %1206 = vst [vmem:[#allocation2 + $0x60] sm:$0x22] %v1205
        %v1207 = vld [vmem:[#allocation2 + $0x68] sm:$0x22]
        %v1208 = vsel %vm1170, %v1139, %v1207
        %1209 = vst [vmem:[#allocation2 + $0x68] sm:$0x22] %v1208
        %v1210 = vld [vmem:[#allocation2 + $0x70] sm:$0x22]
        %v1211 = vsel %vm1170, %v1141, %v1210
        %1212 = vst [vmem:[#allocation2 + $0x70] sm:$0x22] %v1211
        %v1213 = vld [vmem:[#allocation2 + $0x78] sm:$0x22]
        %v1214 = vsel %vm1170, %v1143, %v1213
        %1215 = vst [vmem:[#allocation2 + $0x78] sm:$0x22] %v1214
        %1216 = vst [vmem:[#allocation1] ss:$4 sm:$0xff] %v363
        %v1217 = vld [vmem:[#allocation1 + $0x18] sm:$0xff]
        %v1218 = vshll.u32 %v1217, 16
        %v1220 = vrot.slane %v1218, 7
        %1221 = vrot.lane.b32.xlu0 %v1220, 1
        %v1222 = vpop.permute.xlu0 %1221
        %v1223 = vrot.slane %v1222, 4
        %vm1225 = vcmask 1025
        %vm1226 = vmand %vm1225, %vm1161
        %v1227 = vld [vmem:[#allocation2] sm:$0x2]
        %v1228 = vsel %vm1226, %v1223, %v1227
        %1229 = vst [vmem:[#allocation2] sm:$0x2] %v1228
        %s1230 = scalar_lea.vmem [#allocation1], 2
        %1231 = vst [vmem:[%s1230] ss:$4 sm:$0xff] %v360
        %s1232 = scalar_lea.vmem [#allocation1], 34
        %1233 = vst [vmem:[%s1232] ss:$4 sm:$0xff] %v361
        %v1234 = vld [vmem:[#allocation1] sm:$0xff]
        %v1235 = vld [vmem:[#allocation1 + $0x8] sm:$0xff]
        %v1236 = vld [vmem:[#allocation1 + $0x10] sm:$0xff]
        %v1237 = vld [vmem:[#allocation1 + $0x18] sm:$0xff]
        %v1238 = vld [vmem:[#allocation1 + $0x20] sm:$0xff]
        %v1239 = vld [vmem:[#allocation1 + $0x28] sm:$0xff]
        %v1240 = vld [vmem:[#allocation1 + $0x30] sm:$0xff]
        %v1241 = vld [vmem:[#allocation1 + $0x38] sm:$0xff]
        %1242 = vst [vmem:[%s1230] ss:$4 sm:$0xff] %v362
        %1243 = vst [vmem:[%s1232] ss:$4 sm:$0xff] %v363
        %v1244 = vld [vmem:[#allocation1] sm:$0xff]
        %v1245 = vld [vmem:[#allocation1 + $0x8] sm:$0xff]
        %v1246 = vld [vmem:[#allocation1 + $0x10] sm:$0xff]
        %v1247 = vld [vmem:[#allocation1 + $0x18] sm:$0xff]
        %v1248 = vld [vmem:[#allocation1 + $0x20] sm:$0xff]
        %v1249 = vld [vmem:[#allocation1 + $0x28] sm:$0xff]
        %v1250 = vld [vmem:[#allocation1 + $0x30] sm:$0xff]
        %v1251 = vld [vmem:[#allocation1 + $0x38] sm:$0xff]
        %vm1268 = vcmask 1042434
        %vm1269 = vsmask.f32 2304
        %vm1270 = vmand %vm1268, %vm1269
        %vm1271 = vcmask 1046534
        %vm1272 = vsmask.f32 6400
        %vm1273 = vmand %vm1271, %vm1272
        %vm1274 = vmor %vm1273, %vm1270
        %v1275 = vld [vmem:[#allocation2] sm:$0x44]
        %v1276 = vsel %vm1274, %v1234, %v1275
        %1277 = vst [vmem:[#allocation2] sm:$0x44] %v1276
        %v1278 = vld [vmem:[#allocation2 + $0x8] sm:$0x44]
        %v1279 = vsel %vm1274, %v1235, %v1278
        %1280 = vst [vmem:[#allocation2 + $0x8] sm:$0x44] %v1279
        %v1281 = vld [vmem:[#allocation2 + $0x10] sm:$0x44]
        %v1282 = vsel %vm1274, %v1236, %v1281
        %1283 = vst [vmem:[#allocation2 + $0x10] sm:$0x44] %v1282
        %v1284 = vld [vmem:[#allocation2 + $0x18] sm:$0x44]
        %v1285 = vsel %vm1274, %v1237, %v1284
        %1286 = vst [vmem:[#allocation2 + $0x18] sm:$0x44] %v1285
        %v1287 = vld [vmem:[#allocation2 + $0x20] sm:$0x44]
        %v1288 = vsel %vm1274, %v1238, %v1287
        %1289 = vst [vmem:[#allocation2 + $0x20] sm:$0x44] %v1288
        %v1290 = vld [vmem:[#allocation2 + $0x28] sm:$0x44]
        %v1291 = vsel %vm1274, %v1239, %v1290
        %1292 = vst [vmem:[#allocation2 + $0x28] sm:$0x44] %v1291
        %v1293 = vld [vmem:[#allocation2 + $0x30] sm:$0x44]
        %v1294 = vsel %vm1274, %v1240, %v1293
        %1295 = vst [vmem:[#allocation2 + $0x30] sm:$0x44] %v1294
        %v1296 = vld [vmem:[#allocation2 + $0x38] sm:$0x44]
        %v1297 = vsel %vm1274, %v1241, %v1296
        %1298 = vst [vmem:[#allocation2 + $0x38] sm:$0x44] %v1297
        %v1299 = vld [vmem:[#allocation2 + $0x40] sm:$0x44]
        %v1300 = vsel %vm1274, %v1244, %v1299
        %1301 = vst [vmem:[#allocation2 + $0x40] sm:$0x44] %v1300
        %v1302 = vld [vmem:[#allocation2 + $0x48] sm:$0x44]
        %v1303 = vsel %vm1274, %v1245, %v1302
        %1304 = vst [vmem:[#allocation2 + $0x48] sm:$0x44] %v1303
        %v1305 = vld [vmem:[#allocation2 + $0x50] sm:$0x44]
        %v1306 = vsel %vm1274, %v1246, %v1305
        %1307 = vst [vmem:[#allocation2 + $0x50] sm:$0x44] %v1306
        %v1308 = vld [vmem:[#allocation2 + $0x58] sm:$0x44]
        %v1309 = vsel %vm1274, %v1247, %v1308
        %1310 = vst [vmem:[#allocation2 + $0x58] sm:$0x44] %v1309
        %v1311 = vld [vmem:[#allocation2 + $0x60] sm:$0x44]
        %v1312 = vsel %vm1274, %v1248, %v1311
        %1313 = vst [vmem:[#allocation2 + $0x60] sm:$0x44] %v1312
        %v1314 = vld [vmem:[#allocation2 + $0x68] sm:$0x44]
        %v1315 = vsel %vm1274, %v1249, %v1314
        %1316 = vst [vmem:[#allocation2 + $0x68] sm:$0x44] %v1315
        %v1317 = vld [vmem:[#allocation2 + $0x70] sm:$0x44]
        %v1318 = vsel %vm1274, %v1250, %v1317
        %1319 = vst [vmem:[#allocation2 + $0x70] sm:$0x44] %v1318
        %v1320 = vld [vmem:[#allocation2 + $0x78] sm:$0x44]
        %v1321 = vsel %vm1274, %v1251, %v1320
        %1322 = vst [vmem:[#allocation2 + $0x78] sm:$0x44] %v1321
        %1323 = vst [vmem:[#allocation1] ss:$4 sm:$0xff] %v360
        %s1324 = scalar_lea.vmem [#allocation1], 32
        %1325 = vst [vmem:[%s1324] ss:$4 sm:$0xff] %v361
        %v1326 = vld [vmem:[#allocation1] sm:$0xff]
        %v1327 = vld [vmem:[#allocation1 + $0x8] sm:$0xff]
        %v1328 = vld [vmem:[#allocation1 + $0x10] sm:$0xff]
        %v1329 = vld [vmem:[#allocation1 + $0x18] sm:$0xff]
        %v1330 = vld [vmem:[#allocation1 + $0x20] sm:$0xff]
        %v1331 = vld [vmem:[#allocation1 + $0x28] sm:$0xff]
        %v1332 = vld [vmem:[#allocation1 + $0x30] sm:$0xff]
        %v1333 = vld [vmem:[#allocation1 + $0x38] sm:$0xff]
        %1334 = vst [vmem:[#allocation1] ss:$4 sm:$0xff] %v362
        %1335 = vst [vmem:[%s1324] ss:$4 sm:$0xff] %v363
        %v1336 = vld [vmem:[#allocation1] sm:$0xff]
        %v1337 = vld [vmem:[#allocation1 + $0x8] sm:$0xff]
        %v1338 = vld [vmem:[#allocation1 + $0x10] sm:$0xff]
        %v1339 = vld [vmem:[#allocation1 + $0x18] sm:$0xff]
        %v1340 = vld [vmem:[#allocation1 + $0x20] sm:$0xff]
        %v1341 = vld [vmem:[#allocation1 + $0x28] sm:$0xff]
        %v1342 = vld [vmem:[#allocation1 + $0x30] sm:$0xff]
        %v1343 = vld [vmem:[#allocation1 + $0x38] sm:$0xff]
        %v1344 = vshll.u32 %v1326, 16
        %v1346 = vrot.slane %v1344, 6
        %v1347 = vshll.u32 %v1327, 16
        %v1349 = vrot.slane %v1347, 6
        %v1350 = vshll.u32 %v1328, 16
        %v1352 = vrot.slane %v1350, 6
        %v1353 = vshll.u32 %v1329, 16
        %v1355 = vrot.slane %v1353, 6
        %v1356 = vshll.u32 %v1330, 16
        %v1358 = vrot.slane %v1356, 6
        %v1359 = vshll.u32 %v1331, 16
        %v1361 = vrot.slane %v1359, 6
        %v1362 = vshll.u32 %v1332, 16
        %v1364 = vrot.slane %v1362, 6
        %v1365 = vshll.u32 %v1333, 16
        %v1367 = vrot.slane %v1365, 6
        %v1368 = vshll.u32 %v1336, 16
        %v1370 = vrot.slane %v1368, 6
        %v1371 = vshll.u32 %v1337, 16
        %v1373 = vrot.slane %v1371, 6
        %v1374 = vshll.u32 %v1338, 16
        %v1376 = vrot.slane %v1374, 6
        %v1377 = vshll.u32 %v1339, 16
        %v1379 = vrot.slane %v1377, 6
        %v1380 = vshll.u32 %v1340, 16
        %v1382 = vrot.slane %v1380, 6
        %v1383 = vshll.u32 %v1341, 16
        %v1385 = vrot.slane %v1383, 6
        %v1386 = vshll.u32 %v1342, 16
        %v1388 = vrot.slane %v1386, 6
        %v1389 = vshll.u32 %v1343, 16
        %v1391 = vrot.slane %v1389, 6
        %1392 = vrot.lane.b32.xlu0 %v1346, 127
        %v1393 = vpop.permute.xlu0 %1392
        %1394 = vrot.lane.b32.xlu0 %v1349, 127
        %v1395 = vpop.permute.xlu0 %1394
        %1396 = vrot.lane.b32.xlu0 %v1352, 127
        %v1397 = vpop.permute.xlu0 %1396
        %1398 = vrot.lane.b32.xlu0 %v1355, 127
        %v1399 = vpop.permute.xlu0 %1398
        %1400 = vrot.lane.b32.xlu0 %v1358, 127
        %v1401 = vpop.permute.xlu0 %1400
        %1402 = vrot.lane.b32.xlu0 %v1361, 127
        %v1403 = vpop.permute.xlu0 %1402
        %1404 = vrot.lane.b32.xlu0 %v1364, 127
        %v1405 = vpop.permute.xlu0 %1404
        %1406 = vrot.lane.b32.xlu0 %v1367, 127
        %v1407 = vpop.permute.xlu0 %1406
        %1408 = vrot.lane.b32.xlu0 %v1370, 127
        %v1409 = vpop.permute.xlu0 %1408
        %1410 = vrot.lane.b32.xlu0 %v1373, 127
        %v1411 = vpop.permute.xlu0 %1410
        %1412 = vrot.lane.b32.xlu0 %v1376, 127
        %v1413 = vpop.permute.xlu0 %1412
        %1414 = vrot.lane.b32.xlu0 %v1379, 127
        %v1415 = vpop.permute.xlu0 %1414
        %1416 = vrot.lane.b32.xlu0 %v1382, 127
        %v1417 = vpop.permute.xlu0 %1416
        %1418 = vrot.lane.b32.xlu0 %v1385, 127
        %v1419 = vpop.permute.xlu0 %1418
        %1420 = vrot.lane.b32.xlu0 %v1388, 127
        %v1421 = vpop.permute.xlu0 %1420
        %1422 = vrot.lane.b32.xlu0 %v1391, 127
        %v1423 = vpop.permute.xlu0 %1422
        %v1424 = vrot.slane %v1393, 4
        %v1425 = vrot.slane %v1395, 4
        %v1426 = vrot.slane %v1397, 4
        %v1427 = vrot.slane %v1399, 4
        %v1428 = vrot.slane %v1401, 4
        %v1429 = vrot.slane %v1403, 4
        %v1430 = vrot.slane %v1405, 4
        %v1431 = vrot.slane %v1407, 4
        %v1432 = vrot.slane %v1409, 4
        %v1433 = vrot.slane %v1411, 4
        %v1434 = vrot.slane %v1413, 4
        %v1435 = vrot.slane %v1415, 4
        %v1436 = vrot.slane %v1417, 4
        %v1437 = vrot.slane %v1419, 4
        %v1438 = vrot.slane %v1421, 4
        %v1439 = vrot.slane %v1423, 4
        %v1440 = vsel %vm455, %v1424, %v1425
        %vm1441 = vcmask 1039360
        %v1442 = vsel %vm1441, %v1393, %v1440
        %v1443 = vsel %vm455, %v1425, %v1426
        %v1444 = vsel %vm1441, %v1395, %v1443
        %v1445 = vsel %vm455, %v1426, %v1427
        %v1446 = vsel %vm1441, %v1397, %v1445
        %v1447 = vsel %vm455, %v1427, %v1428
        %v1448 = vsel %vm1441, %v1399, %v1447
        %v1449 = vsel %vm455, %v1428, %v1429
        %v1450 = vsel %vm1441, %v1401, %v1449
        %v1451 = vsel %vm455, %v1429, %v1430
        %v1452 = vsel %vm1441, %v1403, %v1451
        %v1453 = vsel %vm455, %v1430, %v1431
        %v1454 = vsel %vm1441, %v1405, %v1453
        %v1455 = vsel %vm455, %v1431, %v1432
        %v1456 = vsel %vm1441, %v1407, %v1455
        %v1457 = vsel %vm455, %v1432, %v1433
        %v1458 = vsel %vm1441, %v1409, %v1457
        %v1459 = vsel %vm455, %v1433, %v1434
        %v1460 = vsel %vm1441, %v1411, %v1459
        %v1461 = vsel %vm455, %v1434, %v1435
        %v1462 = vsel %vm1441, %v1413, %v1461
        %v1463 = vsel %vm455, %v1435, %v1436
        %v1464 = vsel %vm1441, %v1415, %v1463
        %v1465 = vsel %vm455, %v1436, %v1437
        %v1466 = vsel %vm1441, %v1417, %v1465
        %v1467 = vsel %vm455, %v1437, %v1438
        %v1468 = vsel %vm1441, %v1419, %v1467
        %v1469 = vsel %vm455, %v1438, %v1439
        %v1470 = vsel %vm1441, %v1421, %v1469
        %v1471 = vsel %vm1441, %v1423, %v1439
        %vm1488 = vsmask.f32 7946
        %vm1489 = vmand %vm1268, %vm1488
        %vm1490 = vsmask.f32 7962
        %vm1491 = vmand %vm1271, %vm1490
        %vm1492 = vmor %vm1491, %vm1489
        %v1493 = vld [vmem:[#allocation2] sm:$0x44]
        %v1494 = vsel %vm1492, %v1442, %v1493
        %1495 = vst [vmem:[#allocation2] sm:$0x44] %v1494
        %v1496 = vld [vmem:[#allocation2 + $0x8] sm:$0x44]
        %v1497 = vsel %vm1492, %v1444, %v1496
        %1498 = vst [vmem:[#allocation2 + $0x8] sm:$0x44] %v1497
        %v1499 = vld [vmem:[#allocation2 + $0x10] sm:$0x44]
        %v1500 = vsel %vm1492, %v1446, %v1499
        %1501 = vst [vmem:[#allocation2 + $0x10] sm:$0x44] %v1500
        %v1502 = vld [vmem:[#allocation2 + $0x18] sm:$0x44]
        %v1503 = vsel %vm1492, %v1448, %v1502
        %1504 = vst [vmem:[#allocation2 + $0x18] sm:$0x44] %v1503
        %v1505 = vld [vmem:[#allocation2 + $0x20] sm:$0x44]
        %v1506 = vsel %vm1492, %v1450, %v1505
        %1507 = vst [vmem:[#allocation2 + $0x20] sm:$0x44] %v1506
        %v1508 = vld [vmem:[#allocation2 + $0x28] sm:$0x44]
        %v1509 = vsel %vm1492, %v1452, %v1508
        %1510 = vst [vmem:[#allocation2 + $0x28] sm:$0x44] %v1509
        %v1511 = vld [vmem:[#allocation2 + $0x30] sm:$0x44]
        %v1512 = vsel %vm1492, %v1454, %v1511
        %1513 = vst [vmem:[#allocation2 + $0x30] sm:$0x44] %v1512
        %v1514 = vld [vmem:[#allocation2 + $0x38] sm:$0x44]
        %v1515 = vsel %vm1492, %v1456, %v1514
        %1516 = vst [vmem:[#allocation2 + $0x38] sm:$0x44] %v1515
        %v1517 = vld [vmem:[#allocation2 + $0x40] sm:$0x44]
        %v1518 = vsel %vm1492, %v1458, %v1517
        %1519 = vst [vmem:[#allocation2 + $0x40] sm:$0x44] %v1518
        %v1520 = vld [vmem:[#allocation2 + $0x48] sm:$0x44]
        %v1521 = vsel %vm1492, %v1460, %v1520
        %1522 = vst [vmem:[#allocation2 + $0x48] sm:$0x44] %v1521
        %v1523 = vld [vmem:[#allocation2 + $0x50] sm:$0x44]
        %v1524 = vsel %vm1492, %v1462, %v1523
        %1525 = vst [vmem:[#allocation2 + $0x50] sm:$0x44] %v1524
        %v1526 = vld [vmem:[#allocation2 + $0x58] sm:$0x44]
        %v1527 = vsel %vm1492, %v1464, %v1526
        %1528 = vst [vmem:[#allocation2 + $0x58] sm:$0x44] %v1527
        %v1529 = vld [vmem:[#allocation2 + $0x60] sm:$0x44]
        %v1530 = vsel %vm1492, %v1466, %v1529
        %1531 = vst [vmem:[#allocation2 + $0x60] sm:$0x44] %v1530
        %v1532 = vld [vmem:[#allocation2 + $0x68] sm:$0x44]
        %v1533 = vsel %vm1492, %v1468, %v1532
        %1534 = vst [vmem:[#allocation2 + $0x68] sm:$0x44] %v1533
        %v1535 = vld [vmem:[#allocation2 + $0x70] sm:$0x44]
        %v1536 = vsel %vm1492, %v1470, %v1535
        %1537 = vst [vmem:[#allocation2 + $0x70] sm:$0x44] %v1536
        %vm1538 = vcmask 1038342
        %vm1539 = vmand %vm1538, %vm1490
        %vm1540 = vmor %vm1539, %vm1489
        %v1541 = vld [vmem:[#allocation2 + $0x78] sm:$0x44]
        %v1542 = vsel %vm1540, %v1471, %v1541
        %1543 = vst [vmem:[#allocation2 + $0x78] sm:$0x44] %v1542
        %1544 = vst [vmem:[#allocation1] ss:$4 sm:$0xff] %v360
        %v1545 = vld [vmem:[#allocation1] sm:$0xff]
        %v1546 = vshll.u32 %v1545, 16
        %v1548 = vrot.slane %v1546, 6
        %1549 = vrot.lane.b32.xlu0 %v1548, 127
        %v1550 = vpop.permute.xlu0 %1549
        %vm1552 = vcmask 1043450
        %vm1553 = vmand %vm1552, %vm1488
        %v1554 = vld [vmem:[#allocation2 + $0x7c] sm:$0x4]
        %v1555 = vsel %vm1553, %v1550, %v1554
        %1556 = vst [vmem:[#allocation2 + $0x7c] sm:$0x4] %v1555
        %s1557 = scalar_lea.vmem [#allocation1], 3
        %1558 = vst [vmem:[%s1557] ss:$4 sm:$0xff] %v360
        %s1559 = scalar_lea.vmem [#allocation1], 35
        %1560 = vst [vmem:[%s1559] ss:$4 sm:$0xff] %v361
        %v1561 = vld [vmem:[#allocation1] sm:$0xff]
        %v1563 = vld [vmem:[#allocation1 + $0x8] sm:$0xff]
        %v1565 = vld [vmem:[#allocation1 + $0x10] sm:$0xff]
        %v1567 = vld [vmem:[#allocation1 + $0x18] sm:$0xff]
        %v1569 = vld [vmem:[#allocation1 + $0x20] sm:$0xff]
        %v1571 = vld [vmem:[#allocation1 + $0x28] sm:$0xff]
        %v1573 = vld [vmem:[#allocation1 + $0x30] sm:$0xff]
        %v1575 = vld [vmem:[#allocation1 + $0x38] sm:$0xff]
        %1577 = vst [vmem:[%s1557] ss:$4 sm:$0xff] %v362
        %1578 = vst [vmem:[%s1559] ss:$4 sm:$0xff] %v363
        %v1579 = vld [vmem:[#allocation1] sm:$0xff]
        %v1581 = vld [vmem:[#allocation1 + $0x8] sm:$0xff]
        %v1583 = vld [vmem:[#allocation1 + $0x10] sm:$0xff]
        %v1585 = vld [vmem:[#allocation1 + $0x18] sm:$0xff]
        %v1587 = vld [vmem:[#allocation1 + $0x20] sm:$0xff]
        %v1589 = vld [vmem:[#allocation1 + $0x28] sm:$0xff]
        %v1591 = vld [vmem:[#allocation1 + $0x30] sm:$0xff]
        %v1593 = vld [vmem:[#allocation1 + $0x38] sm:$0xff]
        %1595 = vrot.lane.b32.xlu0 %v1561, 99
        %v1596 = vpop.permute.xlu0 %1595
        %1597 = vrot.lane.b32.xlu0 %v1563, 99
        %v1598 = vpop.permute.xlu0 %1597
        %1599 = vrot.lane.b32.xlu0 %v1565, 99
        %v1600 = vpop.permute.xlu0 %1599
        %1601 = vrot.lane.b32.xlu0 %v1567, 99
        %v1602 = vpop.permute.xlu0 %1601
        %1603 = vrot.lane.b32.xlu0 %v1569, 99
        %v1604 = vpop.permute.xlu0 %1603
        %1605 = vrot.lane.b32.xlu0 %v1571, 99
        %v1606 = vpop.permute.xlu0 %1605
        %1607 = vrot.lane.b32.xlu0 %v1573, 99
        %v1608 = vpop.permute.xlu0 %1607
        %1609 = vrot.lane.b32.xlu0 %v1575, 99
        %v1610 = vpop.permute.xlu0 %1609
        %1611 = vrot.lane.b32.xlu0 %v1579, 99
        %v1612 = vpop.permute.xlu0 %1611
        %1613 = vrot.lane.b32.xlu0 %v1581, 99
        %v1614 = vpop.permute.xlu0 %1613
        %1615 = vrot.lane.b32.xlu0 %v1583, 99
        %v1616 = vpop.permute.xlu0 %1615
        %1617 = vrot.lane.b32.xlu0 %v1585, 99
        %v1618 = vpop.permute.xlu0 %1617
        %1619 = vrot.lane.b32.xlu0 %v1587, 99
        %v1620 = vpop.permute.xlu0 %1619
        %1621 = vrot.lane.b32.xlu0 %v1589, 99
        %v1622 = vpop.permute.xlu0 %1621
        %1623 = vrot.lane.b32.xlu0 %v1591, 99
        %v1624 = vpop.permute.xlu0 %1623
        %1625 = vrot.lane.b32.xlu0 %v1593, 99
        %v1626 = vpop.permute.xlu0 %1625
        %v1627 = vrot.slane %v1596, 4
        %v1628 = vrot.slane %v1598, 4
        %v1629 = vrot.slane %v1600, 4
        %v1630 = vrot.slane %v1602, 4
        %v1631 = vrot.slane %v1604, 4
        %v1632 = vrot.slane %v1606, 4
        %v1633 = vrot.slane %v1608, 4
        %v1634 = vrot.slane %v1610, 4
        %v1635 = vrot.slane %v1612, 4
        %v1636 = vrot.slane %v1614, 4
        %v1637 = vrot.slane %v1616, 4
        %v1638 = vrot.slane %v1618, 4
        %v1639 = vrot.slane %v1620, 4
        %v1640 = vrot.slane %v1622, 4
        %v1641 = vrot.slane %v1624, 4
        %v1642 = vrot.slane %v1626, 4
        %v1643 = vsel %vm455, %v1627, %v1628
        %vm1644 = vcmask 809984
        %v1645 = vsel %vm1644, %v1596, %v1643
        %v1646 = vsel %vm455, %v1628, %v1629
        %v1647 = vsel %vm1644, %v1598, %v1646
        %v1648 = vsel %vm455, %v1629, %v1630
        %v1649 = vsel %vm1644, %v1600, %v1648
        %v1650 = vsel %vm455, %v1630, %v1631
        %v1651 = vsel %vm1644, %v1602, %v1650
        %v1652 = vsel %vm455, %v1631, %v1632
        %v1653 = vsel %vm1644, %v1604, %v1652
        %v1654 = vsel %vm455, %v1632, %v1633
        %v1655 = vsel %vm1644, %v1606, %v1654
        %v1656 = vsel %vm455, %v1633, %v1634
        %v1657 = vsel %vm1644, %v1608, %v1656
        %v1658 = vsel %vm455, %v1634, %v1635
        %v1659 = vsel %vm1644, %v1610, %v1658
        %v1660 = vsel %vm455, %v1635, %v1636
        %v1661 = vsel %vm1644, %v1612, %v1660
        %v1662 = vsel %vm455, %v1636, %v1637
        %v1663 = vsel %vm1644, %v1614, %v1662
        %v1664 = vsel %vm455, %v1637, %v1638
        %v1665 = vsel %vm1644, %v1616, %v1664
        %v1666 = vsel %vm455, %v1638, %v1639
        %v1667 = vsel %vm1644, %v1618, %v1666
        %v1668 = vsel %vm455, %v1639, %v1640
        %v1669 = vsel %vm1644, %v1620, %v1668
        %v1670 = vsel %vm455, %v1640, %v1641
        %v1671 = vsel %vm1644, %v1622, %v1670
        %v1672 = vsel %vm455, %v1641, %v1642
        %v1673 = vsel %vm1644, %v1624, %v1672
        %v1674 = vsel %vm1644, %v1626, %v1642
        %vm1691 = vcmask 1043459
        %vm1692 = vsmask.f32 3328
        %vm1693 = vmand %vm1691, %vm1692
        %vm1694 = vcmask 1047559
        %vm1695 = vsmask.f32 7424
        %vm1696 = vmand %vm1694, %vm1695
        %vm1697 = vmor %vm1696, %vm1693
        %v1698 = vld [vmem:[#allocation2] sm:$0x88]
        %v1699 = vsel %vm1697, %v1645, %v1698
        %1700 = vst [vmem:[#allocation2] sm:$0x88] %v1699
        %v1701 = vld [vmem:[#allocation2 + $0x8] sm:$0x88]
        %v1702 = vsel %vm1697, %v1647, %v1701
        %1703 = vst [vmem:[#allocation2 + $0x8] sm:$0x88] %v1702
        %v1704 = vld [vmem:[#allocation2 + $0x10] sm:$0x88]
        %v1705 = vsel %vm1697, %v1649, %v1704
        %1706 = vst [vmem:[#allocation2 + $0x10] sm:$0x88] %v1705
        %v1707 = vld [vmem:[#allocation2 + $0x18] sm:$0x88]
        %v1708 = vsel %vm1697, %v1651, %v1707
        %1709 = vst [vmem:[#allocation2 + $0x18] sm:$0x88] %v1708
        %v1710 = vld [vmem:[#allocation2 + $0x20] sm:$0x88]
        %v1711 = vsel %vm1697, %v1653, %v1710
        %1712 = vst [vmem:[#allocation2 + $0x20] sm:$0x88] %v1711
        %v1713 = vld [vmem:[#allocation2 + $0x28] sm:$0x88]
        %v1714 = vsel %vm1697, %v1655, %v1713
        %1715 = vst [vmem:[#allocation2 + $0x28] sm:$0x88] %v1714
        %v1716 = vld [vmem:[#allocation2 + $0x30] sm:$0x88]
        %v1717 = vsel %vm1697, %v1657, %v1716
        %1718 = vst [vmem:[#allocation2 + $0x30] sm:$0x88] %v1717
        %v1719 = vld [vmem:[#allocation2 + $0x38] sm:$0x88]
        %v1720 = vsel %vm1697, %v1659, %v1719
        %1721 = vst [vmem:[#allocation2 + $0x38] sm:$0x88] %v1720
        %v1722 = vld [vmem:[#allocation2 + $0x40] sm:$0x88]
        %v1723 = vsel %vm1697, %v1661, %v1722
        %1724 = vst [vmem:[#allocation2 + $0x40] sm:$0x88] %v1723
        %v1725 = vld [vmem:[#allocation2 + $0x48] sm:$0x88]
        %v1726 = vsel %vm1697, %v1663, %v1725
        %1727 = vst [vmem:[#allocation2 + $0x48] sm:$0x88] %v1726
        %v1728 = vld [vmem:[#allocation2 + $0x50] sm:$0x88]
        %v1729 = vsel %vm1697, %v1665, %v1728
        %1730 = vst [vmem:[#allocation2 + $0x50] sm:$0x88] %v1729
        %v1731 = vld [vmem:[#allocation2 + $0x58] sm:$0x88]
        %v1732 = vsel %vm1697, %v1667, %v1731
        %1733 = vst [vmem:[#allocation2 + $0x58] sm:$0x88] %v1732
        %v1734 = vld [vmem:[#allocation2 + $0x60] sm:$0x88]
        %v1735 = vsel %vm1697, %v1669, %v1734
        %1736 = vst [vmem:[#allocation2 + $0x60] sm:$0x88] %v1735
        %v1737 = vld [vmem:[#allocation2 + $0x68] sm:$0x88]
        %v1738 = vsel %vm1697, %v1671, %v1737
        %1739 = vst [vmem:[#allocation2 + $0x68] sm:$0x88] %v1738
        %v1740 = vld [vmem:[#allocation2 + $0x70] sm:$0x88]
        %v1741 = vsel %vm1697, %v1673, %v1740
        %1742 = vst [vmem:[#allocation2 + $0x70] sm:$0x88] %v1741
        %vm1743 = vcmask 809991
        %vm1744 = vmand %vm1743, %vm1695
        %vm1745 = vmor %vm1744, %vm1693
        %v1746 = vld [vmem:[#allocation2 + $0x78] sm:$0x88]
        %v1747 = vsel %vm1745, %v1674, %v1746
        %1748 = vst [vmem:[#allocation2 + $0x78] sm:$0x88] %v1747
        %s1749 = scalar_lea.vmem [#allocation1], 3
        %1750 = vst [vmem:[%s1749] ss:$4 sm:$0xff] %v360
        %v1751 = vld [vmem:[#allocation1] sm:$0xff]
        %1753 = vrot.lane.b32.xlu0 %v1751, 99
        %v1754 = vpop.permute.xlu0 %1753
        %vm1756 = vcmask 1044251
        %vm1757 = vmand %vm1756, %vm1692
        %v1758 = vld [vmem:[#allocation2 + $0x7c] sm:$0x8]
        %v1759 = vsel %vm1757, %v1754, %v1758
        %1760 = vst [vmem:[#allocation2 + $0x7c] sm:$0x8] %v1759
        %1761 = vst [vmem:[#allocation1] ss:$4 sm:$0xff] %v360
        %s1762 = scalar_lea.vmem [#allocation1], 32
        %1763 = vst [vmem:[%s1762] ss:$4 sm:$0xff] %v361
        %v1764 = vld [vmem:[#allocation1] sm:$0xff]
        %v1765 = vld [vmem:[#allocation1 + $0x8] sm:$0xff]
        %v1766 = vld [vmem:[#allocation1 + $0x10] sm:$0xff]
        %v1767 = vld [vmem:[#allocation1 + $0x18] sm:$0xff]
        %v1768 = vld [vmem:[#allocation1 + $0x20] sm:$0xff]
        %v1769 = vld [vmem:[#allocation1 + $0x28] sm:$0xff]
        %v1770 = vld [vmem:[#allocation1 + $0x30] sm:$0xff]
        %v1771 = vld [vmem:[#allocation1 + $0x38] sm:$0xff]
        %1772 = vst [vmem:[#allocation1] ss:$4 sm:$0xff] %v362
        %1773 = vst [vmem:[%s1762] ss:$4 sm:$0xff] %v363
        %v1774 = vld [vmem:[#allocation1] sm:$0xff]
        %v1775 = vld [vmem:[#allocation1 + $0x8] sm:$0xff]
        %v1776 = vld [vmem:[#allocation1 + $0x10] sm:$0xff]
        %v1777 = vld [vmem:[#allocation1 + $0x18] sm:$0xff]
        %v1778 = vld [vmem:[#allocation1 + $0x20] sm:$0xff]
        %v1779 = vld [vmem:[#allocation1 + $0x28] sm:$0xff]
        %v1780 = vld [vmem:[#allocation1 + $0x30] sm:$0xff]
        %v1781 = vld [vmem:[#allocation1 + $0x38] sm:$0xff]
        %v1782 = vshll.u32 %v1764, 16
        %v1784 = vrot.slane %v1782, 5
        %v1785 = vshll.u32 %v1765, 16
        %v1787 = vrot.slane %v1785, 5
        %v1788 = vshll.u32 %v1766, 16
        %v1790 = vrot.slane %v1788, 5
        %v1791 = vshll.u32 %v1767, 16
        %v1793 = vrot.slane %v1791, 5
        %v1794 = vshll.u32 %v1768, 16
        %v1796 = vrot.slane %v1794, 5
        %v1797 = vshll.u32 %v1769, 16
        %v1799 = vrot.slane %v1797, 5
        %v1800 = vshll.u32 %v1770, 16
        %v1802 = vrot.slane %v1800, 5
        %v1803 = vshll.u32 %v1771, 16
        %v1805 = vrot.slane %v1803, 5
        %v1806 = vshll.u32 %v1774, 16
        %v1808 = vrot.slane %v1806, 5
        %v1809 = vshll.u32 %v1775, 16
        %v1811 = vrot.slane %v1809, 5
        %v1812 = vshll.u32 %v1776, 16
        %v1814 = vrot.slane %v1812, 5
        %v1815 = vshll.u32 %v1777, 16
        %v1817 = vrot.slane %v1815, 5
        %v1818 = vshll.u32 %v1778, 16
        %v1820 = vrot.slane %v1818, 5
        %v1821 = vshll.u32 %v1779, 16
        %v1823 = vrot.slane %v1821, 5
        %v1824 = vshll.u32 %v1780, 16
        %v1826 = vrot.slane %v1824, 5
        %v1827 = vshll.u32 %v1781, 16
        %v1829 = vrot.slane %v1827, 5
        %1830 = vrot.lane.b32.xlu0 %v1784, 98
        %v1831 = vpop.permute.xlu0 %1830
        %1832 = vrot.lane.b32.xlu0 %v1787, 98
        %v1833 = vpop.permute.xlu0 %1832
        %1834 = vrot.lane.b32.xlu0 %v1790, 98
        %v1835 = vpop.permute.xlu0 %1834
        %1836 = vrot.lane.b32.xlu0 %v1793, 98
        %v1837 = vpop.permute.xlu0 %1836
        %1838 = vrot.lane.b32.xlu0 %v1796, 98
        %v1839 = vpop.permute.xlu0 %1838
        %1840 = vrot.lane.b32.xlu0 %v1799, 98
        %v1841 = vpop.permute.xlu0 %1840
        %1842 = vrot.lane.b32.xlu0 %v1802, 98
        %v1843 = vpop.permute.xlu0 %1842
        %1844 = vrot.lane.b32.xlu0 %v1805, 98
        %v1845 = vpop.permute.xlu0 %1844
        %1846 = vrot.lane.b32.xlu0 %v1808, 98
        %v1847 = vpop.permute.xlu0 %1846
        %1848 = vrot.lane.b32.xlu0 %v1811, 98
        %v1849 = vpop.permute.xlu0 %1848
        %1850 = vrot.lane.b32.xlu0 %v1814, 98
        %v1851 = vpop.permute.xlu0 %1850
        %1852 = vrot.lane.b32.xlu0 %v1817, 98
        %v1853 = vpop.permute.xlu0 %1852
        %1854 = vrot.lane.b32.xlu0 %v1820, 98
        %v1855 = vpop.permute.xlu0 %1854
        %1856 = vrot.lane.b32.xlu0 %v1823, 98
        %v1857 = vpop.permute.xlu0 %1856
        %1858 = vrot.lane.b32.xlu0 %v1826, 98
        %v1859 = vpop.permute.xlu0 %1858
        %1860 = vrot.lane.b32.xlu0 %v1829, 98
        %v1861 = vpop.permute.xlu0 %1860
        %v1862 = vrot.slane %v1831, 4
        %v1863 = vrot.slane %v1833, 4
        %v1864 = vrot.slane %v1835, 4
        %v1865 = vrot.slane %v1837, 4
        %v1866 = vrot.slane %v1839, 4
        %v1867 = vrot.slane %v1841, 4
        %v1868 = vrot.slane %v1843, 4
        %v1869 = vrot.slane %v1845, 4
        %v1870 = vrot.slane %v1847, 4
        %v1871 = vrot.slane %v1849, 4
        %v1872 = vrot.slane %v1851, 4
        %v1873 = vrot.slane %v1853, 4
        %v1874 = vrot.slane %v1855, 4
        %v1875 = vrot.slane %v1857, 4
        %v1876 = vrot.slane %v1859, 4
        %v1877 = vrot.slane %v1861, 4
        %v1878 = vsel %vm455, %v1862, %v1863
        %vm1879 = vcmask 801792
        %v1880 = vsel %vm1879, %v1831, %v1878
        %v1881 = vsel %vm455, %v1863, %v1864
        %v1882 = vsel %vm1879, %v1833, %v1881
        %v1883 = vsel %vm455, %v1864, %v1865
        %v1884 = vsel %vm1879, %v1835, %v1883
        %v1885 = vsel %vm455, %v1865, %v1866
        %v1886 = vsel %vm1879, %v1837, %v1885
        %v1887 = vsel %vm455, %v1866, %v1867
        %v1888 = vsel %vm1879, %v1839, %v1887
        %v1889 = vsel %vm455, %v1867, %v1868
        %v1890 = vsel %vm1879, %v1841, %v1889
        %v1891 = vsel %vm455, %v1868, %v1869
        %v1892 = vsel %vm1879, %v1843, %v1891
        %v1893 = vsel %vm455, %v1869, %v1870
        %v1894 = vsel %vm1879, %v1845, %v1893
        %v1895 = vsel %vm455, %v1870, %v1871
        %v1896 = vsel %vm1879, %v1847, %v1895
        %v1897 = vsel %vm455, %v1871, %v1872
        %v1898 = vsel %vm1879, %v1849, %v1897
        %v1899 = vsel %vm455, %v1872, %v1873
        %v1900 = vsel %vm1879, %v1851, %v1899
        %v1901 = vsel %vm455, %v1873, %v1874
        %v1902 = vsel %vm1879, %v1853, %v1901
        %v1903 = vsel %vm455, %v1874, %v1875
        %v1904 = vsel %vm1879, %v1855, %v1903
        %v1905 = vsel %vm455, %v1875, %v1876
        %v1906 = vsel %vm1879, %v1857, %v1905
        %v1907 = vsel %vm455, %v1876, %v1877
        %v1908 = vsel %vm1879, %v1859, %v1907
        %v1909 = vsel %vm1879, %v1861, %v1877
        %vm1926 = vsmask.f32 7950
        %vm1927 = vmand %vm1691, %vm1926
        %vm1928 = vsmask.f32 7966
        %vm1929 = vmand %vm1694, %vm1928
        %vm1930 = vmor %vm1929, %vm1927
        %v1931 = vld [vmem:[#allocation2] sm:$0x88]
        %v1932 = vsel %vm1930, %v1880, %v1931
        %1933 = vst [vmem:[#allocation2] sm:$0x88] %v1932
        %v1934 = vld [vmem:[#allocation2 + $0x8] sm:$0x88]
        %v1935 = vsel %vm1930, %v1882, %v1934
        %1936 = vst [vmem:[#allocation2 + $0x8] sm:$0x88] %v1935
        %v1937 = vld [vmem:[#allocation2 + $0x10] sm:$0x88]
        %v1938 = vsel %vm1930, %v1884, %v1937
        %1939 = vst [vmem:[#allocation2 + $0x10] sm:$0x88] %v1938
        %v1940 = vld [vmem:[#allocation2 + $0x18] sm:$0x88]
        %v1941 = vsel %vm1930, %v1886, %v1940
        %1942 = vst [vmem:[#allocation2 + $0x18] sm:$0x88] %v1941
        %v1943 = vld [vmem:[#allocation2 + $0x20] sm:$0x88]
        %v1944 = vsel %vm1930, %v1888, %v1943
        %1945 = vst [vmem:[#allocation2 + $0x20] sm:$0x88] %v1944
        %v1946 = vld [vmem:[#allocation2 + $0x28] sm:$0x88]
        %v1947 = vsel %vm1930, %v1890, %v1946
        %1948 = vst [vmem:[#allocation2 + $0x28] sm:$0x88] %v1947
        %v1949 = vld [vmem:[#allocation2 + $0x30] sm:$0x88]
        %v1950 = vsel %vm1930, %v1892, %v1949
        %1951 = vst [vmem:[#allocation2 + $0x30] sm:$0x88] %v1950
        %v1952 = vld [vmem:[#allocation2 + $0x38] sm:$0x88]
        %v1953 = vsel %vm1930, %v1894, %v1952
        %1954 = vst [vmem:[#allocation2 + $0x38] sm:$0x88] %v1953
        %v1955 = vld [vmem:[#allocation2 + $0x40] sm:$0x88]
        %v1956 = vsel %vm1930, %v1896, %v1955
        %1957 = vst [vmem:[#allocation2 + $0x40] sm:$0x88] %v1956
        %v1958 = vld [vmem:[#allocation2 + $0x48] sm:$0x88]
        %v1959 = vsel %vm1930, %v1898, %v1958
        %1960 = vst [vmem:[#allocation2 + $0x48] sm:$0x88] %v1959
        %v1961 = vld [vmem:[#allocation2 + $0x50] sm:$0x88]
        %v1962 = vsel %vm1930, %v1900, %v1961
        %1963 = vst [vmem:[#allocation2 + $0x50] sm:$0x88] %v1962
        %v1964 = vld [vmem:[#allocation2 + $0x58] sm:$0x88]
        %v1965 = vsel %vm1930, %v1902, %v1964
        %1966 = vst [vmem:[#allocation2 + $0x58] sm:$0x88] %v1965
        %v1967 = vld [vmem:[#allocation2 + $0x60] sm:$0x88]
        %v1968 = vsel %vm1930, %v1904, %v1967
        %1969 = vst [vmem:[#allocation2 + $0x60] sm:$0x88] %v1968
        %v1970 = vld [vmem:[#allocation2 + $0x68] sm:$0x88]
        %v1971 = vsel %vm1930, %v1906, %v1970
        %1972 = vst [vmem:[#allocation2 + $0x68] sm:$0x88] %v1971
        %v1973 = vld [vmem:[#allocation2 + $0x70] sm:$0x88]
        %v1974 = vsel %vm1930, %v1908, %v1973
        %1975 = vst [vmem:[#allocation2 + $0x70] sm:$0x88] %v1974
        %vm1976 = vcmask 801799
        %vm1977 = vmand %vm1976, %vm1928
        %vm1978 = vmor %vm1977, %vm1927
        %v1979 = vld [vmem:[#allocation2 + $0x78] sm:$0x88]
        %v1980 = vsel %vm1978, %v1909, %v1979
        %1981 = vst [vmem:[#allocation2 + $0x78] sm:$0x88] %v1980
        %1982 = vst [vmem:[#allocation1] ss:$4 sm:$0xff] %v360
        %v1983 = vld [vmem:[#allocation1] sm:$0xff]
        %v1984 = vshll.u32 %v1983, 16
        %v1986 = vrot.slane %v1984, 5
        %1987 = vrot.lane.b32.xlu0 %v1986, 98
        %v1988 = vpop.permute.xlu0 %1987
        %vm1990 = vcmask 1044243
        %vm1991 = vmand %vm1990, %vm1926
        %v1992 = vld [vmem:[#allocation2 + $0x7c] sm:$0x8]
        %v1993 = vsel %vm1991, %v1988, %v1992
        %1994 = vst [vmem:[#allocation2 + $0x7c] sm:$0x8] %v1993
        %1995 = vst [vmem:[#allocation1] ss:$4 sm:$0xff] %v360
        %s1996 = scalar_lea.vmem [#allocation1], 32
        %1997 = vst [vmem:[%s1996] ss:$4 sm:$0xff] %v361
        %v1998 = vld [vmem:[#allocation1] sm:$0xff]
        %v2000 = vld [vmem:[#allocation1 + $0x8] sm:$0xff]
        %v2002 = vld [vmem:[#allocation1 + $0x10] sm:$0xff]
        %v2004 = vld [vmem:[#allocation1 + $0x18] sm:$0xff]
        %v2006 = vld [vmem:[#allocation1 + $0x20] sm:$0xff]
        %v2008 = vld [vmem:[#allocation1 + $0x28] sm:$0xff]
        %v2010 = vld [vmem:[#allocation1 + $0x30] sm:$0xff]
        %v2012 = vld [vmem:[#allocation1 + $0x38] sm:$0xff]
        %2014 = vst [vmem:[#allocation1] ss:$4 sm:$0xff] %v362
        %2015 = vst [vmem:[%s1996] ss:$4 sm:$0xff] %v363
        %v2016 = vld [vmem:[#allocation1] sm:$0xff]
        %v2018 = vld [vmem:[#allocation1 + $0x8] sm:$0xff]
        %v2020 = vld [vmem:[#allocation1 + $0x10] sm:$0xff]
        %v2022 = vld [vmem:[#allocation1 + $0x18] sm:$0xff]
        %v2024 = vld [vmem:[#allocation1 + $0x20] sm:$0xff]
        %v2026 = vld [vmem:[#allocation1 + $0x28] sm:$0xff]
        %v2028 = vld [vmem:[#allocation1 + $0x30] sm:$0xff]
        %v2030 = vld [vmem:[#allocation1 + $0x38] sm:$0xff]
        %2032 = vrot.lane.b32.xlu0 %v1998, 97
        %v2033 = vpop.permute.xlu0 %2032
        %2034 = vrot.lane.b32.xlu0 %v2000, 97
        %v2035 = vpop.permute.xlu0 %2034
        %2036 = vrot.lane.b32.xlu0 %v2002, 97
        %v2037 = vpop.permute.xlu0 %2036
        %2038 = vrot.lane.b32.xlu0 %v2004, 97
        %v2039 = vpop.permute.xlu0 %2038
        %2040 = vrot.lane.b32.xlu0 %v2006, 97
        %v2041 = vpop.permute.xlu0 %2040
        %2042 = vrot.lane.b32.xlu0 %v2008, 97
        %v2043 = vpop.permute.xlu0 %2042
        %2044 = vrot.lane.b32.xlu0 %v2010, 97
        %v2045 = vpop.permute.xlu0 %2044
        %2046 = vrot.lane.b32.xlu0 %v2012, 97
        %v2047 = vpop.permute.xlu0 %2046
        %2048 = vrot.lane.b32.xlu0 %v2016, 97
        %v2049 = vpop.permute.xlu0 %2048
        %2050 = vrot.lane.b32.xlu0 %v2018, 97
        %v2051 = vpop.permute.xlu0 %2050
        %2052 = vrot.lane.b32.xlu0 %v2020, 97
        %v2053 = vpop.permute.xlu0 %2052
        %2054 = vrot.lane.b32.xlu0 %v2022, 97
        %v2055 = vpop.permute.xlu0 %2054
        %2056 = vrot.lane.b32.xlu0 %v2024, 97
        %v2057 = vpop.permute.xlu0 %2056
        %2058 = vrot.lane.b32.xlu0 %v2026, 97
        %v2059 = vpop.permute.xlu0 %2058
        %2060 = vrot.lane.b32.xlu0 %v2028, 97
        %v2061 = vpop.permute.xlu0 %2060
        %2062 = vrot.lane.b32.xlu0 %v2030, 97
        %v2063 = vpop.permute.xlu0 %2062
        %v2064 = vrot.slane %v2033, 4
        %v2065 = vrot.slane %v2035, 4
        %v2066 = vrot.slane %v2037, 4
        %v2067 = vrot.slane %v2039, 4
        %v2068 = vrot.slane %v2041, 4
        %v2069 = vrot.slane %v2043, 4
        %v2070 = vrot.slane %v2045, 4
        %v2071 = vrot.slane %v2047, 4
        %v2072 = vrot.slane %v2049, 4
        %v2073 = vrot.slane %v2051, 4
        %v2074 = vrot.slane %v2053, 4
        %v2075 = vrot.slane %v2055, 4
        %v2076 = vrot.slane %v2057, 4
        %v2077 = vrot.slane %v2059, 4
        %v2078 = vrot.slane %v2061, 4
        %v2079 = vrot.slane %v2063, 4
        %v2080 = vsel %vm455, %v2064, %v2065
        %vm2081 = vcmask 793600
        %v2082 = vsel %vm2081, %v2033, %v2080
        %v2083 = vsel %vm455, %v2065, %v2066
        %v2084 = vsel %vm2081, %v2035, %v2083
        %v2085 = vsel %vm455, %v2066, %v2067
        %v2086 = vsel %vm2081, %v2037, %v2085
        %v2087 = vsel %vm455, %v2067, %v2068
        %v2088 = vsel %vm2081, %v2039, %v2087
        %v2089 = vsel %vm455, %v2068, %v2069
        %v2090 = vsel %vm2081, %v2041, %v2089
        %v2091 = vsel %vm455, %v2069, %v2070
        %v2092 = vsel %vm2081, %v2043, %v2091
        %v2093 = vsel %vm455, %v2070, %v2071
        %v2094 = vsel %vm2081, %v2045, %v2093
        %v2095 = vsel %vm455, %v2071, %v2072
        %v2096 = vsel %vm2081, %v2047, %v2095
        %v2097 = vsel %vm455, %v2072, %v2073
        %v2098 = vsel %vm2081, %v2049, %v2097
        %v2099 = vsel %vm455, %v2073, %v2074
        %v2100 = vsel %vm2081, %v2051, %v2099
        %v2101 = vsel %vm455, %v2074, %v2075
        %v2102 = vsel %vm2081, %v2053, %v2101
        %v2103 = vsel %vm455, %v2075, %v2076
        %v2104 = vsel %vm2081, %v2055, %v2103
        %v2105 = vsel %vm455, %v2076, %v2077
        %v2106 = vsel %vm2081, %v2057, %v2105
        %v2107 = vsel %vm455, %v2077, %v2078
        %v2108 = vsel %vm2081, %v2059, %v2107
        %v2109 = vsel %vm455, %v2078, %v2079
        %v2110 = vsel %vm2081, %v2061, %v2109
        %v2111 = vsel %vm2081, %v2063, %v2079
        %v2128 = vld [vmem:[#allocation2 + $0x80] sm:$0x11]
        %v2129 = vsel %vm514, %v2082, %v2128
        %2130 = vst [vmem:[#allocation2 + $0x80] sm:$0x11] %v2129
        %v2131 = vld [vmem:[#allocation2 + $0x88] sm:$0x11]
        %v2132 = vsel %vm514, %v2084, %v2131
        %2133 = vst [vmem:[#allocation2 + $0x88] sm:$0x11] %v2132
        %v2134 = vld [vmem:[#allocation2 + $0x90] sm:$0x11]
        %v2135 = vsel %vm514, %v2086, %v2134
        %2136 = vst [vmem:[#allocation2 + $0x90] sm:$0x11] %v2135
        %v2137 = vld [vmem:[#allocation2 + $0x98] sm:$0x11]
        %v2138 = vsel %vm514, %v2088, %v2137
        %2139 = vst [vmem:[#allocation2 + $0x98] sm:$0x11] %v2138
        %v2140 = vld [vmem:[#allocation2 + $0xa0] sm:$0x11]
        %v2141 = vsel %vm514, %v2090, %v2140
        %2142 = vst [vmem:[#allocation2 + $0xa0] sm:$0x11] %v2141
        %v2143 = vld [vmem:[#allocation2 + $0xa8] sm:$0x11]
        %v2144 = vsel %vm514, %v2092, %v2143
        %2145 = vst [vmem:[#allocation2 + $0xa8] sm:$0x11] %v2144
        %v2146 = vld [vmem:[#allocation2 + $0xb0] sm:$0x11]
        %v2147 = vsel %vm514, %v2094, %v2146
        %2148 = vst [vmem:[#allocation2 + $0xb0] sm:$0x11] %v2147
        %v2149 = vld [vmem:[#allocation2 + $0xb8] sm:$0x11]
        %v2150 = vsel %vm514, %v2096, %v2149
        %2151 = vst [vmem:[#allocation2 + $0xb8] sm:$0x11] %v2150
        %v2152 = vld [vmem:[#allocation2 + $0xc0] sm:$0x11]
        %v2153 = vsel %vm514, %v2098, %v2152
        %2154 = vst [vmem:[#allocation2 + $0xc0] sm:$0x11] %v2153
        %v2155 = vld [vmem:[#allocation2 + $0xc8] sm:$0x11]
        %v2156 = vsel %vm514, %v2100, %v2155
        %2157 = vst [vmem:[#allocation2 + $0xc8] sm:$0x11] %v2156
        %v2158 = vld [vmem:[#allocation2 + $0xd0] sm:$0x11]
        %v2159 = vsel %vm514, %v2102, %v2158
        %2160 = vst [vmem:[#allocation2 + $0xd0] sm:$0x11] %v2159
        %v2161 = vld [vmem:[#allocation2 + $0xd8] sm:$0x11]
        %v2162 = vsel %vm514, %v2104, %v2161
        %2163 = vst [vmem:[#allocation2 + $0xd8] sm:$0x11] %v2162
        %v2164 = vld [vmem:[#allocation2 + $0xe0] sm:$0x11]
        %v2165 = vsel %vm514, %v2106, %v2164
        %2166 = vst [vmem:[#allocation2 + $0xe0] sm:$0x11] %v2165
        %v2167 = vld [vmem:[#allocation2 + $0xe8] sm:$0x11]
        %v2168 = vsel %vm514, %v2108, %v2167
        %2169 = vst [vmem:[#allocation2 + $0xe8] sm:$0x11] %v2168
        %v2170 = vld [vmem:[#allocation2 + $0xf0] sm:$0x11]
        %v2171 = vsel %vm514, %v2110, %v2170
        %2172 = vst [vmem:[#allocation2 + $0xf0] sm:$0x11] %v2171
        %vm2173 = vcmask 790532
        %vm2174 = vmand %vm2173, %vm506
        %vm2175 = vmor %vm2174, %vm513
        %v2176 = vld [vmem:[#allocation2 + $0xf8] sm:$0x11]
        %v2177 = vsel %vm2175, %v2111, %v2176
        %2178 = vst [vmem:[#allocation2 + $0xf8] sm:$0x11] %v2177
        %2179 = vst [vmem:[#allocation1] ss:$4 sm:$0xff] %v360
        %v2180 = vld [vmem:[#allocation1] sm:$0xff]
        %2182 = vrot.lane.b32.xlu0 %v2180, 97
        %v2183 = vpop.permute.xlu0 %2182
        %vm2185 = vcmask 1041160
        %vm2186 = vmand %vm2185, %vm503
        %v2187 = vld [vmem:[#allocation2 + $0xfc] sm:$0x1]
        %v2188 = vsel %vm2186, %v2183, %v2187
        %2189 = vst [vmem:[#allocation2 + $0xfc] sm:$0x1] %v2188
        %v2190 = vld [vmem:[%s2] sm:$0xf]
        %v2191 = vld [vmem:[%s2 + $0x4] sm:$0x1]
        %v2192 = vld [vmem:[#allocation2] sm:$0xff]
        %v2193 = vld [vmem:[#allocation2 + $0x8] sm:$0xff]
        %v2194 = vld [vmem:[#allocation2 + $0x10] sm:$0xff]
        %v2195 = vld [vmem:[#allocation2 + $0x18] sm:$0xff]
        %v2196 = vld [vmem:[#allocation2 + $0x20] sm:$0xff]
        %v2197 = vld [vmem:[#allocation2 + $0x28] sm:$0xff]
        %v2198 = vld [vmem:[#allocation2 + $0x30] sm:$0xff]
        %v2199 = vld [vmem:[#allocation2 + $0x38] sm:$0xff]
        %v2200 = vld [vmem:[#allocation2 + $0x40] sm:$0xff]
        %v2201 = vld [vmem:[#allocation2 + $0x48] sm:$0xff]
        %v2202 = vld [vmem:[#allocation2 + $0x50] sm:$0xff]
        %v2203 = vld [vmem:[#allocation2 + $0x58] sm:$0xff]
        %v2204 = vld [vmem:[#allocation2 + $0x60] sm:$0xff]
        %v2205 = vld [vmem:[#allocation2 + $0x68] sm:$0xff]
        %v2206 = vld [vmem:[#allocation2 + $0x70] sm:$0xff]
        %v2207 = vld [vmem:[#allocation2 + $0x78] sm:$0xff]
        %v2208 = vld [vmem:[#allocation2 + $0x80] sm:$0x11]
        %v2209 = vld [vmem:[#allocation2 + $0x88] sm:$0x11]
        %v2210 = vld [vmem:[#allocation2 + $0x90] sm:$0x11]
        %v2211 = vld [vmem:[#allocation2 + $0x98] sm:$0x11]
        %v2212 = vld [vmem:[#allocation2 + $0xa0] sm:$0x11]
        %v2213 = vld [vmem:[#allocation2 + $0xa8] sm:$0x11]
        %v2214 = vld [vmem:[#allocation2 + $0xb0] sm:$0x11]
        %v2215 = vld [vmem:[#allocation2 + $0xb8] sm:$0x11]
        %v2216 = vld [vmem:[#allocation2 + $0xc0] sm:$0x11]
        %v2217 = vld [vmem:[#allocation2 + $0xc8] sm:$0x11]
        %v2218 = vld [vmem:[#allocation2 + $0xd0] sm:$0x11]
        %v2219 = vld [vmem:[#allocation2 + $0xd8] sm:$0x11]
        %v2220 = vld [vmem:[#allocation2 + $0xe0] sm:$0x11]
        %v2221 = vld [vmem:[#allocation2 + $0xe8] sm:$0x11]
        %v2222 = vld [vmem:[#allocation2 + $0xf0] sm:$0x11]
        %v2223 = vld [vmem:[#allocation2 + $0xf8] sm:$0x11]
        %v2224 = vld [vmem:[%s3] sm:$0xff]
        %v2225 = vld [vmem:[%s3 + $0x8] sm:$0x3]
        %2227 = vset.pattern.permute.xlu0 0
        %2228 = vperm.xlu0 %2227, %v2224
        %v2229 = vpop.permute.xlu0 %2228
        %2232 = vset.pattern.permute.xlu0 0
        %2233 = vperm.xlu0 %2232, %v2225
        %v2234 = vpop.permute.xlu0 %2233
        %v2238 = vunpack.c.l.b16 %v2190
        %v2239 = vunpack.c.l.b16 %v2191
        %v2240 = vpack.c.b16 %v2239, %v2238
        %v2273 = vunpack.c.l.b16 %v2192
        %v2274 = vunpack.c.h.b16 %v2192
        %v2275 = vunpack.c.l.b16 %v2193
        %v2276 = vunpack.c.h.b16 %v2193
        %v2277 = vunpack.c.l.b16 %v2194
        %v2278 = vunpack.c.h.b16 %v2194
        %v2279 = vunpack.c.l.b16 %v2195
        %v2280 = vunpack.c.h.b16 %v2195
        %v2281 = vunpack.c.l.b16 %v2196
        %v2282 = vunpack.c.h.b16 %v2196
        %v2283 = vunpack.c.l.b16 %v2197
        %v2284 = vunpack.c.h.b16 %v2197
        %v2285 = vunpack.c.l.b16 %v2198
        %v2286 = vunpack.c.h.b16 %v2198
        %v2287 = vunpack.c.l.b16 %v2199
        %v2288 = vunpack.c.h.b16 %v2199
        %v2289 = vunpack.c.l.b16 %v2200
        %v2290 = vunpack.c.h.b16 %v2200
        %v2291 = vunpack.c.l.b16 %v2201
        %v2292 = vunpack.c.h.b16 %v2201
        %v2293 = vunpack.c.l.b16 %v2202
        %v2294 = vunpack.c.h.b16 %v2202
        %v2295 = vunpack.c.l.b16 %v2203
        %v2296 = vunpack.c.h.b16 %v2203
        %v2297 = vunpack.c.l.b16 %v2204
        %v2298 = vunpack.c.h.b16 %v2204
        %v2299 = vunpack.c.l.b16 %v2205
        %v2300 = vunpack.c.h.b16 %v2205
        %v2301 = vunpack.c.l.b16 %v2206
        %v2302 = vunpack.c.h.b16 %v2206
        %v2303 = vunpack.c.l.b16 %v2207
        %v2304 = vunpack.c.h.b16 %v2207
        %v2305 = vunpack.c.l.b16 %v2208
        %v2306 = vunpack.c.h.b16 %v2208
        %v2307 = vunpack.c.l.b16 %v2209
        %v2308 = vunpack.c.h.b16 %v2209
        %v2309 = vunpack.c.l.b16 %v2210
        %v2310 = vunpack.c.h.b16 %v2210
        %v2311 = vunpack.c.l.b16 %v2211
        %v2312 = vunpack.c.h.b16 %v2211
        %v2313 = vunpack.c.l.b16 %v2212
        %v2314 = vunpack.c.h.b16 %v2212
        %v2315 = vunpack.c.l.b16 %v2213
        %v2316 = vunpack.c.h.b16 %v2213
        %v2317 = vunpack.c.l.b16 %v2214
        %v2318 = vunpack.c.h.b16 %v2214
        %v2319 = vunpack.c.l.b16 %v2215
        %v2320 = vunpack.c.h.b16 %v2215
        %v2321 = vunpack.c.l.b16 %v2216
        %v2322 = vunpack.c.h.b16 %v2216
        %v2323 = vunpack.c.l.b16 %v2217
        %v2324 = vunpack.c.h.b16 %v2217
        %v2325 = vunpack.c.l.b16 %v2218
        %v2326 = vunpack.c.h.b16 %v2218
        %v2327 = vunpack.c.l.b16 %v2219
        %v2328 = vunpack.c.h.b16 %v2219
        %v2329 = vunpack.c.l.b16 %v2220
        %v2330 = vunpack.c.h.b16 %v2220
        %v2331 = vunpack.c.l.b16 %v2221
        %v2332 = vunpack.c.h.b16 %v2221
        %v2333 = vunpack.c.l.b16 %v2222
        %v2334 = vunpack.c.h.b16 %v2222
        %v2335 = vunpack.c.l.b16 %v2223
        %v2336 = vunpack.c.h.b16 %v2223
        %v2337 = vpack.c.b16 %v2305, %v2273
        %v2338 = vpack.c.b16 %v2306, %v2274
        %v2339 = vpack.c.b16 %v2307, %v2275
        %v2340 = vpack.c.b16 %v2308, %v2276
        %v2341 = vpack.c.b16 %v2309, %v2277
        %v2342 = vpack.c.b16 %v2310, %v2278
        %v2343 = vpack.c.b16 %v2311, %v2279
        %v2344 = vpack.c.b16 %v2312, %v2280
        %v2345 = vpack.c.b16 %v2313, %v2281
        %v2346 = vpack.c.b16 %v2314, %v2282
        %v2347 = vpack.c.b16 %v2315, %v2283
        %v2348 = vpack.c.b16 %v2316, %v2284
        %v2349 = vpack.c.b16 %v2317, %v2285
        %v2350 = vpack.c.b16 %v2318, %v2286
        %v2351 = vpack.c.b16 %v2319, %v2287
        %v2352 = vpack.c.b16 %v2320, %v2288
        %v2353 = vpack.c.b16 %v2321, %v2289
        %v2354 = vpack.c.b16 %v2322, %v2290
        %v2355 = vpack.c.b16 %v2323, %v2291
        %v2356 = vpack.c.b16 %v2324, %v2292
        %v2357 = vpack.c.b16 %v2325, %v2293
        %v2358 = vpack.c.b16 %v2326, %v2294
        %v2359 = vpack.c.b16 %v2327, %v2295
        %v2360 = vpack.c.b16 %v2328, %v2296
        %v2361 = vpack.c.b16 %v2329, %v2297
        %v2362 = vpack.c.b16 %v2330, %v2298
        %v2363 = vpack.c.b16 %v2331, %v2299
        %v2364 = vpack.c.b16 %v2332, %v2300
        %v2365 = vpack.c.b16 %v2333, %v2301
        %v2366 = vpack.c.b16 %v2334, %v2302
        %v2367 = vpack.c.b16 %v2335, %v2303
        %v2368 = vpack.c.b16 %v2336, %v2304
        %vm2369 = vcmask 72704
        %v2371 = vsel %vm2369, %v2240, 0
        %vm2373 = vcmask 1043456
        %vm2374 = vcmask 1044480
        %v2375 = vsel %vm2373, 4294967295, 65535
        %v2376 = vsel %vm2374, %v2375, 0
        %v2378 = vand.u32 %v2337, %v2376
        %v2381 = vand.u32 %v2338, %v2376
        %v2384 = vand.u32 %v2339, %v2376
        %v2387 = vand.u32 %v2340, %v2376
        %v2390 = vand.u32 %v2341, %v2376
        %v2393 = vand.u32 %v2342, %v2376
        %v2396 = vand.u32 %v2343, %v2376
        %v2399 = vand.u32 %v2344, %v2376
        %v2402 = vand.u32 %v2345, %v2376
        %v2405 = vand.u32 %v2346, %v2376
        %v2408 = vand.u32 %v2347, %v2376
        %v2411 = vand.u32 %v2348, %v2376
        %v2414 = vand.u32 %v2349, %v2376
        %v2417 = vand.u32 %v2350, %v2376
        %v2420 = vand.u32 %v2351, %v2376
        %v2423 = vand.u32 %v2352, %v2376
        %v2426 = vand.u32 %v2353, %v2376
        %v2429 = vand.u32 %v2354, %v2376
        %v2432 = vand.u32 %v2355, %v2376
        %v2435 = vand.u32 %v2356, %v2376
        %v2438 = vand.u32 %v2357, %v2376
        %v2441 = vand.u32 %v2358, %v2376
        %v2444 = vand.u32 %v2359, %v2376
        %v2447 = vand.u32 %v2360, %v2376
        %v2450 = vand.u32 %v2361, %v2376
        %v2453 = vand.u32 %v2362, %v2376
        %v2456 = vand.u32 %v2363, %v2376
        %v2459 = vand.u32 %v2364, %v2376
        %v2462 = vand.u32 %v2365, %v2376
        %v2465 = vand.u32 %v2366, %v2376
        %v2468 = vand.u32 %v2367, %v2376
        %v2471 = vand.u32 %v2368, %v2376
        %2473 = vmatpush.bf16.msra.mxu0 0
        %2474 = vmatpush.bf16.msra.mxu0 0
        %2475 = vmatpush.bf16.msra.mxu0 0
        %2476 = vmatpush.bf16.msra.mxu0 0
        %2477 = vmatpush.bf16.msra.mxu0 0
        %2478 = vmatpush.bf16.msra.mxu0 0
        %2479 = vmatpush.bf16.msra.mxu0 0
        %2480 = vmatpush.bf16.msra.mxu0 %v2378
        %2481 = vmatmul.bf16.gmra.mxu0 %v2371
        %v2482 = vpop.f32.mrf.mxu0
        %v2483 = vadd.f32 %v2229, %v2482
        %v2484 = vpop.f32.mrf.mxu0
        %v2485 = vadd.f32 %v2234, %v2484
        %2486 = vdwg.mxu0
        %2487 = vmatpush.bf16.msra.mxu0 0
        %2488 = vmatpush.bf16.msra.mxu0 0
        %2489 = vmatpush.bf16.msra.mxu0 0
        %2490 = vmatpush.bf16.msra.mxu0 0
        %2491 = vmatpush.bf16.msra.mxu0 0
        %2492 = vmatpush.bf16.msra.mxu0 0
        %2493 = vmatpush.bf16.msra.mxu0 0
        %2494 = vmatpush.bf16.msra.mxu0 %v2381
        %2495 = vmatmul.bf16.gmra.mxu0 %v2371
        %v2496 = vpop.f32.mrf.mxu0
        %v2497 = vadd.f32 %v2229, %v2496
        %v2498 = vpop.f32.mrf.mxu0
        %v2499 = vadd.f32 %v2234, %v2498
        %2500 = vdwg.mxu0
        %2501 = vmatpush.bf16.msra.mxu0 0
        %2502 = vmatpush.bf16.msra.mxu0 0
        %2503 = vmatpush.bf16.msra.mxu0 0
        %2504 = vmatpush.bf16.msra.mxu0 0
        %2505 = vmatpush.bf16.msra.mxu0 0
        %2506 = vmatpush.bf16.msra.mxu0 0
        %2507 = vmatpush.bf16.msra.mxu0 0
        %2508 = vmatpush.bf16.msra.mxu0 %v2384
        %2509 = vmatmul.bf16.gmra.mxu0 %v2371
        %v2510 = vpop.f32.mrf.mxu0
        %v2511 = vadd.f32 %v2229, %v2510
        %v2512 = vpop.f32.mrf.mxu0
        %v2513 = vadd.f32 %v2234, %v2512
        %2514 = vdwg.mxu0
        %2515 = vmatpush.bf16.msra.mxu0 0
        %2516 = vmatpush.bf16.msra.mxu0 0
        %2517 = vmatpush.bf16.msra.mxu0 0
        %2518 = vmatpush.bf16.msra.mxu0 0
        %2519 = vmatpush.bf16.msra.mxu0 0
        %2520 = vmatpush.bf16.msra.mxu0 0
        %2521 = vmatpush.bf16.msra.mxu0 0
        %2522 = vmatpush.bf16.msra.mxu0 %v2387
        %2523 = vmatmul.bf16.gmra.mxu0 %v2371
        %v2524 = vpop.f32.mrf.mxu0
        %v2525 = vadd.f32 %v2229, %v2524
        %v2526 = vpop.f32.mrf.mxu0
        %v2527 = vadd.f32 %v2234, %v2526
        %2528 = vdwg.mxu0
        %2529 = vmatpush.bf16.msra.mxu0 0
        %2530 = vmatpush.bf16.msra.mxu0 0
        %2531 = vmatpush.bf16.msra.mxu0 0
        %2532 = vmatpush.bf16.msra.mxu0 0
        %2533 = vmatpush.bf16.msra.mxu0 0
        %2534 = vmatpush.bf16.msra.mxu0 0
        %2535 = vmatpush.bf16.msra.mxu0 0
        %2536 = vmatpush.bf16.msra.mxu0 %v2390
        %2537 = vmatmul.bf16.gmra.mxu0 %v2371
        %v2538 = vpop.f32.mrf.mxu0
        %v2539 = vadd.f32 %v2229, %v2538
        %v2540 = vpop.f32.mrf.mxu0
        %v2541 = vadd.f32 %v2234, %v2540
        %2542 = vdwg.mxu0
        %2543 = vmatpush.bf16.msra.mxu0 0
        %2544 = vmatpush.bf16.msra.mxu0 0
        %2545 = vmatpush.bf16.msra.mxu0 0
        %2546 = vmatpush.bf16.msra.mxu0 0
        %2547 = vmatpush.bf16.msra.mxu0 0
        %2548 = vmatpush.bf16.msra.mxu0 0
        %2549 = vmatpush.bf16.msra.mxu0 0
        %2550 = vmatpush.bf16.msra.mxu0 %v2393
        %2551 = vmatmul.bf16.gmra.mxu0 %v2371
        %v2552 = vpop.f32.mrf.mxu0
        %v2553 = vadd.f32 %v2229, %v2552
        %v2554 = vpop.f32.mrf.mxu0
        %v2555 = vadd.f32 %v2234, %v2554
        %2556 = vdwg.mxu0
        %2557 = vmatpush.bf16.msra.mxu0 0
        %2558 = vmatpush.bf16.msra.mxu0 0
        %2559 = vmatpush.bf16.msra.mxu0 0
        %2560 = vmatpush.bf16.msra.mxu0 0
        %2561 = vmatpush.bf16.msra.mxu0 0
        %2562 = vmatpush.bf16.msra.mxu0 0
        %2563 = vmatpush.bf16.msra.mxu0 0
        %2564 = vmatpush.bf16.msra.mxu0 %v2396
        %2565 = vmatmul.bf16.gmra.mxu0 %v2371
        %v2566 = vpop.f32.mrf.mxu0
        %v2567 = vadd.f32 %v2229, %v2566
        %v2568 = vpop.f32.mrf.mxu0
        %v2569 = vadd.f32 %v2234, %v2568
        %2570 = vdwg.mxu0
        %2571 = vmatpush.bf16.msra.mxu0 0
        %2572 = vmatpush.bf16.msra.mxu0 0
        %2573 = vmatpush.bf16.msra.mxu0 0
        %2574 = vmatpush.bf16.msra.mxu0 0
        %2575 = vmatpush.bf16.msra.mxu0 0
        %2576 = vmatpush.bf16.msra.mxu0 0
        %2577 = vmatpush.bf16.msra.mxu0 0
        %2578 = vmatpush.bf16.msra.mxu0 %v2399
        %2579 = vmatmul.bf16.gmra.mxu0 %v2371
        %v2580 = vpop.f32.mrf.mxu0
        %v2581 = vadd.f32 %v2229, %v2580
        %v2582 = vpop.f32.mrf.mxu0
        %v2583 = vadd.f32 %v2234, %v2582
        %2584 = vdwg.mxu0
        %2585 = vmatpush.bf16.msra.mxu0 0
        %2586 = vmatpush.bf16.msra.mxu0 0
        %2587 = vmatpush.bf16.msra.mxu0 0
        %2588 = vmatpush.bf16.msra.mxu0 0
        %2589 = vmatpush.bf16.msra.mxu0 0
        %2590 = vmatpush.bf16.msra.mxu0 0
        %2591 = vmatpush.bf16.msra.mxu0 0
        %2592 = vmatpush.bf16.msra.mxu0 %v2402
        %2593 = vmatmul.bf16.gmra.mxu0 %v2371
        %v2594 = vpop.f32.mrf.mxu0
        %v2595 = vadd.f32 %v2229, %v2594
        %v2596 = vpop.f32.mrf.mxu0
        %v2597 = vadd.f32 %v2234, %v2596
        %2598 = vdwg.mxu0
        %2599 = vmatpush.bf16.msra.mxu0 0
        %2600 = vmatpush.bf16.msra.mxu0 0
        %2601 = vmatpush.bf16.msra.mxu0 0
        %2602 = vmatpush.bf16.msra.mxu0 0
        %2603 = vmatpush.bf16.msra.mxu0 0
        %2604 = vmatpush.bf16.msra.mxu0 0
        %2605 = vmatpush.bf16.msra.mxu0 0
        %2606 = vmatpush.bf16.msra.mxu0 %v2405
        %2607 = vmatmul.bf16.gmra.mxu0 %v2371
        %v2608 = vpop.f32.mrf.mxu0
        %v2609 = vadd.f32 %v2229, %v2608
        %v2610 = vpop.f32.mrf.mxu0
        %v2611 = vadd.f32 %v2234, %v2610
        %2612 = vdwg.mxu0
        %2613 = vmatpush.bf16.msra.mxu0 0
        %2614 = vmatpush.bf16.msra.mxu0 0
        %2615 = vmatpush.bf16.msra.mxu0 0
        %2616 = vmatpush.bf16.msra.mxu0 0
        %2617 = vmatpush.bf16.msra.mxu0 0
        %2618 = vmatpush.bf16.msra.mxu0 0
        %2619 = vmatpush.bf16.msra.mxu0 0
        %2620 = vmatpush.bf16.msra.mxu0 %v2408
        %2621 = vmatmul.bf16.gmra.mxu0 %v2371
        %v2622 = vpop.f32.mrf.mxu0
        %v2623 = vadd.f32 %v2229, %v2622
        %v2624 = vpop.f32.mrf.mxu0
        %v2625 = vadd.f32 %v2234, %v2624
        %2626 = vdwg.mxu0
        %2627 = vmatpush.bf16.msra.mxu0 0
        %2628 = vmatpush.bf16.msra.mxu0 0
        %2629 = vmatpush.bf16.msra.mxu0 0
        %2630 = vmatpush.bf16.msra.mxu0 0
        %2631 = vmatpush.bf16.msra.mxu0 0
        %2632 = vmatpush.bf16.msra.mxu0 0
        %2633 = vmatpush.bf16.msra.mxu0 0
        %2634 = vmatpush.bf16.msra.mxu0 %v2411
        %2635 = vmatmul.bf16.gmra.mxu0 %v2371
        %v2636 = vpop.f32.mrf.mxu0
        %v2637 = vadd.f32 %v2229, %v2636
        %v2638 = vpop.f32.mrf.mxu0
        %v2639 = vadd.f32 %v2234, %v2638
        %2640 = vdwg.mxu0
        %2641 = vmatpush.bf16.msra.mxu0 0
        %2642 = vmatpush.bf16.msra.mxu0 0
        %2643 = vmatpush.bf16.msra.mxu0 0
        %2644 = vmatpush.bf16.msra.mxu0 0
        %2645 = vmatpush.bf16.msra.mxu0 0
        %2646 = vmatpush.bf16.msra.mxu0 0
        %2647 = vmatpush.bf16.msra.mxu0 0
        %2648 = vmatpush.bf16.msra.mxu0 %v2414
        %2649 = vmatmul.bf16.gmra.mxu0 %v2371
        %v2650 = vpop.f32.mrf.mxu0
        %v2651 = vadd.f32 %v2229, %v2650
        %v2652 = vpop.f32.mrf.mxu0
        %v2653 = vadd.f32 %v2234, %v2652
        %2654 = vdwg.mxu0
        %2655 = vmatpush.bf16.msra.mxu0 0
        %2656 = vmatpush.bf16.msra.mxu0 0
        %2657 = vmatpush.bf16.msra.mxu0 0
        %2658 = vmatpush.bf16.msra.mxu0 0
        %2659 = vmatpush.bf16.msra.mxu0 0
        %2660 = vmatpush.bf16.msra.mxu0 0
        %2661 = vmatpush.bf16.msra.mxu0 0
        %2662 = vmatpush.bf16.msra.mxu0 %v2417
        %2663 = vmatmul.bf16.gmra.mxu0 %v2371
        %v2664 = vpop.f32.mrf.mxu0
        %v2665 = vadd.f32 %v2229, %v2664
        %v2666 = vpop.f32.mrf.mxu0
        %v2667 = vadd.f32 %v2234, %v2666
        %2668 = vdwg.mxu0
        %2669 = vmatpush.bf16.msra.mxu0 0
        %2670 = vmatpush.bf16.msra.mxu0 0
        %2671 = vmatpush.bf16.msra.mxu0 0
        %2672 = vmatpush.bf16.msra.mxu0 0
        %2673 = vmatpush.bf16.msra.mxu0 0
        %2674 = vmatpush.bf16.msra.mxu0 0
        %2675 = vmatpush.bf16.msra.mxu0 0
        %2676 = vmatpush.bf16.msra.mxu0 %v2420
        %2677 = vmatmul.bf16.gmra.mxu0 %v2371
        %v2678 = vpop.f32.mrf.mxu0
        %v2679 = vadd.f32 %v2229, %v2678
        %v2680 = vpop.f32.mrf.mxu0
        %v2681 = vadd.f32 %v2234, %v2680
        %2682 = vdwg.mxu0
        %2683 = vmatpush.bf16.msra.mxu0 0
        %2684 = vmatpush.bf16.msra.mxu0 0
        %2685 = vmatpush.bf16.msra.mxu0 0
        %2686 = vmatpush.bf16.msra.mxu0 0
        %2687 = vmatpush.bf16.msra.mxu0 0
        %2688 = vmatpush.bf16.msra.mxu0 0
        %2689 = vmatpush.bf16.msra.mxu0 0
        %2690 = vmatpush.bf16.msra.mxu0 %v2423
        %2691 = vmatmul.bf16.gmra.mxu0 %v2371
        %v2692 = vpop.f32.mrf.mxu0
        %v2693 = vadd.f32 %v2229, %v2692
        %v2694 = vpop.f32.mrf.mxu0
        %v2695 = vadd.f32 %v2234, %v2694
        %2696 = vdwg.mxu0
        %2697 = vmatpush.bf16.msra.mxu0 0
        %2698 = vmatpush.bf16.msra.mxu0 0
        %2699 = vmatpush.bf16.msra.mxu0 0
        %2700 = vmatpush.bf16.msra.mxu0 0
        %2701 = vmatpush.bf16.msra.mxu0 0
        %2702 = vmatpush.bf16.msra.mxu0 0
        %2703 = vmatpush.bf16.msra.mxu0 0
        %2704 = vmatpush.bf16.msra.mxu0 %v2426
        %2705 = vmatmul.bf16.gmra.mxu0 %v2371
        %v2706 = vpop.f32.mrf.mxu0
        %v2707 = vadd.f32 %v2229, %v2706
        %v2708 = vpop.f32.mrf.mxu0
        %v2709 = vadd.f32 %v2234, %v2708
        %2710 = vdwg.mxu0
        %2711 = vmatpush.bf16.msra.mxu0 0
        %2712 = vmatpush.bf16.msra.mxu0 0
        %2713 = vmatpush.bf16.msra.mxu0 0
        %2714 = vmatpush.bf16.msra.mxu0 0
        %2715 = vmatpush.bf16.msra.mxu0 0
        %2716 = vmatpush.bf16.msra.mxu0 0
        %2717 = vmatpush.bf16.msra.mxu0 0
        %2718 = vmatpush.bf16.msra.mxu0 %v2429
        %2719 = vmatmul.bf16.gmra.mxu0 %v2371
        %v2720 = vpop.f32.mrf.mxu0
        %v2721 = vadd.f32 %v2229, %v2720
        %v2722 = vpop.f32.mrf.mxu0
        %v2723 = vadd.f32 %v2234, %v2722
        %2724 = vdwg.mxu0
        %2725 = vmatpush.bf16.msra.mxu0 0
        %2726 = vmatpush.bf16.msra.mxu0 0
        %2727 = vmatpush.bf16.msra.mxu0 0
        %2728 = vmatpush.bf16.msra.mxu0 0
        %2729 = vmatpush.bf16.msra.mxu0 0
        %2730 = vmatpush.bf16.msra.mxu0 0
        %2731 = vmatpush.bf16.msra.mxu0 0
        %2732 = vmatpush.bf16.msra.mxu0 %v2432
        %2733 = vmatmul.bf16.gmra.mxu0 %v2371
        %v2734 = vpop.f32.mrf.mxu0
        %v2735 = vadd.f32 %v2229, %v2734
        %v2736 = vpop.f32.mrf.mxu0
        %v2737 = vadd.f32 %v2234, %v2736
        %2738 = vdwg.mxu0
        %2739 = vmatpush.bf16.msra.mxu0 0
        %2740 = vmatpush.bf16.msra.mxu0 0
        %2741 = vmatpush.bf16.msra.mxu0 0
        %2742 = vmatpush.bf16.msra.mxu0 0
        %2743 = vmatpush.bf16.msra.mxu0 0
        %2744 = vmatpush.bf16.msra.mxu0 0
        %2745 = vmatpush.bf16.msra.mxu0 0
        %2746 = vmatpush.bf16.msra.mxu0 %v2435
        %2747 = vmatmul.bf16.gmra.mxu0 %v2371
        %v2748 = vpop.f32.mrf.mxu0
        %v2749 = vadd.f32 %v2229, %v2748
        %v2750 = vpop.f32.mrf.mxu0
        %v2751 = vadd.f32 %v2234, %v2750
        %2752 = vdwg.mxu0
        %2753 = vmatpush.bf16.msra.mxu0 0
        %2754 = vmatpush.bf16.msra.mxu0 0
        %2755 = vmatpush.bf16.msra.mxu0 0
        %2756 = vmatpush.bf16.msra.mxu0 0
        %2757 = vmatpush.bf16.msra.mxu0 0
        %2758 = vmatpush.bf16.msra.mxu0 0
        %2759 = vmatpush.bf16.msra.mxu0 0
        %2760 = vmatpush.bf16.msra.mxu0 %v2438
        %2761 = vmatmul.bf16.gmra.mxu0 %v2371
        %v2762 = vpop.f32.mrf.mxu0
        %v2763 = vadd.f32 %v2229, %v2762
        %v2764 = vpop.f32.mrf.mxu0
        %v2765 = vadd.f32 %v2234, %v2764
        %2766 = vdwg.mxu0
        %2767 = vmatpush.bf16.msra.mxu0 0
        %2768 = vmatpush.bf16.msra.mxu0 0
        %2769 = vmatpush.bf16.msra.mxu0 0
        %2770 = vmatpush.bf16.msra.mxu0 0
        %2771 = vmatpush.bf16.msra.mxu0 0
        %2772 = vmatpush.bf16.msra.mxu0 0
        %2773 = vmatpush.bf16.msra.mxu0 0
        %2774 = vmatpush.bf16.msra.mxu0 %v2441
        %2775 = vmatmul.bf16.gmra.mxu0 %v2371
        %v2776 = vpop.f32.mrf.mxu0
        %v2777 = vadd.f32 %v2229, %v2776
        %v2778 = vpop.f32.mrf.mxu0
        %v2779 = vadd.f32 %v2234, %v2778
        %2780 = vdwg.mxu0
        %2781 = vmatpush.bf16.msra.mxu0 0
        %2782 = vmatpush.bf16.msra.mxu0 0
        %2783 = vmatpush.bf16.msra.mxu0 0
        %2784 = vmatpush.bf16.msra.mxu0 0
        %2785 = vmatpush.bf16.msra.mxu0 0
        %2786 = vmatpush.bf16.msra.mxu0 0
        %2787 = vmatpush.bf16.msra.mxu0 0
        %2788 = vmatpush.bf16.msra.mxu0 %v2444
        %2789 = vmatmul.bf16.gmra.mxu0 %v2371
        %v2790 = vpop.f32.mrf.mxu0
        %v2791 = vadd.f32 %v2229, %v2790
        %v2792 = vpop.f32.mrf.mxu0
        %v2793 = vadd.f32 %v2234, %v2792
        %2794 = vdwg.mxu0
        %2795 = vmatpush.bf16.msra.mxu0 0
        %2796 = vmatpush.bf16.msra.mxu0 0
        %2797 = vmatpush.bf16.msra.mxu0 0
        %2798 = vmatpush.bf16.msra.mxu0 0
        %2799 = vmatpush.bf16.msra.mxu0 0
        %2800 = vmatpush.bf16.msra.mxu0 0
        %2801 = vmatpush.bf16.msra.mxu0 0
        %2802 = vmatpush.bf16.msra.mxu0 %v2447
        %2803 = vmatmul.bf16.gmra.mxu0 %v2371
        %v2804 = vpop.f32.mrf.mxu0
        %v2805 = vadd.f32 %v2229, %v2804
        %v2806 = vpop.f32.mrf.mxu0
        %v2807 = vadd.f32 %v2234, %v2806
        %2808 = vdwg.mxu0
        %2809 = vmatpush.bf16.msra.mxu0 0
        %2810 = vmatpush.bf16.msra.mxu0 0
        %2811 = vmatpush.bf16.msra.mxu0 0
        %2812 = vmatpush.bf16.msra.mxu0 0
        %2813 = vmatpush.bf16.msra.mxu0 0
        %2814 = vmatpush.bf16.msra.mxu0 0
        %2815 = vmatpush.bf16.msra.mxu0 0
        %2816 = vmatpush.bf16.msra.mxu0 %v2450
        %2817 = vmatmul.bf16.gmra.mxu0 %v2371
        %v2818 = vpop.f32.mrf.mxu0
        %v2819 = vadd.f32 %v2229, %v2818
        %v2820 = vpop.f32.mrf.mxu0
        %v2821 = vadd.f32 %v2234, %v2820
        %2822 = vdwg.mxu0
        %2823 = vmatpush.bf16.msra.mxu0 0
        %2824 = vmatpush.bf16.msra.mxu0 0
        %2825 = vmatpush.bf16.msra.mxu0 0
        %2826 = vmatpush.bf16.msra.mxu0 0
        %2827 = vmatpush.bf16.msra.mxu0 0
        %2828 = vmatpush.bf16.msra.mxu0 0
        %2829 = vmatpush.bf16.msra.mxu0 0
        %2830 = vmatpush.bf16.msra.mxu0 %v2453
        %2831 = vmatmul.bf16.gmra.mxu0 %v2371
        %v2832 = vpop.f32.mrf.mxu0
        %v2833 = vadd.f32 %v2229, %v2832
        %v2834 = vpop.f32.mrf.mxu0
        %v2835 = vadd.f32 %v2234, %v2834
        %2836 = vdwg.mxu0
        %2837 = vmatpush.bf16.msra.mxu0 0
        %2838 = vmatpush.bf16.msra.mxu0 0
        %2839 = vmatpush.bf16.msra.mxu0 0
        %2840 = vmatpush.bf16.msra.mxu0 0
        %2841 = vmatpush.bf16.msra.mxu0 0
        %2842 = vmatpush.bf16.msra.mxu0 0
        %2843 = vmatpush.bf16.msra.mxu0 0
        %2844 = vmatpush.bf16.msra.mxu0 %v2456
        %2845 = vmatmul.bf16.gmra.mxu0 %v2371
        %v2846 = vpop.f32.mrf.mxu0
        %v2847 = vadd.f32 %v2229, %v2846
        %v2848 = vpop.f32.mrf.mxu0
        %v2849 = vadd.f32 %v2234, %v2848
        %2850 = vdwg.mxu0
        %2851 = vmatpush.bf16.msra.mxu0 0
        %2852 = vmatpush.bf16.msra.mxu0 0
        %2853 = vmatpush.bf16.msra.mxu0 0
        %2854 = vmatpush.bf16.msra.mxu0 0
        %2855 = vmatpush.bf16.msra.mxu0 0
        %2856 = vmatpush.bf16.msra.mxu0 0
        %2857 = vmatpush.bf16.msra.mxu0 0
        %2858 = vmatpush.bf16.msra.mxu0 %v2459
        %2859 = vmatmul.bf16.gmra.mxu0 %v2371
        %v2860 = vpop.f32.mrf.mxu0
        %v2861 = vadd.f32 %v2229, %v2860
        %v2862 = vpop.f32.mrf.mxu0
        %v2863 = vadd.f32 %v2234, %v2862
        %2864 = vdwg.mxu0
        %2865 = vmatpush.bf16.msra.mxu0 0
        %2866 = vmatpush.bf16.msra.mxu0 0
        %2867 = vmatpush.bf16.msra.mxu0 0
        %2868 = vmatpush.bf16.msra.mxu0 0
        %2869 = vmatpush.bf16.msra.mxu0 0
        %2870 = vmatpush.bf16.msra.mxu0 0
        %2871 = vmatpush.bf16.msra.mxu0 0
        %2872 = vmatpush.bf16.msra.mxu0 %v2462
        %2873 = vmatmul.bf16.gmra.mxu0 %v2371
        %v2874 = vpop.f32.mrf.mxu0
        %v2875 = vadd.f32 %v2229, %v2874
        %v2876 = vpop.f32.mrf.mxu0
        %v2877 = vadd.f32 %v2234, %v2876
        %2878 = vdwg.mxu0
        %2879 = vmatpush.bf16.msra.mxu0 0
        %2880 = vmatpush.bf16.msra.mxu0 0
        %2881 = vmatpush.bf16.msra.mxu0 0
        %2882 = vmatpush.bf16.msra.mxu0 0
        %2883 = vmatpush.bf16.msra.mxu0 0
        %2884 = vmatpush.bf16.msra.mxu0 0
        %2885 = vmatpush.bf16.msra.mxu0 0
        %2886 = vmatpush.bf16.msra.mxu0 %v2465
        %2887 = vmatmul.bf16.gmra.mxu0 %v2371
        %v2888 = vpop.f32.mrf.mxu0
        %v2889 = vadd.f32 %v2229, %v2888
        %v2890 = vpop.f32.mrf.mxu0
        %v2891 = vadd.f32 %v2234, %v2890
        %2892 = vdwg.mxu0
        %2893 = vmatpush.bf16.msra.mxu0 0
        %2894 = vmatpush.bf16.msra.mxu0 0
        %2895 = vmatpush.bf16.msra.mxu0 0
        %2896 = vmatpush.bf16.msra.mxu0 0
        %2897 = vmatpush.bf16.msra.mxu0 0
        %2898 = vmatpush.bf16.msra.mxu0 0
        %2899 = vmatpush.bf16.msra.mxu0 0
        %2900 = vmatpush.bf16.msra.mxu0 %v2468
        %2901 = vmatmul.bf16.gmra.mxu0 %v2371
        %v2902 = vpop.f32.mrf.mxu0
        %v2903 = vadd.f32 %v2229, %v2902
        %v2904 = vpop.f32.mrf.mxu0
        %v2905 = vadd.f32 %v2234, %v2904
        %2906 = vdwg.mxu0
        %2907 = vmatpush.bf16.msra.mxu0 0
        %2908 = vmatpush.bf16.msra.mxu0 0
        %2909 = vmatpush.bf16.msra.mxu0 0
        %2910 = vmatpush.bf16.msra.mxu0 0
        %2911 = vmatpush.bf16.msra.mxu0 0
        %2912 = vmatpush.bf16.msra.mxu0 0
        %2913 = vmatpush.bf16.msra.mxu0 0
        %2914 = vmatpush.bf16.msra.mxu0 %v2471
        %2915 = vmatmul.bf16.gmra.mxu0 %v2371
        %v2916 = vpop.f32.mrf.mxu0
        %v2917 = vadd.f32 %v2229, %v2916
        %v2918 = vpop.f32.mrf.mxu0
        %v2919 = vadd.f32 %v2234, %v2918
        %2920 = vdwg.mxu0
        %v2921 = vmax.f32 %v2483, 0.0
        %v2922 = vmax.f32 %v2497, 0.0
        %v2923 = vmax.f32 %v2511, 0.0
        %v2924 = vmax.f32 %v2525, 0.0
        %v2925 = vmax.f32 %v2539, 0.0
        %v2926 = vmax.f32 %v2553, 0.0
        %v2927 = vmax.f32 %v2567, 0.0
        %v2928 = vmax.f32 %v2581, 0.0
        %v2929 = vmax.f32 %v2595, 0.0
        %v2930 = vmax.f32 %v2609, 0.0
        %v2931 = vmax.f32 %v2623, 0.0
        %v2932 = vmax.f32 %v2637, 0.0
        %v2933 = vmax.f32 %v2651, 0.0
        %v2934 = vmax.f32 %v2665, 0.0
        %v2935 = vmax.f32 %v2679, 0.0
        %v2936 = vmax.f32 %v2693, 0.0
        %v2937 = vmax.f32 %v2707, 0.0
        %v2938 = vmax.f32 %v2721, 0.0
        %v2939 = vmax.f32 %v2735, 0.0
        %v2940 = vmax.f32 %v2749, 0.0
        %v2941 = vmax.f32 %v2763, 0.0
        %v2942 = vmax.f32 %v2777, 0.0
        %v2943 = vmax.f32 %v2791, 0.0
        %v2944 = vmax.f32 %v2805, 0.0
        %v2945 = vmax.f32 %v2819, 0.0
        %v2946 = vmax.f32 %v2833, 0.0
        %v2947 = vmax.f32 %v2847, 0.0
        %v2948 = vmax.f32 %v2861, 0.0
        %v2949 = vmax.f32 %v2875, 0.0
        %v2950 = vmax.f32 %v2889, 0.0
        %v2951 = vmax.f32 %v2903, 0.0
        %v2952 = vmax.f32 %v2917, 0.0
        %v2953 = vmax.f32 %v2485, 0.0
        %v2954 = vmax.f32 %v2499, 0.0
        %v2955 = vmax.f32 %v2513, 0.0
        %v2956 = vmax.f32 %v2527, 0.0
        %v2957 = vmax.f32 %v2541, 0.0
        %v2958 = vmax.f32 %v2555, 0.0
        %v2959 = vmax.f32 %v2569, 0.0
        %v2960 = vmax.f32 %v2583, 0.0
        %v2961 = vmax.f32 %v2597, 0.0
        %v2962 = vmax.f32 %v2611, 0.0
        %v2963 = vmax.f32 %v2625, 0.0
        %v2964 = vmax.f32 %v2639, 0.0
        %v2965 = vmax.f32 %v2653, 0.0
        %v2966 = vmax.f32 %v2667, 0.0
        %v2967 = vmax.f32 %v2681, 0.0
        %v2968 = vmax.f32 %v2695, 0.0
        %v2969 = vmax.f32 %v2709, 0.0
        %v2970 = vmax.f32 %v2723, 0.0
        %v2971 = vmax.f32 %v2737, 0.0
        %v2972 = vmax.f32 %v2751, 0.0
        %v2973 = vmax.f32 %v2765, 0.0
        %v2974 = vmax.f32 %v2779, 0.0
        %v2975 = vmax.f32 %v2793, 0.0
        %v2976 = vmax.f32 %v2807, 0.0
        %v2977 = vmax.f32 %v2821, 0.0
        %v2978 = vmax.f32 %v2835, 0.0
        %v2979 = vmax.f32 %v2849, 0.0
        %v2980 = vmax.f32 %v2863, 0.0
        %v2981 = vmax.f32 %v2877, 0.0
        %v2982 = vmax.f32 %v2891, 0.0
        %v2983 = vmax.f32 %v2905, 0.0
        %v2984 = vmax.f32 %v2919, 0.0
        %v2989 = vperm.slane %v356, 0
        %v2990 = vperm.slane %v356, 1
        %v2991 = vperm.slane %v356, 2
        %v2992 = vperm.slane %v356, 3
        %v2993 = vperm.slane %v356, 4
        %v2994 = vperm.slane %v356, 5
        %v2995 = vperm.slane %v356, 6
        %v2996 = vperm.slane %v356, 7
        %v2997 = vperm.slane %v357, 0
        %v2998 = vperm.slane %v357, 1
        %v2999 = vperm.slane %v357, 2
        %v3000 = vperm.slane %v357, 3
        %v3001 = vperm.slane %v357, 4
        %v3002 = vperm.slane %v357, 5
        %v3003 = vperm.slane %v357, 6
        %v3004 = vperm.slane %v357, 7
        %v3005 = vperm.slane %v358, 0
        %v3006 = vperm.slane %v358, 1
        %v3007 = vperm.slane %v358, 2
        %v3008 = vperm.slane %v358, 3
        %v3009 = vperm.slane %v358, 4
        %v3010 = vperm.slane %v358, 5
        %v3011 = vperm.slane %v358, 6
        %v3012 = vperm.slane %v358, 7
        %v3013 = vperm.slane %v359, 0
        %v3014 = vperm.slane %v359, 1
        %v3015 = vperm.slane %v359, 2
        %v3016 = vperm.slane %v359, 3
        %v3017 = vperm.slane %v359, 4
        %v3018 = vperm.slane %v359, 5
        %v3019 = vperm.slane %v359, 6
        %v3020 = vperm.slane %v359, 7
        %v3053 = vmul.f32 %v2921, %v2989
        %v3054 = vmul.f32 %v2922, %v2990
        %v3055 = vmul.f32 %v2923, %v2991
        %v3056 = vmul.f32 %v2924, %v2992
        %v3057 = vmul.f32 %v2925, %v2993
        %v3058 = vmul.f32 %v2926, %v2994
        %v3059 = vmul.f32 %v2927, %v2995
        %v3060 = vmul.f32 %v2928, %v2996
        %v3061 = vmul.f32 %v2929, %v2997
        %v3062 = vmul.f32 %v2930, %v2998
        %v3063 = vmul.f32 %v2931, %v2999
        %v3064 = vmul.f32 %v2932, %v3000
        %v3065 = vmul.f32 %v2933, %v3001
        %v3066 = vmul.f32 %v2934, %v3002
        %v3067 = vmul.f32 %v2935, %v3003
        %v3068 = vmul.f32 %v2936, %v3004
        %v3069 = vmul.f32 %v2937, %v3005
        %v3070 = vmul.f32 %v2938, %v3006
        %v3071 = vmul.f32 %v2939, %v3007
        %v3072 = vmul.f32 %v2940, %v3008
        %v3073 = vmul.f32 %v2941, %v3009
        %v3074 = vmul.f32 %v2942, %v3010
        %v3075 = vmul.f32 %v2943, %v3011
        %v3076 = vmul.f32 %v2944, %v3012
        %v3077 = vmul.f32 %v2945, %v3013
        %v3078 = vmul.f32 %v2946, %v3014
        %v3079 = vmul.f32 %v2947, %v3015
        %v3080 = vmul.f32 %v2948, %v3016
        %v3081 = vmul.f32 %v2949, %v3017
        %v3082 = vmul.f32 %v2950, %v3018
        %v3083 = vmul.f32 %v2951, %v3019
        %v3084 = vmul.f32 %v2952, %v3020
        %v3085 = vmul.f32 %v2953, %v2989
        %v3086 = vmul.f32 %v2954, %v2990
        %v3087 = vmul.f32 %v2955, %v2991
        %v3088 = vmul.f32 %v2956, %v2992
        %v3089 = vmul.f32 %v2957, %v2993
        %v3090 = vmul.f32 %v2958, %v2994
        %v3091 = vmul.f32 %v2959, %v2995
        %v3092 = vmul.f32 %v2960, %v2996
        %v3093 = vmul.f32 %v2961, %v2997
        %v3094 = vmul.f32 %v2962, %v2998
        %v3095 = vmul.f32 %v2963, %v2999
        %v3096 = vmul.f32 %v2964, %v3000
        %v3097 = vmul.f32 %v2965, %v3001
        %v3098 = vmul.f32 %v2966, %v3002
        %v3099 = vmul.f32 %v2967, %v3003
        %v3100 = vmul.f32 %v2968, %v3004
        %v3101 = vmul.f32 %v2969, %v3005
        %v3102 = vmul.f32 %v2970, %v3006
        %v3103 = vmul.f32 %v2971, %v3007
        %v3104 = vmul.f32 %v2972, %v3008
        %v3105 = vmul.f32 %v2973, %v3009
        %v3106 = vmul.f32 %v2974, %v3010
        %v3107 = vmul.f32 %v2975, %v3011
        %v3108 = vmul.f32 %v2976, %v3012
        %v3109 = vmul.f32 %v2977, %v3013
        %v3110 = vmul.f32 %v2978, %v3014
        %v3111 = vmul.f32 %v2979, %v3015
        %v3112 = vmul.f32 %v2980, %v3016
        %v3113 = vmul.f32 %v2981, %v3017
        %v3114 = vmul.f32 %v2982, %v3018
        %v3115 = vmul.f32 %v2983, %v3019
        %v3116 = vmul.f32 %v2984, %v3020
        %v3117 = vpack.c.bf16 %v3054, %v3053
        %v3118 = vpack.c.bf16 %v3056, %v3055
        %v3119 = vpack.c.bf16 %v3058, %v3057
        %v3120 = vpack.c.bf16 %v3060, %v3059
        %v3121 = vpack.c.bf16 %v3062, %v3061
        %v3122 = vpack.c.bf16 %v3064, %v3063
        %v3123 = vpack.c.bf16 %v3066, %v3065
        %v3124 = vpack.c.bf16 %v3068, %v3067
        %v3125 = vpack.c.bf16 %v3070, %v3069
        %v3126 = vpack.c.bf16 %v3072, %v3071
        %v3127 = vpack.c.bf16 %v3074, %v3073
        %v3128 = vpack.c.bf16 %v3076, %v3075
        %v3129 = vpack.c.bf16 %v3078, %v3077
        %v3130 = vpack.c.bf16 %v3080, %v3079
        %v3131 = vpack.c.bf16 %v3082, %v3081
        %v3132 = vpack.c.bf16 %v3084, %v3083
        %v3133 = vpack.c.bf16 %v3086, %v3085
        %v3134 = vpack.c.bf16 %v3088, %v3087
        %v3135 = vpack.c.bf16 %v3090, %v3089
        %v3136 = vpack.c.bf16 %v3092, %v3091
        %v3137 = vpack.c.bf16 %v3094, %v3093
        %v3138 = vpack.c.bf16 %v3096, %v3095
        %v3139 = vpack.c.bf16 %v3098, %v3097
        %v3140 = vpack.c.bf16 %v3100, %v3099
        %v3141 = vpack.c.bf16 %v3102, %v3101
        %v3142 = vpack.c.bf16 %v3104, %v3103
        %v3143 = vpack.c.bf16 %v3106, %v3105
        %v3144 = vpack.c.bf16 %v3108, %v3107
        %v3145 = vpack.c.bf16 %v3110, %v3109
        %v3146 = vpack.c.bf16 %v3112, %v3111
        %v3147 = vpack.c.bf16 %v3114, %v3113
        %v3148 = vpack.c.bf16 %v3116, %v3115
        %3181 = vrot.lane.b32.xlu0 %v3117, 31
        %v3182 = vpop.permute.xlu0 %3181
        %3183 = vrot.lane.b32.xlu0 %v3118, 31
        %v3184 = vpop.permute.xlu0 %3183
        %3185 = vrot.lane.b32.xlu0 %v3119, 31
        %v3186 = vpop.permute.xlu0 %3185
        %3187 = vrot.lane.b32.xlu0 %v3120, 31
        %v3188 = vpop.permute.xlu0 %3187
        %3189 = vrot.lane.b32.xlu0 %v3121, 31
        %v3190 = vpop.permute.xlu0 %3189
        %3191 = vrot.lane.b32.xlu0 %v3122, 31
        %v3192 = vpop.permute.xlu0 %3191
        %3193 = vrot.lane.b32.xlu0 %v3123, 31
        %v3194 = vpop.permute.xlu0 %3193
        %3195 = vrot.lane.b32.xlu0 %v3124, 31
        %v3196 = vpop.permute.xlu0 %3195
        %3197 = vrot.lane.b32.xlu0 %v3125, 31
        %v3198 = vpop.permute.xlu0 %3197
        %3199 = vrot.lane.b32.xlu0 %v3126, 31
        %v3200 = vpop.permute.xlu0 %3199
        %3201 = vrot.lane.b32.xlu0 %v3127, 31
        %v3202 = vpop.permute.xlu0 %3201
        %3203 = vrot.lane.b32.xlu0 %v3128, 31
        %v3204 = vpop.permute.xlu0 %3203
        %3205 = vrot.lane.b32.xlu0 %v3129, 31
        %v3206 = vpop.permute.xlu0 %3205
        %3207 = vrot.lane.b32.xlu0 %v3130, 31
        %v3208 = vpop.permute.xlu0 %3207
        %3209 = vrot.lane.b32.xlu0 %v3131, 31
        %v3210 = vpop.permute.xlu0 %3209
        %3211 = vrot.lane.b32.xlu0 %v3132, 31
        %v3212 = vpop.permute.xlu0 %3211
        %3213 = vrot.lane.b32.xlu0 %v3133, 31
        %v3214 = vpop.permute.xlu0 %3213
        %3215 = vrot.lane.b32.xlu0 %v3134, 31
        %v3216 = vpop.permute.xlu0 %3215
        %3217 = vrot.lane.b32.xlu0 %v3135, 31
        %v3218 = vpop.permute.xlu0 %3217
        %3219 = vrot.lane.b32.xlu0 %v3136, 31
        %v3220 = vpop.permute.xlu0 %3219
        %3221 = vrot.lane.b32.xlu0 %v3137, 31
        %v3222 = vpop.permute.xlu0 %3221
        %3223 = vrot.lane.b32.xlu0 %v3138, 31
        %v3224 = vpop.permute.xlu0 %3223
        %3225 = vrot.lane.b32.xlu0 %v3139, 31
        %v3226 = vpop.permute.xlu0 %3225
        %3227 = vrot.lane.b32.xlu0 %v3140, 31
        %v3228 = vpop.permute.xlu0 %3227
        %3229 = vrot.lane.b32.xlu0 %v3141, 31
        %v3230 = vpop.permute.xlu0 %3229
        %3231 = vrot.lane.b32.xlu0 %v3142, 31
        %v3232 = vpop.permute.xlu0 %3231
        %3233 = vrot.lane.b32.xlu0 %v3143, 31
        %v3234 = vpop.permute.xlu0 %3233
        %3235 = vrot.lane.b32.xlu0 %v3144, 31
        %v3236 = vpop.permute.xlu0 %3235
        %3237 = vrot.lane.b32.xlu0 %v3145, 31
        %v3238 = vpop.permute.xlu0 %3237
        %3239 = vrot.lane.b32.xlu0 %v3146, 31
        %v3240 = vpop.permute.xlu0 %3239
        %3241 = vrot.lane.b32.xlu0 %v3147, 31
        %v3242 = vpop.permute.xlu0 %3241
        %3243 = vrot.lane.b32.xlu0 %v3148, 31
        %v3244 = vpop.permute.xlu0 %3243
        %v3245 = vrot.slane %v3182, 4
        %v3246 = vrot.slane %v3184, 4
        %v3247 = vrot.slane %v3186, 4
        %v3248 = vrot.slane %v3188, 4
        %v3249 = vrot.slane %v3190, 4
        %v3250 = vrot.slane %v3192, 4
        %v3251 = vrot.slane %v3194, 4
        %v3252 = vrot.slane %v3196, 4
        %v3253 = vrot.slane %v3198, 4
        %v3254 = vrot.slane %v3200, 4
        %v3255 = vrot.slane %v3202, 4
        %v3256 = vrot.slane %v3204, 4
        %v3257 = vrot.slane %v3206, 4
        %v3258 = vrot.slane %v3208, 4
        %v3259 = vrot.slane %v3210, 4
        %v3260 = vrot.slane %v3212, 4
        %v3261 = vrot.slane %v3214, 4
        %v3262 = vrot.slane %v3216, 4
        %v3263 = vrot.slane %v3218, 4
        %v3264 = vrot.slane %v3220, 4
        %v3265 = vrot.slane %v3222, 4
        %v3266 = vrot.slane %v3224, 4
        %v3267 = vrot.slane %v3226, 4
        %v3268 = vrot.slane %v3228, 4
        %v3269 = vrot.slane %v3230, 4
        %v3270 = vrot.slane %v3232, 4
        %v3271 = vrot.slane %v3234, 4
        %v3272 = vrot.slane %v3236, 4
        %v3273 = vrot.slane %v3238, 4
        %v3274 = vrot.slane %v3240, 4
        %v3275 = vrot.slane %v3242, 4
        %v3276 = vrot.slane %v3244, 4
        %v3277 = vsel %vm453, %v3245, %v3182
        %v3278 = vsel %vm455, %v3245, %v3246
        %v3279 = vsel %vm453, %v3278, %v3184
        %v3280 = vsel %vm455, %v3246, %v3247
        %v3281 = vsel %vm453, %v3280, %v3186
        %v3282 = vsel %vm455, %v3247, %v3248
        %v3283 = vsel %vm453, %v3282, %v3188
        %v3284 = vsel %vm455, %v3248, %v3249
        %v3285 = vsel %vm453, %v3284, %v3190
        %v3286 = vsel %vm455, %v3249, %v3250
        %v3287 = vsel %vm453, %v3286, %v3192
        %v3288 = vsel %vm455, %v3250, %v3251
        %v3289 = vsel %vm453, %v3288, %v3194
        %v3290 = vsel %vm455, %v3251, %v3252
        %v3291 = vsel %vm453, %v3290, %v3196
        %v3292 = vsel %vm455, %v3252, %v3253
        %v3293 = vsel %vm453, %v3292, %v3198
        %v3294 = vsel %vm455, %v3253, %v3254
        %v3295 = vsel %vm453, %v3294, %v3200
        %v3296 = vsel %vm455, %v3254, %v3255
        %v3297 = vsel %vm453, %v3296, %v3202
        %v3298 = vsel %vm455, %v3255, %v3256
        %v3299 = vsel %vm453, %v3298, %v3204
        %v3300 = vsel %vm455, %v3256, %v3257
        %v3301 = vsel %vm453, %v3300, %v3206
        %v3302 = vsel %vm455, %v3257, %v3258
        %v3303 = vsel %vm453, %v3302, %v3208
        %v3304 = vsel %vm455, %v3258, %v3259
        %v3305 = vsel %vm453, %v3304, %v3210
        %v3306 = vsel %vm455, %v3259, %v3260
        %v3307 = vsel %vm453, %v3306, %v3212
        %v3308 = vsel %vm453, %v3261, %v3214
        %v3309 = vsel %vm455, %v3261, %v3262
        %v3310 = vsel %vm453, %v3309, %v3216
        %v3311 = vsel %vm455, %v3262, %v3263
        %v3312 = vsel %vm453, %v3311, %v3218
        %v3313 = vsel %vm455, %v3263, %v3264
        %v3314 = vsel %vm453, %v3313, %v3220
        %v3315 = vsel %vm455, %v3264, %v3265
        %v3316 = vsel %vm453, %v3315, %v3222
        %v3317 = vsel %vm455, %v3265, %v3266
        %v3318 = vsel %vm453, %v3317, %v3224
        %v3319 = vsel %vm455, %v3266, %v3267
        %v3320 = vsel %vm453, %v3319, %v3226
        %v3321 = vsel %vm455, %v3267, %v3268
        %v3322 = vsel %vm453, %v3321, %v3228
        %v3323 = vsel %vm455, %v3268, %v3269
        %v3324 = vsel %vm453, %v3323, %v3230
        %v3325 = vsel %vm455, %v3269, %v3270
        %v3326 = vsel %vm453, %v3325, %v3232
        %v3327 = vsel %vm455, %v3270, %v3271
        %v3328 = vsel %vm453, %v3327, %v3234
        %v3329 = vsel %vm455, %v3271, %v3272
        %v3330 = vsel %vm453, %v3329, %v3236
        %v3331 = vsel %vm455, %v3272, %v3273
        %v3332 = vsel %vm453, %v3331, %v3238
        %v3333 = vsel %vm455, %v3273, %v3274
        %v3334 = vsel %vm453, %v3333, %v3240
        %v3335 = vsel %vm455, %v3274, %v3275
        %v3336 = vsel %vm453, %v3335, %v3242
        %v3337 = vsel %vm455, %v3275, %v3276
        %v3338 = vsel %vm453, %v3337, %v3244
        %vm3371 = vcmask 1043704
        %vm3372 = vcmask 1047556
        %vm3373 = vmor %vm3372, %vm3371
        %3374 = vst.msk [vmem:[#allocation2] sm:$0xff] %vm3373, %v3277
        %3375 = vst [vmem:[#allocation2 + $0x8] sm:$0xff] %v3279
        %3376 = vst [vmem:[#allocation2 + $0x10] sm:$0xff] %v3281
        %3377 = vst [vmem:[#allocation2 + $0x18] sm:$0xff] %v3283
        %3378 = vst [vmem:[#allocation2 + $0x20] sm:$0xff] %v3285
        %3379 = vst [vmem:[#allocation2 + $0x28] sm:$0xff] %v3287
        %3380 = vst [vmem:[#allocation2 + $0x30] sm:$0xff] %v3289
        %3381 = vst [vmem:[#allocation2 + $0x38] sm:$0xff] %v3291
        %3382 = vst [vmem:[#allocation2 + $0x40] sm:$0xff] %v3293
        %3383 = vst [vmem:[#allocation2 + $0x48] sm:$0xff] %v3295
        %3384 = vst [vmem:[#allocation2 + $0x50] sm:$0xff] %v3297
        %3385 = vst [vmem:[#allocation2 + $0x58] sm:$0xff] %v3299
        %3386 = vst [vmem:[#allocation2 + $0x60] sm:$0xff] %v3301
        %3387 = vst [vmem:[#allocation2 + $0x68] sm:$0xff] %v3303
        %3388 = vst [vmem:[#allocation2 + $0x70] sm:$0xff] %v3305
        %3389 = vst [vmem:[#allocation2 + $0x78] sm:$0xff] %v3307
        %vm3390 = vcmask 1040632
        %vm3391 = vcmask 1044484
        %vm3392 = vmor %vm3391, %vm3390
        %3393 = vst.msk [vmem:[#allocation2 + $0x80] sm:$0x11] %vm3392, %v3308
        %3394 = vst [vmem:[#allocation2 + $0x88] sm:$0x11] %v3310
        %3395 = vst [vmem:[#allocation2 + $0x90] sm:$0x11] %v3312
        %3396 = vst [vmem:[#allocation2 + $0x98] sm:$0x11] %v3314
        %3397 = vst [vmem:[#allocation2 + $0xa0] sm:$0x11] %v3316
        %3398 = vst [vmem:[#allocation2 + $0xa8] sm:$0x11] %v3318
        %3399 = vst [vmem:[#allocation2 + $0xb0] sm:$0x11] %v3320
        %3400 = vst [vmem:[#allocation2 + $0xb8] sm:$0x11] %v3322
        %3401 = vst [vmem:[#allocation2 + $0xc0] sm:$0x11] %v3324
        %3402 = vst [vmem:[#allocation2 + $0xc8] sm:$0x11] %v3326
        %3403 = vst [vmem:[#allocation2 + $0xd0] sm:$0x11] %v3328
        %3404 = vst [vmem:[#allocation2 + $0xd8] sm:$0x11] %v3330
        %3405 = vst [vmem:[#allocation2 + $0xe0] sm:$0x11] %v3332
        %3406 = vst [vmem:[#allocation2 + $0xe8] sm:$0x11] %v3334
        %3407 = vst [vmem:[#allocation2 + $0xf0] sm:$0x11] %v3336
        %3408 = vst [vmem:[#allocation2 + $0xf8] sm:$0x11] %v3338
        %vm3411 = vcmask 248832
        %3412 = vst.msk [vmem:[#allocation2] sm:$0xf] %vm3411, %v3260
        %vm3413 = vcmask 245760
        %3414 = vst.msk [vmem:[#allocation2 + $0x80] sm:$0x1] %vm3413, %v3276
        %vm3415 = vmor %vm512, %vm505
        %v3416 = vrot.slane %v3117, 7
        %v3417 = vrot.slane %v3118, 7
        %v3418 = vrot.slane %v3119, 7
        %v3419 = vrot.slane %v3120, 7
        %v3420 = vrot.slane %v3121, 7
        %v3421 = vrot.slane %v3122, 7
        %v3422 = vrot.slane %v3123, 7
        %v3423 = vrot.slane %v3124, 7
        %v3424 = vrot.slane %v3125, 7
        %v3425 = vrot.slane %v3126, 7
        %v3426 = vrot.slane %v3127, 7
        %v3427 = vrot.slane %v3128, 7
        %v3428 = vrot.slane %v3129, 7
        %v3429 = vrot.slane %v3130, 7
        %v3430 = vrot.slane %v3131, 7
        %v3431 = vrot.slane %v3132, 7
        %v3432 = vrot.slane %v3416, 4
        %v3433 = vrot.slane %v3133, 7
        %v3434 = vsel %vm3415, %v3432, %v3433
        %v3435 = vrot.slane %v3417, 4
        %v3436 = vrot.slane %v3134, 7
        %v3437 = vsel %vm3415, %v3435, %v3436
        %v3438 = vrot.slane %v3418, 4
        %v3439 = vrot.slane %v3135, 7
        %v3440 = vsel %vm3415, %v3438, %v3439
        %v3441 = vrot.slane %v3419, 4
        %v3442 = vrot.slane %v3136, 7
        %v3443 = vsel %vm3415, %v3441, %v3442
        %v3444 = vrot.slane %v3420, 4
        %v3445 = vrot.slane %v3137, 7
        %v3446 = vsel %vm3415, %v3444, %v3445
        %v3447 = vrot.slane %v3421, 4
        %v3448 = vrot.slane %v3138, 7
        %v3449 = vsel %vm3415, %v3447, %v3448
        %v3450 = vrot.slane %v3422, 4
        %v3451 = vrot.slane %v3139, 7
        %v3452 = vsel %vm3415, %v3450, %v3451
        %v3453 = vrot.slane %v3423, 4
        %v3454 = vrot.slane %v3140, 7
        %v3455 = vsel %vm3415, %v3453, %v3454
        %v3456 = vrot.slane %v3424, 4
        %v3457 = vrot.slane %v3141, 7
        %v3458 = vsel %vm3415, %v3456, %v3457
        %v3459 = vrot.slane %v3425, 4
        %v3460 = vrot.slane %v3142, 7
        %v3461 = vsel %vm3415, %v3459, %v3460
        %v3462 = vrot.slane %v3426, 4
        %v3463 = vrot.slane %v3143, 7
        %v3464 = vsel %vm3415, %v3462, %v3463
        %v3465 = vrot.slane %v3427, 4
        %v3466 = vrot.slane %v3144, 7
        %v3467 = vsel %vm3415, %v3465, %v3466
        %v3468 = vrot.slane %v3428, 4
        %v3469 = vrot.slane %v3145, 7
        %v3470 = vsel %vm3415, %v3468, %v3469
        %v3471 = vrot.slane %v3429, 4
        %v3472 = vrot.slane %v3146, 7
        %v3473 = vsel %vm3415, %v3471, %v3472
        %v3474 = vrot.slane %v3430, 4
        %v3475 = vrot.slane %v3147, 7
        %v3476 = vsel %vm3415, %v3474, %v3475
        %v3477 = vrot.slane %v3431, 4
        %v3478 = vrot.slane %v3148, 7
        %v3479 = vsel %vm3415, %v3477, %v3478
        %3480 = vrot.lane.b32.xlu0 %v3416, 30
        %v3481 = vpop.permute.xlu0 %3480
        %3482 = vrot.lane.b32.xlu0 %v3417, 30
        %v3483 = vpop.permute.xlu0 %3482
        %3484 = vrot.lane.b32.xlu0 %v3418, 30
        %v3485 = vpop.permute.xlu0 %3484
        %3486 = vrot.lane.b32.xlu0 %v3419, 30
        %v3487 = vpop.permute.xlu0 %3486
        %3488 = vrot.lane.b32.xlu0 %v3420, 30
        %v3489 = vpop.permute.xlu0 %3488
        %3490 = vrot.lane.b32.xlu0 %v3421, 30
        %v3491 = vpop.permute.xlu0 %3490
        %3492 = vrot.lane.b32.xlu0 %v3422, 30
        %v3493 = vpop.permute.xlu0 %3492
        %3494 = vrot.lane.b32.xlu0 %v3423, 30
        %v3495 = vpop.permute.xlu0 %3494
        %3496 = vrot.lane.b32.xlu0 %v3424, 30
        %v3497 = vpop.permute.xlu0 %3496
        %3498 = vrot.lane.b32.xlu0 %v3425, 30
        %v3499 = vpop.permute.xlu0 %3498
        %3500 = vrot.lane.b32.xlu0 %v3426, 30
        %v3501 = vpop.permute.xlu0 %3500
        %3502 = vrot.lane.b32.xlu0 %v3427, 30
        %v3503 = vpop.permute.xlu0 %3502
        %3504 = vrot.lane.b32.xlu0 %v3428, 30
        %v3505 = vpop.permute.xlu0 %3504
        %3506 = vrot.lane.b32.xlu0 %v3429, 30
        %v3507 = vpop.permute.xlu0 %3506
        %3508 = vrot.lane.b32.xlu0 %v3430, 30
        %v3509 = vpop.permute.xlu0 %3508
        %3510 = vrot.lane.b32.xlu0 %v3431, 30
        %v3511 = vpop.permute.xlu0 %3510
        %3512 = vrot.lane.b32.xlu0 %v3434, 30
        %v3513 = vpop.permute.xlu0 %3512
        %3514 = vrot.lane.b32.xlu0 %v3437, 30
        %v3515 = vpop.permute.xlu0 %3514
        %3516 = vrot.lane.b32.xlu0 %v3440, 30
        %v3517 = vpop.permute.xlu0 %3516
        %3518 = vrot.lane.b32.xlu0 %v3443, 30
        %v3519 = vpop.permute.xlu0 %3518
        %3520 = vrot.lane.b32.xlu0 %v3446, 30
        %v3521 = vpop.permute.xlu0 %3520
        %3522 = vrot.lane.b32.xlu0 %v3449, 30
        %v3523 = vpop.permute.xlu0 %3522
        %3524 = vrot.lane.b32.xlu0 %v3452, 30
        %v3525 = vpop.permute.xlu0 %3524
        %3526 = vrot.lane.b32.xlu0 %v3455, 30
        %v3527 = vpop.permute.xlu0 %3526
        %3528 = vrot.lane.b32.xlu0 %v3458, 30
        %v3529 = vpop.permute.xlu0 %3528
        %3530 = vrot.lane.b32.xlu0 %v3461, 30
        %v3531 = vpop.permute.xlu0 %3530
        %3532 = vrot.lane.b32.xlu0 %v3464, 30
        %v3533 = vpop.permute.xlu0 %3532
        %3534 = vrot.lane.b32.xlu0 %v3467, 30
        %v3535 = vpop.permute.xlu0 %3534
        %3536 = vrot.lane.b32.xlu0 %v3470, 30
        %v3537 = vpop.permute.xlu0 %3536
        %3538 = vrot.lane.b32.xlu0 %v3473, 30
        %v3539 = vpop.permute.xlu0 %3538
        %3540 = vrot.lane.b32.xlu0 %v3476, 30
        %v3541 = vpop.permute.xlu0 %3540
        %3542 = vrot.lane.b32.xlu0 %v3479, 30
        %v3543 = vpop.permute.xlu0 %3542
        %v3544 = vrot.slane %v3481, 4
        %v3545 = vrot.slane %v3483, 4
        %v3546 = vrot.slane %v3485, 4
        %v3547 = vrot.slane %v3487, 4
        %v3548 = vrot.slane %v3489, 4
        %v3549 = vrot.slane %v3491, 4
        %v3550 = vrot.slane %v3493, 4
        %v3551 = vrot.slane %v3495, 4
        %v3552 = vrot.slane %v3497, 4
        %v3553 = vrot.slane %v3499, 4
        %v3554 = vrot.slane %v3501, 4
        %v3555 = vrot.slane %v3503, 4
        %v3556 = vrot.slane %v3505, 4
        %v3557 = vrot.slane %v3507, 4
        %v3558 = vrot.slane %v3509, 4
        %v3559 = vrot.slane %v3511, 4
        %v3560 = vrot.slane %v3513, 4
        %v3561 = vrot.slane %v3515, 4
        %v3562 = vrot.slane %v3517, 4
        %v3563 = vrot.slane %v3519, 4
        %v3564 = vrot.slane %v3521, 4
        %v3565 = vrot.slane %v3523, 4
        %v3566 = vrot.slane %v3525, 4
        %v3567 = vrot.slane %v3527, 4
        %v3568 = vrot.slane %v3529, 4
        %v3569 = vrot.slane %v3531, 4
        %v3570 = vrot.slane %v3533, 4
        %v3571 = vrot.slane %v3535, 4
        %v3572 = vrot.slane %v3537, 4
        %v3573 = vrot.slane %v3539, 4
        %v3574 = vrot.slane %v3541, 4
        %v3575 = vrot.slane %v3543, 4
        %v3576 = vsel %vm673, %v3544, %v3481
        %v3577 = vsel %vm455, %v3544, %v3545
        %v3578 = vsel %vm673, %v3577, %v3483
        %v3579 = vsel %vm455, %v3545, %v3546
        %v3580 = vsel %vm673, %v3579, %v3485
        %v3581 = vsel %vm455, %v3546, %v3547
        %v3582 = vsel %vm673, %v3581, %v3487
        %v3583 = vsel %vm455, %v3547, %v3548
        %v3584 = vsel %vm673, %v3583, %v3489
        %v3585 = vsel %vm455, %v3548, %v3549
        %v3586 = vsel %vm673, %v3585, %v3491
        %v3587 = vsel %vm455, %v3549, %v3550
        %v3588 = vsel %vm673, %v3587, %v3493
        %v3589 = vsel %vm455, %v3550, %v3551
        %v3590 = vsel %vm673, %v3589, %v3495
        %v3591 = vsel %vm455, %v3551, %v3552
        %v3592 = vsel %vm673, %v3591, %v3497
        %v3593 = vsel %vm455, %v3552, %v3553
        %v3594 = vsel %vm673, %v3593, %v3499
        %v3595 = vsel %vm455, %v3553, %v3554
        %v3596 = vsel %vm673, %v3595, %v3501
        %v3597 = vsel %vm455, %v3554, %v3555
        %v3598 = vsel %vm673, %v3597, %v3503
        %v3599 = vsel %vm455, %v3555, %v3556
        %v3600 = vsel %vm673, %v3599, %v3505
        %v3601 = vsel %vm455, %v3556, %v3557
        %v3602 = vsel %vm673, %v3601, %v3507
        %v3603 = vsel %vm455, %v3557, %v3558
        %v3604 = vsel %vm673, %v3603, %v3509
        %v3605 = vsel %vm455, %v3558, %v3559
        %v3606 = vsel %vm673, %v3605, %v3511
        %v3607 = vsel %vm673, %v3560, %v3513
        %v3608 = vsel %vm455, %v3560, %v3561
        %v3609 = vsel %vm673, %v3608, %v3515
        %v3610 = vsel %vm455, %v3561, %v3562
        %v3611 = vsel %vm673, %v3610, %v3517
        %v3612 = vsel %vm455, %v3562, %v3563
        %v3613 = vsel %vm673, %v3612, %v3519
        %v3614 = vsel %vm455, %v3563, %v3564
        %v3615 = vsel %vm673, %v3614, %v3521
        %v3616 = vsel %vm455, %v3564, %v3565
        %v3617 = vsel %vm673, %v3616, %v3523
        %v3618 = vsel %vm455, %v3565, %v3566
        %v3619 = vsel %vm673, %v3618, %v3525
        %v3620 = vsel %vm455, %v3566, %v3567
        %v3621 = vsel %vm673, %v3620, %v3527
        %v3622 = vsel %vm455, %v3567, %v3568
        %v3623 = vsel %vm673, %v3622, %v3529
        %v3624 = vsel %vm455, %v3568, %v3569
        %v3625 = vsel %vm673, %v3624, %v3531
        %v3626 = vsel %vm455, %v3569, %v3570
        %v3627 = vsel %vm673, %v3626, %v3533
        %v3628 = vsel %vm455, %v3570, %v3571
        %v3629 = vsel %vm673, %v3628, %v3535
        %v3630 = vsel %vm455, %v3571, %v3572
        %v3631 = vsel %vm673, %v3630, %v3537
        %v3632 = vsel %vm455, %v3572, %v3573
        %v3633 = vsel %vm673, %v3632, %v3539
        %v3634 = vsel %vm455, %v3573, %v3574
        %v3635 = vsel %vm673, %v3634, %v3541
        %v3636 = vsel %vm455, %v3574, %v3575
        %v3637 = vsel %vm673, %v3636, %v3543
        %vm3670 = vcmask 1043697
        %vm3671 = vcmask 1047557
        %vm3672 = vmor %vm3671, %vm3670
        %3673 = vst.msk [vmem:[#allocation2 + $0x80] sm:$0xee] %vm3672, %v3576
        %3674 = vst [vmem:[#allocation2 + $0x88] sm:$0xee] %v3578
        %3675 = vst [vmem:[#allocation2 + $0x90] sm:$0xee] %v3580
        %3676 = vst [vmem:[#allocation2 + $0x98] sm:$0xee] %v3582
        %3677 = vst [vmem:[#allocation2 + $0xa0] sm:$0xee] %v3584
        %3678 = vst [vmem:[#allocation2 + $0xa8] sm:$0xee] %v3586
        %3679 = vst [vmem:[#allocation2 + $0xb0] sm:$0xee] %v3588
        %3680 = vst [vmem:[#allocation2 + $0xb8] sm:$0xee] %v3590
        %3681 = vst [vmem:[#allocation2 + $0xc0] sm:$0xee] %v3592
        %3682 = vst [vmem:[#allocation2 + $0xc8] sm:$0xee] %v3594
        %3683 = vst [vmem:[#allocation2 + $0xd0] sm:$0xee] %v3596
        %3684 = vst [vmem:[#allocation2 + $0xd8] sm:$0xee] %v3598
        %3685 = vst [vmem:[#allocation2 + $0xe0] sm:$0xee] %v3600
        %3686 = vst [vmem:[#allocation2 + $0xe8] sm:$0xee] %v3602
        %3687 = vst [vmem:[#allocation2 + $0xf0] sm:$0xee] %v3604
        %3688 = vst [vmem:[#allocation2 + $0xf8] sm:$0xee] %v3606
        %vm3689 = vcmask 1041648
        %vm3690 = vcmask 1045508
        %vm3691 = vmor %vm3690, %vm3689
        %3692 = vst.msk [vmem:[#allocation2 + $0x100] sm:$0x33] %vm3691, %v3607
        %3693 = vst [vmem:[#allocation2 + $0x108] sm:$0x33] %v3609
        %3694 = vst [vmem:[#allocation2 + $0x110] sm:$0x33] %v3611
        %3695 = vst [vmem:[#allocation2 + $0x118] sm:$0x33] %v3613
        %3696 = vst [vmem:[#allocation2 + $0x120] sm:$0x33] %v3615
        %3697 = vst [vmem:[#allocation2 + $0x128] sm:$0x33] %v3617
        %3698 = vst [vmem:[#allocation2 + $0x130] sm:$0x33] %v3619
        %3699 = vst [vmem:[#allocation2 + $0x138] sm:$0x33] %v3621
        %3700 = vst [vmem:[#allocation2 + $0x140] sm:$0x33] %v3623
        %3701 = vst [vmem:[#allocation2 + $0x148] sm:$0x33] %v3625
        %3702 = vst [vmem:[#allocation2 + $0x150] sm:$0x33] %v3627
        %3703 = vst [vmem:[#allocation2 + $0x158] sm:$0x33] %v3629
        %3704 = vst [vmem:[#allocation2 + $0x160] sm:$0x33] %v3631
        %3705 = vst [vmem:[#allocation2 + $0x168] sm:$0x33] %v3633
        %3706 = vst [vmem:[#allocation2 + $0x170] sm:$0x33] %v3635
        %3707 = vst [vmem:[#allocation2 + $0x178] sm:$0x33] %v3637
        %vm3710 = vcmask 240641
        %3711 = vst.msk [vmem:[#allocation2 + $0x80] sm:$0xe] %vm3710, %v3559
        %vm3712 = vcmask 238592
        %3713 = vst.msk [vmem:[#allocation2 + $0x100] sm:$0x3] %vm3712, %v3575
        %vm3714 = vcmask 1041408
        %vm3715 = vcmask 1045508
        %vm3716 = vmor %vm3714, %vm3715
        %v3717 = vrot.slane %v3117, 6
        %v3718 = vrot.slane %v3118, 6
        %v3719 = vrot.slane %v3119, 6
        %v3720 = vrot.slane %v3120, 6
        %v3721 = vrot.slane %v3121, 6
        %v3722 = vrot.slane %v3122, 6
        %v3723 = vrot.slane %v3123, 6
        %v3724 = vrot.slane %v3124, 6
        %v3725 = vrot.slane %v3125, 6
        %v3726 = vrot.slane %v3126, 6
        %v3727 = vrot.slane %v3127, 6
        %v3728 = vrot.slane %v3128, 6
        %v3729 = vrot.slane %v3129, 6
        %v3730 = vrot.slane %v3130, 6
        %v3731 = vrot.slane %v3131, 6
        %v3732 = vrot.slane %v3132, 6
        %v3733 = vrot.slane %v3717, 4
        %v3734 = vrot.slane %v3133, 6
        %v3735 = vsel %vm3716, %v3733, %v3734
        %v3736 = vrot.slane %v3718, 4
        %v3737 = vrot.slane %v3134, 6
        %v3738 = vsel %vm3716, %v3736, %v3737
        %v3739 = vrot.slane %v3719, 4
        %v3740 = vrot.slane %v3135, 6
        %v3741 = vsel %vm3716, %v3739, %v3740
        %v3742 = vrot.slane %v3720, 4
        %v3743 = vrot.slane %v3136, 6
        %v3744 = vsel %vm3716, %v3742, %v3743
        %v3745 = vrot.slane %v3721, 4
        %v3746 = vrot.slane %v3137, 6
        %v3747 = vsel %vm3716, %v3745, %v3746
        %v3748 = vrot.slane %v3722, 4
        %v3749 = vrot.slane %v3138, 6
        %v3750 = vsel %vm3716, %v3748, %v3749
        %v3751 = vrot.slane %v3723, 4
        %v3752 = vrot.slane %v3139, 6
        %v3753 = vsel %vm3716, %v3751, %v3752
        %v3754 = vrot.slane %v3724, 4
        %v3755 = vrot.slane %v3140, 6
        %v3756 = vsel %vm3716, %v3754, %v3755
        %v3757 = vrot.slane %v3725, 4
        %v3758 = vrot.slane %v3141, 6
        %v3759 = vsel %vm3716, %v3757, %v3758
        %v3760 = vrot.slane %v3726, 4
        %v3761 = vrot.slane %v3142, 6
        %v3762 = vsel %vm3716, %v3760, %v3761
        %v3763 = vrot.slane %v3727, 4
        %v3764 = vrot.slane %v3143, 6
        %v3765 = vsel %vm3716, %v3763, %v3764
        %v3766 = vrot.slane %v3728, 4
        %v3767 = vrot.slane %v3144, 6
        %v3768 = vsel %vm3716, %v3766, %v3767
        %v3769 = vrot.slane %v3729, 4
        %v3770 = vrot.slane %v3145, 6
        %v3771 = vsel %vm3716, %v3769, %v3770
        %v3772 = vrot.slane %v3730, 4
        %v3773 = vrot.slane %v3146, 6
        %v3774 = vsel %vm3716, %v3772, %v3773
        %v3775 = vrot.slane %v3731, 4
        %v3776 = vrot.slane %v3147, 6
        %v3777 = vsel %vm3716, %v3775, %v3776
        %v3778 = vrot.slane %v3732, 4
        %v3779 = vrot.slane %v3148, 6
        %v3780 = vsel %vm3716, %v3778, %v3779
        %3781 = vrot.lane.b32.xlu0 %v3717, 29
        %v3782 = vpop.permute.xlu0 %3781
        %3783 = vrot.lane.b32.xlu0 %v3718, 29
        %v3784 = vpop.permute.xlu0 %3783
        %3785 = vrot.lane.b32.xlu0 %v3719, 29
        %v3786 = vpop.permute.xlu0 %3785
        %3787 = vrot.lane.b32.xlu0 %v3720, 29
        %v3788 = vpop.permute.xlu0 %3787
        %3789 = vrot.lane.b32.xlu0 %v3721, 29
        %v3790 = vpop.permute.xlu0 %3789
        %3791 = vrot.lane.b32.xlu0 %v3722, 29
        %v3792 = vpop.permute.xlu0 %3791
        %3793 = vrot.lane.b32.xlu0 %v3723, 29
        %v3794 = vpop.permute.xlu0 %3793
        %3795 = vrot.lane.b32.xlu0 %v3724, 29
        %v3796 = vpop.permute.xlu0 %3795
        %3797 = vrot.lane.b32.xlu0 %v3725, 29
        %v3798 = vpop.permute.xlu0 %3797
        %3799 = vrot.lane.b32.xlu0 %v3726, 29
        %v3800 = vpop.permute.xlu0 %3799
        %3801 = vrot.lane.b32.xlu0 %v3727, 29
        %v3802 = vpop.permute.xlu0 %3801
        %3803 = vrot.lane.b32.xlu0 %v3728, 29
        %v3804 = vpop.permute.xlu0 %3803
        %3805 = vrot.lane.b32.xlu0 %v3729, 29
        %v3806 = vpop.permute.xlu0 %3805
        %3807 = vrot.lane.b32.xlu0 %v3730, 29
        %v3808 = vpop.permute.xlu0 %3807
        %3809 = vrot.lane.b32.xlu0 %v3731, 29
        %v3810 = vpop.permute.xlu0 %3809
        %3811 = vrot.lane.b32.xlu0 %v3732, 29
        %v3812 = vpop.permute.xlu0 %3811
        %3813 = vrot.lane.b32.xlu0 %v3735, 29
        %v3814 = vpop.permute.xlu0 %3813
        %3815 = vrot.lane.b32.xlu0 %v3738, 29
        %v3816 = vpop.permute.xlu0 %3815
        %3817 = vrot.lane.b32.xlu0 %v3741, 29
        %v3818 = vpop.permute.xlu0 %3817
        %3819 = vrot.lane.b32.xlu0 %v3744, 29
        %v3820 = vpop.permute.xlu0 %3819
        %3821 = vrot.lane.b32.xlu0 %v3747, 29
        %v3822 = vpop.permute.xlu0 %3821
        %3823 = vrot.lane.b32.xlu0 %v3750, 29
        %v3824 = vpop.permute.xlu0 %3823
        %3825 = vrot.lane.b32.xlu0 %v3753, 29
        %v3826 = vpop.permute.xlu0 %3825
        %3827 = vrot.lane.b32.xlu0 %v3756, 29
        %v3828 = vpop.permute.xlu0 %3827
        %3829 = vrot.lane.b32.xlu0 %v3759, 29
        %v3830 = vpop.permute.xlu0 %3829
        %3831 = vrot.lane.b32.xlu0 %v3762, 29
        %v3832 = vpop.permute.xlu0 %3831
        %3833 = vrot.lane.b32.xlu0 %v3765, 29
        %v3834 = vpop.permute.xlu0 %3833
        %3835 = vrot.lane.b32.xlu0 %v3768, 29
        %v3836 = vpop.permute.xlu0 %3835
        %3837 = vrot.lane.b32.xlu0 %v3771, 29
        %v3838 = vpop.permute.xlu0 %3837
        %3839 = vrot.lane.b32.xlu0 %v3774, 29
        %v3840 = vpop.permute.xlu0 %3839
        %3841 = vrot.lane.b32.xlu0 %v3777, 29
        %v3842 = vpop.permute.xlu0 %3841
        %3843 = vrot.lane.b32.xlu0 %v3780, 29
        %v3844 = vpop.permute.xlu0 %3843
        %v3845 = vrot.slane %v3782, 4
        %v3846 = vrot.slane %v3784, 4
        %v3847 = vrot.slane %v3786, 4
        %v3848 = vrot.slane %v3788, 4
        %v3849 = vrot.slane %v3790, 4
        %v3850 = vrot.slane %v3792, 4
        %v3851 = vrot.slane %v3794, 4
        %v3852 = vrot.slane %v3796, 4
        %v3853 = vrot.slane %v3798, 4
        %v3854 = vrot.slane %v3800, 4
        %v3855 = vrot.slane %v3802, 4
        %v3856 = vrot.slane %v3804, 4
        %v3857 = vrot.slane %v3806, 4
        %v3858 = vrot.slane %v3808, 4
        %v3859 = vrot.slane %v3810, 4
        %v3860 = vrot.slane %v3812, 4
        %v3861 = vrot.slane %v3814, 4
        %v3862 = vrot.slane %v3816, 4
        %v3863 = vrot.slane %v3818, 4
        %v3864 = vrot.slane %v3820, 4
        %v3865 = vrot.slane %v3822, 4
        %v3866 = vrot.slane %v3824, 4
        %v3867 = vrot.slane %v3826, 4
        %v3868 = vrot.slane %v3828, 4
        %v3869 = vrot.slane %v3830, 4
        %v3870 = vrot.slane %v3832, 4
        %v3871 = vrot.slane %v3834, 4
        %v3872 = vrot.slane %v3836, 4
        %v3873 = vrot.slane %v3838, 4
        %v3874 = vrot.slane %v3840, 4
        %v3875 = vrot.slane %v3842, 4
        %v3876 = vrot.slane %v3844, 4
        %v3877 = vsel %vm876, %v3845, %v3782
        %v3878 = vsel %vm455, %v3845, %v3846
        %v3879 = vsel %vm876, %v3878, %v3784
        %v3880 = vsel %vm455, %v3846, %v3847
        %v3881 = vsel %vm876, %v3880, %v3786
        %v3882 = vsel %vm455, %v3847, %v3848
        %v3883 = vsel %vm876, %v3882, %v3788
        %v3884 = vsel %vm455, %v3848, %v3849
        %v3885 = vsel %vm876, %v3884, %v3790
        %v3886 = vsel %vm455, %v3849, %v3850
        %v3887 = vsel %vm876, %v3886, %v3792
        %v3888 = vsel %vm455, %v3850, %v3851
        %v3889 = vsel %vm876, %v3888, %v3794
        %v3890 = vsel %vm455, %v3851, %v3852
        %v3891 = vsel %vm876, %v3890, %v3796
        %v3892 = vsel %vm455, %v3852, %v3853
        %v3893 = vsel %vm876, %v3892, %v3798
        %v3894 = vsel %vm455, %v3853, %v3854
        %v3895 = vsel %vm876, %v3894, %v3800
        %v3896 = vsel %vm455, %v3854, %v3855
        %v3897 = vsel %vm876, %v3896, %v3802
        %v3898 = vsel %vm455, %v3855, %v3856
        %v3899 = vsel %vm876, %v3898, %v3804
        %v3900 = vsel %vm455, %v3856, %v3857
        %v3901 = vsel %vm876, %v3900, %v3806
        %v3902 = vsel %vm455, %v3857, %v3858
        %v3903 = vsel %vm876, %v3902, %v3808
        %v3904 = vsel %vm455, %v3858, %v3859
        %v3905 = vsel %vm876, %v3904, %v3810
        %v3906 = vsel %vm455, %v3859, %v3860
        %v3907 = vsel %vm876, %v3906, %v3812
        %v3908 = vsel %vm876, %v3861, %v3814
        %v3909 = vsel %vm455, %v3861, %v3862
        %v3910 = vsel %vm876, %v3909, %v3816
        %v3911 = vsel %vm455, %v3862, %v3863
        %v3912 = vsel %vm876, %v3911, %v3818
        %v3913 = vsel %vm455, %v3863, %v3864
        %v3914 = vsel %vm876, %v3913, %v3820
        %v3915 = vsel %vm455, %v3864, %v3865
        %v3916 = vsel %vm876, %v3915, %v3822
        %v3917 = vsel %vm455, %v3865, %v3866
        %v3918 = vsel %vm876, %v3917, %v3824
        %v3919 = vsel %vm455, %v3866, %v3867
        %v3920 = vsel %vm876, %v3919, %v3826
        %v3921 = vsel %vm455, %v3867, %v3868
        %v3922 = vsel %vm876, %v3921, %v3828
        %v3923 = vsel %vm455, %v3868, %v3869
        %v3924 = vsel %vm876, %v3923, %v3830
        %v3925 = vsel %vm455, %v3869, %v3870
        %v3926 = vsel %vm876, %v3925, %v3832
        %v3927 = vsel %vm455, %v3870, %v3871
        %v3928 = vsel %vm876, %v3927, %v3834
        %v3929 = vsel %vm455, %v3871, %v3872
        %v3930 = vsel %vm876, %v3929, %v3836
        %v3931 = vsel %vm455, %v3872, %v3873
        %v3932 = vsel %vm876, %v3931, %v3838
        %v3933 = vsel %vm455, %v3873, %v3874
        %v3934 = vsel %vm876, %v3933, %v3840
        %v3935 = vsel %vm455, %v3874, %v3875
        %v3936 = vsel %vm876, %v3935, %v3842
        %v3937 = vsel %vm455, %v3875, %v3876
        %v3938 = vsel %vm876, %v3937, %v3844
        %vm3971 = vcmask 1043690
        %vm3972 = vcmask 1047558
        %vm3973 = vmor %vm3972, %vm3971
        %3974 = vst.msk [vmem:[#allocation2 + $0x100] sm:$0xcc] %vm3973, %v3877
        %3975 = vst [vmem:[#allocation2 + $0x108] sm:$0xcc] %v3879
        %3976 = vst [vmem:[#allocation2 + $0x110] sm:$0xcc] %v3881
        %3977 = vst [vmem:[#allocation2 + $0x118] sm:$0xcc] %v3883
        %3978 = vst [vmem:[#allocation2 + $0x120] sm:$0xcc] %v3885
        %3979 = vst [vmem:[#allocation2 + $0x128] sm:$0xcc] %v3887
        %3980 = vst [vmem:[#allocation2 + $0x130] sm:$0xcc] %v3889
        %3981 = vst [vmem:[#allocation2 + $0x138] sm:$0xcc] %v3891
        %3982 = vst [vmem:[#allocation2 + $0x140] sm:$0xcc] %v3893
        %3983 = vst [vmem:[#allocation2 + $0x148] sm:$0xcc] %v3895
        %3984 = vst [vmem:[#allocation2 + $0x150] sm:$0xcc] %v3897
        %3985 = vst [vmem:[#allocation2 + $0x158] sm:$0xcc] %v3899
        %3986 = vst [vmem:[#allocation2 + $0x160] sm:$0xcc] %v3901
        %3987 = vst [vmem:[#allocation2 + $0x168] sm:$0xcc] %v3903
        %3988 = vst [vmem:[#allocation2 + $0x170] sm:$0xcc] %v3905
        %3989 = vst [vmem:[#allocation2 + $0x178] sm:$0xcc] %v3907
        %vm3990 = vcmask 1042664
        %vm3991 = vcmask 1046532
        %vm3992 = vmor %vm3991, %vm3990
        %3993 = vst.msk [vmem:[#allocation2 + $0x180] sm:$0x77] %vm3992, %v3908
        %3994 = vst [vmem:[#allocation2 + $0x188] sm:$0x77] %v3910
        %3995 = vst [vmem:[#allocation2 + $0x190] sm:$0x77] %v3912
        %3996 = vst [vmem:[#allocation2 + $0x198] sm:$0x77] %v3914
        %3997 = vst [vmem:[#allocation2 + $0x1a0] sm:$0x77] %v3916
        %3998 = vst [vmem:[#allocation2 + $0x1a8] sm:$0x77] %v3918
        %3999 = vst [vmem:[#allocation2 + $0x1b0] sm:$0x77] %v3920
        %4000 = vst [vmem:[#allocation2 + $0x1b8] sm:$0x77] %v3922
        %4001 = vst [vmem:[#allocation2 + $0x1c0] sm:$0x77] %v3924
        %4002 = vst [vmem:[#allocation2 + $0x1c8] sm:$0x77] %v3926
        %4003 = vst [vmem:[#allocation2 + $0x1d0] sm:$0x77] %v3928
        %4004 = vst [vmem:[#allocation2 + $0x1d8] sm:$0x77] %v3930
        %4005 = vst [vmem:[#allocation2 + $0x1e0] sm:$0x77] %v3932
        %4006 = vst [vmem:[#allocation2 + $0x1e8] sm:$0x77] %v3934
        %4007 = vst [vmem:[#allocation2 + $0x1f0] sm:$0x77] %v3936
        %4008 = vst [vmem:[#allocation2 + $0x1f8] sm:$0x77] %v3938
        %vm4011 = vcmask 232450
        %4012 = vst.msk [vmem:[#allocation2 + $0x100] sm:$0xc] %vm4011, %v3860
        %vm4013 = vcmask 231424
        %4014 = vst.msk [vmem:[#allocation2 + $0x180] sm:$0x7] %vm4013, %v3876
        %vm4015 = vcmask 1042432
        %vm4016 = vcmask 1046532
        %vm4017 = vmor %vm4015, %vm4016
        %v4018 = vrot.slane %v3117, 5
        %v4019 = vrot.slane %v3118, 5
        %v4020 = vrot.slane %v3119, 5
        %v4021 = vrot.slane %v3120, 5
        %v4022 = vrot.slane %v3121, 5
        %v4023 = vrot.slane %v3122, 5
        %v4024 = vrot.slane %v3123, 5
        %v4025 = vrot.slane %v3124, 5
        %v4026 = vrot.slane %v3125, 5
        %v4027 = vrot.slane %v3126, 5
        %v4028 = vrot.slane %v3127, 5
        %v4029 = vrot.slane %v3128, 5
        %v4030 = vrot.slane %v3129, 5
        %v4031 = vrot.slane %v3130, 5
        %v4032 = vrot.slane %v3131, 5
        %v4033 = vrot.slane %v3132, 5
        %v4034 = vrot.slane %v4018, 4
        %v4035 = vrot.slane %v3133, 5
        %v4036 = vsel %vm4017, %v4034, %v4035
        %v4037 = vrot.slane %v4019, 4
        %v4038 = vrot.slane %v3134, 5
        %v4039 = vsel %vm4017, %v4037, %v4038
        %v4040 = vrot.slane %v4020, 4
        %v4041 = vrot.slane %v3135, 5
        %v4042 = vsel %vm4017, %v4040, %v4041
        %v4043 = vrot.slane %v4021, 4
        %v4044 = vrot.slane %v3136, 5
        %v4045 = vsel %vm4017, %v4043, %v4044
        %v4046 = vrot.slane %v4022, 4
        %v4047 = vrot.slane %v3137, 5
        %v4048 = vsel %vm4017, %v4046, %v4047
        %v4049 = vrot.slane %v4023, 4
        %v4050 = vrot.slane %v3138, 5
        %v4051 = vsel %vm4017, %v4049, %v4050
        %v4052 = vrot.slane %v4024, 4
        %v4053 = vrot.slane %v3139, 5
        %v4054 = vsel %vm4017, %v4052, %v4053
        %v4055 = vrot.slane %v4025, 4
        %v4056 = vrot.slane %v3140, 5
        %v4057 = vsel %vm4017, %v4055, %v4056
        %v4058 = vrot.slane %v4026, 4
        %v4059 = vrot.slane %v3141, 5
        %v4060 = vsel %vm4017, %v4058, %v4059
        %v4061 = vrot.slane %v4027, 4
        %v4062 = vrot.slane %v3142, 5
        %v4063 = vsel %vm4017, %v4061, %v4062
        %v4064 = vrot.slane %v4028, 4
        %v4065 = vrot.slane %v3143, 5
        %v4066 = vsel %vm4017, %v4064, %v4065
        %v4067 = vrot.slane %v4029, 4
        %v4068 = vrot.slane %v3144, 5
        %v4069 = vsel %vm4017, %v4067, %v4068
        %v4070 = vrot.slane %v4030, 4
        %v4071 = vrot.slane %v3145, 5
        %v4072 = vsel %vm4017, %v4070, %v4071
        %v4073 = vrot.slane %v4031, 4
        %v4074 = vrot.slane %v3146, 5
        %v4075 = vsel %vm4017, %v4073, %v4074
        %v4076 = vrot.slane %v4032, 4
        %v4077 = vrot.slane %v3147, 5
        %v4078 = vsel %vm4017, %v4076, %v4077
        %v4079 = vrot.slane %v4033, 4
        %v4080 = vrot.slane %v3148, 5
        %v4081 = vsel %vm4017, %v4079, %v4080
        %4082 = vrot.lane.b32.xlu0 %v4018, 1
        %v4083 = vpop.permute.xlu0 %4082
        %4084 = vrot.lane.b32.xlu0 %v4019, 1
        %v4085 = vpop.permute.xlu0 %4084
        %4086 = vrot.lane.b32.xlu0 %v4020, 1
        %v4087 = vpop.permute.xlu0 %4086
        %4088 = vrot.lane.b32.xlu0 %v4021, 1
        %v4089 = vpop.permute.xlu0 %4088
        %4090 = vrot.lane.b32.xlu0 %v4022, 1
        %v4091 = vpop.permute.xlu0 %4090
        %4092 = vrot.lane.b32.xlu0 %v4023, 1
        %v4093 = vpop.permute.xlu0 %4092
        %4094 = vrot.lane.b32.xlu0 %v4024, 1
        %v4095 = vpop.permute.xlu0 %4094
        %4096 = vrot.lane.b32.xlu0 %v4025, 1
        %v4097 = vpop.permute.xlu0 %4096
        %4098 = vrot.lane.b32.xlu0 %v4026, 1
        %v4099 = vpop.permute.xlu0 %4098
        %4100 = vrot.lane.b32.xlu0 %v4027, 1
        %v4101 = vpop.permute.xlu0 %4100
        %4102 = vrot.lane.b32.xlu0 %v4028, 1
        %v4103 = vpop.permute.xlu0 %4102
        %4104 = vrot.lane.b32.xlu0 %v4029, 1
        %v4105 = vpop.permute.xlu0 %4104
        %4106 = vrot.lane.b32.xlu0 %v4030, 1
        %v4107 = vpop.permute.xlu0 %4106
        %4108 = vrot.lane.b32.xlu0 %v4031, 1
        %v4109 = vpop.permute.xlu0 %4108
        %4110 = vrot.lane.b32.xlu0 %v4032, 1
        %v4111 = vpop.permute.xlu0 %4110
        %4112 = vrot.lane.b32.xlu0 %v4033, 1
        %v4113 = vpop.permute.xlu0 %4112
        %4114 = vrot.lane.b32.xlu0 %v4036, 1
        %v4115 = vpop.permute.xlu0 %4114
        %4116 = vrot.lane.b32.xlu0 %v4039, 1
        %v4117 = vpop.permute.xlu0 %4116
        %4118 = vrot.lane.b32.xlu0 %v4042, 1
        %v4119 = vpop.permute.xlu0 %4118
        %4120 = vrot.lane.b32.xlu0 %v4045, 1
        %v4121 = vpop.permute.xlu0 %4120
        %4122 = vrot.lane.b32.xlu0 %v4048, 1
        %v4123 = vpop.permute.xlu0 %4122
        %4124 = vrot.lane.b32.xlu0 %v4051, 1
        %v4125 = vpop.permute.xlu0 %4124
        %4126 = vrot.lane.b32.xlu0 %v4054, 1
        %v4127 = vpop.permute.xlu0 %4126
        %4128 = vrot.lane.b32.xlu0 %v4057, 1
        %v4129 = vpop.permute.xlu0 %4128
        %4130 = vrot.lane.b32.xlu0 %v4060, 1
        %v4131 = vpop.permute.xlu0 %4130
        %4132 = vrot.lane.b32.xlu0 %v4063, 1
        %v4133 = vpop.permute.xlu0 %4132
        %4134 = vrot.lane.b32.xlu0 %v4066, 1
        %v4135 = vpop.permute.xlu0 %4134
        %4136 = vrot.lane.b32.xlu0 %v4069, 1
        %v4137 = vpop.permute.xlu0 %4136
        %4138 = vrot.lane.b32.xlu0 %v4072, 1
        %v4139 = vpop.permute.xlu0 %4138
        %4140 = vrot.lane.b32.xlu0 %v4075, 1
        %v4141 = vpop.permute.xlu0 %4140
        %4142 = vrot.lane.b32.xlu0 %v4078, 1
        %v4143 = vpop.permute.xlu0 %4142
        %4144 = vrot.lane.b32.xlu0 %v4081, 1
        %v4145 = vpop.permute.xlu0 %4144
        %v4146 = vrot.slane %v4083, 4
        %v4147 = vrot.slane %v4085, 4
        %v4148 = vrot.slane %v4087, 4
        %v4149 = vrot.slane %v4089, 4
        %v4150 = vrot.slane %v4091, 4
        %v4151 = vrot.slane %v4093, 4
        %v4152 = vrot.slane %v4095, 4
        %v4153 = vrot.slane %v4097, 4
        %v4154 = vrot.slane %v4099, 4
        %v4155 = vrot.slane %v4101, 4
        %v4156 = vrot.slane %v4103, 4
        %v4157 = vrot.slane %v4105, 4
        %v4158 = vrot.slane %v4107, 4
        %v4159 = vrot.slane %v4109, 4
        %v4160 = vrot.slane %v4111, 4
        %v4161 = vrot.slane %v4113, 4
        %v4162 = vrot.slane %v4115, 4
        %v4163 = vrot.slane %v4117, 4
        %v4164 = vrot.slane %v4119, 4
        %v4165 = vrot.slane %v4121, 4
        %v4166 = vrot.slane %v4123, 4
        %v4167 = vrot.slane %v4125, 4
        %v4168 = vrot.slane %v4127, 4
        %v4169 = vrot.slane %v4129, 4
        %v4170 = vrot.slane %v4131, 4
        %v4171 = vrot.slane %v4133, 4
        %v4172 = vrot.slane %v4135, 4
        %v4173 = vrot.slane %v4137, 4
        %v4174 = vrot.slane %v4139, 4
        %v4175 = vrot.slane %v4141, 4
        %v4176 = vrot.slane %v4143, 4
        %v4177 = vrot.slane %v4145, 4
        %v4178 = vsel %vm1112, %v4146, %v4083
        %v4179 = vsel %vm455, %v4146, %v4147
        %v4180 = vsel %vm1112, %v4179, %v4085
        %v4181 = vsel %vm455, %v4147, %v4148
        %v4182 = vsel %vm1112, %v4181, %v4087
        %v4183 = vsel %vm455, %v4148, %v4149
        %v4184 = vsel %vm1112, %v4183, %v4089
        %v4185 = vsel %vm455, %v4149, %v4150
        %v4186 = vsel %vm1112, %v4185, %v4091
        %v4187 = vsel %vm455, %v4150, %v4151
        %v4188 = vsel %vm1112, %v4187, %v4093
        %v4189 = vsel %vm455, %v4151, %v4152
        %v4190 = vsel %vm1112, %v4189, %v4095
        %v4191 = vsel %vm455, %v4152, %v4153
        %v4192 = vsel %vm1112, %v4191, %v4097
        %v4193 = vsel %vm455, %v4153, %v4154
        %v4194 = vsel %vm1112, %v4193, %v4099
        %v4195 = vsel %vm455, %v4154, %v4155
        %v4196 = vsel %vm1112, %v4195, %v4101
        %v4197 = vsel %vm455, %v4155, %v4156
        %v4198 = vsel %vm1112, %v4197, %v4103
        %v4199 = vsel %vm455, %v4156, %v4157
        %v4200 = vsel %vm1112, %v4199, %v4105
        %v4201 = vsel %vm455, %v4157, %v4158
        %v4202 = vsel %vm1112, %v4201, %v4107
        %v4203 = vsel %vm455, %v4158, %v4159
        %v4204 = vsel %vm1112, %v4203, %v4109
        %v4205 = vsel %vm455, %v4159, %v4160
        %v4206 = vsel %vm1112, %v4205, %v4111
        %v4207 = vsel %vm455, %v4160, %v4161
        %v4208 = vsel %vm1112, %v4207, %v4113
        %v4209 = vsel %vm1112, %v4162, %v4115
        %v4210 = vsel %vm455, %v4162, %v4163
        %v4211 = vsel %vm1112, %v4210, %v4117
        %v4212 = vsel %vm455, %v4163, %v4164
        %v4213 = vsel %vm1112, %v4212, %v4119
        %v4214 = vsel %vm455, %v4164, %v4165
        %v4215 = vsel %vm1112, %v4214, %v4121
        %v4216 = vsel %vm455, %v4165, %v4166
        %v4217 = vsel %vm1112, %v4216, %v4123
        %v4218 = vsel %vm455, %v4166, %v4167
        %v4219 = vsel %vm1112, %v4218, %v4125
        %v4220 = vsel %vm455, %v4167, %v4168
        %v4221 = vsel %vm1112, %v4220, %v4127
        %v4222 = vsel %vm455, %v4168, %v4169
        %v4223 = vsel %vm1112, %v4222, %v4129
        %v4224 = vsel %vm455, %v4169, %v4170
        %v4225 = vsel %vm1112, %v4224, %v4131
        %v4226 = vsel %vm455, %v4170, %v4171
        %v4227 = vsel %vm1112, %v4226, %v4133
        %v4228 = vsel %vm455, %v4171, %v4172
        %v4229 = vsel %vm1112, %v4228, %v4135
        %v4230 = vsel %vm455, %v4172, %v4173
        %v4231 = vsel %vm1112, %v4230, %v4137
        %v4232 = vsel %vm455, %v4173, %v4174
        %v4233 = vsel %vm1112, %v4232, %v4139
        %v4234 = vsel %vm455, %v4174, %v4175
        %v4235 = vsel %vm1112, %v4234, %v4141
        %v4236 = vsel %vm455, %v4175, %v4176
        %v4237 = vsel %vm1112, %v4236, %v4143
        %v4238 = vsel %vm455, %v4176, %v4177
        %v4239 = vsel %vm1112, %v4238, %v4145
        %vm4272 = vcmask 1043467
        %vm4273 = vcmask 1047559
        %vm4274 = vmor %vm4273, %vm4272
        %4275 = vst.msk [vmem:[#allocation2 + $0x180] sm:$0x88] %vm4274, %v4178
        %4276 = vst [vmem:[#allocation2 + $0x188] sm:$0x88] %v4180
        %4277 = vst [vmem:[#allocation2 + $0x190] sm:$0x88] %v4182
        %4278 = vst [vmem:[#allocation2 + $0x198] sm:$0x88] %v4184
        %4279 = vst [vmem:[#allocation2 + $0x1a0] sm:$0x88] %v4186
        %4280 = vst [vmem:[#allocation2 + $0x1a8] sm:$0x88] %v4188
        %4281 = vst [vmem:[#allocation2 + $0x1b0] sm:$0x88] %v4190
        %4282 = vst [vmem:[#allocation2 + $0x1b8] sm:$0x88] %v4192
        %4283 = vst [vmem:[#allocation2 + $0x1c0] sm:$0x88] %v4194
        %4284 = vst [vmem:[#allocation2 + $0x1c8] sm:$0x88] %v4196
        %4285 = vst [vmem:[#allocation2 + $0x1d0] sm:$0x88] %v4198
        %4286 = vst [vmem:[#allocation2 + $0x1d8] sm:$0x88] %v4200
        %4287 = vst [vmem:[#allocation2 + $0x1e0] sm:$0x88] %v4202
        %4288 = vst [vmem:[#allocation2 + $0x1e8] sm:$0x88] %v4204
        %4289 = vst [vmem:[#allocation2 + $0x1f0] sm:$0x88] %v4206
        %4290 = vst [vmem:[#allocation2 + $0x1f8] sm:$0x88] %v4208
        %vm4291 = vcmask 1043464
        %vm4292 = vmor %vm3372, %vm4291
        %4293 = vst.msk [vmem:[#allocation2 + $0x200] sm:$0xff] %vm4292, %v4209
        %4294 = vst [vmem:[#allocation2 + $0x208] sm:$0xff] %v4211
        %4295 = vst [vmem:[#allocation2 + $0x210] sm:$0xff] %v4213
        %4296 = vst [vmem:[#allocation2 + $0x218] sm:$0xff] %v4215
        %4297 = vst [vmem:[#allocation2 + $0x220] sm:$0xff] %v4217
        %4298 = vst [vmem:[#allocation2 + $0x228] sm:$0xff] %v4219
        %4299 = vst [vmem:[#allocation2 + $0x230] sm:$0xff] %v4221
        %4300 = vst [vmem:[#allocation2 + $0x238] sm:$0xff] %v4223
        %4301 = vst [vmem:[#allocation2 + $0x240] sm:$0xff] %v4225
        %4302 = vst [vmem:[#allocation2 + $0x248] sm:$0xff] %v4227
        %4303 = vst [vmem:[#allocation2 + $0x250] sm:$0xff] %v4229
        %4304 = vst [vmem:[#allocation2 + $0x258] sm:$0xff] %v4231
        %4305 = vst [vmem:[#allocation2 + $0x260] sm:$0xff] %v4233
        %4306 = vst [vmem:[#allocation2 + $0x268] sm:$0xff] %v4235
        %4307 = vst [vmem:[#allocation2 + $0x270] sm:$0xff] %v4237
        %4308 = vst [vmem:[#allocation2 + $0x278] sm:$0xff] %v4239
        %vm4311 = vcmask 3075
        %4312 = vst.msk [vmem:[#allocation2 + $0x180] sm:$0x8] %vm4311, %v4161
        %vm4313 = vcmask 3072
        %4314 = vst.msk [vmem:[#allocation2 + $0x200] sm:$0xf] %vm4313, %v4177
        %4315 = vst [vmem:[#allocation2 + $0x280] sm:$0xff] %v3117
        %4316 = vst [vmem:[#allocation2 + $0x288] sm:$0xff] %v3118
        %4317 = vst [vmem:[#allocation2 + $0x290] sm:$0xff] %v3119
        %4318 = vst [vmem:[#allocation2 + $0x298] sm:$0xff] %v3120
        %4319 = vst [vmem:[#allocation2 + $0x2a0] sm:$0xff] %v3121
        %4320 = vst [vmem:[#allocation2 + $0x2a8] sm:$0xff] %v3122
        %4321 = vst [vmem:[#allocation2 + $0x2b0] sm:$0xff] %v3123
        %4322 = vst [vmem:[#allocation2 + $0x2b8] sm:$0xff] %v3124
        %4323 = vst [vmem:[#allocation2 + $0x2c0] sm:$0xff] %v3125
        %4324 = vst [vmem:[#allocation2 + $0x2c8] sm:$0xff] %v3126
        %4325 = vst [vmem:[#allocation2 + $0x2d0] sm:$0xff] %v3127
        %4326 = vst [vmem:[#allocation2 + $0x2d8] sm:$0xff] %v3128
        %4327 = vst [vmem:[#allocation2 + $0x2e0] sm:$0xff] %v3129
        %4328 = vst [vmem:[#allocation2 + $0x2e8] sm:$0xff] %v3130
        %4329 = vst [vmem:[#allocation2 + $0x2f0] sm:$0xff] %v3131
        %4330 = vst [vmem:[#allocation2 + $0x2f8] sm:$0xff] %v3132
        %4331 = vst [vmem:[#allocation2 + $0x300] sm:$0x11] %v3133
        %4332 = vst [vmem:[#allocation2 + $0x308] sm:$0x11] %v3134
        %4333 = vst [vmem:[#allocation2 + $0x310] sm:$0x11] %v3135
        %4334 = vst [vmem:[#allocation2 + $0x318] sm:$0x11] %v3136
        %4335 = vst [vmem:[#allocation2 + $0x320] sm:$0x11] %v3137
        %4336 = vst [vmem:[#allocation2 + $0x328] sm:$0x11] %v3138
        %4337 = vst [vmem:[#allocation2 + $0x330] sm:$0x11] %v3139
        %4338 = vst [vmem:[#allocation2 + $0x338] sm:$0x11] %v3140
        %4339 = vst [vmem:[#allocation2 + $0x340] sm:$0x11] %v3141
        %4340 = vst [vmem:[#allocation2 + $0x348] sm:$0x11] %v3142
        %4341 = vst [vmem:[#allocation2 + $0x350] sm:$0x11] %v3143
        %4342 = vst [vmem:[#allocation2 + $0x358] sm:$0x11] %v3144
        %4343 = vst [vmem:[#allocation2 + $0x360] sm:$0x11] %v3145
        %4344 = vst [vmem:[#allocation2 + $0x368] sm:$0x11] %v3146
        %4345 = vst [vmem:[#allocation2 + $0x370] sm:$0x11] %v3147
        %4346 = vst [vmem:[#allocation2 + $0x378] sm:$0x11] %v3148
        %4347 = vrot.lane.b32.xlu0 %v3416, 127
        %v4348 = vpop.permute.xlu0 %4347
        %4349 = vrot.lane.b32.xlu0 %v3417, 127
        %v4350 = vpop.permute.xlu0 %4349
        %4351 = vrot.lane.b32.xlu0 %v3418, 127
        %v4352 = vpop.permute.xlu0 %4351
        %4353 = vrot.lane.b32.xlu0 %v3419, 127
        %v4354 = vpop.permute.xlu0 %4353
        %4355 = vrot.lane.b32.xlu0 %v3420, 127
        %v4356 = vpop.permute.xlu0 %4355
        %4357 = vrot.lane.b32.xlu0 %v3421, 127
        %v4358 = vpop.permute.xlu0 %4357
        %4359 = vrot.lane.b32.xlu0 %v3422, 127
        %v4360 = vpop.permute.xlu0 %4359
        %4361 = vrot.lane.b32.xlu0 %v3423, 127
        %v4362 = vpop.permute.xlu0 %4361
        %4363 = vrot.lane.b32.xlu0 %v3424, 127
        %v4364 = vpop.permute.xlu0 %4363
        %4365 = vrot.lane.b32.xlu0 %v3425, 127
        %v4366 = vpop.permute.xlu0 %4365
        %4367 = vrot.lane.b32.xlu0 %v3426, 127
        %v4368 = vpop.permute.xlu0 %4367
        %4369 = vrot.lane.b32.xlu0 %v3427, 127
        %v4370 = vpop.permute.xlu0 %4369
        %4371 = vrot.lane.b32.xlu0 %v3428, 127
        %v4372 = vpop.permute.xlu0 %4371
        %4373 = vrot.lane.b32.xlu0 %v3429, 127
        %v4374 = vpop.permute.xlu0 %4373
        %4375 = vrot.lane.b32.xlu0 %v3430, 127
        %v4376 = vpop.permute.xlu0 %4375
        %4377 = vrot.lane.b32.xlu0 %v3431, 127
        %v4378 = vpop.permute.xlu0 %4377
        %4379 = vrot.lane.b32.xlu0 %v3434, 127
        %v4380 = vpop.permute.xlu0 %4379
        %4381 = vrot.lane.b32.xlu0 %v3437, 127
        %v4382 = vpop.permute.xlu0 %4381
        %4383 = vrot.lane.b32.xlu0 %v3440, 127
        %v4384 = vpop.permute.xlu0 %4383
        %4385 = vrot.lane.b32.xlu0 %v3443, 127
        %v4386 = vpop.permute.xlu0 %4385
        %4387 = vrot.lane.b32.xlu0 %v3446, 127
        %v4388 = vpop.permute.xlu0 %4387
        %4389 = vrot.lane.b32.xlu0 %v3449, 127
        %v4390 = vpop.permute.xlu0 %4389
        %4391 = vrot.lane.b32.xlu0 %v3452, 127
        %v4392 = vpop.permute.xlu0 %4391
        %4393 = vrot.lane.b32.xlu0 %v3455, 127
        %v4394 = vpop.permute.xlu0 %4393
        %4395 = vrot.lane.b32.xlu0 %v3458, 127
        %v4396 = vpop.permute.xlu0 %4395
        %4397 = vrot.lane.b32.xlu0 %v3461, 127
        %v4398 = vpop.permute.xlu0 %4397
        %4399 = vrot.lane.b32.xlu0 %v3464, 127
        %v4400 = vpop.permute.xlu0 %4399
        %4401 = vrot.lane.b32.xlu0 %v3467, 127
        %v4402 = vpop.permute.xlu0 %4401
        %4403 = vrot.lane.b32.xlu0 %v3470, 127
        %v4404 = vpop.permute.xlu0 %4403
        %4405 = vrot.lane.b32.xlu0 %v3473, 127
        %v4406 = vpop.permute.xlu0 %4405
        %4407 = vrot.lane.b32.xlu0 %v3476, 127
        %v4408 = vpop.permute.xlu0 %4407
        %4409 = vrot.lane.b32.xlu0 %v3479, 127
        %v4410 = vpop.permute.xlu0 %4409
        %v4411 = vrot.slane %v4348, 4
        %v4412 = vrot.slane %v4350, 4
        %v4413 = vrot.slane %v4352, 4
        %v4414 = vrot.slane %v4354, 4
        %v4415 = vrot.slane %v4356, 4
        %v4416 = vrot.slane %v4358, 4
        %v4417 = vrot.slane %v4360, 4
        %v4418 = vrot.slane %v4362, 4
        %v4419 = vrot.slane %v4364, 4
        %v4420 = vrot.slane %v4366, 4
        %v4421 = vrot.slane %v4368, 4
        %v4422 = vrot.slane %v4370, 4
        %v4423 = vrot.slane %v4372, 4
        %v4424 = vrot.slane %v4374, 4
        %v4425 = vrot.slane %v4376, 4
        %v4426 = vrot.slane %v4378, 4
        %v4427 = vrot.slane %v4380, 4
        %v4428 = vrot.slane %v4382, 4
        %v4429 = vrot.slane %v4384, 4
        %v4430 = vrot.slane %v4386, 4
        %v4431 = vrot.slane %v4388, 4
        %v4432 = vrot.slane %v4390, 4
        %v4433 = vrot.slane %v4392, 4
        %v4434 = vrot.slane %v4394, 4
        %v4435 = vrot.slane %v4396, 4
        %v4436 = vrot.slane %v4398, 4
        %v4437 = vrot.slane %v4400, 4
        %v4438 = vrot.slane %v4402, 4
        %v4439 = vrot.slane %v4404, 4
        %v4440 = vrot.slane %v4406, 4
        %v4441 = vrot.slane %v4408, 4
        %v4442 = vrot.slane %v4410, 4
        %v4443 = vsel %vm455, %v4411, %v4412
        %v4444 = vsel %vm1441, %v4348, %v4443
        %v4445 = vsel %vm455, %v4412, %v4413
        %v4446 = vsel %vm1441, %v4350, %v4445
        %v4447 = vsel %vm455, %v4413, %v4414
        %v4448 = vsel %vm1441, %v4352, %v4447
        %v4449 = vsel %vm455, %v4414, %v4415
        %v4450 = vsel %vm1441, %v4354, %v4449
        %v4451 = vsel %vm455, %v4415, %v4416
        %v4452 = vsel %vm1441, %v4356, %v4451
        %v4453 = vsel %vm455, %v4416, %v4417
        %v4454 = vsel %vm1441, %v4358, %v4453
        %v4455 = vsel %vm455, %v4417, %v4418
        %v4456 = vsel %vm1441, %v4360, %v4455
        %v4457 = vsel %vm455, %v4418, %v4419
        %v4458 = vsel %vm1441, %v4362, %v4457
        %v4459 = vsel %vm455, %v4419, %v4420
        %v4460 = vsel %vm1441, %v4364, %v4459
        %v4461 = vsel %vm455, %v4420, %v4421
        %v4462 = vsel %vm1441, %v4366, %v4461
        %v4463 = vsel %vm455, %v4421, %v4422
        %v4464 = vsel %vm1441, %v4368, %v4463
        %v4465 = vsel %vm455, %v4422, %v4423
        %v4466 = vsel %vm1441, %v4370, %v4465
        %v4467 = vsel %vm455, %v4423, %v4424
        %v4468 = vsel %vm1441, %v4372, %v4467
        %v4469 = vsel %vm455, %v4424, %v4425
        %v4470 = vsel %vm1441, %v4374, %v4469
        %v4471 = vsel %vm455, %v4425, %v4426
        %v4472 = vsel %vm1441, %v4376, %v4471
        %v4473 = vsel %vm1441, %v4378, %v4426
        %v4474 = vsel %vm455, %v4427, %v4428
        %v4475 = vsel %vm1441, %v4380, %v4474
        %v4476 = vsel %vm455, %v4428, %v4429
        %v4477 = vsel %vm1441, %v4382, %v4476
        %v4478 = vsel %vm455, %v4429, %v4430
        %v4479 = vsel %vm1441, %v4384, %v4478
        %v4480 = vsel %vm455, %v4430, %v4431
        %v4481 = vsel %vm1441, %v4386, %v4480
        %v4482 = vsel %vm455, %v4431, %v4432
        %v4483 = vsel %vm1441, %v4388, %v4482
        %v4484 = vsel %vm455, %v4432, %v4433
        %v4485 = vsel %vm1441, %v4390, %v4484
        %v4486 = vsel %vm455, %v4433, %v4434
        %v4487 = vsel %vm1441, %v4392, %v4486
        %v4488 = vsel %vm455, %v4434, %v4435
        %v4489 = vsel %vm1441, %v4394, %v4488
        %v4490 = vsel %vm455, %v4435, %v4436
        %v4491 = vsel %vm1441, %v4396, %v4490
        %v4492 = vsel %vm455, %v4436, %v4437
        %v4493 = vsel %vm1441, %v4398, %v4492
        %v4494 = vsel %vm455, %v4437, %v4438
        %v4495 = vsel %vm1441, %v4400, %v4494
        %v4496 = vsel %vm455, %v4438, %v4439
        %v4497 = vsel %vm1441, %v4402, %v4496
        %v4498 = vsel %vm455, %v4439, %v4440
        %v4499 = vsel %vm1441, %v4404, %v4498
        %v4500 = vsel %vm455, %v4440, %v4441
        %v4501 = vsel %vm1441, %v4406, %v4500
        %v4502 = vsel %vm455, %v4441, %v4442
        %v4503 = vsel %vm1441, %v4408, %v4502
        %v4504 = vsel %vm1441, %v4410, %v4442
        %4537 = vst [vmem:[#allocation2 + $0x300] sm:$0xee] %v4444
        %4538 = vst [vmem:[#allocation2 + $0x308] sm:$0xee] %v4446
        %4539 = vst [vmem:[#allocation2 + $0x310] sm:$0xee] %v4448
        %4540 = vst [vmem:[#allocation2 + $0x318] sm:$0xee] %v4450
        %4541 = vst [vmem:[#allocation2 + $0x320] sm:$0xee] %v4452
        %4542 = vst [vmem:[#allocation2 + $0x328] sm:$0xee] %v4454
        %4543 = vst [vmem:[#allocation2 + $0x330] sm:$0xee] %v4456
        %4544 = vst [vmem:[#allocation2 + $0x338] sm:$0xee] %v4458
        %4545 = vst [vmem:[#allocation2 + $0x340] sm:$0xee] %v4460
        %4546 = vst [vmem:[#allocation2 + $0x348] sm:$0xee] %v4462
        %4547 = vst [vmem:[#allocation2 + $0x350] sm:$0xee] %v4464
        %4548 = vst [vmem:[#allocation2 + $0x358] sm:$0xee] %v4466
        %4549 = vst [vmem:[#allocation2 + $0x360] sm:$0xee] %v4468
        %4550 = vst [vmem:[#allocation2 + $0x368] sm:$0xee] %v4470
        %4551 = vst [vmem:[#allocation2 + $0x370] sm:$0xee] %v4472
        %vm4552 = vcmask 1043457
        %vm4553 = vcmask 1039365
        %vm4554 = vmor %vm4553, %vm4552
        %4555 = vst.msk [vmem:[#allocation2 + $0x378] sm:$0xee] %vm4554, %v4473
        %4556 = vst [vmem:[#allocation2 + $0x380] sm:$0x33] %v4475
        %4557 = vst [vmem:[#allocation2 + $0x388] sm:$0x33] %v4477
        %4558 = vst [vmem:[#allocation2 + $0x390] sm:$0x33] %v4479
        %4559 = vst [vmem:[#allocation2 + $0x398] sm:$0x33] %v4481
        %4560 = vst [vmem:[#allocation2 + $0x3a0] sm:$0x33] %v4483
        %4561 = vst [vmem:[#allocation2 + $0x3a8] sm:$0x33] %v4485
        %4562 = vst [vmem:[#allocation2 + $0x3b0] sm:$0x33] %v4487
        %4563 = vst [vmem:[#allocation2 + $0x3b8] sm:$0x33] %v4489
        %4564 = vst [vmem:[#allocation2 + $0x3c0] sm:$0x33] %v4491
        %4565 = vst [vmem:[#allocation2 + $0x3c8] sm:$0x33] %v4493
        %4566 = vst [vmem:[#allocation2 + $0x3d0] sm:$0x33] %v4495
        %4567 = vst [vmem:[#allocation2 + $0x3d8] sm:$0x33] %v4497
        %4568 = vst [vmem:[#allocation2 + $0x3e0] sm:$0x33] %v4499
        %4569 = vst [vmem:[#allocation2 + $0x3e8] sm:$0x33] %v4501
        %4570 = vst [vmem:[#allocation2 + $0x3f0] sm:$0x33] %v4503
        %vm4571 = vcmask 1041408
        %vm4572 = vcmask 1037316
        %vm4573 = vmor %vm4572, %vm4571
        %4574 = vst.msk [vmem:[#allocation2 + $0x3f8] sm:$0x33] %vm4573, %v4504
        %vm4577 = vcmask 1044473
        %4578 = vst.msk [vmem:[#allocation2 + $0x37c] sm:$0xe] %vm4577, %v4348
        %vm4579 = vcmask 1042424
        %4580 = vst.msk [vmem:[#allocation2 + $0x3fc] sm:$0x3] %vm4579, %v4380
        %4581 = vrot.lane.b32.xlu0 %v3717, 99
        %v4582 = vpop.permute.xlu0 %4581
        %4583 = vrot.lane.b32.xlu0 %v3718, 99
        %v4584 = vpop.permute.xlu0 %4583
        %4585 = vrot.lane.b32.xlu0 %v3719, 99
        %v4586 = vpop.permute.xlu0 %4585
        %4587 = vrot.lane.b32.xlu0 %v3720, 99
        %v4588 = vpop.permute.xlu0 %4587
        %4589 = vrot.lane.b32.xlu0 %v3721, 99
        %v4590 = vpop.permute.xlu0 %4589
        %4591 = vrot.lane.b32.xlu0 %v3722, 99
        %v4592 = vpop.permute.xlu0 %4591
        %4593 = vrot.lane.b32.xlu0 %v3723, 99
        %v4594 = vpop.permute.xlu0 %4593
        %4595 = vrot.lane.b32.xlu0 %v3724, 99
        %v4596 = vpop.permute.xlu0 %4595
        %4597 = vrot.lane.b32.xlu0 %v3725, 99
        %v4598 = vpop.permute.xlu0 %4597
        %4599 = vrot.lane.b32.xlu0 %v3726, 99
        %v4600 = vpop.permute.xlu0 %4599
        %4601 = vrot.lane.b32.xlu0 %v3727, 99
        %v4602 = vpop.permute.xlu0 %4601
        %4603 = vrot.lane.b32.xlu0 %v3728, 99
        %v4604 = vpop.permute.xlu0 %4603
        %4605 = vrot.lane.b32.xlu0 %v3729, 99
        %v4606 = vpop.permute.xlu0 %4605
        %4607 = vrot.lane.b32.xlu0 %v3730, 99
        %v4608 = vpop.permute.xlu0 %4607
        %4609 = vrot.lane.b32.xlu0 %v3731, 99
        %v4610 = vpop.permute.xlu0 %4609
        %4611 = vrot.lane.b32.xlu0 %v3732, 99
        %v4612 = vpop.permute.xlu0 %4611
        %4613 = vrot.lane.b32.xlu0 %v3735, 99
        %v4614 = vpop.permute.xlu0 %4613
        %4615 = vrot.lane.b32.xlu0 %v3738, 99
        %v4616 = vpop.permute.xlu0 %4615
        %4617 = vrot.lane.b32.xlu0 %v3741, 99
        %v4618 = vpop.permute.xlu0 %4617
        %4619 = vrot.lane.b32.xlu0 %v3744, 99
        %v4620 = vpop.permute.xlu0 %4619
        %4621 = vrot.lane.b32.xlu0 %v3747, 99
        %v4622 = vpop.permute.xlu0 %4621
        %4623 = vrot.lane.b32.xlu0 %v3750, 99
        %v4624 = vpop.permute.xlu0 %4623
        %4625 = vrot.lane.b32.xlu0 %v3753, 99
        %v4626 = vpop.permute.xlu0 %4625
        %4627 = vrot.lane.b32.xlu0 %v3756, 99
        %v4628 = vpop.permute.xlu0 %4627
        %4629 = vrot.lane.b32.xlu0 %v3759, 99
        %v4630 = vpop.permute.xlu0 %4629
        %4631 = vrot.lane.b32.xlu0 %v3762, 99
        %v4632 = vpop.permute.xlu0 %4631
        %4633 = vrot.lane.b32.xlu0 %v3765, 99
        %v4634 = vpop.permute.xlu0 %4633
        %4635 = vrot.lane.b32.xlu0 %v3768, 99
        %v4636 = vpop.permute.xlu0 %4635
        %4637 = vrot.lane.b32.xlu0 %v3771, 99
        %v4638 = vpop.permute.xlu0 %4637
        %4639 = vrot.lane.b32.xlu0 %v3774, 99
        %v4640 = vpop.permute.xlu0 %4639
        %4641 = vrot.lane.b32.xlu0 %v3777, 99
        %v4642 = vpop.permute.xlu0 %4641
        %4643 = vrot.lane.b32.xlu0 %v3780, 99
        %v4644 = vpop.permute.xlu0 %4643
        %v4645 = vrot.slane %v4582, 4
        %v4646 = vrot.slane %v4584, 4
        %v4647 = vrot.slane %v4586, 4
        %v4648 = vrot.slane %v4588, 4
        %v4649 = vrot.slane %v4590, 4
        %v4650 = vrot.slane %v4592, 4
        %v4651 = vrot.slane %v4594, 4
        %v4652 = vrot.slane %v4596, 4
        %v4653 = vrot.slane %v4598, 4
        %v4654 = vrot.slane %v4600, 4
        %v4655 = vrot.slane %v4602, 4
        %v4656 = vrot.slane %v4604, 4
        %v4657 = vrot.slane %v4606, 4
        %v4658 = vrot.slane %v4608, 4
        %v4659 = vrot.slane %v4610, 4
        %v4660 = vrot.slane %v4612, 4
        %v4661 = vrot.slane %v4614, 4
        %v4662 = vrot.slane %v4616, 4
        %v4663 = vrot.slane %v4618, 4
        %v4664 = vrot.slane %v4620, 4
        %v4665 = vrot.slane %v4622, 4
        %v4666 = vrot.slane %v4624, 4
        %v4667 = vrot.slane %v4626, 4
        %v4668 = vrot.slane %v4628, 4
        %v4669 = vrot.slane %v4630, 4
        %v4670 = vrot.slane %v4632, 4
        %v4671 = vrot.slane %v4634, 4
        %v4672 = vrot.slane %v4636, 4
        %v4673 = vrot.slane %v4638, 4
        %v4674 = vrot.slane %v4640, 4
        %v4675 = vrot.slane %v4642, 4
        %v4676 = vrot.slane %v4644, 4
        %v4677 = vsel %vm455, %v4645, %v4646
        %v4678 = vsel %vm1644, %v4582, %v4677
        %v4679 = vsel %vm455, %v4646, %v4647
        %v4680 = vsel %vm1644, %v4584, %v4679
        %v4681 = vsel %vm455, %v4647, %v4648
        %v4682 = vsel %vm1644, %v4586, %v4681
        %v4683 = vsel %vm455, %v4648, %v4649
        %v4684 = vsel %vm1644, %v4588, %v4683
        %v4685 = vsel %vm455, %v4649, %v4650
        %v4686 = vsel %vm1644, %v4590, %v4685
        %v4687 = vsel %vm455, %v4650, %v4651
        %v4688 = vsel %vm1644, %v4592, %v4687
        %v4689 = vsel %vm455, %v4651, %v4652
        %v4690 = vsel %vm1644, %v4594, %v4689
        %v4691 = vsel %vm455, %v4652, %v4653
        %v4692 = vsel %vm1644, %v4596, %v4691
        %v4693 = vsel %vm455, %v4653, %v4654
        %v4694 = vsel %vm1644, %v4598, %v4693
        %v4695 = vsel %vm455, %v4654, %v4655
        %v4696 = vsel %vm1644, %v4600, %v4695
        %v4697 = vsel %vm455, %v4655, %v4656
        %v4698 = vsel %vm1644, %v4602, %v4697
        %v4699 = vsel %vm455, %v4656, %v4657
        %v4700 = vsel %vm1644, %v4604, %v4699
        %v4701 = vsel %vm455, %v4657, %v4658
        %v4702 = vsel %vm1644, %v4606, %v4701
        %v4703 = vsel %vm455, %v4658, %v4659
        %v4704 = vsel %vm1644, %v4608, %v4703
        %v4705 = vsel %vm455, %v4659, %v4660
        %v4706 = vsel %vm1644, %v4610, %v4705
        %v4707 = vsel %vm1644, %v4612, %v4660
        %v4708 = vsel %vm455, %v4661, %v4662
        %v4709 = vsel %vm1644, %v4614, %v4708
        %v4710 = vsel %vm455, %v4662, %v4663
        %v4711 = vsel %vm1644, %v4616, %v4710
        %v4712 = vsel %vm455, %v4663, %v4664
        %v4713 = vsel %vm1644, %v4618, %v4712
        %v4714 = vsel %vm455, %v4664, %v4665
        %v4715 = vsel %vm1644, %v4620, %v4714
        %v4716 = vsel %vm455, %v4665, %v4666
        %v4717 = vsel %vm1644, %v4622, %v4716
        %v4718 = vsel %vm455, %v4666, %v4667
        %v4719 = vsel %vm1644, %v4624, %v4718
        %v4720 = vsel %vm455, %v4667, %v4668
        %v4721 = vsel %vm1644, %v4626, %v4720
        %v4722 = vsel %vm455, %v4668, %v4669
        %v4723 = vsel %vm1644, %v4628, %v4722
        %v4724 = vsel %vm455, %v4669, %v4670
        %v4725 = vsel %vm1644, %v4630, %v4724
        %v4726 = vsel %vm455, %v4670, %v4671
        %v4727 = vsel %vm1644, %v4632, %v4726
        %v4728 = vsel %vm455, %v4671, %v4672
        %v4729 = vsel %vm1644, %v4634, %v4728
        %v4730 = vsel %vm455, %v4672, %v4673
        %v4731 = vsel %vm1644, %v4636, %v4730
        %v4732 = vsel %vm455, %v4673, %v4674
        %v4733 = vsel %vm1644, %v4638, %v4732
        %v4734 = vsel %vm455, %v4674, %v4675
        %v4735 = vsel %vm1644, %v4640, %v4734
        %v4736 = vsel %vm455, %v4675, %v4676
        %v4737 = vsel %vm1644, %v4642, %v4736
        %v4738 = vsel %vm1644, %v4644, %v4676
        %4771 = vst [vmem:[#allocation2 + $0x380] sm:$0xcc] %v4678
        %4772 = vst [vmem:[#allocation2 + $0x388] sm:$0xcc] %v4680
        %4773 = vst [vmem:[#allocation2 + $0x390] sm:$0xcc] %v4682
        %4774 = vst [vmem:[#allocation2 + $0x398] sm:$0xcc] %v4684
        %4775 = vst [vmem:[#allocation2 + $0x3a0] sm:$0xcc] %v4686
        %4776 = vst [vmem:[#allocation2 + $0x3a8] sm:$0xcc] %v4688
        %4777 = vst [vmem:[#allocation2 + $0x3b0] sm:$0xcc] %v4690
        %4778 = vst [vmem:[#allocation2 + $0x3b8] sm:$0xcc] %v4692
        %4779 = vst [vmem:[#allocation2 + $0x3c0] sm:$0xcc] %v4694
        %4780 = vst [vmem:[#allocation2 + $0x3c8] sm:$0xcc] %v4696
        %4781 = vst [vmem:[#allocation2 + $0x3d0] sm:$0xcc] %v4698
        %4782 = vst [vmem:[#allocation2 + $0x3d8] sm:$0xcc] %v4700
        %4783 = vst [vmem:[#allocation2 + $0x3e0] sm:$0xcc] %v4702
        %4784 = vst [vmem:[#allocation2 + $0x3e8] sm:$0xcc] %v4704
        %4785 = vst [vmem:[#allocation2 + $0x3f0] sm:$0xcc] %v4706
        %vm4786 = vcmask 1043458
        %vm4787 = vcmask 809990
        %vm4788 = vmor %vm4787, %vm4786
        %4789 = vst.msk [vmem:[#allocation2 + $0x3f8] sm:$0xcc] %vm4788, %v4707
        %4790 = vst [vmem:[#allocation2 + $0x400] sm:$0x77] %v4709
        %4791 = vst [vmem:[#allocation2 + $0x408] sm:$0x77] %v4711
        %4792 = vst [vmem:[#allocation2 + $0x410] sm:$0x77] %v4713
        %4793 = vst [vmem:[#allocation2 + $0x418] sm:$0x77] %v4715
        %4794 = vst [vmem:[#allocation2 + $0x420] sm:$0x77] %v4717
        %4795 = vst [vmem:[#allocation2 + $0x428] sm:$0x77] %v4719
        %4796 = vst [vmem:[#allocation2 + $0x430] sm:$0x77] %v4721
        %4797 = vst [vmem:[#allocation2 + $0x438] sm:$0x77] %v4723
        %4798 = vst [vmem:[#allocation2 + $0x440] sm:$0x77] %v4725
        %4799 = vst [vmem:[#allocation2 + $0x448] sm:$0x77] %v4727
        %4800 = vst [vmem:[#allocation2 + $0x450] sm:$0x77] %v4729
        %4801 = vst [vmem:[#allocation2 + $0x458] sm:$0x77] %v4731
        %4802 = vst [vmem:[#allocation2 + $0x460] sm:$0x77] %v4733
        %4803 = vst [vmem:[#allocation2 + $0x468] sm:$0x77] %v4735
        %4804 = vst [vmem:[#allocation2 + $0x470] sm:$0x77] %v4737
        %vm4805 = vcmask 1042432
        %vm4806 = vcmask 808964
        %vm4807 = vmor %vm4806, %vm4805
        %4808 = vst.msk [vmem:[#allocation2 + $0x478] sm:$0x77] %vm4807, %v4738
        %vm4811 = vcmask 1044250
        %4812 = vst.msk [vmem:[#allocation2 + $0x3fc] sm:$0xc] %vm4811, %v4582
        %vm4813 = vcmask 1043224
        %4814 = vst.msk [vmem:[#allocation2 + $0x47c] sm:$0x7] %vm4813, %v4614
        %4815 = vrot.lane.b32.xlu0 %v4018, 98
        %v4816 = vpop.permute.xlu0 %4815
        %4817 = vrot.lane.b32.xlu0 %v4019, 98
        %v4818 = vpop.permute.xlu0 %4817
        %4819 = vrot.lane.b32.xlu0 %v4020, 98
        %v4820 = vpop.permute.xlu0 %4819
        %4821 = vrot.lane.b32.xlu0 %v4021, 98
        %v4822 = vpop.permute.xlu0 %4821
        %4823 = vrot.lane.b32.xlu0 %v4022, 98
        %v4824 = vpop.permute.xlu0 %4823
        %4825 = vrot.lane.b32.xlu0 %v4023, 98
        %v4826 = vpop.permute.xlu0 %4825
        %4827 = vrot.lane.b32.xlu0 %v4024, 98
        %v4828 = vpop.permute.xlu0 %4827
        %4829 = vrot.lane.b32.xlu0 %v4025, 98
        %v4830 = vpop.permute.xlu0 %4829
        %4831 = vrot.lane.b32.xlu0 %v4026, 98
        %v4832 = vpop.permute.xlu0 %4831
        %4833 = vrot.lane.b32.xlu0 %v4027, 98
        %v4834 = vpop.permute.xlu0 %4833
        %4835 = vrot.lane.b32.xlu0 %v4028, 98
        %v4836 = vpop.permute.xlu0 %4835
        %4837 = vrot.lane.b32.xlu0 %v4029, 98
        %v4838 = vpop.permute.xlu0 %4837
        %4839 = vrot.lane.b32.xlu0 %v4030, 98
        %v4840 = vpop.permute.xlu0 %4839
        %4841 = vrot.lane.b32.xlu0 %v4031, 98
        %v4842 = vpop.permute.xlu0 %4841
        %4843 = vrot.lane.b32.xlu0 %v4032, 98
        %v4844 = vpop.permute.xlu0 %4843
        %4845 = vrot.lane.b32.xlu0 %v4033, 98
        %v4846 = vpop.permute.xlu0 %4845
        %4847 = vrot.lane.b32.xlu0 %v4036, 98
        %v4848 = vpop.permute.xlu0 %4847
        %4849 = vrot.lane.b32.xlu0 %v4039, 98
        %v4850 = vpop.permute.xlu0 %4849
        %4851 = vrot.lane.b32.xlu0 %v4042, 98
        %v4852 = vpop.permute.xlu0 %4851
        %4853 = vrot.lane.b32.xlu0 %v4045, 98
        %v4854 = vpop.permute.xlu0 %4853
        %4855 = vrot.lane.b32.xlu0 %v4048, 98
        %v4856 = vpop.permute.xlu0 %4855
        %4857 = vrot.lane.b32.xlu0 %v4051, 98
        %v4858 = vpop.permute.xlu0 %4857
        %4859 = vrot.lane.b32.xlu0 %v4054, 98
        %v4860 = vpop.permute.xlu0 %4859
        %4861 = vrot.lane.b32.xlu0 %v4057, 98
        %v4862 = vpop.permute.xlu0 %4861
        %4863 = vrot.lane.b32.xlu0 %v4060, 98
        %v4864 = vpop.permute.xlu0 %4863
        %4865 = vrot.lane.b32.xlu0 %v4063, 98
        %v4866 = vpop.permute.xlu0 %4865
        %4867 = vrot.lane.b32.xlu0 %v4066, 98
        %v4868 = vpop.permute.xlu0 %4867
        %4869 = vrot.lane.b32.xlu0 %v4069, 98
        %v4870 = vpop.permute.xlu0 %4869
        %4871 = vrot.lane.b32.xlu0 %v4072, 98
        %v4872 = vpop.permute.xlu0 %4871
        %4873 = vrot.lane.b32.xlu0 %v4075, 98
        %v4874 = vpop.permute.xlu0 %4873
        %4875 = vrot.lane.b32.xlu0 %v4078, 98
        %v4876 = vpop.permute.xlu0 %4875
        %4877 = vrot.lane.b32.xlu0 %v4081, 98
        %v4878 = vpop.permute.xlu0 %4877
        %v4879 = vrot.slane %v4816, 4
        %v4880 = vrot.slane %v4818, 4
        %v4881 = vrot.slane %v4820, 4
        %v4882 = vrot.slane %v4822, 4
        %v4883 = vrot.slane %v4824, 4
        %v4884 = vrot.slane %v4826, 4
        %v4885 = vrot.slane %v4828, 4
        %v4886 = vrot.slane %v4830, 4
        %v4887 = vrot.slane %v4832, 4
        %v4888 = vrot.slane %v4834, 4
        %v4889 = vrot.slane %v4836, 4
        %v4890 = vrot.slane %v4838, 4
        %v4891 = vrot.slane %v4840, 4
        %v4892 = vrot.slane %v4842, 4
        %v4893 = vrot.slane %v4844, 4
        %v4894 = vrot.slane %v4846, 4
        %v4895 = vrot.slane %v4848, 4
        %v4896 = vrot.slane %v4850, 4
        %v4897 = vrot.slane %v4852, 4
        %v4898 = vrot.slane %v4854, 4
        %v4899 = vrot.slane %v4856, 4
        %v4900 = vrot.slane %v4858, 4
        %v4901 = vrot.slane %v4860, 4
        %v4902 = vrot.slane %v4862, 4
        %v4903 = vrot.slane %v4864, 4
        %v4904 = vrot.slane %v4866, 4
        %v4905 = vrot.slane %v4868, 4
        %v4906 = vrot.slane %v4870, 4
        %v4907 = vrot.slane %v4872, 4
        %v4908 = vrot.slane %v4874, 4
        %v4909 = vrot.slane %v4876, 4
        %v4910 = vrot.slane %v4878, 4
        %v4911 = vsel %vm455, %v4879, %v4880
        %v4912 = vsel %vm1879, %v4816, %v4911
        %v4913 = vsel %vm455, %v4880, %v4881
        %v4914 = vsel %vm1879, %v4818, %v4913
        %v4915 = vsel %vm455, %v4881, %v4882
        %v4916 = vsel %vm1879, %v4820, %v4915
        %v4917 = vsel %vm455, %v4882, %v4883
        %v4918 = vsel %vm1879, %v4822, %v4917
        %v4919 = vsel %vm455, %v4883, %v4884
        %v4920 = vsel %vm1879, %v4824, %v4919
        %v4921 = vsel %vm455, %v4884, %v4885
        %v4922 = vsel %vm1879, %v4826, %v4921
        %v4923 = vsel %vm455, %v4885, %v4886
        %v4924 = vsel %vm1879, %v4828, %v4923
        %v4925 = vsel %vm455, %v4886, %v4887
        %v4926 = vsel %vm1879, %v4830, %v4925
        %v4927 = vsel %vm455, %v4887, %v4888
        %v4928 = vsel %vm1879, %v4832, %v4927
        %v4929 = vsel %vm455, %v4888, %v4889
        %v4930 = vsel %vm1879, %v4834, %v4929
        %v4931 = vsel %vm455, %v4889, %v4890
        %v4932 = vsel %vm1879, %v4836, %v4931
        %v4933 = vsel %vm455, %v4890, %v4891
        %v4934 = vsel %vm1879, %v4838, %v4933
        %v4935 = vsel %vm455, %v4891, %v4892
        %v4936 = vsel %vm1879, %v4840, %v4935
        %v4937 = vsel %vm455, %v4892, %v4893
        %v4938 = vsel %vm1879, %v4842, %v4937
        %v4939 = vsel %vm455, %v4893, %v4894
        %v4940 = vsel %vm1879, %v4844, %v4939
        %v4941 = vsel %vm1879, %v4846, %v4894
        %v4942 = vsel %vm455, %v4895, %v4896
        %v4943 = vsel %vm1879, %v4848, %v4942
        %v4944 = vsel %vm455, %v4896, %v4897
        %v4945 = vsel %vm1879, %v4850, %v4944
        %v4946 = vsel %vm455, %v4897, %v4898
        %v4947 = vsel %vm1879, %v4852, %v4946
        %v4948 = vsel %vm455, %v4898, %v4899
        %v4949 = vsel %vm1879, %v4854, %v4948
        %v4950 = vsel %vm455, %v4899, %v4900
        %v4951 = vsel %vm1879, %v4856, %v4950
        %v4952 = vsel %vm455, %v4900, %v4901
        %v4953 = vsel %vm1879, %v4858, %v4952
        %v4954 = vsel %vm455, %v4901, %v4902
        %v4955 = vsel %vm1879, %v4860, %v4954
        %v4956 = vsel %vm455, %v4902, %v4903
        %v4957 = vsel %vm1879, %v4862, %v4956
        %v4958 = vsel %vm455, %v4903, %v4904
        %v4959 = vsel %vm1879, %v4864, %v4958
        %v4960 = vsel %vm455, %v4904, %v4905
        %v4961 = vsel %vm1879, %v4866, %v4960
        %v4962 = vsel %vm455, %v4905, %v4906
        %v4963 = vsel %vm1879, %v4868, %v4962
        %v4964 = vsel %vm455, %v4906, %v4907
        %v4965 = vsel %vm1879, %v4870, %v4964
        %v4966 = vsel %vm455, %v4907, %v4908
        %v4967 = vsel %vm1879, %v4872, %v4966
        %v4968 = vsel %vm455, %v4908, %v4909
        %v4969 = vsel %vm1879, %v4874, %v4968
        %v4970 = vsel %vm455, %v4909, %v4910
        %v4971 = vsel %vm1879, %v4876, %v4970
        %v4972 = vsel %vm1879, %v4878, %v4910
        %5005 = vst [vmem:[#allocation2 + $0x400] sm:$0x88] %v4912
        %5006 = vst [vmem:[#allocation2 + $0x408] sm:$0x88] %v4914
        %5007 = vst [vmem:[#allocation2 + $0x410] sm:$0x88] %v4916
        %5008 = vst [vmem:[#allocation2 + $0x418] sm:$0x88] %v4918
        %5009 = vst [vmem:[#allocation2 + $0x420] sm:$0x88] %v4920
        %5010 = vst [vmem:[#allocation2 + $0x428] sm:$0x88] %v4922
        %5011 = vst [vmem:[#allocation2 + $0x430] sm:$0x88] %v4924
        %5012 = vst [vmem:[#allocation2 + $0x438] sm:$0x88] %v4926
        %5013 = vst [vmem:[#allocation2 + $0x440] sm:$0x88] %v4928
        %5014 = vst [vmem:[#allocation2 + $0x448] sm:$0x88] %v4930
        %5015 = vst [vmem:[#allocation2 + $0x450] sm:$0x88] %v4932
        %5016 = vst [vmem:[#allocation2 + $0x458] sm:$0x88] %v4934
        %5017 = vst [vmem:[#allocation2 + $0x460] sm:$0x88] %v4936
        %5018 = vst [vmem:[#allocation2 + $0x468] sm:$0x88] %v4938
        %5019 = vst [vmem:[#allocation2 + $0x470] sm:$0x88] %v4940
        %vm5020 = vcmask 1043459
        %vm5021 = vcmask 801799
        %vm5022 = vmor %vm5021, %vm5020
        %5023 = vst.msk [vmem:[#allocation2 + $0x478] sm:$0x88] %vm5022, %v4941
        %5024 = vst [vmem:[#allocation2 + $0x480] sm:$0xff] %v4943
        %5025 = vst [vmem:[#allocation2 + $0x488] sm:$0xff] %v4945
        %5026 = vst [vmem:[#allocation2 + $0x490] sm:$0xff] %v4947
        %5027 = vst [vmem:[#allocation2 + $0x498] sm:$0xff] %v4949
        %5028 = vst [vmem:[#allocation2 + $0x4a0] sm:$0xff] %v4951
        %5029 = vst [vmem:[#allocation2 + $0x4a8] sm:$0xff] %v4953
        %5030 = vst [vmem:[#allocation2 + $0x4b0] sm:$0xff] %v4955
        %5031 = vst [vmem:[#allocation2 + $0x4b8] sm:$0xff] %v4957
        %5032 = vst [vmem:[#allocation2 + $0x4c0] sm:$0xff] %v4959
        %5033 = vst [vmem:[#allocation2 + $0x4c8] sm:$0xff] %v4961
        %5034 = vst [vmem:[#allocation2 + $0x4d0] sm:$0xff] %v4963
        %5035 = vst [vmem:[#allocation2 + $0x4d8] sm:$0xff] %v4965
        %5036 = vst [vmem:[#allocation2 + $0x4e0] sm:$0xff] %v4967
        %5037 = vst [vmem:[#allocation2 + $0x4e8] sm:$0xff] %v4969
        %5038 = vst [vmem:[#allocation2 + $0x4f0] sm:$0xff] %v4971
        %vm5039 = vcmask 801796
        %vm5040 = vmor %vm5039, %vm2373
        %5041 = vst.msk [vmem:[#allocation2 + $0x4f8] sm:$0xff] %vm5040, %v4972
        %vm5044 = vcmask 1044243
        %5045 = vst.msk [vmem:[#allocation2 + $0x47c] sm:$0x8] %vm5044, %v4816
        %vm5046 = vcmask 1044240
        %5047 = vst.msk [vmem:[#allocation2 + $0x4fc] sm:$0xf] %vm5046, %v4848
        %5048 = vrot.lane.b32.xlu0 %v3117, 97
        %v5049 = vpop.permute.xlu0 %5048
        %5050 = vrot.lane.b32.xlu0 %v3118, 97
        %v5051 = vpop.permute.xlu0 %5050
        %5052 = vrot.lane.b32.xlu0 %v3119, 97
        %v5053 = vpop.permute.xlu0 %5052
        %5054 = vrot.lane.b32.xlu0 %v3120, 97
        %v5055 = vpop.permute.xlu0 %5054
        %5056 = vrot.lane.b32.xlu0 %v3121, 97
        %v5057 = vpop.permute.xlu0 %5056
        %5058 = vrot.lane.b32.xlu0 %v3122, 97
        %v5059 = vpop.permute.xlu0 %5058
        %5060 = vrot.lane.b32.xlu0 %v3123, 97
        %v5061 = vpop.permute.xlu0 %5060
        %5062 = vrot.lane.b32.xlu0 %v3124, 97
        %v5063 = vpop.permute.xlu0 %5062
        %5064 = vrot.lane.b32.xlu0 %v3125, 97
        %v5065 = vpop.permute.xlu0 %5064
        %5066 = vrot.lane.b32.xlu0 %v3126, 97
        %v5067 = vpop.permute.xlu0 %5066
        %5068 = vrot.lane.b32.xlu0 %v3127, 97
        %v5069 = vpop.permute.xlu0 %5068
        %5070 = vrot.lane.b32.xlu0 %v3128, 97
        %v5071 = vpop.permute.xlu0 %5070
        %5072 = vrot.lane.b32.xlu0 %v3129, 97
        %v5073 = vpop.permute.xlu0 %5072
        %5074 = vrot.lane.b32.xlu0 %v3130, 97
        %v5075 = vpop.permute.xlu0 %5074
        %5076 = vrot.lane.b32.xlu0 %v3131, 97
        %v5077 = vpop.permute.xlu0 %5076
        %5078 = vrot.lane.b32.xlu0 %v3132, 97
        %v5079 = vpop.permute.xlu0 %5078
        %5080 = vrot.lane.b32.xlu0 %v3133, 97
        %v5081 = vpop.permute.xlu0 %5080
        %5082 = vrot.lane.b32.xlu0 %v3134, 97
        %v5083 = vpop.permute.xlu0 %5082
        %5084 = vrot.lane.b32.xlu0 %v3135, 97
        %v5085 = vpop.permute.xlu0 %5084
        %5086 = vrot.lane.b32.xlu0 %v3136, 97
        %v5087 = vpop.permute.xlu0 %5086
        %5088 = vrot.lane.b32.xlu0 %v3137, 97
        %v5089 = vpop.permute.xlu0 %5088
        %5090 = vrot.lane.b32.xlu0 %v3138, 97
        %v5091 = vpop.permute.xlu0 %5090
        %5092 = vrot.lane.b32.xlu0 %v3139, 97
        %v5093 = vpop.permute.xlu0 %5092
        %5094 = vrot.lane.b32.xlu0 %v3140, 97
        %v5095 = vpop.permute.xlu0 %5094
        %5096 = vrot.lane.b32.xlu0 %v3141, 97
        %v5097 = vpop.permute.xlu0 %5096
        %5098 = vrot.lane.b32.xlu0 %v3142, 97
        %v5099 = vpop.permute.xlu0 %5098
        %5100 = vrot.lane.b32.xlu0 %v3143, 97
        %v5101 = vpop.permute.xlu0 %5100
        %5102 = vrot.lane.b32.xlu0 %v3144, 97
        %v5103 = vpop.permute.xlu0 %5102
        %5104 = vrot.lane.b32.xlu0 %v3145, 97
        %v5105 = vpop.permute.xlu0 %5104
        %5106 = vrot.lane.b32.xlu0 %v3146, 97
        %v5107 = vpop.permute.xlu0 %5106
        %5108 = vrot.lane.b32.xlu0 %v3147, 97
        %v5109 = vpop.permute.xlu0 %5108
        %5110 = vrot.lane.b32.xlu0 %v3148, 97
        %v5111 = vpop.permute.xlu0 %5110
        %v5112 = vrot.slane %v5049, 4
        %v5113 = vrot.slane %v5051, 4
        %v5114 = vrot.slane %v5053, 4
        %v5115 = vrot.slane %v5055, 4
        %v5116 = vrot.slane %v5057, 4
        %v5117 = vrot.slane %v5059, 4
        %v5118 = vrot.slane %v5061, 4
        %v5119 = vrot.slane %v5063, 4
        %v5120 = vrot.slane %v5065, 4
        %v5121 = vrot.slane %v5067, 4
        %v5122 = vrot.slane %v5069, 4
        %v5123 = vrot.slane %v5071, 4
        %v5124 = vrot.slane %v5073, 4
        %v5125 = vrot.slane %v5075, 4
        %v5126 = vrot.slane %v5077, 4
        %v5127 = vrot.slane %v5079, 4
        %v5128 = vrot.slane %v5081, 4
        %v5129 = vrot.slane %v5083, 4
        %v5130 = vrot.slane %v5085, 4
        %v5131 = vrot.slane %v5087, 4
        %v5132 = vrot.slane %v5089, 4
        %v5133 = vrot.slane %v5091, 4
        %v5134 = vrot.slane %v5093, 4
        %v5135 = vrot.slane %v5095, 4
        %v5136 = vrot.slane %v5097, 4
        %v5137 = vrot.slane %v5099, 4
        %v5138 = vrot.slane %v5101, 4
        %v5139 = vrot.slane %v5103, 4
        %v5140 = vrot.slane %v5105, 4
        %v5141 = vrot.slane %v5107, 4
        %v5142 = vrot.slane %v5109, 4
        %v5143 = vrot.slane %v5111, 4
        %v5144 = vsel %vm455, %v5112, %v5113
        %v5145 = vsel %vm2081, %v5049, %v5144
        %v5146 = vsel %vm455, %v5113, %v5114
        %v5147 = vsel %vm2081, %v5051, %v5146
        %v5148 = vsel %vm455, %v5114, %v5115
        %v5149 = vsel %vm2081, %v5053, %v5148
        %v5150 = vsel %vm455, %v5115, %v5116
        %v5151 = vsel %vm2081, %v5055, %v5150
        %v5152 = vsel %vm455, %v5116, %v5117
        %v5153 = vsel %vm2081, %v5057, %v5152
        %v5154 = vsel %vm455, %v5117, %v5118
        %v5155 = vsel %vm2081, %v5059, %v5154
        %v5156 = vsel %vm455, %v5118, %v5119
        %v5157 = vsel %vm2081, %v5061, %v5156
        %v5158 = vsel %vm455, %v5119, %v5120
        %v5159 = vsel %vm2081, %v5063, %v5158
        %v5160 = vsel %vm455, %v5120, %v5121
        %v5161 = vsel %vm2081, %v5065, %v5160
        %v5162 = vsel %vm455, %v5121, %v5122
        %v5163 = vsel %vm2081, %v5067, %v5162
        %v5164 = vsel %vm455, %v5122, %v5123
        %v5165 = vsel %vm2081, %v5069, %v5164
        %v5166 = vsel %vm455, %v5123, %v5124
        %v5167 = vsel %vm2081, %v5071, %v5166
        %v5168 = vsel %vm455, %v5124, %v5125
        %v5169 = vsel %vm2081, %v5073, %v5168
        %v5170 = vsel %vm455, %v5125, %v5126
        %v5171 = vsel %vm2081, %v5075, %v5170
        %v5172 = vsel %vm455, %v5126, %v5127
        %v5173 = vsel %vm2081, %v5077, %v5172
        %v5174 = vsel %vm2081, %v5079, %v5127
        %v5175 = vsel %vm455, %v5128, %v5129
        %v5176 = vsel %vm2081, %v5081, %v5175
        %v5177 = vsel %vm455, %v5129, %v5130
        %v5178 = vsel %vm2081, %v5083, %v5177
        %v5179 = vsel %vm455, %v5130, %v5131
        %v5180 = vsel %vm2081, %v5085, %v5179
        %v5181 = vsel %vm455, %v5131, %v5132
        %v5182 = vsel %vm2081, %v5087, %v5181
        %v5183 = vsel %vm455, %v5132, %v5133
        %v5184 = vsel %vm2081, %v5089, %v5183
        %v5185 = vsel %vm455, %v5133, %v5134
        %v5186 = vsel %vm2081, %v5091, %v5185
        %v5187 = vsel %vm455, %v5134, %v5135
        %v5188 = vsel %vm2081, %v5093, %v5187
        %v5189 = vsel %vm455, %v5135, %v5136
        %v5190 = vsel %vm2081, %v5095, %v5189
        %v5191 = vsel %vm455, %v5136, %v5137
        %v5192 = vsel %vm2081, %v5097, %v5191
        %v5193 = vsel %vm455, %v5137, %v5138
        %v5194 = vsel %vm2081, %v5099, %v5193
        %v5195 = vsel %vm455, %v5138, %v5139
        %v5196 = vsel %vm2081, %v5101, %v5195
        %v5197 = vsel %vm455, %v5139, %v5140
        %v5198 = vsel %vm2081, %v5103, %v5197
        %v5199 = vsel %vm455, %v5140, %v5141
        %v5200 = vsel %vm2081, %v5105, %v5199
        %v5201 = vsel %vm455, %v5141, %v5142
        %v5202 = vsel %vm2081, %v5107, %v5201
        %v5203 = vsel %vm455, %v5142, %v5143
        %v5204 = vsel %vm2081, %v5109, %v5203
        %v5205 = vsel %vm2081, %v5111, %v5143
        %5238 = vst [vmem:[#allocation2 + $0x500] sm:$0xff] %v5145
        %5239 = vst [vmem:[#allocation2 + $0x508] sm:$0xff] %v5147
        %5240 = vst [vmem:[#allocation2 + $0x510] sm:$0xff] %v5149
        %5241 = vst [vmem:[#allocation2 + $0x518] sm:$0xff] %v5151
        %5242 = vst [vmem:[#allocation2 + $0x520] sm:$0xff] %v5153
        %5243 = vst [vmem:[#allocation2 + $0x528] sm:$0xff] %v5155
        %5244 = vst [vmem:[#allocation2 + $0x530] sm:$0xff] %v5157
        %5245 = vst [vmem:[#allocation2 + $0x538] sm:$0xff] %v5159
        %5246 = vst [vmem:[#allocation2 + $0x540] sm:$0xff] %v5161
        %5247 = vst [vmem:[#allocation2 + $0x548] sm:$0xff] %v5163
        %5248 = vst [vmem:[#allocation2 + $0x550] sm:$0xff] %v5165
        %5249 = vst [vmem:[#allocation2 + $0x558] sm:$0xff] %v5167
        %5250 = vst [vmem:[#allocation2 + $0x560] sm:$0xff] %v5169
        %5251 = vst [vmem:[#allocation2 + $0x568] sm:$0xff] %v5171
        %5252 = vst [vmem:[#allocation2 + $0x570] sm:$0xff] %v5173
        %vm5253 = vcmask 793604
        %vm5254 = vmor %vm5253, %vm2373
        %5255 = vst.msk [vmem:[#allocation2 + $0x578] sm:$0xff] %vm5254, %v5174
        %5256 = vst [vmem:[#allocation2 + $0x580] sm:$0x11] %v5176
        %5257 = vst [vmem:[#allocation2 + $0x588] sm:$0x11] %v5178
        %5258 = vst [vmem:[#allocation2 + $0x590] sm:$0x11] %v5180
        %5259 = vst [vmem:[#allocation2 + $0x598] sm:$0x11] %v5182
        %5260 = vst [vmem:[#allocation2 + $0x5a0] sm:$0x11] %v5184
        %5261 = vst [vmem:[#allocation2 + $0x5a8] sm:$0x11] %v5186
        %5262 = vst [vmem:[#allocation2 + $0x5b0] sm:$0x11] %v5188
        %5263 = vst [vmem:[#allocation2 + $0x5b8] sm:$0x11] %v5190
        %5264 = vst [vmem:[#allocation2 + $0x5c0] sm:$0x11] %v5192
        %5265 = vst [vmem:[#allocation2 + $0x5c8] sm:$0x11] %v5194
        %5266 = vst [vmem:[#allocation2 + $0x5d0] sm:$0x11] %v5196
        %5267 = vst [vmem:[#allocation2 + $0x5d8] sm:$0x11] %v5198
        %5268 = vst [vmem:[#allocation2 + $0x5e0] sm:$0x11] %v5200
        %5269 = vst [vmem:[#allocation2 + $0x5e8] sm:$0x11] %v5202
        %5270 = vst [vmem:[#allocation2 + $0x5f0] sm:$0x11] %v5204
        %vm5271 = vcmask 1040384
        %vm5272 = vcmask 790532
        %vm5273 = vmor %vm5272, %vm5271
        %5274 = vst.msk [vmem:[#allocation2 + $0x5f8] sm:$0x11] %vm5273, %v5205
        %vm5277 = vcmask 1044232
        %5278 = vst.msk [vmem:[#allocation2 + $0x57c] sm:$0xf] %vm5277, %v5049
        %vm5279 = vcmask 1041160
        %5280 = vst.msk [vmem:[#allocation2 + $0x5fc] sm:$0x1] %vm5279, %v5081
        %v5281 = vld [vmem:[%s4] sm:$0xf]
        %v5282 = vld [vmem:[%s4 + $0x4] sm:$0x1]
        %v5283 = vld [vmem:[#allocation2] sm:$0xff]
        %v5284 = vld [vmem:[#allocation2 + $0x8] sm:$0xff]
        %v5285 = vld [vmem:[#allocation2 + $0x10] sm:$0xff]
        %v5286 = vld [vmem:[#allocation2 + $0x18] sm:$0xff]
        %v5287 = vld [vmem:[#allocation2 + $0x20] sm:$0xff]
        %v5288 = vld [vmem:[#allocation2 + $0x28] sm:$0xff]
        %v5289 = vld [vmem:[#allocation2 + $0x30] sm:$0xff]
        %v5290 = vld [vmem:[#allocation2 + $0x38] sm:$0xff]
        %v5291 = vld [vmem:[#allocation2 + $0x40] sm:$0xff]
        %v5292 = vld [vmem:[#allocation2 + $0x48] sm:$0xff]
        %v5293 = vld [vmem:[#allocation2 + $0x50] sm:$0xff]
        %v5294 = vld [vmem:[#allocation2 + $0x58] sm:$0xff]
        %v5295 = vld [vmem:[#allocation2 + $0x60] sm:$0xff]
        %v5296 = vld [vmem:[#allocation2 + $0x68] sm:$0xff]
        %v5297 = vld [vmem:[#allocation2 + $0x70] sm:$0xff]
        %v5298 = vld [vmem:[#allocation2 + $0x78] sm:$0xff]
        %v5299 = vld [vmem:[#allocation2 + $0x80] sm:$0xff]
        %v5300 = vld [vmem:[#allocation2 + $0x88] sm:$0xff]
        %v5301 = vld [vmem:[#allocation2 + $0x90] sm:$0xff]
        %v5302 = vld [vmem:[#allocation2 + $0x98] sm:$0xff]
        %v5303 = vld [vmem:[#allocation2 + $0xa0] sm:$0xff]
        %v5304 = vld [vmem:[#allocation2 + $0xa8] sm:$0xff]
        %v5305 = vld [vmem:[#allocation2 + $0xb0] sm:$0xff]
        %v5306 = vld [vmem:[#allocation2 + $0xb8] sm:$0xff]
        %v5307 = vld [vmem:[#allocation2 + $0xc0] sm:$0xff]
        %v5308 = vld [vmem:[#allocation2 + $0xc8] sm:$0xff]
        %v5309 = vld [vmem:[#allocation2 + $0xd0] sm:$0xff]
        %v5310 = vld [vmem:[#allocation2 + $0xd8] sm:$0xff]
        %v5311 = vld [vmem:[#allocation2 + $0xe0] sm:$0xff]
        %v5312 = vld [vmem:[#allocation2 + $0xe8] sm:$0xff]
        %v5313 = vld [vmem:[#allocation2 + $0xf0] sm:$0xff]
        %v5314 = vld [vmem:[#allocation2 + $0xf8] sm:$0xff]
        %v5315 = vld [vmem:[#allocation2 + $0x100] sm:$0xff]
        %v5316 = vld [vmem:[#allocation2 + $0x108] sm:$0xff]
        %v5317 = vld [vmem:[#allocation2 + $0x110] sm:$0xff]
        %v5318 = vld [vmem:[#allocation2 + $0x118] sm:$0xff]
        %v5319 = vld [vmem:[#allocation2 + $0x120] sm:$0xff]
        %v5320 = vld [vmem:[#allocation2 + $0x128] sm:$0xff]
        %v5321 = vld [vmem:[#allocation2 + $0x130] sm:$0xff]
        %v5322 = vld [vmem:[#allocation2 + $0x138] sm:$0xff]
        %v5323 = vld [vmem:[#allocation2 + $0x140] sm:$0xff]
        %v5324 = vld [vmem:[#allocation2 + $0x148] sm:$0xff]
        %v5325 = vld [vmem:[#allocation2 + $0x150] sm:$0xff]
        %v5326 = vld [vmem:[#allocation2 + $0x158] sm:$0xff]
        %v5327 = vld [vmem:[#allocation2 + $0x160] sm:$0xff]
        %v5328 = vld [vmem:[#allocation2 + $0x168] sm:$0xff]
        %v5329 = vld [vmem:[#allocation2 + $0x170] sm:$0xff]
        %v5330 = vld [vmem:[#allocation2 + $0x178] sm:$0xff]
        %v5331 = vld [vmem:[#allocation2 + $0x180] sm:$0xff]
        %v5332 = vld [vmem:[#allocation2 + $0x188] sm:$0xff]
        %v5333 = vld [vmem:[#allocation2 + $0x190] sm:$0xff]
        %v5334 = vld [vmem:[#allocation2 + $0x198] sm:$0xff]
        %v5335 = vld [vmem:[#allocation2 + $0x1a0] sm:$0xff]
        %v5336 = vld [vmem:[#allocation2 + $0x1a8] sm:$0xff]
        %v5337 = vld [vmem:[#allocation2 + $0x1b0] sm:$0xff]
        %v5338 = vld [vmem:[#allocation2 + $0x1b8] sm:$0xff]
        %v5339 = vld [vmem:[#allocation2 + $0x1c0] sm:$0xff]
        %v5340 = vld [vmem:[#allocation2 + $0x1c8] sm:$0xff]
        %v5341 = vld [vmem:[#allocation2 + $0x1d0] sm:$0xff]
        %v5342 = vld [vmem:[#allocation2 + $0x1d8] sm:$0xff]
        %v5343 = vld [vmem:[#allocation2 + $0x1e0] sm:$0xff]
        %v5344 = vld [vmem:[#allocation2 + $0x1e8] sm:$0xff]
        %v5345 = vld [vmem:[#allocation2 + $0x1f0] sm:$0xff]
        %v5346 = vld [vmem:[#allocation2 + $0x1f8] sm:$0xff]
        %v5347 = vld [vmem:[#allocation2 + $0x200] sm:$0xff]
        %v5348 = vld [vmem:[#allocation2 + $0x208] sm:$0xff]
        %v5349 = vld [vmem:[#allocation2 + $0x210] sm:$0xff]
        %v5350 = vld [vmem:[#allocation2 + $0x218] sm:$0xff]
        %v5351 = vld [vmem:[#allocation2 + $0x220] sm:$0xff]
        %v5352 = vld [vmem:[#allocation2 + $0x228] sm:$0xff]
        %v5353 = vld [vmem:[#allocation2 + $0x230] sm:$0xff]
        %v5354 = vld [vmem:[#allocation2 + $0x238] sm:$0xff]
        %v5355 = vld [vmem:[#allocation2 + $0x240] sm:$0xff]
        %v5356 = vld [vmem:[#allocation2 + $0x248] sm:$0xff]
        %v5357 = vld [vmem:[#allocation2 + $0x250] sm:$0xff]
        %v5358 = vld [vmem:[#allocation2 + $0x258] sm:$0xff]
        %v5359 = vld [vmem:[#allocation2 + $0x260] sm:$0xff]
        %v5360 = vld [vmem:[#allocation2 + $0x268] sm:$0xff]
        %v5361 = vld [vmem:[#allocation2 + $0x270] sm:$0xff]
        %v5362 = vld [vmem:[#allocation2 + $0x278] sm:$0xff]
        %v5363 = vld [vmem:[#allocation2 + $0x280] sm:$0xff]
        %v5364 = vld [vmem:[#allocation2 + $0x288] sm:$0xff]
        %v5365 = vld [vmem:[#allocation2 + $0x290] sm:$0xff]
        %v5366 = vld [vmem:[#allocation2 + $0x298] sm:$0xff]
        %v5367 = vld [vmem:[#allocation2 + $0x2a0] sm:$0xff]
        %v5368 = vld [vmem:[#allocation2 + $0x2a8] sm:$0xff]
        %v5369 = vld [vmem:[#allocation2 + $0x2b0] sm:$0xff]
        %v5370 = vld [vmem:[#allocation2 + $0x2b8] sm:$0xff]
        %v5371 = vld [vmem:[#allocation2 + $0x2c0] sm:$0xff]
        %v5372 = vld [vmem:[#allocation2 + $0x2c8] sm:$0xff]
        %v5373 = vld [vmem:[#allocation2 + $0x2d0] sm:$0xff]
        %v5374 = vld [vmem:[#allocation2 + $0x2d8] sm:$0xff]
        %v5375 = vld [vmem:[#allocation2 + $0x2e0] sm:$0xff]
        %v5376 = vld [vmem:[#allocation2 + $0x2e8] sm:$0xff]
        %v5377 = vld [vmem:[#allocation2 + $0x2f0] sm:$0xff]
        %v5378 = vld [vmem:[#allocation2 + $0x2f8] sm:$0xff]
        %v5379 = vld [vmem:[#allocation2 + $0x300] sm:$0xff]
        %v5380 = vld [vmem:[#allocation2 + $0x308] sm:$0xff]
        %v5381 = vld [vmem:[#allocation2 + $0x310] sm:$0xff]
        %v5382 = vld [vmem:[#allocation2 + $0x318] sm:$0xff]
        %v5383 = vld [vmem:[#allocation2 + $0x320] sm:$0xff]
        %v5384 = vld [vmem:[#allocation2 + $0x328] sm:$0xff]
        %v5385 = vld [vmem:[#allocation2 + $0x330] sm:$0xff]
        %v5386 = vld [vmem:[#allocation2 + $0x338] sm:$0xff]
        %v5387 = vld [vmem:[#allocation2 + $0x340] sm:$0xff]
        %v5388 = vld [vmem:[#allocation2 + $0x348] sm:$0xff]
        %v5389 = vld [vmem:[#allocation2 + $0x350] sm:$0xff]
        %v5390 = vld [vmem:[#allocation2 + $0x358] sm:$0xff]
        %v5391 = vld [vmem:[#allocation2 + $0x360] sm:$0xff]
        %v5392 = vld [vmem:[#allocation2 + $0x368] sm:$0xff]
        %v5393 = vld [vmem:[#allocation2 + $0x370] sm:$0xff]
        %v5394 = vld [vmem:[#allocation2 + $0x378] sm:$0xff]
        %v5395 = vld [vmem:[#allocation2 + $0x380] sm:$0xff]
        %v5396 = vld [vmem:[#allocation2 + $0x388] sm:$0xff]
        %v5397 = vld [vmem:[#allocation2 + $0x390] sm:$0xff]
        %v5398 = vld [vmem:[#allocation2 + $0x398] sm:$0xff]
        %v5399 = vld [vmem:[#allocation2 + $0x3a0] sm:$0xff]
        %v5400 = vld [vmem:[#allocation2 + $0x3a8] sm:$0xff]
        %v5401 = vld [vmem:[#allocation2 + $0x3b0] sm:$0xff]
        %v5402 = vld [vmem:[#allocation2 + $0x3b8] sm:$0xff]
        %v5403 = vld [vmem:[#allocation2 + $0x3c0] sm:$0xff]
        %v5404 = vld [vmem:[#allocation2 + $0x3c8] sm:$0xff]
        %v5405 = vld [vmem:[#allocation2 + $0x3d0] sm:$0xff]
        %v5406 = vld [vmem:[#allocation2 + $0x3d8] sm:$0xff]
        %v5407 = vld [vmem:[#allocation2 + $0x3e0] sm:$0xff]
        %v5408 = vld [vmem:[#allocation2 + $0x3e8] sm:$0xff]
        %v5409 = vld [vmem:[#allocation2 + $0x3f0] sm:$0xff]
        %v5410 = vld [vmem:[#allocation2 + $0x3f8] sm:$0xff]
        %v5411 = vld [vmem:[#allocation2 + $0x400] sm:$0xff]
        %v5412 = vld [vmem:[#allocation2 + $0x408] sm:$0xff]
        %v5413 = vld [vmem:[#allocation2 + $0x410] sm:$0xff]
        %v5414 = vld [vmem:[#allocation2 + $0x418] sm:$0xff]
        %v5415 = vld [vmem:[#allocation2 + $0x420] sm:$0xff]
        %v5416 = vld [vmem:[#allocation2 + $0x428] sm:$0xff]
        %v5417 = vld [vmem:[#allocation2 + $0x430] sm:$0xff]
        %v5418 = vld [vmem:[#allocation2 + $0x438] sm:$0xff]
        %v5419 = vld [vmem:[#allocation2 + $0x440] sm:$0xff]
        %v5420 = vld [vmem:[#allocation2 + $0x448] sm:$0xff]
        %v5421 = vld [vmem:[#allocation2 + $0x450] sm:$0xff]
        %v5422 = vld [vmem:[#allocation2 + $0x458] sm:$0xff]
        %v5423 = vld [vmem:[#allocation2 + $0x460] sm:$0xff]
        %v5424 = vld [vmem:[#allocation2 + $0x468] sm:$0xff]
        %v5425 = vld [vmem:[#allocation2 + $0x470] sm:$0xff]
        %v5426 = vld [vmem:[#allocation2 + $0x478] sm:$0xff]
        %v5427 = vld [vmem:[#allocation2 + $0x480] sm:$0xff]
        %v5428 = vld [vmem:[#allocation2 + $0x488] sm:$0xff]
        %v5429 = vld [vmem:[#allocation2 + $0x490] sm:$0xff]
        %v5430 = vld [vmem:[#allocation2 + $0x498] sm:$0xff]
        %v5431 = vld [vmem:[#allocation2 + $0x4a0] sm:$0xff]
        %v5432 = vld [vmem:[#allocation2 + $0x4a8] sm:$0xff]
        %v5433 = vld [vmem:[#allocation2 + $0x4b0] sm:$0xff]
        %v5434 = vld [vmem:[#allocation2 + $0x4b8] sm:$0xff]
        %v5435 = vld [vmem:[#allocation2 + $0x4c0] sm:$0xff]
        %v5436 = vld [vmem:[#allocation2 + $0x4c8] sm:$0xff]
        %v5437 = vld [vmem:[#allocation2 + $0x4d0] sm:$0xff]
        %v5438 = vld [vmem:[#allocation2 + $0x4d8] sm:$0xff]
        %v5439 = vld [vmem:[#allocation2 + $0x4e0] sm:$0xff]
        %v5440 = vld [vmem:[#allocation2 + $0x4e8] sm:$0xff]
        %v5441 = vld [vmem:[#allocation2 + $0x4f0] sm:$0xff]
        %v5442 = vld [vmem:[#allocation2 + $0x4f8] sm:$0xff]
        %v5443 = vld [vmem:[#allocation2 + $0x500] sm:$0xff]
        %v5444 = vld [vmem:[#allocation2 + $0x508] sm:$0xff]
        %v5445 = vld [vmem:[#allocation2 + $0x510] sm:$0xff]
        %v5446 = vld [vmem:[#allocation2 + $0x518] sm:$0xff]
        %v5447 = vld [vmem:[#allocation2 + $0x520] sm:$0xff]
        %v5448 = vld [vmem:[#allocation2 + $0x528] sm:$0xff]
        %v5449 = vld [vmem:[#allocation2 + $0x530] sm:$0xff]
        %v5450 = vld [vmem:[#allocation2 + $0x538] sm:$0xff]
        %v5451 = vld [vmem:[#allocation2 + $0x540] sm:$0xff]
        %v5452 = vld [vmem:[#allocation2 + $0x548] sm:$0xff]
        %v5453 = vld [vmem:[#allocation2 + $0x550] sm:$0xff]
        %v5454 = vld [vmem:[#allocation2 + $0x558] sm:$0xff]
        %v5455 = vld [vmem:[#allocation2 + $0x560] sm:$0xff]
        %v5456 = vld [vmem:[#allocation2 + $0x568] sm:$0xff]
        %v5457 = vld [vmem:[#allocation2 + $0x570] sm:$0xff]
        %v5458 = vld [vmem:[#allocation2 + $0x578] sm:$0xff]
        %v5459 = vld [vmem:[#allocation2 + $0x580] sm:$0x11]
        %v5460 = vld [vmem:[#allocation2 + $0x588] sm:$0x11]
        %v5461 = vld [vmem:[#allocation2 + $0x590] sm:$0x11]
        %v5462 = vld [vmem:[#allocation2 + $0x598] sm:$0x11]
        %v5463 = vld [vmem:[#allocation2 + $0x5a0] sm:$0x11]
        %v5464 = vld [vmem:[#allocation2 + $0x5a8] sm:$0x11]
        %v5465 = vld [vmem:[#allocation2 + $0x5b0] sm:$0x11]
        %v5466 = vld [vmem:[#allocation2 + $0x5b8] sm:$0x11]
        %v5467 = vld [vmem:[#allocation2 + $0x5c0] sm:$0x11]
        %v5468 = vld [vmem:[#allocation2 + $0x5c8] sm:$0x11]
        %v5469 = vld [vmem:[#allocation2 + $0x5d0] sm:$0x11]
        %v5470 = vld [vmem:[#allocation2 + $0x5d8] sm:$0x11]
        %v5471 = vld [vmem:[#allocation2 + $0x5e0] sm:$0x11]
        %v5472 = vld [vmem:[#allocation2 + $0x5e8] sm:$0x11]
        %v5473 = vld [vmem:[#allocation2 + $0x5f0] sm:$0x11]
        %v5474 = vld [vmem:[#allocation2 + $0x5f8] sm:$0x11]
        %v5475 = vld [vmem:[%s5] sm:$0xff]
        %v5476 = vld [vmem:[%s5 + $0x8] sm:$0x3]
        %5478 = vset.pattern.permute.xlu0 0
        %5479 = vperm.xlu0 %5478, %v5475
        %v5480 = vpop.permute.xlu0 %5479
        %5483 = vset.pattern.permute.xlu0 0
        %5484 = vperm.xlu0 %5483, %v5476
        %v5485 = vpop.permute.xlu0 %5484
        %v5489 = vunpack.c.l.b16 %v5281
        %v5490 = vunpack.c.l.b16 %v5282
        %v5491 = vpack.c.b16 %v5490, %v5489
        %v5684 = vunpack.c.l.b16 %v5283
        %v5685 = vunpack.c.h.b16 %v5283
        %v5686 = vunpack.c.l.b16 %v5284
        %v5687 = vunpack.c.h.b16 %v5284
        %v5688 = vunpack.c.l.b16 %v5285
        %v5689 = vunpack.c.h.b16 %v5285
        %v5690 = vunpack.c.l.b16 %v5286
        %v5691 = vunpack.c.h.b16 %v5286
        %v5692 = vunpack.c.l.b16 %v5287
        %v5693 = vunpack.c.h.b16 %v5287
        %v5694 = vunpack.c.l.b16 %v5288
        %v5695 = vunpack.c.h.b16 %v5288
        %v5696 = vunpack.c.l.b16 %v5289
        %v5697 = vunpack.c.h.b16 %v5289
        %v5698 = vunpack.c.l.b16 %v5290
        %v5699 = vunpack.c.h.b16 %v5290
        %v5700 = vunpack.c.l.b16 %v5291
        %v5701 = vunpack.c.h.b16 %v5291
        %v5702 = vunpack.c.l.b16 %v5292
        %v5703 = vunpack.c.h.b16 %v5292
        %v5704 = vunpack.c.l.b16 %v5293
        %v5705 = vunpack.c.h.b16 %v5293
        %v5706 = vunpack.c.l.b16 %v5294
        %v5707 = vunpack.c.h.b16 %v5294
        %v5708 = vunpack.c.l.b16 %v5295
        %v5709 = vunpack.c.h.b16 %v5295
        %v5710 = vunpack.c.l.b16 %v5296
        %v5711 = vunpack.c.h.b16 %v5296
        %v5712 = vunpack.c.l.b16 %v5297
        %v5713 = vunpack.c.h.b16 %v5297
        %v5714 = vunpack.c.l.b16 %v5298
        %v5715 = vunpack.c.h.b16 %v5298
        %v5716 = vunpack.c.l.b16 %v5299
        %v5717 = vunpack.c.h.b16 %v5299
        %v5718 = vunpack.c.l.b16 %v5300
        %v5719 = vunpack.c.h.b16 %v5300
        %v5720 = vunpack.c.l.b16 %v5301
        %v5721 = vunpack.c.h.b16 %v5301
        %v5722 = vunpack.c.l.b16 %v5302
        %v5723 = vunpack.c.h.b16 %v5302
        %v5724 = vunpack.c.l.b16 %v5303
        %v5725 = vunpack.c.h.b16 %v5303
        %v5726 = vunpack.c.l.b16 %v5304
        %v5727 = vunpack.c.h.b16 %v5304
        %v5728 = vunpack.c.l.b16 %v5305
        %v5729 = vunpack.c.h.b16 %v5305
        %v5730 = vunpack.c.l.b16 %v5306
        %v5731 = vunpack.c.h.b16 %v5306
        %v5732 = vunpack.c.l.b16 %v5307
        %v5733 = vunpack.c.h.b16 %v5307
        %v5734 = vunpack.c.l.b16 %v5308
        %v5735 = vunpack.c.h.b16 %v5308
        %v5736 = vunpack.c.l.b16 %v5309
        %v5737 = vunpack.c.h.b16 %v5309
        %v5738 = vunpack.c.l.b16 %v5310
        %v5739 = vunpack.c.h.b16 %v5310
        %v5740 = vunpack.c.l.b16 %v5311
        %v5741 = vunpack.c.h.b16 %v5311
        %v5742 = vunpack.c.l.b16 %v5312
        %v5743 = vunpack.c.h.b16 %v5312
        %v5744 = vunpack.c.l.b16 %v5313
        %v5745 = vunpack.c.h.b16 %v5313
        %v5746 = vunpack.c.l.b16 %v5314
        %v5747 = vunpack.c.h.b16 %v5314
        %v5748 = vunpack.c.l.b16 %v5315
        %v5749 = vunpack.c.h.b16 %v5315
        %v5750 = vunpack.c.l.b16 %v5316
        %v5751 = vunpack.c.h.b16 %v5316
        %v5752 = vunpack.c.l.b16 %v5317
        %v5753 = vunpack.c.h.b16 %v5317
        %v5754 = vunpack.c.l.b16 %v5318
        %v5755 = vunpack.c.h.b16 %v5318
        %v5756 = vunpack.c.l.b16 %v5319
        %v5757 = vunpack.c.h.b16 %v5319
        %v5758 = vunpack.c.l.b16 %v5320
        %v5759 = vunpack.c.h.b16 %v5320
        %v5760 = vunpack.c.l.b16 %v5321
        %v5761 = vunpack.c.h.b16 %v5321
        %v5762 = vunpack.c.l.b16 %v5322
        %v5763 = vunpack.c.h.b16 %v5322
        %v5764 = vunpack.c.l.b16 %v5323
        %v5765 = vunpack.c.h.b16 %v5323
        %v5766 = vunpack.c.l.b16 %v5324
        %v5767 = vunpack.c.h.b16 %v5324
        %v5768 = vunpack.c.l.b16 %v5325
        %v5769 = vunpack.c.h.b16 %v5325
        %v5770 = vunpack.c.l.b16 %v5326
        %v5771 = vunpack.c.h.b16 %v5326
        %v5772 = vunpack.c.l.b16 %v5327
        %v5773 = vunpack.c.h.b16 %v5327
        %v5774 = vunpack.c.l.b16 %v5328
        %v5775 = vunpack.c.h.b16 %v5328
        %v5776 = vunpack.c.l.b16 %v5329
        %v5777 = vunpack.c.h.b16 %v5329
        %v5778 = vunpack.c.l.b16 %v5330
        %v5779 = vunpack.c.h.b16 %v5330
        %v5780 = vunpack.c.l.b16 %v5331
        %v5781 = vunpack.c.h.b16 %v5331
        %v5782 = vunpack.c.l.b16 %v5332
        %v5783 = vunpack.c.h.b16 %v5332
        %v5784 = vunpack.c.l.b16 %v5333
        %v5785 = vunpack.c.h.b16 %v5333
        %v5786 = vunpack.c.l.b16 %v5334
        %v5787 = vunpack.c.h.b16 %v5334
        %v5788 = vunpack.c.l.b16 %v5335
        %v5789 = vunpack.c.h.b16 %v5335
        %v5790 = vunpack.c.l.b16 %v5336
        %v5791 = vunpack.c.h.b16 %v5336
        %v5792 = vunpack.c.l.b16 %v5337
        %v5793 = vunpack.c.h.b16 %v5337
        %v5794 = vunpack.c.l.b16 %v5338
        %v5795 = vunpack.c.h.b16 %v5338
        %v5796 = vunpack.c.l.b16 %v5339
        %v5797 = vunpack.c.h.b16 %v5339
        %v5798 = vunpack.c.l.b16 %v5340
        %v5799 = vunpack.c.h.b16 %v5340
        %v5800 = vunpack.c.l.b16 %v5341
        %v5801 = vunpack.c.h.b16 %v5341
        %v5802 = vunpack.c.l.b16 %v5342
        %v5803 = vunpack.c.h.b16 %v5342
        %v5804 = vunpack.c.l.b16 %v5343
        %v5805 = vunpack.c.h.b16 %v5343
        %v5806 = vunpack.c.l.b16 %v5344
        %v5807 = vunpack.c.h.b16 %v5344
        %v5808 = vunpack.c.l.b16 %v5345
        %v5809 = vunpack.c.h.b16 %v5345
        %v5810 = vunpack.c.l.b16 %v5346
        %v5811 = vunpack.c.h.b16 %v5346
        %v5812 = vunpack.c.l.b16 %v5347
        %v5813 = vunpack.c.h.b16 %v5347
        %v5814 = vunpack.c.l.b16 %v5348
        %v5815 = vunpack.c.h.b16 %v5348
        %v5816 = vunpack.c.l.b16 %v5349
        %v5817 = vunpack.c.h.b16 %v5349
        %v5818 = vunpack.c.l.b16 %v5350
        %v5819 = vunpack.c.h.b16 %v5350
        %v5820 = vunpack.c.l.b16 %v5351
        %v5821 = vunpack.c.h.b16 %v5351
        %v5822 = vunpack.c.l.b16 %v5352
        %v5823 = vunpack.c.h.b16 %v5352
        %v5824 = vunpack.c.l.b16 %v5353
        %v5825 = vunpack.c.h.b16 %v5353
        %v5826 = vunpack.c.l.b16 %v5354
        %v5827 = vunpack.c.h.b16 %v5354
        %v5828 = vunpack.c.l.b16 %v5355
        %v5829 = vunpack.c.h.b16 %v5355
        %v5830 = vunpack.c.l.b16 %v5356
        %v5831 = vunpack.c.h.b16 %v5356
        %v5832 = vunpack.c.l.b16 %v5357
        %v5833 = vunpack.c.h.b16 %v5357
        %v5834 = vunpack.c.l.b16 %v5358
        %v5835 = vunpack.c.h.b16 %v5358
        %v5836 = vunpack.c.l.b16 %v5359
        %v5837 = vunpack.c.h.b16 %v5359
        %v5838 = vunpack.c.l.b16 %v5360
        %v5839 = vunpack.c.h.b16 %v5360
        %v5840 = vunpack.c.l.b16 %v5361
        %v5841 = vunpack.c.h.b16 %v5361
        %v5842 = vunpack.c.l.b16 %v5362
        %v5843 = vunpack.c.h.b16 %v5362
        %v5844 = vunpack.c.l.b16 %v5363
        %v5845 = vunpack.c.h.b16 %v5363
        %v5846 = vunpack.c.l.b16 %v5364
        %v5847 = vunpack.c.h.b16 %v5364
        %v5848 = vunpack.c.l.b16 %v5365
        %v5849 = vunpack.c.h.b16 %v5365
        %v5850 = vunpack.c.l.b16 %v5366
        %v5851 = vunpack.c.h.b16 %v5366
        %v5852 = vunpack.c.l.b16 %v5367
        %v5853 = vunpack.c.h.b16 %v5367
        %v5854 = vunpack.c.l.b16 %v5368
        %v5855 = vunpack.c.h.b16 %v5368
        %v5856 = vunpack.c.l.b16 %v5369
        %v5857 = vunpack.c.h.b16 %v5369
        %v5858 = vunpack.c.l.b16 %v5370
        %v5859 = vunpack.c.h.b16 %v5370
        %v5860 = vunpack.c.l.b16 %v5371
        %v5861 = vunpack.c.h.b16 %v5371
        %v5862 = vunpack.c.l.b16 %v5372
        %v5863 = vunpack.c.h.b16 %v5372
        %v5864 = vunpack.c.l.b16 %v5373
        %v5865 = vunpack.c.h.b16 %v5373
        %v5866 = vunpack.c.l.b16 %v5374
        %v5867 = vunpack.c.h.b16 %v5374
        %v5868 = vunpack.c.l.b16 %v5375
        %v5869 = vunpack.c.h.b16 %v5375
        %v5870 = vunpack.c.l.b16 %v5376
        %v5871 = vunpack.c.h.b16 %v5376
        %v5872 = vunpack.c.l.b16 %v5377
        %v5873 = vunpack.c.h.b16 %v5377
        %v5874 = vunpack.c.l.b16 %v5378
        %v5875 = vunpack.c.h.b16 %v5378
        %v5876 = vunpack.c.l.b16 %v5379
        %v5877 = vunpack.c.h.b16 %v5379
        %v5878 = vunpack.c.l.b16 %v5380
        %v5879 = vunpack.c.h.b16 %v5380
        %v5880 = vunpack.c.l.b16 %v5381
        %v5881 = vunpack.c.h.b16 %v5381
        %v5882 = vunpack.c.l.b16 %v5382
        %v5883 = vunpack.c.h.b16 %v5382
        %v5884 = vunpack.c.l.b16 %v5383
        %v5885 = vunpack.c.h.b16 %v5383
        %v5886 = vunpack.c.l.b16 %v5384
        %v5887 = vunpack.c.h.b16 %v5384
        %v5888 = vunpack.c.l.b16 %v5385
        %v5889 = vunpack.c.h.b16 %v5385
        %v5890 = vunpack.c.l.b16 %v5386
        %v5891 = vunpack.c.h.b16 %v5386
        %v5892 = vunpack.c.l.b16 %v5387
        %v5893 = vunpack.c.h.b16 %v5387
        %v5894 = vunpack.c.l.b16 %v5388
        %v5895 = vunpack.c.h.b16 %v5388
        %v5896 = vunpack.c.l.b16 %v5389
        %v5897 = vunpack.c.h.b16 %v5389
        %v5898 = vunpack.c.l.b16 %v5390
        %v5899 = vunpack.c.h.b16 %v5390
        %v5900 = vunpack.c.l.b16 %v5391
        %v5901 = vunpack.c.h.b16 %v5391
        %v5902 = vunpack.c.l.b16 %v5392
        %v5903 = vunpack.c.h.b16 %v5392
        %v5904 = vunpack.c.l.b16 %v5393
        %v5905 = vunpack.c.h.b16 %v5393
        %v5906 = vunpack.c.l.b16 %v5394
        %v5907 = vunpack.c.h.b16 %v5394
        %v5908 = vunpack.c.l.b16 %v5395
        %v5909 = vunpack.c.h.b16 %v5395
        %v5910 = vunpack.c.l.b16 %v5396
        %v5911 = vunpack.c.h.b16 %v5396
        %v5912 = vunpack.c.l.b16 %v5397
        %v5913 = vunpack.c.h.b16 %v5397
        %v5914 = vunpack.c.l.b16 %v5398
        %v5915 = vunpack.c.h.b16 %v5398
        %v5916 = vunpack.c.l.b16 %v5399
        %v5917 = vunpack.c.h.b16 %v5399
        %v5918 = vunpack.c.l.b16 %v5400
        %v5919 = vunpack.c.h.b16 %v5400
        %v5920 = vunpack.c.l.b16 %v5401
        %v5921 = vunpack.c.h.b16 %v5401
        %v5922 = vunpack.c.l.b16 %v5402
        %v5923 = vunpack.c.h.b16 %v5402
        %v5924 = vunpack.c.l.b16 %v5403
        %v5925 = vunpack.c.h.b16 %v5403
        %v5926 = vunpack.c.l.b16 %v5404
        %v5927 = vunpack.c.h.b16 %v5404
        %v5928 = vunpack.c.l.b16 %v5405
        %v5929 = vunpack.c.h.b16 %v5405
        %v5930 = vunpack.c.l.b16 %v5406
        %v5931 = vunpack.c.h.b16 %v5406
        %v5932 = vunpack.c.l.b16 %v5407
        %v5933 = vunpack.c.h.b16 %v5407
        %v5934 = vunpack.c.l.b16 %v5408
        %v5935 = vunpack.c.h.b16 %v5408
        %v5936 = vunpack.c.l.b16 %v5409
        %v5937 = vunpack.c.h.b16 %v5409
        %v5938 = vunpack.c.l.b16 %v5410
        %v5939 = vunpack.c.h.b16 %v5410
        %v5940 = vunpack.c.l.b16 %v5411
        %v5941 = vunpack.c.h.b16 %v5411
        %v5942 = vunpack.c.l.b16 %v5412
        %v5943 = vunpack.c.h.b16 %v5412
        %v5944 = vunpack.c.l.b16 %v5413
        %v5945 = vunpack.c.h.b16 %v5413
        %v5946 = vunpack.c.l.b16 %v5414
        %v5947 = vunpack.c.h.b16 %v5414
        %v5948 = vunpack.c.l.b16 %v5415
        %v5949 = vunpack.c.h.b16 %v5415
        %v5950 = vunpack.c.l.b16 %v5416
        %v5951 = vunpack.c.h.b16 %v5416
        %v5952 = vunpack.c.l.b16 %v5417
        %v5953 = vunpack.c.h.b16 %v5417
        %v5954 = vunpack.c.l.b16 %v5418
        %v5955 = vunpack.c.h.b16 %v5418
        %v5956 = vunpack.c.l.b16 %v5419
        %v5957 = vunpack.c.h.b16 %v5419
        %v5958 = vunpack.c.l.b16 %v5420
        %v5959 = vunpack.c.h.b16 %v5420
        %v5960 = vunpack.c.l.b16 %v5421
        %v5961 = vunpack.c.h.b16 %v5421
        %v5962 = vunpack.c.l.b16 %v5422
        %v5963 = vunpack.c.h.b16 %v5422
        %v5964 = vunpack.c.l.b16 %v5423
        %v5965 = vunpack.c.h.b16 %v5423
        %v5966 = vunpack.c.l.b16 %v5424
        %v5967 = vunpack.c.h.b16 %v5424
        %v5968 = vunpack.c.l.b16 %v5425
        %v5969 = vunpack.c.h.b16 %v5425
        %v5970 = vunpack.c.l.b16 %v5426
        %v5971 = vunpack.c.h.b16 %v5426
        %v5972 = vunpack.c.l.b16 %v5427
        %v5973 = vunpack.c.h.b16 %v5427
        %v5974 = vunpack.c.l.b16 %v5428
        %v5975 = vunpack.c.h.b16 %v5428
        %v5976 = vunpack.c.l.b16 %v5429
        %v5977 = vunpack.c.h.b16 %v5429
        %v5978 = vunpack.c.l.b16 %v5430
        %v5979 = vunpack.c.h.b16 %v5430
        %v5980 = vunpack.c.l.b16 %v5431
        %v5981 = vunpack.c.h.b16 %v5431
        %v5982 = vunpack.c.l.b16 %v5432
        %v5983 = vunpack.c.h.b16 %v5432
        %v5984 = vunpack.c.l.b16 %v5433
        %v5985 = vunpack.c.h.b16 %v5433
        %v5986 = vunpack.c.l.b16 %v5434
        %v5987 = vunpack.c.h.b16 %v5434
        %v5988 = vunpack.c.l.b16 %v5435
        %v5989 = vunpack.c.h.b16 %v5435
        %v5990 = vunpack.c.l.b16 %v5436
        %v5991 = vunpack.c.h.b16 %v5436
        %v5992 = vunpack.c.l.b16 %v5437
        %v5993 = vunpack.c.h.b16 %v5437
        %v5994 = vunpack.c.l.b16 %v5438
        %v5995 = vunpack.c.h.b16 %v5438
        %v5996 = vunpack.c.l.b16 %v5439
        %v5997 = vunpack.c.h.b16 %v5439
        %v5998 = vunpack.c.l.b16 %v5440
        %v5999 = vunpack.c.h.b16 %v5440
        %v6000 = vunpack.c.l.b16 %v5441
        %v6001 = vunpack.c.h.b16 %v5441
        %v6002 = vunpack.c.l.b16 %v5442
        %v6003 = vunpack.c.h.b16 %v5442
        %v6004 = vunpack.c.l.b16 %v5443
        %v6005 = vunpack.c.h.b16 %v5443
        %v6006 = vunpack.c.l.b16 %v5444
        %v6007 = vunpack.c.h.b16 %v5444
        %v6008 = vunpack.c.l.b16 %v5445
        %v6009 = vunpack.c.h.b16 %v5445
        %v6010 = vunpack.c.l.b16 %v5446
        %v6011 = vunpack.c.h.b16 %v5446
        %v6012 = vunpack.c.l.b16 %v5447
        %v6013 = vunpack.c.h.b16 %v5447
        %v6014 = vunpack.c.l.b16 %v5448
        %v6015 = vunpack.c.h.b16 %v5448
        %v6016 = vunpack.c.l.b16 %v5449
        %v6017 = vunpack.c.h.b16 %v5449
        %v6018 = vunpack.c.l.b16 %v5450
        %v6019 = vunpack.c.h.b16 %v5450
        %v6020 = vunpack.c.l.b16 %v5451
        %v6021 = vunpack.c.h.b16 %v5451
        %v6022 = vunpack.c.l.b16 %v5452
        %v6023 = vunpack.c.h.b16 %v5452
        %v6024 = vunpack.c.l.b16 %v5453
        %v6025 = vunpack.c.h.b16 %v5453
        %v6026 = vunpack.c.l.b16 %v5454
        %v6027 = vunpack.c.h.b16 %v5454
        %v6028 = vunpack.c.l.b16 %v5455
        %v6029 = vunpack.c.h.b16 %v5455
        %v6030 = vunpack.c.l.b16 %v5456
        %v6031 = vunpack.c.h.b16 %v5456
        %v6032 = vunpack.c.l.b16 %v5457
        %v6033 = vunpack.c.h.b16 %v5457
        %v6034 = vunpack.c.l.b16 %v5458
        %v6035 = vunpack.c.h.b16 %v5458
        %v6036 = vunpack.c.l.b16 %v5459
        %v6037 = vunpack.c.h.b16 %v5459
        %v6038 = vunpack.c.l.b16 %v5460
        %v6039 = vunpack.c.h.b16 %v5460
        %v6040 = vunpack.c.l.b16 %v5461
        %v6041 = vunpack.c.h.b16 %v5461
        %v6042 = vunpack.c.l.b16 %v5462
        %v6043 = vunpack.c.h.b16 %v5462
        %v6044 = vunpack.c.l.b16 %v5463
        %v6045 = vunpack.c.h.b16 %v5463
        %v6046 = vunpack.c.l.b16 %v5464
        %v6047 = vunpack.c.h.b16 %v5464
        %v6048 = vunpack.c.l.b16 %v5465
        %v6049 = vunpack.c.h.b16 %v5465
        %v6050 = vunpack.c.l.b16 %v5466
        %v6051 = vunpack.c.h.b16 %v5466
        %v6052 = vunpack.c.l.b16 %v5467
        %v6053 = vunpack.c.h.b16 %v5467
        %v6054 = vunpack.c.l.b16 %v5468
        %v6055 = vunpack.c.h.b16 %v5468
        %v6056 = vunpack.c.l.b16 %v5469
        %v6057 = vunpack.c.h.b16 %v5469
        %v6058 = vunpack.c.l.b16 %v5470
        %v6059 = vunpack.c.h.b16 %v5470
        %v6060 = vunpack.c.l.b16 %v5471
        %v6061 = vunpack.c.h.b16 %v5471
        %v6062 = vunpack.c.l.b16 %v5472
        %v6063 = vunpack.c.h.b16 %v5472
        %v6064 = vunpack.c.l.b16 %v5473
        %v6065 = vunpack.c.h.b16 %v5473
        %v6066 = vunpack.c.l.b16 %v5474
        %v6067 = vunpack.c.h.b16 %v5474
        %v6068 = vpack.c.b16 %v5716, %v5684
        %v6069 = vpack.c.b16 %v5717, %v5685
        %v6070 = vpack.c.b16 %v5718, %v5686
        %v6071 = vpack.c.b16 %v5719, %v5687
        %v6072 = vpack.c.b16 %v5720, %v5688
        %v6073 = vpack.c.b16 %v5721, %v5689
        %v6074 = vpack.c.b16 %v5722, %v5690
        %v6075 = vpack.c.b16 %v5723, %v5691
        %v6076 = vpack.c.b16 %v5724, %v5692
        %v6077 = vpack.c.b16 %v5725, %v5693
        %v6078 = vpack.c.b16 %v5726, %v5694
        %v6079 = vpack.c.b16 %v5727, %v5695
        %v6080 = vpack.c.b16 %v5728, %v5696
        %v6081 = vpack.c.b16 %v5729, %v5697
        %v6082 = vpack.c.b16 %v5730, %v5698
        %v6083 = vpack.c.b16 %v5731, %v5699
        %v6084 = vpack.c.b16 %v5732, %v5700
        %v6085 = vpack.c.b16 %v5733, %v5701
        %v6086 = vpack.c.b16 %v5734, %v5702
        %v6087 = vpack.c.b16 %v5735, %v5703
        %v6088 = vpack.c.b16 %v5736, %v5704
        %v6089 = vpack.c.b16 %v5737, %v5705
        %v6090 = vpack.c.b16 %v5738, %v5706
        %v6091 = vpack.c.b16 %v5739, %v5707
        %v6092 = vpack.c.b16 %v5740, %v5708
        %v6093 = vpack.c.b16 %v5741, %v5709
        %v6094 = vpack.c.b16 %v5742, %v5710
        %v6095 = vpack.c.b16 %v5743, %v5711
        %v6096 = vpack.c.b16 %v5744, %v5712
        %v6097 = vpack.c.b16 %v5745, %v5713
        %v6098 = vpack.c.b16 %v5746, %v5714
        %v6099 = vpack.c.b16 %v5747, %v5715
        %v6100 = vpack.c.b16 %v5780, %v5748
        %v6101 = vpack.c.b16 %v5781, %v5749
        %v6102 = vpack.c.b16 %v5782, %v5750
        %v6103 = vpack.c.b16 %v5783, %v5751
        %v6104 = vpack.c.b16 %v5784, %v5752
        %v6105 = vpack.c.b16 %v5785, %v5753
        %v6106 = vpack.c.b16 %v5786, %v5754
        %v6107 = vpack.c.b16 %v5787, %v5755
        %v6108 = vpack.c.b16 %v5788, %v5756
        %v6109 = vpack.c.b16 %v5789, %v5757
        %v6110 = vpack.c.b16 %v5790, %v5758
        %v6111 = vpack.c.b16 %v5791, %v5759
        %v6112 = vpack.c.b16 %v5792, %v5760
        %v6113 = vpack.c.b16 %v5793, %v5761
        %v6114 = vpack.c.b16 %v5794, %v5762
        %v6115 = vpack.c.b16 %v5795, %v5763
        %v6116 = vpack.c.b16 %v5796, %v5764
        %v6117 = vpack.c.b16 %v5797, %v5765
        %v6118 = vpack.c.b16 %v5798, %v5766
        %v6119 = vpack.c.b16 %v5799, %v5767
        %v6120 = vpack.c.b16 %v5800, %v5768
        %v6121 = vpack.c.b16 %v5801, %v5769
        %v6122 = vpack.c.b16 %v5802, %v5770
        %v6123 = vpack.c.b16 %v5803, %v5771
        %v6124 = vpack.c.b16 %v5804, %v5772
        %v6125 = vpack.c.b16 %v5805, %v5773
        %v6126 = vpack.c.b16 %v5806, %v5774
        %v6127 = vpack.c.b16 %v5807, %v5775
        %v6128 = vpack.c.b16 %v5808, %v5776
        %v6129 = vpack.c.b16 %v5809, %v5777
        %v6130 = vpack.c.b16 %v5810, %v5778
        %v6131 = vpack.c.b16 %v5811, %v5779
        %v6132 = vpack.c.b16 %v5844, %v5812
        %v6133 = vpack.c.b16 %v5845, %v5813
        %v6134 = vpack.c.b16 %v5846, %v5814
        %v6135 = vpack.c.b16 %v5847, %v5815
        %v6136 = vpack.c.b16 %v5848, %v5816
        %v6137 = vpack.c.b16 %v5849, %v5817
        %v6138 = vpack.c.b16 %v5850, %v5818
        %v6139 = vpack.c.b16 %v5851, %v5819
        %v6140 = vpack.c.b16 %v5852, %v5820
        %v6141 = vpack.c.b16 %v5853, %v5821
        %v6142 = vpack.c.b16 %v5854, %v5822
        %v6143 = vpack.c.b16 %v5855, %v5823
        %v6144 = vpack.c.b16 %v5856, %v5824
        %v6145 = vpack.c.b16 %v5857, %v5825
        %v6146 = vpack.c.b16 %v5858, %v5826
        %v6147 = vpack.c.b16 %v5859, %v5827
        %v6148 = vpack.c.b16 %v5860, %v5828
        %v6149 = vpack.c.b16 %v5861, %v5829
        %v6150 = vpack.c.b16 %v5862, %v5830
        %v6151 = vpack.c.b16 %v5863, %v5831
        %v6152 = vpack.c.b16 %v5864, %v5832
        %v6153 = vpack.c.b16 %v5865, %v5833
        %v6154 = vpack.c.b16 %v5866, %v5834
        %v6155 = vpack.c.b16 %v5867, %v5835
        %v6156 = vpack.c.b16 %v5868, %v5836
        %v6157 = vpack.c.b16 %v5869, %v5837
        %v6158 = vpack.c.b16 %v5870, %v5838
        %v6159 = vpack.c.b16 %v5871, %v5839
        %v6160 = vpack.c.b16 %v5872, %v5840
        %v6161 = vpack.c.b16 %v5873, %v5841
        %v6162 = vpack.c.b16 %v5874, %v5842
        %v6163 = vpack.c.b16 %v5875, %v5843
        %v6164 = vpack.c.b16 %v5908, %v5876
        %v6165 = vpack.c.b16 %v5909, %v5877
        %v6166 = vpack.c.b16 %v5910, %v5878
        %v6167 = vpack.c.b16 %v5911, %v5879
        %v6168 = vpack.c.b16 %v5912, %v5880
        %v6169 = vpack.c.b16 %v5913, %v5881
        %v6170 = vpack.c.b16 %v5914, %v5882
        %v6171 = vpack.c.b16 %v5915, %v5883
        %v6172 = vpack.c.b16 %v5916, %v5884
        %v6173 = vpack.c.b16 %v5917, %v5885
        %v6174 = vpack.c.b16 %v5918, %v5886
        %v6175 = vpack.c.b16 %v5919, %v5887
        %v6176 = vpack.c.b16 %v5920, %v5888
        %v6177 = vpack.c.b16 %v5921, %v5889
        %v6178 = vpack.c.b16 %v5922, %v5890
        %v6179 = vpack.c.b16 %v5923, %v5891
        %v6180 = vpack.c.b16 %v5924, %v5892
        %v6181 = vpack.c.b16 %v5925, %v5893
        %v6182 = vpack.c.b16 %v5926, %v5894
        %v6183 = vpack.c.b16 %v5927, %v5895
        %v6184 = vpack.c.b16 %v5928, %v5896
        %v6185 = vpack.c.b16 %v5929, %v5897
        %v6186 = vpack.c.b16 %v5930, %v5898
        %v6187 = vpack.c.b16 %v5931, %v5899
        %v6188 = vpack.c.b16 %v5932, %v5900
        %v6189 = vpack.c.b16 %v5933, %v5901
        %v6190 = vpack.c.b16 %v5934, %v5902
        %v6191 = vpack.c.b16 %v5935, %v5903
        %v6192 = vpack.c.b16 %v5936, %v5904
        %v6193 = vpack.c.b16 %v5937, %v5905
        %v6194 = vpack.c.b16 %v5938, %v5906
        %v6195 = vpack.c.b16 %v5939, %v5907
        %v6196 = vpack.c.b16 %v5972, %v5940
        %v6197 = vpack.c.b16 %v5973, %v5941
        %v6198 = vpack.c.b16 %v5974, %v5942
        %v6199 = vpack.c.b16 %v5975, %v5943
        %v6200 = vpack.c.b16 %v5976, %v5944
        %v6201 = vpack.c.b16 %v5977, %v5945
        %v6202 = vpack.c.b16 %v5978, %v5946
        %v6203 = vpack.c.b16 %v5979, %v5947
        %v6204 = vpack.c.b16 %v5980, %v5948
        %v6205 = vpack.c.b16 %v5981, %v5949
        %v6206 = vpack.c.b16 %v5982, %v5950
        %v6207 = vpack.c.b16 %v5983, %v5951
        %v6208 = vpack.c.b16 %v5984, %v5952
        %v6209 = vpack.c.b16 %v5985, %v5953
        %v6210 = vpack.c.b16 %v5986, %v5954
        %v6211 = vpack.c.b16 %v5987, %v5955
        %v6212 = vpack.c.b16 %v5988, %v5956
        %v6213 = vpack.c.b16 %v5989, %v5957
        %v6214 = vpack.c.b16 %v5990, %v5958
        %v6215 = vpack.c.b16 %v5991, %v5959
        %v6216 = vpack.c.b16 %v5992, %v5960
        %v6217 = vpack.c.b16 %v5993, %v5961
        %v6218 = vpack.c.b16 %v5994, %v5962
        %v6219 = vpack.c.b16 %v5995, %v5963
        %v6220 = vpack.c.b16 %v5996, %v5964
        %v6221 = vpack.c.b16 %v5997, %v5965
        %v6222 = vpack.c.b16 %v5998, %v5966
        %v6223 = vpack.c.b16 %v5999, %v5967
        %v6224 = vpack.c.b16 %v6000, %v5968
        %v6225 = vpack.c.b16 %v6001, %v5969
        %v6226 = vpack.c.b16 %v6002, %v5970
        %v6227 = vpack.c.b16 %v6003, %v5971
        %v6228 = vpack.c.b16 %v6036, %v6004
        %v6229 = vpack.c.b16 %v6037, %v6005
        %v6230 = vpack.c.b16 %v6038, %v6006
        %v6231 = vpack.c.b16 %v6039, %v6007
        %v6232 = vpack.c.b16 %v6040, %v6008
        %v6233 = vpack.c.b16 %v6041, %v6009
        %v6234 = vpack.c.b16 %v6042, %v6010
        %v6235 = vpack.c.b16 %v6043, %v6011
        %v6236 = vpack.c.b16 %v6044, %v6012
        %v6237 = vpack.c.b16 %v6045, %v6013
        %v6238 = vpack.c.b16 %v6046, %v6014
        %v6239 = vpack.c.b16 %v6047, %v6015
        %v6240 = vpack.c.b16 %v6048, %v6016
        %v6241 = vpack.c.b16 %v6049, %v6017
        %v6242 = vpack.c.b16 %v6050, %v6018
        %v6243 = vpack.c.b16 %v6051, %v6019
        %v6244 = vpack.c.b16 %v6052, %v6020
        %v6245 = vpack.c.b16 %v6053, %v6021
        %v6246 = vpack.c.b16 %v6054, %v6022
        %v6247 = vpack.c.b16 %v6055, %v6023
        %v6248 = vpack.c.b16 %v6056, %v6024
        %v6249 = vpack.c.b16 %v6057, %v6025
        %v6250 = vpack.c.b16 %v6058, %v6026
        %v6251 = vpack.c.b16 %v6059, %v6027
        %v6252 = vpack.c.b16 %v6060, %v6028
        %v6253 = vpack.c.b16 %v6061, %v6029
        %v6254 = vpack.c.b16 %v6062, %v6030
        %v6255 = vpack.c.b16 %v6063, %v6031
        %v6256 = vpack.c.b16 %v6064, %v6032
        %v6257 = vpack.c.b16 %v6065, %v6033
        %v6258 = vpack.c.b16 %v6066, %v6034
        %v6259 = vpack.c.b16 %v6067, %v6035
        %vm6420 = vcmask 736256
        %v6422 = vsel %vm6420, %v5491, 0
        %v6425 = vsel %vm2374, %v6228, 0
        %v6428 = vsel %vm2374, %v6229, 0
        %v6431 = vsel %vm2374, %v6230, 0
        %v6434 = vsel %vm2374, %v6231, 0
        %v6437 = vsel %vm2374, %v6232, 0
        %v6440 = vsel %vm2374, %v6233, 0
        %v6443 = vsel %vm2374, %v6234, 0
        %v6446 = vsel %vm2374, %v6235, 0
        %v6449 = vsel %vm2374, %v6236, 0
        %v6452 = vsel %vm2374, %v6237, 0
        %v6455 = vsel %vm2374, %v6238, 0
        %v6458 = vsel %vm2374, %v6239, 0
        %v6461 = vsel %vm2374, %v6240, 0
        %v6464 = vsel %vm2374, %v6241, 0
        %v6467 = vsel %vm2374, %v6242, 0
        %v6470 = vsel %vm2374, %v6243, 0
        %v6473 = vsel %vm2374, %v6244, 0
        %v6476 = vsel %vm2374, %v6245, 0
        %v6479 = vsel %vm2374, %v6246, 0
        %v6482 = vsel %vm2374, %v6247, 0
        %v6485 = vsel %vm2374, %v6248, 0
        %v6488 = vsel %vm2374, %v6249, 0
        %v6491 = vsel %vm2374, %v6250, 0
        %v6494 = vsel %vm2374, %v6251, 0
        %v6497 = vsel %vm2374, %v6252, 0
        %v6500 = vsel %vm2374, %v6253, 0
        %v6503 = vsel %vm2374, %v6254, 0
        %v6506 = vsel %vm2374, %v6255, 0
        %v6509 = vsel %vm2374, %v6256, 0
        %v6512 = vsel %vm2374, %v6257, 0
        %v6515 = vsel %vm2374, %v6258, 0
        %v6518 = vsel %vm2374, %v6259, 0
        %6520 = vmatpush.bf16.msra.mxu0 0
        %6521 = vmatpush.bf16.msra.mxu0 0
        %6522 = vmatpush.bf16.msra.mxu0 %v6425
        %6523 = vmatpush.bf16.msra.mxu0 %v6196
        %6524 = vmatpush.bf16.msra.mxu0 %v6164
        %6525 = vmatpush.bf16.msra.mxu0 %v6132
        %6526 = vmatpush.bf16.msra.mxu0 %v6100
        %6527 = vmatpush.bf16.msra.mxu0 %v6068
        %6528 = vmatmul.bf16.gmra.mxu0 %v6422
        %v6529 = vpop.f32.mrf.mxu0
        %v6530 = vadd.f32 %v5480, %v6529
        %v6531 = vpop.f32.mrf.mxu0
        %v6532 = vadd.f32 %v5485, %v6531
        %6533 = vdwg.mxu0
        %6534 = vmatpush.bf16.msra.mxu0 0
        %6535 = vmatpush.bf16.msra.mxu0 0
        %6536 = vmatpush.bf16.msra.mxu0 %v6428
        %6537 = vmatpush.bf16.msra.mxu0 %v6197
        %6538 = vmatpush.bf16.msra.mxu0 %v6165
        %6539 = vmatpush.bf16.msra.mxu0 %v6133
        %6540 = vmatpush.bf16.msra.mxu0 %v6101
        %6541 = vmatpush.bf16.msra.mxu0 %v6069
        %6542 = vmatmul.bf16.gmra.mxu0 %v6422
        %v6543 = vpop.f32.mrf.mxu0
        %v6544 = vadd.f32 %v5480, %v6543
        %v6545 = vpop.f32.mrf.mxu0
        %v6546 = vadd.f32 %v5485, %v6545
        %6547 = vdwg.mxu0
        %6548 = vmatpush.bf16.msra.mxu0 0
        %6549 = vmatpush.bf16.msra.mxu0 0
        %6550 = vmatpush.bf16.msra.mxu0 %v6431
        %6551 = vmatpush.bf16.msra.mxu0 %v6198
        %6552 = vmatpush.bf16.msra.mxu0 %v6166
        %6553 = vmatpush.bf16.msra.mxu0 %v6134
        %6554 = vmatpush.bf16.msra.mxu0 %v6102
        %6555 = vmatpush.bf16.msra.mxu0 %v6070
        %6556 = vmatmul.bf16.gmra.mxu0 %v6422
        %v6557 = vpop.f32.mrf.mxu0
        %v6558 = vadd.f32 %v5480, %v6557
        %v6559 = vpop.f32.mrf.mxu0
        %v6560 = vadd.f32 %v5485, %v6559
        %6561 = vdwg.mxu0
        %6562 = vmatpush.bf16.msra.mxu0 0
        %6563 = vmatpush.bf16.msra.mxu0 0
        %6564 = vmatpush.bf16.msra.mxu0 %v6434
        %6565 = vmatpush.bf16.msra.mxu0 %v6199
        %6566 = vmatpush.bf16.msra.mxu0 %v6167
        %6567 = vmatpush.bf16.msra.mxu0 %v6135
        %6568 = vmatpush.bf16.msra.mxu0 %v6103
        %6569 = vmatpush.bf16.msra.mxu0 %v6071
        %6570 = vmatmul.bf16.gmra.mxu0 %v6422
        %v6571 = vpop.f32.mrf.mxu0
        %v6572 = vadd.f32 %v5480, %v6571
        %v6573 = vpop.f32.mrf.mxu0
        %v6574 = vadd.f32 %v5485, %v6573
        %6575 = vdwg.mxu0
        %6576 = vmatpush.bf16.msra.mxu0 0
        %6577 = vmatpush.bf16.msra.mxu0 0
        %6578 = vmatpush.bf16.msra.mxu0 %v6437
        %6579 = vmatpush.bf16.msra.mxu0 %v6200
        %6580 = vmatpush.bf16.msra.mxu0 %v6168
        %6581 = vmatpush.bf16.msra.mxu0 %v6136
        %6582 = vmatpush.bf16.msra.mxu0 %v6104
        %6583 = vmatpush.bf16.msra.mxu0 %v6072
        %6584 = vmatmul.bf16.gmra.mxu0 %v6422
        %v6585 = vpop.f32.mrf.mxu0
        %v6586 = vadd.f32 %v5480, %v6585
        %v6587 = vpop.f32.mrf.mxu0
        %v6588 = vadd.f32 %v5485, %v6587
        %6589 = vdwg.mxu0
        %6590 = vmatpush.bf16.msra.mxu0 0
        %6591 = vmatpush.bf16.msra.mxu0 0
        %6592 = vmatpush.bf16.msra.mxu0 %v6440
        %6593 = vmatpush.bf16.msra.mxu0 %v6201
        %6594 = vmatpush.bf16.msra.mxu0 %v6169
        %6595 = vmatpush.bf16.msra.mxu0 %v6137
        %6596 = vmatpush.bf16.msra.mxu0 %v6105
        %6597 = vmatpush.bf16.msra.mxu0 %v6073
        %6598 = vmatmul.bf16.gmra.mxu0 %v6422
        %v6599 = vpop.f32.mrf.mxu0
        %v6600 = vadd.f32 %v5480, %v6599
        %v6601 = vpop.f32.mrf.mxu0
        %v6602 = vadd.f32 %v5485, %v6601
        %6603 = vdwg.mxu0
        %6604 = vmatpush.bf16.msra.mxu0 0
        %6605 = vmatpush.bf16.msra.mxu0 0
        %6606 = vmatpush.bf16.msra.mxu0 %v6443
        %6607 = vmatpush.bf16.msra.mxu0 %v6202
        %6608 = vmatpush.bf16.msra.mxu0 %v6170
        %6609 = vmatpush.bf16.msra.mxu0 %v6138
        %6610 = vmatpush.bf16.msra.mxu0 %v6106
        %6611 = vmatpush.bf16.msra.mxu0 %v6074
        %6612 = vmatmul.bf16.gmra.mxu0 %v6422
        %v6613 = vpop.f32.mrf.mxu0
        %v6614 = vadd.f32 %v5480, %v6613
        %v6615 = vpop.f32.mrf.mxu0
        %v6616 = vadd.f32 %v5485, %v6615
        %6617 = vdwg.mxu0
        %6618 = vmatpush.bf16.msra.mxu0 0
        %6619 = vmatpush.bf16.msra.mxu0 0
        %6620 = vmatpush.bf16.msra.mxu0 %v6446
        %6621 = vmatpush.bf16.msra.mxu0 %v6203
        %6622 = vmatpush.bf16.msra.mxu0 %v6171
        %6623 = vmatpush.bf16.msra.mxu0 %v6139
        %6624 = vmatpush.bf16.msra.mxu0 %v6107
        %6625 = vmatpush.bf16.msra.mxu0 %v6075
        %6626 = vmatmul.bf16.gmra.mxu0 %v6422
        %v6627 = vpop.f32.mrf.mxu0
        %v6628 = vadd.f32 %v5480, %v6627
        %v6629 = vpop.f32.mrf.mxu0
        %v6630 = vadd.f32 %v5485, %v6629
        %6631 = vdwg.mxu0
        %6632 = vmatpush.bf16.msra.mxu0 0
        %6633 = vmatpush.bf16.msra.mxu0 0
        %6634 = vmatpush.bf16.msra.mxu0 %v6449
        %6635 = vmatpush.bf16.msra.mxu0 %v6204
        %6636 = vmatpush.bf16.msra.mxu0 %v6172
        %6637 = vmatpush.bf16.msra.mxu0 %v6140
        %6638 = vmatpush.bf16.msra.mxu0 %v6108
        %6639 = vmatpush.bf16.msra.mxu0 %v6076
        %6640 = vmatmul.bf16.gmra.mxu0 %v6422
        %v6641 = vpop.f32.mrf.mxu0
        %v6642 = vadd.f32 %v5480, %v6641
        %v6643 = vpop.f32.mrf.mxu0
        %v6644 = vadd.f32 %v5485, %v6643
        %6645 = vdwg.mxu0
        %6646 = vmatpush.bf16.msra.mxu0 0
        %6647 = vmatpush.bf16.msra.mxu0 0
        %6648 = vmatpush.bf16.msra.mxu0 %v6452
        %6649 = vmatpush.bf16.msra.mxu0 %v6205
        %6650 = vmatpush.bf16.msra.mxu0 %v6173
        %6651 = vmatpush.bf16.msra.mxu0 %v6141
        %6652 = vmatpush.bf16.msra.mxu0 %v6109
        %6653 = vmatpush.bf16.msra.mxu0 %v6077
        %6654 = vmatmul.bf16.gmra.mxu0 %v6422
        %v6655 = vpop.f32.mrf.mxu0
        %v6656 = vadd.f32 %v5480, %v6655
        %v6657 = vpop.f32.mrf.mxu0
        %v6658 = vadd.f32 %v5485, %v6657
        %6659 = vdwg.mxu0
        %6660 = vmatpush.bf16.msra.mxu0 0
        %6661 = vmatpush.bf16.msra.mxu0 0
        %6662 = vmatpush.bf16.msra.mxu0 %v6455
        %6663 = vmatpush.bf16.msra.mxu0 %v6206
        %6664 = vmatpush.bf16.msra.mxu0 %v6174
        %6665 = vmatpush.bf16.msra.mxu0 %v6142
        %6666 = vmatpush.bf16.msra.mxu0 %v6110
        %6667 = vmatpush.bf16.msra.mxu0 %v6078
        %6668 = vmatmul.bf16.gmra.mxu0 %v6422
        %v6669 = vpop.f32.mrf.mxu0
        %v6670 = vadd.f32 %v5480, %v6669
        %v6671 = vpop.f32.mrf.mxu0
        %v6672 = vadd.f32 %v5485, %v6671
        %6673 = vdwg.mxu0
        %6674 = vmatpush.bf16.msra.mxu0 0
        %6675 = vmatpush.bf16.msra.mxu0 0
        %6676 = vmatpush.bf16.msra.mxu0 %v6458
        %6677 = vmatpush.bf16.msra.mxu0 %v6207
        %6678 = vmatpush.bf16.msra.mxu0 %v6175
        %6679 = vmatpush.bf16.msra.mxu0 %v6143
        %6680 = vmatpush.bf16.msra.mxu0 %v6111
        %6681 = vmatpush.bf16.msra.mxu0 %v6079
        %6682 = vmatmul.bf16.gmra.mxu0 %v6422
        %v6683 = vpop.f32.mrf.mxu0
        %v6684 = vadd.f32 %v5480, %v6683
        %v6685 = vpop.f32.mrf.mxu0
        %v6686 = vadd.f32 %v5485, %v6685
        %6687 = vdwg.mxu0
        %6688 = vmatpush.bf16.msra.mxu0 0
        %6689 = vmatpush.bf16.msra.mxu0 0
        %6690 = vmatpush.bf16.msra.mxu0 %v6461
        %6691 = vmatpush.bf16.msra.mxu0 %v6208
        %6692 = vmatpush.bf16.msra.mxu0 %v6176
        %6693 = vmatpush.bf16.msra.mxu0 %v6144
        %6694 = vmatpush.bf16.msra.mxu0 %v6112
        %6695 = vmatpush.bf16.msra.mxu0 %v6080
        %6696 = vmatmul.bf16.gmra.mxu0 %v6422
        %v6697 = vpop.f32.mrf.mxu0
        %v6698 = vadd.f32 %v5480, %v6697
        %v6699 = vpop.f32.mrf.mxu0
        %v6700 = vadd.f32 %v5485, %v6699
        %6701 = vdwg.mxu0
        %6702 = vmatpush.bf16.msra.mxu0 0
        %6703 = vmatpush.bf16.msra.mxu0 0
        %6704 = vmatpush.bf16.msra.mxu0 %v6464
        %6705 = vmatpush.bf16.msra.mxu0 %v6209
        %6706 = vmatpush.bf16.msra.mxu0 %v6177
        %6707 = vmatpush.bf16.msra.mxu0 %v6145
        %6708 = vmatpush.bf16.msra.mxu0 %v6113
        %6709 = vmatpush.bf16.msra.mxu0 %v6081
        %6710 = vmatmul.bf16.gmra.mxu0 %v6422
        %v6711 = vpop.f32.mrf.mxu0
        %v6712 = vadd.f32 %v5480, %v6711
        %v6713 = vpop.f32.mrf.mxu0
        %v6714 = vadd.f32 %v5485, %v6713
        %6715 = vdwg.mxu0
        %6716 = vmatpush.bf16.msra.mxu0 0
        %6717 = vmatpush.bf16.msra.mxu0 0
        %6718 = vmatpush.bf16.msra.mxu0 %v6467
        %6719 = vmatpush.bf16.msra.mxu0 %v6210
        %6720 = vmatpush.bf16.msra.mxu0 %v6178
        %6721 = vmatpush.bf16.msra.mxu0 %v6146
        %6722 = vmatpush.bf16.msra.mxu0 %v6114
        %6723 = vmatpush.bf16.msra.mxu0 %v6082
        %6724 = vmatmul.bf16.gmra.mxu0 %v6422
        %v6725 = vpop.f32.mrf.mxu0
        %v6726 = vadd.f32 %v5480, %v6725
        %v6727 = vpop.f32.mrf.mxu0
        %v6728 = vadd.f32 %v5485, %v6727
        %6729 = vdwg.mxu0
        %6730 = vmatpush.bf16.msra.mxu0 0
        %6731 = vmatpush.bf16.msra.mxu0 0
        %6732 = vmatpush.bf16.msra.mxu0 %v6470
        %6733 = vmatpush.bf16.msra.mxu0 %v6211
        %6734 = vmatpush.bf16.msra.mxu0 %v6179
        %6735 = vmatpush.bf16.msra.mxu0 %v6147
        %6736 = vmatpush.bf16.msra.mxu0 %v6115
        %6737 = vmatpush.bf16.msra.mxu0 %v6083
        %6738 = vmatmul.bf16.gmra.mxu0 %v6422
        %v6739 = vpop.f32.mrf.mxu0
        %v6740 = vadd.f32 %v5480, %v6739
        %v6741 = vpop.f32.mrf.mxu0
        %v6742 = vadd.f32 %v5485, %v6741
        %6743 = vdwg.mxu0
        %6744 = vmatpush.bf16.msra.mxu0 0
        %6745 = vmatpush.bf16.msra.mxu0 0
        %6746 = vmatpush.bf16.msra.mxu0 %v6473
        %6747 = vmatpush.bf16.msra.mxu0 %v6212
        %6748 = vmatpush.bf16.msra.mxu0 %v6180
        %6749 = vmatpush.bf16.msra.mxu0 %v6148
        %6750 = vmatpush.bf16.msra.mxu0 %v6116
        %6751 = vmatpush.bf16.msra.mxu0 %v6084
        %6752 = vmatmul.bf16.gmra.mxu0 %v6422
        %v6753 = vpop.f32.mrf.mxu0
        %v6754 = vadd.f32 %v5480, %v6753
        %v6755 = vpop.f32.mrf.mxu0
        %v6756 = vadd.f32 %v5485, %v6755
        %6757 = vdwg.mxu0
        %6758 = vmatpush.bf16.msra.mxu0 0
        %6759 = vmatpush.bf16.msra.mxu0 0
        %6760 = vmatpush.bf16.msra.mxu0 %v6476
        %6761 = vmatpush.bf16.msra.mxu0 %v6213
        %6762 = vmatpush.bf16.msra.mxu0 %v6181
        %6763 = vmatpush.bf16.msra.mxu0 %v6149
        %6764 = vmatpush.bf16.msra.mxu0 %v6117
        %6765 = vmatpush.bf16.msra.mxu0 %v6085
        %6766 = vmatmul.bf16.gmra.mxu0 %v6422
        %v6767 = vpop.f32.mrf.mxu0
        %v6768 = vadd.f32 %v5480, %v6767
        %v6769 = vpop.f32.mrf.mxu0
        %v6770 = vadd.f32 %v5485, %v6769
        %6771 = vdwg.mxu0
        %6772 = vmatpush.bf16.msra.mxu0 0
        %6773 = vmatpush.bf16.msra.mxu0 0
        %6774 = vmatpush.bf16.msra.mxu0 %v6479
        %6775 = vmatpush.bf16.msra.mxu0 %v6214
        %6776 = vmatpush.bf16.msra.mxu0 %v6182
        %6777 = vmatpush.bf16.msra.mxu0 %v6150
        %6778 = vmatpush.bf16.msra.mxu0 %v6118
        %6779 = vmatpush.bf16.msra.mxu0 %v6086
        %6780 = vmatmul.bf16.gmra.mxu0 %v6422
        %v6781 = vpop.f32.mrf.mxu0
        %v6782 = vadd.f32 %v5480, %v6781
        %v6783 = vpop.f32.mrf.mxu0
        %v6784 = vadd.f32 %v5485, %v6783
        %6785 = vdwg.mxu0
        %6786 = vmatpush.bf16.msra.mxu0 0
        %6787 = vmatpush.bf16.msra.mxu0 0
        %6788 = vmatpush.bf16.msra.mxu0 %v6482
        %6789 = vmatpush.bf16.msra.mxu0 %v6215
        %6790 = vmatpush.bf16.msra.mxu0 %v6183
        %6791 = vmatpush.bf16.msra.mxu0 %v6151
        %6792 = vmatpush.bf16.msra.mxu0 %v6119
        %6793 = vmatpush.bf16.msra.mxu0 %v6087
        %6794 = vmatmul.bf16.gmra.mxu0 %v6422
        %v6795 = vpop.f32.mrf.mxu0
        %v6796 = vadd.f32 %v5480, %v6795
        %v6797 = vpop.f32.mrf.mxu0
        %v6798 = vadd.f32 %v5485, %v6797
        %6799 = vdwg.mxu0
        %6800 = vmatpush.bf16.msra.mxu0 0
        %6801 = vmatpush.bf16.msra.mxu0 0
        %6802 = vmatpush.bf16.msra.mxu0 %v6485
        %6803 = vmatpush.bf16.msra.mxu0 %v6216
        %6804 = vmatpush.bf16.msra.mxu0 %v6184
        %6805 = vmatpush.bf16.msra.mxu0 %v6152
        %6806 = vmatpush.bf16.msra.mxu0 %v6120
        %6807 = vmatpush.bf16.msra.mxu0 %v6088
        %6808 = vmatmul.bf16.gmra.mxu0 %v6422
        %v6809 = vpop.f32.mrf.mxu0
        %v6810 = vadd.f32 %v5480, %v6809
        %v6811 = vpop.f32.mrf.mxu0
        %v6812 = vadd.f32 %v5485, %v6811
        %6813 = vdwg.mxu0
        %6814 = vmatpush.bf16.msra.mxu0 0
        %6815 = vmatpush.bf16.msra.mxu0 0
        %6816 = vmatpush.bf16.msra.mxu0 %v6488
        %6817 = vmatpush.bf16.msra.mxu0 %v6217
        %6818 = vmatpush.bf16.msra.mxu0 %v6185
        %6819 = vmatpush.bf16.msra.mxu0 %v6153
        %6820 = vmatpush.bf16.msra.mxu0 %v6121
        %6821 = vmatpush.bf16.msra.mxu0 %v6089
        %6822 = vmatmul.bf16.gmra.mxu0 %v6422
        %v6823 = vpop.f32.mrf.mxu0
        %v6824 = vadd.f32 %v5480, %v6823
        %v6825 = vpop.f32.mrf.mxu0
        %v6826 = vadd.f32 %v5485, %v6825
        %6827 = vdwg.mxu0
        %6828 = vmatpush.bf16.msra.mxu0 0
        %6829 = vmatpush.bf16.msra.mxu0 0
        %6830 = vmatpush.bf16.msra.mxu0 %v6491
        %6831 = vmatpush.bf16.msra.mxu0 %v6218
        %6832 = vmatpush.bf16.msra.mxu0 %v6186
        %6833 = vmatpush.bf16.msra.mxu0 %v6154
        %6834 = vmatpush.bf16.msra.mxu0 %v6122
        %6835 = vmatpush.bf16.msra.mxu0 %v6090
        %6836 = vmatmul.bf16.gmra.mxu0 %v6422
        %v6837 = vpop.f32.mrf.mxu0
        %v6838 = vadd.f32 %v5480, %v6837
        %v6839 = vpop.f32.mrf.mxu0
        %v6840 = vadd.f32 %v5485, %v6839
        %6841 = vdwg.mxu0
        %6842 = vmatpush.bf16.msra.mxu0 0
        %6843 = vmatpush.bf16.msra.mxu0 0
        %6844 = vmatpush.bf16.msra.mxu0 %v6494
        %6845 = vmatpush.bf16.msra.mxu0 %v6219
        %6846 = vmatpush.bf16.msra.mxu0 %v6187
        %6847 = vmatpush.bf16.msra.mxu0 %v6155
        %6848 = vmatpush.bf16.msra.mxu0 %v6123
        %6849 = vmatpush.bf16.msra.mxu0 %v6091
        %6850 = vmatmul.bf16.gmra.mxu0 %v6422
        %v6851 = vpop.f32.mrf.mxu0
        %v6852 = vadd.f32 %v5480, %v6851
        %v6853 = vpop.f32.mrf.mxu0
        %v6854 = vadd.f32 %v5485, %v6853
        %6855 = vdwg.mxu0
        %6856 = vmatpush.bf16.msra.mxu0 0
        %6857 = vmatpush.bf16.msra.mxu0 0
        %6858 = vmatpush.bf16.msra.mxu0 %v6497
        %6859 = vmatpush.bf16.msra.mxu0 %v6220
        %6860 = vmatpush.bf16.msra.mxu0 %v6188
        %6861 = vmatpush.bf16.msra.mxu0 %v6156
        %6862 = vmatpush.bf16.msra.mxu0 %v6124
        %6863 = vmatpush.bf16.msra.mxu0 %v6092
        %6864 = vmatmul.bf16.gmra.mxu0 %v6422
        %v6865 = vpop.f32.mrf.mxu0
        %v6866 = vadd.f32 %v5480, %v6865
        %v6867 = vpop.f32.mrf.mxu0
        %v6868 = vadd.f32 %v5485, %v6867
        %6869 = vdwg.mxu0
        %6870 = vmatpush.bf16.msra.mxu0 0
        %6871 = vmatpush.bf16.msra.mxu0 0
        %6872 = vmatpush.bf16.msra.mxu0 %v6500
        %6873 = vmatpush.bf16.msra.mxu0 %v6221
        %6874 = vmatpush.bf16.msra.mxu0 %v6189
        %6875 = vmatpush.bf16.msra.mxu0 %v6157
        %6876 = vmatpush.bf16.msra.mxu0 %v6125
        %6877 = vmatpush.bf16.msra.mxu0 %v6093
        %6878 = vmatmul.bf16.gmra.mxu0 %v6422
        %v6879 = vpop.f32.mrf.mxu0
        %v6880 = vadd.f32 %v5480, %v6879
        %v6881 = vpop.f32.mrf.mxu0
        %v6882 = vadd.f32 %v5485, %v6881
        %6883 = vdwg.mxu0
        %6884 = vmatpush.bf16.msra.mxu0 0
        %6885 = vmatpush.bf16.msra.mxu0 0
        %6886 = vmatpush.bf16.msra.mxu0 %v6503
        %6887 = vmatpush.bf16.msra.mxu0 %v6222
        %6888 = vmatpush.bf16.msra.mxu0 %v6190
        %6889 = vmatpush.bf16.msra.mxu0 %v6158
        %6890 = vmatpush.bf16.msra.mxu0 %v6126
        %6891 = vmatpush.bf16.msra.mxu0 %v6094
        %6892 = vmatmul.bf16.gmra.mxu0 %v6422
        %v6893 = vpop.f32.mrf.mxu0
        %v6894 = vadd.f32 %v5480, %v6893
        %v6895 = vpop.f32.mrf.mxu0
        %v6896 = vadd.f32 %v5485, %v6895
        %6897 = vdwg.mxu0
        %6898 = vmatpush.bf16.msra.mxu0 0
        %6899 = vmatpush.bf16.msra.mxu0 0
        %6900 = vmatpush.bf16.msra.mxu0 %v6506
        %6901 = vmatpush.bf16.msra.mxu0 %v6223
        %6902 = vmatpush.bf16.msra.mxu0 %v6191
        %6903 = vmatpush.bf16.msra.mxu0 %v6159
        %6904 = vmatpush.bf16.msra.mxu0 %v6127
        %6905 = vmatpush.bf16.msra.mxu0 %v6095
        %6906 = vmatmul.bf16.gmra.mxu0 %v6422
        %v6907 = vpop.f32.mrf.mxu0
        %v6908 = vadd.f32 %v5480, %v6907
        %v6909 = vpop.f32.mrf.mxu0
        %v6910 = vadd.f32 %v5485, %v6909
        %6911 = vdwg.mxu0
        %6912 = vmatpush.bf16.msra.mxu0 0
        %6913 = vmatpush.bf16.msra.mxu0 0
        %6914 = vmatpush.bf16.msra.mxu0 %v6509
        %6915 = vmatpush.bf16.msra.mxu0 %v6224
        %6916 = vmatpush.bf16.msra.mxu0 %v6192
        %6917 = vmatpush.bf16.msra.mxu0 %v6160
        %6918 = vmatpush.bf16.msra.mxu0 %v6128
        %6919 = vmatpush.bf16.msra.mxu0 %v6096
        %6920 = vmatmul.bf16.gmra.mxu0 %v6422
        %v6921 = vpop.f32.mrf.mxu0
        %v6922 = vadd.f32 %v5480, %v6921
        %v6923 = vpop.f32.mrf.mxu0
        %v6924 = vadd.f32 %v5485, %v6923
        %6925 = vdwg.mxu0
        %6926 = vmatpush.bf16.msra.mxu0 0
        %6927 = vmatpush.bf16.msra.mxu0 0
        %6928 = vmatpush.bf16.msra.mxu0 %v6512
        %6929 = vmatpush.bf16.msra.mxu0 %v6225
        %6930 = vmatpush.bf16.msra.mxu0 %v6193
        %6931 = vmatpush.bf16.msra.mxu0 %v6161
        %6932 = vmatpush.bf16.msra.mxu0 %v6129
        %6933 = vmatpush.bf16.msra.mxu0 %v6097
        %6934 = vmatmul.bf16.gmra.mxu0 %v6422
        %v6935 = vpop.f32.mrf.mxu0
        %v6936 = vadd.f32 %v5480, %v6935
        %v6937 = vpop.f32.mrf.mxu0
        %v6938 = vadd.f32 %v5485, %v6937
        %6939 = vdwg.mxu0
        %6940 = vmatpush.bf16.msra.mxu0 0
        %6941 = vmatpush.bf16.msra.mxu0 0
        %6942 = vmatpush.bf16.msra.mxu0 %v6515
        %6943 = vmatpush.bf16.msra.mxu0 %v6226
        %6944 = vmatpush.bf16.msra.mxu0 %v6194
        %6945 = vmatpush.bf16.msra.mxu0 %v6162
        %6946 = vmatpush.bf16.msra.mxu0 %v6130
        %6947 = vmatpush.bf16.msra.mxu0 %v6098
        %6948 = vmatmul.bf16.gmra.mxu0 %v6422
        %v6949 = vpop.f32.mrf.mxu0
        %v6950 = vadd.f32 %v5480, %v6949
        %v6951 = vpop.f32.mrf.mxu0
        %v6952 = vadd.f32 %v5485, %v6951
        %6953 = vdwg.mxu0
        %6954 = vmatpush.bf16.msra.mxu0 0
        %6955 = vmatpush.bf16.msra.mxu0 0
        %6956 = vmatpush.bf16.msra.mxu0 %v6518
        %6957 = vmatpush.bf16.msra.mxu0 %v6227
        %6958 = vmatpush.bf16.msra.mxu0 %v6195
        %6959 = vmatpush.bf16.msra.mxu0 %v6163
        %6960 = vmatpush.bf16.msra.mxu0 %v6131
        %6961 = vmatpush.bf16.msra.mxu0 %v6099
        %6962 = vmatmul.bf16.gmra.mxu0 %v6422
        %v6963 = vpop.f32.mrf.mxu0
        %v6964 = vadd.f32 %v5480, %v6963
        %v6965 = vpop.f32.mrf.mxu0
        %v6966 = vadd.f32 %v5485, %v6965
        %6967 = vdwg.mxu0
        %v6968 = vmax.f32 %v6530, 0.0
        %v6969 = vmax.f32 %v6544, 0.0
        %v6970 = vmax.f32 %v6558, 0.0
        %v6971 = vmax.f32 %v6572, 0.0
        %v6972 = vmax.f32 %v6586, 0.0
        %v6973 = vmax.f32 %v6600, 0.0
        %v6974 = vmax.f32 %v6614, 0.0
        %v6975 = vmax.f32 %v6628, 0.0
        %v6976 = vmax.f32 %v6642, 0.0
        %v6977 = vmax.f32 %v6656, 0.0
        %v6978 = vmax.f32 %v6670, 0.0
        %v6979 = vmax.f32 %v6684, 0.0
        %v6980 = vmax.f32 %v6698, 0.0
        %v6981 = vmax.f32 %v6712, 0.0
        %v6982 = vmax.f32 %v6726, 0.0
        %v6983 = vmax.f32 %v6740, 0.0
        %v6984 = vmax.f32 %v6754, 0.0
        %v6985 = vmax.f32 %v6768, 0.0
        %v6986 = vmax.f32 %v6782, 0.0
        %v6987 = vmax.f32 %v6796, 0.0
        %v6988 = vmax.f32 %v6810, 0.0
        %v6989 = vmax.f32 %v6824, 0.0
        %v6990 = vmax.f32 %v6838, 0.0
        %v6991 = vmax.f32 %v6852, 0.0
        %v6992 = vmax.f32 %v6866, 0.0
        %v6993 = vmax.f32 %v6880, 0.0
        %v6994 = vmax.f32 %v6894, 0.0
        %v6995 = vmax.f32 %v6908, 0.0
        %v6996 = vmax.f32 %v6922, 0.0
        %v6997 = vmax.f32 %v6936, 0.0
        %v6998 = vmax.f32 %v6950, 0.0
        %v6999 = vmax.f32 %v6964, 0.0
        %v7000 = vmax.f32 %v6532, 0.0
        %v7001 = vmax.f32 %v6546, 0.0
        %v7002 = vmax.f32 %v6560, 0.0
        %v7003 = vmax.f32 %v6574, 0.0
        %v7004 = vmax.f32 %v6588, 0.0
        %v7005 = vmax.f32 %v6602, 0.0
        %v7006 = vmax.f32 %v6616, 0.0
        %v7007 = vmax.f32 %v6630, 0.0
        %v7008 = vmax.f32 %v6644, 0.0
        %v7009 = vmax.f32 %v6658, 0.0
        %v7010 = vmax.f32 %v6672, 0.0
        %v7011 = vmax.f32 %v6686, 0.0
        %v7012 = vmax.f32 %v6700, 0.0
        %v7013 = vmax.f32 %v6714, 0.0
        %v7014 = vmax.f32 %v6728, 0.0
        %v7015 = vmax.f32 %v6742, 0.0
        %v7016 = vmax.f32 %v6756, 0.0
        %v7017 = vmax.f32 %v6770, 0.0
        %v7018 = vmax.f32 %v6784, 0.0
        %v7019 = vmax.f32 %v6798, 0.0
        %v7020 = vmax.f32 %v6812, 0.0
        %v7021 = vmax.f32 %v6826, 0.0
        %v7022 = vmax.f32 %v6840, 0.0
        %v7023 = vmax.f32 %v6854, 0.0
        %v7024 = vmax.f32 %v6868, 0.0
        %v7025 = vmax.f32 %v6882, 0.0
        %v7026 = vmax.f32 %v6896, 0.0
        %v7027 = vmax.f32 %v6910, 0.0
        %v7028 = vmax.f32 %v6924, 0.0
        %v7029 = vmax.f32 %v6938, 0.0
        %v7030 = vmax.f32 %v6952, 0.0
        %v7031 = vmax.f32 %v6966, 0.0
        %v7032 = vld [vmem:[%s6] sm:$0xf]
        %v7033 = vld [vmem:[%s6 + $0x4] sm:$0xf]
        %v7034 = vld [vmem:[%s6 + $0x8] sm:$0xf]
        %v7035 = vld [vmem:[%s6 + $0xc] sm:$0xf]
        %v7036 = vld [vmem:[%s6 + $0x10] sm:$0xf]
        %v7037 = vld [vmem:[%s6 + $0x14] sm:$0xf]
        %v7038 = vld [vmem:[%s6 + $0x18] sm:$0xf]
        %v7039 = vld [vmem:[%s6 + $0x1c] sm:$0xf]
        %v7040 = vld [vmem:[%s6 + $0x20] sm:$0xf]
        %v7041 = vld [vmem:[%s6 + $0x24] sm:$0xf]
        %v7042 = vld [vmem:[%s6 + $0x28] sm:$0xf]
        %v7043 = vld [vmem:[%s6 + $0x2c] sm:$0xf]
        %v7044 = vld [vmem:[%s6 + $0x30] sm:$0xf]
        %v7045 = vld [vmem:[%s6 + $0x34] sm:$0xf]
        %v7046 = vld [vmem:[%s6 + $0x38] sm:$0xf]
        %v7047 = vld [vmem:[%s6 + $0x3c] sm:$0xf]
        %v7048 = vld [vmem:[%s6 + $0x40] sm:$0xf]
        %v7049 = vld [vmem:[%s6 + $0x44] sm:$0xf]
        %v7050 = vld [vmem:[%s6 + $0x48] sm:$0xf]
        %v7051 = vld [vmem:[%s6 + $0x4c] sm:$0xf]
        %v7052 = vld [vmem:[%s6 + $0x50] sm:$0xf]
        %v7053 = vld [vmem:[%s6 + $0x54] sm:$0xf]
        %v7054 = vld [vmem:[%s6 + $0x58] sm:$0xf]
        %v7055 = vld [vmem:[%s6 + $0x5c] sm:$0xf]
        %v7056 = vld [vmem:[%s6 + $0x60] sm:$0xf]
        %v7057 = vld [vmem:[%s6 + $0x64] sm:$0xf]
        %v7058 = vld [vmem:[%s6 + $0x68] sm:$0xf]
        %v7059 = vld [vmem:[%s6 + $0x6c] sm:$0xf]
        %v7060 = vld [vmem:[%s6 + $0x70] sm:$0xf]
        %v7061 = vld [vmem:[%s6 + $0x74] sm:$0xf]
        %v7062 = vld [vmem:[%s6 + $0x78] sm:$0xf]
        %v7063 = vld [vmem:[%s6 + $0x7c] sm:$0xf]
        %v7064 = vld [vmem:[%s6 + $0x80] sm:$0xf]
        %v7065 = vld [vmem:[%s6 + $0x84] sm:$0xf]
        %v7066 = vld [vmem:[%s6 + $0x88] sm:$0xf]
        %v7067 = vld [vmem:[%s6 + $0x8c] sm:$0xf]
        %v7068 = vld [vmem:[%s6 + $0x90] sm:$0xf]
        %v7069 = vld [vmem:[%s6 + $0x94] sm:$0xf]
        %v7070 = vld [vmem:[%s6 + $0x98] sm:$0xf]
        %v7071 = vld [vmem:[%s6 + $0x9c] sm:$0xf]
        %v7072 = vld [vmem:[%s6 + $0xa0] sm:$0xf]
        %v7073 = vld [vmem:[%s6 + $0xa4] sm:$0xf]
        %v7074 = vld [vmem:[%s6 + $0xa8] sm:$0xf]
        %v7075 = vld [vmem:[%s6 + $0xac] sm:$0xf]
        %v7076 = vld [vmem:[%s6 + $0xb0] sm:$0xf]
        %v7077 = vld [vmem:[%s6 + $0xb4] sm:$0xf]
        %v7078 = vld [vmem:[%s6 + $0xb8] sm:$0xf]
        %v7079 = vld [vmem:[%s6 + $0xbc] sm:$0xf]
        %v7080 = vld [vmem:[%s6 + $0xc0] sm:$0xf]
        %v7081 = vld [vmem:[%s6 + $0xc4] sm:$0xf]
        %v7082 = vld [vmem:[%s6 + $0xc8] sm:$0xf]
        %v7083 = vld [vmem:[%s6 + $0xcc] sm:$0xf]
        %v7084 = vld [vmem:[%s6 + $0xd0] sm:$0xf]
        %v7085 = vld [vmem:[%s6 + $0xd4] sm:$0xf]
        %v7086 = vld [vmem:[%s6 + $0xd8] sm:$0xf]
        %v7087 = vld [vmem:[%s6 + $0xdc] sm:$0xf]
        %v7088 = vld [vmem:[%s6 + $0xe0] sm:$0xf]
        %v7089 = vld [vmem:[%s6 + $0xe4] sm:$0xf]
        %v7090 = vld [vmem:[%s6 + $0xe8] sm:$0xf]
        %v7091 = vld [vmem:[%s6 + $0xec] sm:$0xf]
        %v7092 = vld [vmem:[%s6 + $0xf0] sm:$0xf]
        %v7093 = vld [vmem:[%s6 + $0xf4] sm:$0xf]
        %v7094 = vld [vmem:[%s6 + $0xf8] sm:$0xf]
        %v7095 = vld [vmem:[%s6 + $0xfc] sm:$0xf]
        %v7096 = vld [vmem:[%s6 + $0x100] sm:$0xf]
        %v7097 = vld [vmem:[%s6 + $0x104] sm:$0xf]
        %v7098 = vld [vmem:[%s6 + $0x108] sm:$0xf]
        %v7099 = vld [vmem:[%s6 + $0x10c] sm:$0xf]
        %v7100 = vld [vmem:[%s6 + $0x110] sm:$0xf]
        %v7101 = vld [vmem:[%s6 + $0x114] sm:$0xf]
        %v7102 = vld [vmem:[%s6 + $0x118] sm:$0xf]
        %v7103 = vld [vmem:[%s6 + $0x11c] sm:$0xf]
        %v7104 = vld [vmem:[%s6 + $0x120] sm:$0xf]
        %v7105 = vld [vmem:[%s6 + $0x124] sm:$0xf]
        %v7106 = vld [vmem:[%s6 + $0x128] sm:$0xf]
        %v7107 = vld [vmem:[%s6 + $0x12c] sm:$0xf]
        %v7108 = vld [vmem:[%s6 + $0x130] sm:$0xf]
        %v7109 = vld [vmem:[%s6 + $0x134] sm:$0xf]
        %v7110 = vld [vmem:[%s6 + $0x138] sm:$0xf]
        %v7111 = vld [vmem:[%s6 + $0x13c] sm:$0xf]
        %v7112 = vld [vmem:[%s6 + $0x140] sm:$0xf]
        %v7113 = vld [vmem:[%s6 + $0x144] sm:$0xf]
        %v7114 = vld [vmem:[%s6 + $0x148] sm:$0xf]
        %v7115 = vld [vmem:[%s6 + $0x14c] sm:$0xf]
        %v7116 = vld [vmem:[%s6 + $0x150] sm:$0xf]
        %v7117 = vld [vmem:[%s6 + $0x154] sm:$0xf]
        %v7118 = vld [vmem:[%s6 + $0x158] sm:$0xf]
        %v7119 = vld [vmem:[%s6 + $0x15c] sm:$0xf]
        %v7120 = vld [vmem:[%s6 + $0x160] sm:$0xf]
        %v7121 = vld [vmem:[%s6 + $0x164] sm:$0xf]
        %v7122 = vld [vmem:[%s6 + $0x168] sm:$0xf]
        %v7123 = vld [vmem:[%s6 + $0x16c] sm:$0xf]
        %v7124 = vld [vmem:[%s6 + $0x170] sm:$0xf]
        %v7125 = vld [vmem:[%s6 + $0x174] sm:$0xf]
        %v7126 = vld [vmem:[%s6 + $0x178] sm:$0xf]
        %v7127 = vld [vmem:[%s6 + $0x17c] sm:$0xf]
        %v7128 = vld [vmem:[%s6 + $0x180] sm:$0xf]
        %v7129 = vld [vmem:[%s6 + $0x184] sm:$0xf]
        %v7130 = vld [vmem:[%s6 + $0x188] sm:$0xf]
        %v7131 = vld [vmem:[%s6 + $0x18c] sm:$0xf]
        %v7132 = vld [vmem:[%s6 + $0x190] sm:$0xf]
        %v7133 = vld [vmem:[%s6 + $0x194] sm:$0xf]
        %v7134 = vld [vmem:[%s6 + $0x198] sm:$0xf]
        %v7135 = vld [vmem:[%s6 + $0x19c] sm:$0xf]
        %v7136 = vld [vmem:[%s6 + $0x1a0] sm:$0xf]
        %v7137 = vld [vmem:[%s6 + $0x1a4] sm:$0xf]
        %v7138 = vld [vmem:[%s6 + $0x1a8] sm:$0xf]
        %v7139 = vld [vmem:[%s6 + $0x1ac] sm:$0xf]
        %v7140 = vld [vmem:[%s6 + $0x1b0] sm:$0xf]
        %v7141 = vld [vmem:[%s6 + $0x1b4] sm:$0xf]
        %v7142 = vld [vmem:[%s6 + $0x1b8] sm:$0xf]
        %v7143 = vld [vmem:[%s6 + $0x1bc] sm:$0xf]
        %v7144 = vld [vmem:[%s6 + $0x1c0] sm:$0xf]
        %v7145 = vld [vmem:[%s6 + $0x1c4] sm:$0xf]
        %v7146 = vld [vmem:[%s6 + $0x1c8] sm:$0xf]
        %v7147 = vld [vmem:[%s6 + $0x1cc] sm:$0xf]
        %v7148 = vld [vmem:[%s6 + $0x1d0] sm:$0xf]
        %v7149 = vld [vmem:[%s6 + $0x1d4] sm:$0xf]
        %v7150 = vld [vmem:[%s6 + $0x1d8] sm:$0xf]
        %v7151 = vld [vmem:[%s6 + $0x1dc] sm:$0xf]
        %v7152 = vld [vmem:[%s6 + $0x1e0] sm:$0xf]
        %v7153 = vld [vmem:[%s6 + $0x1e4] sm:$0xf]
        %v7154 = vld [vmem:[%s6 + $0x1e8] sm:$0xf]
        %v7155 = vld [vmem:[%s6 + $0x1ec] sm:$0xf]
        %v7156 = vld [vmem:[%s6 + $0x1f0] sm:$0xf]
        %v7157 = vld [vmem:[%s6 + $0x1f4] sm:$0xf]
        %v7158 = vld [vmem:[%s6 + $0x1f8] sm:$0xf]
        %v7159 = vld [vmem:[%s6 + $0x1fc] sm:$0xf]
        %v7160 = vld [vmem:[%s8] sm:$0xff]
        %v7161 = vld [vmem:[%s8 + $0x8] sm:$0x3]
        %v7162 = vld [vmem:[%s9] sm:$0xff]
        %v7163 = vld [vmem:[%s9 + $0x8] sm:$0xff]
        %v7164 = vld [vmem:[%s9 + $0x10] sm:$0xff]
        %v7165 = vld [vmem:[%s9 + $0x18] sm:$0xff]
        %v7166 = vld [vmem:[%s9 + $0x20] sm:$0xff]
        %v7167 = vld [vmem:[%s9 + $0x28] sm:$0xff]
        %v7168 = vld [vmem:[%s9 + $0x30] sm:$0xff]
        %v7169 = vld [vmem:[%s9 + $0x38] sm:$0xff]
        %v7170 = vld [vmem:[%s9 + $0x40] sm:$0xff]
        %v7171 = vld [vmem:[%s9 + $0x48] sm:$0xff]
        %v7172 = vld [vmem:[%s9 + $0x50] sm:$0xff]
        %v7173 = vld [vmem:[%s9 + $0x58] sm:$0xff]
        %v7174 = vld [vmem:[%s9 + $0x60] sm:$0xf]
        %v7175 = vld [vmem:[%s7] sm:$0x1]
        %v7176 = vpack.c.bf16 %v6969, %v6968
        %v7177 = vpack.c.bf16 %v6971, %v6970
        %v7178 = vpack.c.bf16 %v6973, %v6972
        %v7179 = vpack.c.bf16 %v6975, %v6974
        %v7180 = vpack.c.bf16 %v6977, %v6976
        %v7181 = vpack.c.bf16 %v6979, %v6978
        %v7182 = vpack.c.bf16 %v6981, %v6980
        %v7183 = vpack.c.bf16 %v6983, %v6982
        %v7184 = vpack.c.bf16 %v6985, %v6984
        %v7185 = vpack.c.bf16 %v6987, %v6986
        %v7186 = vpack.c.bf16 %v6989, %v6988
        %v7187 = vpack.c.bf16 %v6991, %v6990
        %v7188 = vpack.c.bf16 %v6993, %v6992
        %v7189 = vpack.c.bf16 %v6995, %v6994
        %v7190 = vpack.c.bf16 %v6997, %v6996
        %v7191 = vpack.c.bf16 %v6999, %v6998
        %v7192 = vpack.c.bf16 %v7001, %v7000
        %v7193 = vpack.c.bf16 %v7003, %v7002
        %v7194 = vpack.c.bf16 %v7005, %v7004
        %v7195 = vpack.c.bf16 %v7007, %v7006
        %v7196 = vpack.c.bf16 %v7009, %v7008
        %v7197 = vpack.c.bf16 %v7011, %v7010
        %v7198 = vpack.c.bf16 %v7013, %v7012
        %v7199 = vpack.c.bf16 %v7015, %v7014
        %v7200 = vpack.c.bf16 %v7017, %v7016
        %v7201 = vpack.c.bf16 %v7019, %v7018
        %v7202 = vpack.c.bf16 %v7021, %v7020
        %v7203 = vpack.c.bf16 %v7023, %v7022
        %v7204 = vpack.c.bf16 %v7025, %v7024
        %v7205 = vpack.c.bf16 %v7027, %v7026
        %v7206 = vpack.c.bf16 %v7029, %v7028
        %v7207 = vpack.c.bf16 %v7031, %v7030
        %v7216 = vunpack.c.l.b16 %v7176
        %v7217 = vunpack.c.h.b16 %v7176
        %v7218 = vunpack.c.l.b16 %v7177
        %v7219 = vunpack.c.h.b16 %v7177
        %v7220 = vunpack.c.l.b16 %v7178
        %v7221 = vunpack.c.h.b16 %v7178
        %v7222 = vunpack.c.l.b16 %v7179
        %v7223 = vunpack.c.h.b16 %v7179
        %v7224 = vunpack.c.l.b16 %v7192
        %v7225 = vunpack.c.h.b16 %v7192
        %v7226 = vunpack.c.l.b16 %v7193
        %v7227 = vunpack.c.h.b16 %v7193
        %v7228 = vunpack.c.l.b16 %v7194
        %v7229 = vunpack.c.h.b16 %v7194
        %v7230 = vunpack.c.l.b16 %v7195
        %v7231 = vunpack.c.h.b16 %v7195
        %v7232 = vpack.c.b16 %v7224, %v7216
        %v7233 = vpack.c.b16 %v7225, %v7217
        %v7234 = vpack.c.b16 %v7226, %v7218
        %v7235 = vpack.c.b16 %v7227, %v7219
        %v7236 = vpack.c.b16 %v7228, %v7220
        %v7237 = vpack.c.b16 %v7229, %v7221
        %v7238 = vpack.c.b16 %v7230, %v7222
        %v7239 = vpack.c.b16 %v7231, %v7223
        %v7376 = vunpack.c.l.b16 %v7032
        %v7377 = vunpack.c.l.b16 %v7033
        %v7378 = vunpack.c.l.b16 %v7034
        %v7379 = vunpack.c.l.b16 %v7035
        %v7380 = vunpack.c.l.b16 %v7036
        %v7381 = vunpack.c.l.b16 %v7037
        %v7382 = vunpack.c.l.b16 %v7038
        %v7383 = vunpack.c.l.b16 %v7039
        %v7384 = vunpack.c.l.b16 %v7040
        %v7385 = vunpack.c.l.b16 %v7041
        %v7386 = vunpack.c.l.b16 %v7042
        %v7387 = vunpack.c.l.b16 %v7043
        %v7388 = vunpack.c.l.b16 %v7044
        %v7389 = vunpack.c.l.b16 %v7045
        %v7390 = vunpack.c.l.b16 %v7046
        %v7391 = vunpack.c.l.b16 %v7047
        %v7392 = vunpack.c.l.b16 %v7048
        %v7393 = vunpack.c.l.b16 %v7049
        %v7394 = vunpack.c.l.b16 %v7050
        %v7395 = vunpack.c.l.b16 %v7051
        %v7396 = vunpack.c.l.b16 %v7052
        %v7397 = vunpack.c.l.b16 %v7053
        %v7398 = vunpack.c.l.b16 %v7054
        %v7399 = vunpack.c.l.b16 %v7055
        %v7400 = vunpack.c.l.b16 %v7056
        %v7401 = vunpack.c.l.b16 %v7057
        %v7402 = vunpack.c.l.b16 %v7058
        %v7403 = vunpack.c.l.b16 %v7059
        %v7404 = vunpack.c.l.b16 %v7060
        %v7405 = vunpack.c.l.b16 %v7061
        %v7406 = vunpack.c.l.b16 %v7062
        %v7407 = vunpack.c.l.b16 %v7063
        %v7408 = vunpack.c.l.b16 %v7064
        %v7409 = vunpack.c.l.b16 %v7065
        %v7410 = vunpack.c.l.b16 %v7066
        %v7411 = vunpack.c.l.b16 %v7067
        %v7412 = vunpack.c.l.b16 %v7068
        %v7413 = vunpack.c.l.b16 %v7069
        %v7414 = vunpack.c.l.b16 %v7070
        %v7415 = vunpack.c.l.b16 %v7071
        %v7416 = vunpack.c.l.b16 %v7072
        %v7417 = vunpack.c.l.b16 %v7073
        %v7418 = vunpack.c.l.b16 %v7074
        %v7419 = vunpack.c.l.b16 %v7075
        %v7420 = vunpack.c.l.b16 %v7076
        %v7421 = vunpack.c.l.b16 %v7077
        %v7422 = vunpack.c.l.b16 %v7078
        %v7423 = vunpack.c.l.b16 %v7079
        %v7424 = vunpack.c.l.b16 %v7080
        %v7425 = vunpack.c.l.b16 %v7081
        %v7426 = vunpack.c.l.b16 %v7082
        %v7427 = vunpack.c.l.b16 %v7083
        %v7428 = vunpack.c.l.b16 %v7084
        %v7429 = vunpack.c.l.b16 %v7085
        %v7430 = vunpack.c.l.b16 %v7086
        %v7431 = vunpack.c.l.b16 %v7087
        %v7432 = vunpack.c.l.b16 %v7088
        %v7433 = vunpack.c.l.b16 %v7089
        %v7434 = vunpack.c.l.b16 %v7090
        %v7435 = vunpack.c.l.b16 %v7091
        %v7436 = vunpack.c.l.b16 %v7092
        %v7437 = vunpack.c.l.b16 %v7093
        %v7438 = vunpack.c.l.b16 %v7094
        %v7439 = vunpack.c.l.b16 %v7095
        %v7440 = vunpack.c.l.b16 %v7096
        %v7441 = vunpack.c.l.b16 %v7097
        %v7442 = vunpack.c.l.b16 %v7098
        %v7443 = vunpack.c.l.b16 %v7099
        %v7444 = vunpack.c.l.b16 %v7100
        %v7445 = vunpack.c.l.b16 %v7101
        %v7446 = vunpack.c.l.b16 %v7102
        %v7447 = vunpack.c.l.b16 %v7103
        %v7448 = vunpack.c.l.b16 %v7104
        %v7449 = vunpack.c.l.b16 %v7105
        %v7450 = vunpack.c.l.b16 %v7106
        %v7451 = vunpack.c.l.b16 %v7107
        %v7452 = vunpack.c.l.b16 %v7108
        %v7453 = vunpack.c.l.b16 %v7109
        %v7454 = vunpack.c.l.b16 %v7110
        %v7455 = vunpack.c.l.b16 %v7111
        %v7456 = vunpack.c.l.b16 %v7112
        %v7457 = vunpack.c.l.b16 %v7113
        %v7458 = vunpack.c.l.b16 %v7114
        %v7459 = vunpack.c.l.b16 %v7115
        %v7460 = vunpack.c.l.b16 %v7116
        %v7461 = vunpack.c.l.b16 %v7117
        %v7462 = vunpack.c.l.b16 %v7118
        %v7463 = vunpack.c.l.b16 %v7119
        %v7464 = vunpack.c.l.b16 %v7120
        %v7465 = vunpack.c.l.b16 %v7121
        %v7466 = vunpack.c.l.b16 %v7122
        %v7467 = vunpack.c.l.b16 %v7123
        %v7468 = vunpack.c.l.b16 %v7124
        %v7469 = vunpack.c.l.b16 %v7125
        %v7470 = vunpack.c.l.b16 %v7126
        %v7471 = vunpack.c.l.b16 %v7127
        %v7472 = vunpack.c.l.b16 %v7128
        %v7473 = vunpack.c.l.b16 %v7129
        %v7474 = vunpack.c.l.b16 %v7130
        %v7475 = vunpack.c.l.b16 %v7131
        %v7476 = vunpack.c.l.b16 %v7132
        %v7477 = vunpack.c.l.b16 %v7133
        %v7478 = vunpack.c.l.b16 %v7134
        %v7479 = vunpack.c.l.b16 %v7135
        %v7480 = vunpack.c.l.b16 %v7136
        %v7481 = vunpack.c.l.b16 %v7137
        %v7482 = vunpack.c.l.b16 %v7138
        %v7483 = vunpack.c.l.b16 %v7139
        %v7484 = vunpack.c.l.b16 %v7140
        %v7485 = vunpack.c.l.b16 %v7141
        %v7486 = vunpack.c.l.b16 %v7142
        %v7487 = vunpack.c.l.b16 %v7143
        %v7488 = vunpack.c.l.b16 %v7144
        %v7489 = vunpack.c.l.b16 %v7145
        %v7490 = vunpack.c.l.b16 %v7146
        %v7491 = vunpack.c.l.b16 %v7147
        %v7492 = vunpack.c.l.b16 %v7148
        %v7493 = vunpack.c.l.b16 %v7149
        %v7494 = vunpack.c.l.b16 %v7150
        %v7495 = vunpack.c.l.b16 %v7151
        %v7496 = vunpack.c.l.b16 %v7152
        %v7497 = vunpack.c.l.b16 %v7153
        %v7498 = vunpack.c.l.b16 %v7154
        %v7499 = vunpack.c.l.b16 %v7155
        %v7500 = vunpack.c.l.b16 %v7156
        %v7501 = vunpack.c.l.b16 %v7157
        %v7502 = vunpack.c.l.b16 %v7158
        %v7503 = vunpack.c.l.b16 %v7159
        %v7504 = vpack.c.b16 %v7377, %v7376
        %v7505 = vpack.c.b16 %v7379, %v7378
        %v7506 = vpack.c.b16 %v7381, %v7380
        %v7507 = vpack.c.b16 %v7383, %v7382
        %v7508 = vpack.c.b16 %v7385, %v7384
        %v7509 = vpack.c.b16 %v7387, %v7386
        %v7510 = vpack.c.b16 %v7389, %v7388
        %v7511 = vpack.c.b16 %v7391, %v7390
        %v7512 = vpack.c.b16 %v7393, %v7392
        %v7513 = vpack.c.b16 %v7395, %v7394
        %v7514 = vpack.c.b16 %v7397, %v7396
        %v7515 = vpack.c.b16 %v7399, %v7398
        %v7516 = vpack.c.b16 %v7401, %v7400
        %v7517 = vpack.c.b16 %v7403, %v7402
        %v7518 = vpack.c.b16 %v7405, %v7404
        %v7519 = vpack.c.b16 %v7407, %v7406
        %v7520 = vpack.c.b16 %v7409, %v7408
        %v7521 = vpack.c.b16 %v7411, %v7410
        %v7522 = vpack.c.b16 %v7413, %v7412
        %v7523 = vpack.c.b16 %v7415, %v7414
        %v7524 = vpack.c.b16 %v7417, %v7416
        %v7525 = vpack.c.b16 %v7419, %v7418
        %v7526 = vpack.c.b16 %v7421, %v7420
        %v7527 = vpack.c.b16 %v7423, %v7422
        %v7528 = vpack.c.b16 %v7425, %v7424
        %v7529 = vpack.c.b16 %v7427, %v7426
        %v7530 = vpack.c.b16 %v7429, %v7428
        %v7531 = vpack.c.b16 %v7431, %v7430
        %v7532 = vpack.c.b16 %v7433, %v7432
        %v7533 = vpack.c.b16 %v7435, %v7434
        %v7534 = vpack.c.b16 %v7437, %v7436
        %v7535 = vpack.c.b16 %v7439, %v7438
        %v7536 = vpack.c.b16 %v7441, %v7440
        %v7537 = vpack.c.b16 %v7443, %v7442
        %v7538 = vpack.c.b16 %v7445, %v7444
        %v7539 = vpack.c.b16 %v7447, %v7446
        %v7540 = vpack.c.b16 %v7449, %v7448
        %v7541 = vpack.c.b16 %v7451, %v7450
        %v7542 = vpack.c.b16 %v7453, %v7452
        %v7543 = vpack.c.b16 %v7455, %v7454
        %v7544 = vpack.c.b16 %v7457, %v7456
        %v7545 = vpack.c.b16 %v7459, %v7458
        %v7546 = vpack.c.b16 %v7461, %v7460
        %v7547 = vpack.c.b16 %v7463, %v7462
        %v7548 = vpack.c.b16 %v7465, %v7464
        %v7549 = vpack.c.b16 %v7467, %v7466
        %v7550 = vpack.c.b16 %v7469, %v7468
        %v7551 = vpack.c.b16 %v7471, %v7470
        %v7552 = vpack.c.b16 %v7473, %v7472
        %v7553 = vpack.c.b16 %v7475, %v7474
        %v7554 = vpack.c.b16 %v7477, %v7476
        %v7555 = vpack.c.b16 %v7479, %v7478
        %v7556 = vpack.c.b16 %v7481, %v7480
        %v7557 = vpack.c.b16 %v7483, %v7482
        %v7558 = vpack.c.b16 %v7485, %v7484
        %v7559 = vpack.c.b16 %v7487, %v7486
        %v7560 = vpack.c.b16 %v7489, %v7488
        %v7561 = vpack.c.b16 %v7491, %v7490
        %v7562 = vpack.c.b16 %v7493, %v7492
        %v7563 = vpack.c.b16 %v7495, %v7494
        %v7564 = vpack.c.b16 %v7497, %v7496
        %v7565 = vpack.c.b16 %v7499, %v7498
        %v7566 = vpack.c.b16 %v7501, %v7500
        %v7567 = vpack.c.b16 %v7503, %v7502
        %7632 = vmatpush.bf16.msra.mxu0 %v7511
        %7633 = vmatpush.bf16.msra.mxu0 %v7510
        %7634 = vmatpush.bf16.msra.mxu0 %v7509
        %7635 = vmatpush.bf16.msra.mxu0 %v7508
        %7636 = vmatpush.bf16.msra.mxu0 %v7507
        %7637 = vmatpush.bf16.msra.mxu0 %v7506
        %7638 = vmatpush.bf16.msra.mxu0 %v7505
        %7639 = vmatpush.bf16.msra.mxu0 %v7504
        %7640 = vmatmul.bf16.gmra.mxu0 %v7232
        %v7641 = vpop.f32.mrf.mxu0
        %v7642 = vadd.f32 0.0, %v7641
        %v7643 = vpop.f32.mrf.mxu0
        %v7644 = vadd.f32 0.0, %v7643
        %7645 = vdwg.mxu0
        %7646 = vmatpush.bf16.msra.mxu0 %v7519
        %7647 = vmatpush.bf16.msra.mxu0 %v7518
        %7648 = vmatpush.bf16.msra.mxu0 %v7517
        %7649 = vmatpush.bf16.msra.mxu0 %v7516
        %7650 = vmatpush.bf16.msra.mxu0 %v7515
        %7651 = vmatpush.bf16.msra.mxu0 %v7514
        %7652 = vmatpush.bf16.msra.mxu0 %v7513
        %7653 = vmatpush.bf16.msra.mxu0 %v7512
        %7654 = vmatmul.bf16.gmra.mxu0 %v7233
        %v7655 = vpop.f32.mrf.mxu0
        %v7656 = vadd.f32 %v7642, %v7655
        %v7657 = vpop.f32.mrf.mxu0
        %v7658 = vadd.f32 %v7644, %v7657
        %7659 = vdwg.mxu0
        %7660 = vmatpush.bf16.msra.mxu0 %v7527
        %7661 = vmatpush.bf16.msra.mxu0 %v7526
        %7662 = vmatpush.bf16.msra.mxu0 %v7525
        %7663 = vmatpush.bf16.msra.mxu0 %v7524
        %7664 = vmatpush.bf16.msra.mxu0 %v7523
        %7665 = vmatpush.bf16.msra.mxu0 %v7522
        %7666 = vmatpush.bf16.msra.mxu0 %v7521
        %7667 = vmatpush.bf16.msra.mxu0 %v7520
        %7668 = vmatmul.bf16.gmra.mxu0 %v7234
        %v7669 = vpop.f32.mrf.mxu0
        %v7670 = vadd.f32 %v7656, %v7669
        %v7671 = vpop.f32.mrf.mxu0
        %v7672 = vadd.f32 %v7658, %v7671
        %7673 = vdwg.mxu0
        %7674 = vmatpush.bf16.msra.mxu0 %v7535
        %7675 = vmatpush.bf16.msra.mxu0 %v7534
        %7676 = vmatpush.bf16.msra.mxu0 %v7533
        %7677 = vmatpush.bf16.msra.mxu0 %v7532
        %7678 = vmatpush.bf16.msra.mxu0 %v7531
        %7679 = vmatpush.bf16.msra.mxu0 %v7530
        %7680 = vmatpush.bf16.msra.mxu0 %v7529
        %7681 = vmatpush.bf16.msra.mxu0 %v7528
        %7682 = vmatmul.bf16.gmra.mxu0 %v7235
        %v7683 = vpop.f32.mrf.mxu0
        %v7684 = vadd.f32 %v7670, %v7683
        %v7685 = vpop.f32.mrf.mxu0
        %v7686 = vadd.f32 %v7672, %v7685
        %7687 = vdwg.mxu0
        %7688 = vmatpush.bf16.msra.mxu0 %v7543
        %7689 = vmatpush.bf16.msra.mxu0 %v7542
        %7690 = vmatpush.bf16.msra.mxu0 %v7541
        %7691 = vmatpush.bf16.msra.mxu0 %v7540
        %7692 = vmatpush.bf16.msra.mxu0 %v7539
        %7693 = vmatpush.bf16.msra.mxu0 %v7538
        %7694 = vmatpush.bf16.msra.mxu0 %v7537
        %7695 = vmatpush.bf16.msra.mxu0 %v7536
        %7696 = vmatmul.bf16.gmra.mxu0 %v7236
        %v7697 = vpop.f32.mrf.mxu0
        %v7698 = vadd.f32 %v7684, %v7697
        %v7699 = vpop.f32.mrf.mxu0
        %v7700 = vadd.f32 %v7686, %v7699
        %7701 = vdwg.mxu0
        %7702 = vmatpush.bf16.msra.mxu0 %v7551
        %7703 = vmatpush.bf16.msra.mxu0 %v7550
        %7704 = vmatpush.bf16.msra.mxu0 %v7549
        %7705 = vmatpush.bf16.msra.mxu0 %v7548
        %7706 = vmatpush.bf16.msra.mxu0 %v7547
        %7707 = vmatpush.bf16.msra.mxu0 %v7546
        %7708 = vmatpush.bf16.msra.mxu0 %v7545
        %7709 = vmatpush.bf16.msra.mxu0 %v7544
        %7710 = vmatmul.bf16.gmra.mxu0 %v7237
        %v7711 = vpop.f32.mrf.mxu0
        %v7712 = vadd.f32 %v7698, %v7711
        %v7713 = vpop.f32.mrf.mxu0
        %v7714 = vadd.f32 %v7700, %v7713
        %7715 = vdwg.mxu0
        %7716 = vmatpush.bf16.msra.mxu0 %v7559
        %7717 = vmatpush.bf16.msra.mxu0 %v7558
        %7718 = vmatpush.bf16.msra.mxu0 %v7557
        %7719 = vmatpush.bf16.msra.mxu0 %v7556
        %7720 = vmatpush.bf16.msra.mxu0 %v7555
        %7721 = vmatpush.bf16.msra.mxu0 %v7554
        %7722 = vmatpush.bf16.msra.mxu0 %v7553
        %7723 = vmatpush.bf16.msra.mxu0 %v7552
        %7724 = vmatmul.bf16.gmra.mxu0 %v7238
        %v7725 = vpop.f32.mrf.mxu0
        %v7726 = vadd.f32 %v7712, %v7725
        %v7727 = vpop.f32.mrf.mxu0
        %v7728 = vadd.f32 %v7714, %v7727
        %7729 = vdwg.mxu0
        %7730 = vmatpush.bf16.msra.mxu0 %v7567
        %7731 = vmatpush.bf16.msra.mxu0 %v7566
        %7732 = vmatpush.bf16.msra.mxu0 %v7565
        %7733 = vmatpush.bf16.msra.mxu0 %v7564
        %7734 = vmatpush.bf16.msra.mxu0 %v7563
        %7735 = vmatpush.bf16.msra.mxu0 %v7562
        %7736 = vmatpush.bf16.msra.mxu0 %v7561
        %7737 = vmatpush.bf16.msra.mxu0 %v7560
        %7738 = vmatmul.bf16.gmra.mxu0 %v7239
        %v7739 = vpop.f32.mrf.mxu0
        %v7740 = vadd.f32 %v7726, %v7739
        %v7741 = vpop.f32.mrf.mxu0
        %v7742 = vadd.f32 %v7728, %v7741
        %7743 = vdwg.mxu0
        %v7744 = vmul.f32 %v7740, %v7160
        %v7745 = vmul.f32 %v7742, %v7161
        %vm7746 = vcmask 818176
        %v7748 = vsel %vm7746, %v7744, 0
        %v7751 = vsel %vm7746, %v7745, 0
        %v7754 = vsel %vm2373, %v7174, 0
        %7756 = vmatpush.msra.mxu0 0.0
        %7757 = vmatpush.msra.mxu0 0.0
        %7758 = vmatpush.msra.mxu0 0.0
        %7759 = vmatpush.msra.mxu0 %v7754
        %7760 = vmatpush.msra.mxu0 %v7173
        %7761 = vmatpush.msra.mxu0 %v7172
        %7762 = vmatpush.msra.mxu0 %v7171
        %7763 = vmatpush.msra.mxu0 %v7170
        %7764 = vmatpush.msra.mxu0 %v7169
        %7765 = vmatpush.msra.mxu0 %v7168
        %7766 = vmatpush.msra.mxu0 %v7167
        %7767 = vmatpush.msra.mxu0 %v7166
        %7768 = vmatpush.msra.mxu0 %v7165
        %7769 = vmatpush.msra.mxu0 %v7164
        %7770 = vmatpush.msra.mxu0 %v7163
        %7771 = vmatpush.msra.mxu0 %v7162
        %7772 = vmatmul.f32.gmra.mxu0 %v7748
        %v7773 = vpop.f32.mrf.mxu0
        %v7774 = vadd.f32 0.0, %v7773
        %7775 = vmatmul.f32.gmra.mxu0 %v7751
        %v7776 = vpop.f32.mrf.mxu0
        %v7777 = vadd.f32 0.0, %v7776
        %7778 = vdwg.mxu0
        %vm7779 = vcmask 80896
        %v7780 = vsel %vm7779, %v7774, 0.0
        %vm7781 = vcmask 74752
        %v7782 = vsel %vm7781, %v7777, 0.0
        %v7783 = vadd.f32 %v7780, %v7782
        %v7784 = vrot.slane %v7783, 4
        %v7785 = vadd.f32 %v7783, %v7784
        %v7786 = vrot.slane %v7785, 2
        %v7787 = vadd.f32 %v7785, %v7786
        %v7788 = vrot.slane %v7787, 1
        %v7789 = vadd.f32 %v7787, %v7788
        %v7790 = vadd.f32 %v7789, %v7175
        %vm7791 = vcmask 73728
        %7792 = vst.msk [vmem:[%s350] sm:$0x1] %vm7791, %v7790
        %v7801 = vunpack.c.l.b16 %v7180
        %v7802 = vunpack.c.h.b16 %v7180
        %v7803 = vunpack.c.l.b16 %v7181
        %v7804 = vunpack.c.h.b16 %v7181
        %v7805 = vunpack.c.l.b16 %v7182
        %v7806 = vunpack.c.h.b16 %v7182
        %v7807 = vunpack.c.l.b16 %v7183
        %v7808 = vunpack.c.h.b16 %v7183
        %v7809 = vunpack.c.l.b16 %v7196
        %v7810 = vunpack.c.h.b16 %v7196
        %v7811 = vunpack.c.l.b16 %v7197
        %v7812 = vunpack.c.h.b16 %v7197
        %v7813 = vunpack.c.l.b16 %v7198
        %v7814 = vunpack.c.h.b16 %v7198
        %v7815 = vunpack.c.l.b16 %v7199
        %v7816 = vunpack.c.h.b16 %v7199
        %v7817 = vpack.c.b16 %v7809, %v7801
        %v7818 = vpack.c.b16 %v7810, %v7802
        %v7819 = vpack.c.b16 %v7811, %v7803
        %v7820 = vpack.c.b16 %v7812, %v7804
        %v7821 = vpack.c.b16 %v7813, %v7805
        %v7822 = vpack.c.b16 %v7814, %v7806
        %v7823 = vpack.c.b16 %v7815, %v7807
        %v7824 = vpack.c.b16 %v7816, %v7808
        %7833 = vmatpush.bf16.msra.mxu0 %v7511
        %7834 = vmatpush.bf16.msra.mxu0 %v7510
        %7835 = vmatpush.bf16.msra.mxu0 %v7509
        %7836 = vmatpush.bf16.msra.mxu0 %v7508
        %7837 = vmatpush.bf16.msra.mxu0 %v7507
        %7838 = vmatpush.bf16.msra.mxu0 %v7506
        %7839 = vmatpush.bf16.msra.mxu0 %v7505
        %7840 = vmatpush.bf16.msra.mxu0 %v7504
        %7841 = vmatmul.bf16.gmra.mxu0 %v7817
        %v7842 = vpop.f32.mrf.mxu0
        %v7843 = vadd.f32 0.0, %v7842
        %v7844 = vpop.f32.mrf.mxu0
        %v7845 = vadd.f32 0.0, %v7844
        %7846 = vdwg.mxu0
        %7847 = vmatpush.bf16.msra.mxu0 %v7519
        %7848 = vmatpush.bf16.msra.mxu0 %v7518
        %7849 = vmatpush.bf16.msra.mxu0 %v7517
        %7850 = vmatpush.bf16.msra.mxu0 %v7516
        %7851 = vmatpush.bf16.msra.mxu0 %v7515
        %7852 = vmatpush.bf16.msra.mxu0 %v7514
        %7853 = vmatpush.bf16.msra.mxu0 %v7513
        %7854 = vmatpush.bf16.msra.mxu0 %v7512
        %7855 = vmatmul.bf16.gmra.mxu0 %v7818
        %v7856 = vpop.f32.mrf.mxu0
        %v7857 = vadd.f32 %v7843, %v7856
        %v7858 = vpop.f32.mrf.mxu0
        %v7859 = vadd.f32 %v7845, %v7858
        %7860 = vdwg.mxu0
        %7861 = vmatpush.bf16.msra.mxu0 %v7527
        %7862 = vmatpush.bf16.msra.mxu0 %v7526
        %7863 = vmatpush.bf16.msra.mxu0 %v7525
        %7864 = vmatpush.bf16.msra.mxu0 %v7524
        %7865 = vmatpush.bf16.msra.mxu0 %v7523
        %7866 = vmatpush.bf16.msra.mxu0 %v7522
        %7867 = vmatpush.bf16.msra.mxu0 %v7521
        %7868 = vmatpush.bf16.msra.mxu0 %v7520
        %7869 = vmatmul.bf16.gmra.mxu0 %v7819
        %v7870 = vpop.f32.mrf.mxu0
        %v7871 = vadd.f32 %v7857, %v7870
        %v7872 = vpop.f32.mrf.mxu0
        %v7873 = vadd.f32 %v7859, %v7872
        %7874 = vdwg.mxu0
        %7875 = vmatpush.bf16.msra.mxu0 %v7535
        %7876 = vmatpush.bf16.msra.mxu0 %v7534
        %7877 = vmatpush.bf16.msra.mxu0 %v7533
        %7878 = vmatpush.bf16.msra.mxu0 %v7532
        %7879 = vmatpush.bf16.msra.mxu0 %v7531
        %7880 = vmatpush.bf16.msra.mxu0 %v7530
        %7881 = vmatpush.bf16.msra.mxu0 %v7529
        %7882 = vmatpush.bf16.msra.mxu0 %v7528
        %7883 = vmatmul.bf16.gmra.mxu0 %v7820
        %v7884 = vpop.f32.mrf.mxu0
        %v7885 = vadd.f32 %v7871, %v7884
        %v7886 = vpop.f32.mrf.mxu0
        %v7887 = vadd.f32 %v7873, %v7886
        %7888 = vdwg.mxu0
        %7889 = vmatpush.bf16.msra.mxu0 %v7543
        %7890 = vmatpush.bf16.msra.mxu0 %v7542
        %7891 = vmatpush.bf16.msra.mxu0 %v7541
        %7892 = vmatpush.bf16.msra.mxu0 %v7540
        %7893 = vmatpush.bf16.msra.mxu0 %v7539
        %7894 = vmatpush.bf16.msra.mxu0 %v7538
        %7895 = vmatpush.bf16.msra.mxu0 %v7537
        %7896 = vmatpush.bf16.msra.mxu0 %v7536
        %7897 = vmatmul.bf16.gmra.mxu0 %v7821
        %v7898 = vpop.f32.mrf.mxu0
        %v7899 = vadd.f32 %v7885, %v7898
        %v7900 = vpop.f32.mrf.mxu0
        %v7901 = vadd.f32 %v7887, %v7900
        %7902 = vdwg.mxu0
        %7903 = vmatpush.bf16.msra.mxu0 %v7551
        %7904 = vmatpush.bf16.msra.mxu0 %v7550
        %7905 = vmatpush.bf16.msra.mxu0 %v7549
        %7906 = vmatpush.bf16.msra.mxu0 %v7548
        %7907 = vmatpush.bf16.msra.mxu0 %v7547
        %7908 = vmatpush.bf16.msra.mxu0 %v7546
        %7909 = vmatpush.bf16.msra.mxu0 %v7545
        %7910 = vmatpush.bf16.msra.mxu0 %v7544
        %7911 = vmatmul.bf16.gmra.mxu0 %v7822
        %v7912 = vpop.f32.mrf.mxu0
        %v7913 = vadd.f32 %v7899, %v7912
        %v7914 = vpop.f32.mrf.mxu0
        %v7915 = vadd.f32 %v7901, %v7914
        %7916 = vdwg.mxu0
        %7917 = vmatpush.bf16.msra.mxu0 %v7559
        %7918 = vmatpush.bf16.msra.mxu0 %v7558
        %7919 = vmatpush.bf16.msra.mxu0 %v7557
        %7920 = vmatpush.bf16.msra.mxu0 %v7556
        %7921 = vmatpush.bf16.msra.mxu0 %v7555
        %7922 = vmatpush.bf16.msra.mxu0 %v7554
        %7923 = vmatpush.bf16.msra.mxu0 %v7553
        %7924 = vmatpush.bf16.msra.mxu0 %v7552
        %7925 = vmatmul.bf16.gmra.mxu0 %v7823
        %v7926 = vpop.f32.mrf.mxu0
        %v7927 = vadd.f32 %v7913, %v7926
        %v7928 = vpop.f32.mrf.mxu0
        %v7929 = vadd.f32 %v7915, %v7928
        %7930 = vdwg.mxu0
        %7931 = vmatpush.bf16.msra.mxu0 %v7567
        %7932 = vmatpush.bf16.msra.mxu0 %v7566
        %7933 = vmatpush.bf16.msra.mxu0 %v7565
        %7934 = vmatpush.bf16.msra.mxu0 %v7564
        %7935 = vmatpush.bf16.msra.mxu0 %v7563
        %7936 = vmatpush.bf16.msra.mxu0 %v7562
        %7937 = vmatpush.bf16.msra.mxu0 %v7561
        %7938 = vmatpush.bf16.msra.mxu0 %v7560
        %7939 = vmatmul.bf16.gmra.mxu0 %v7824
        %v7940 = vpop.f32.mrf.mxu0
        %v7941 = vadd.f32 %v7927, %v7940
        %v7942 = vpop.f32.mrf.mxu0
        %v7943 = vadd.f32 %v7929, %v7942
        %7944 = vdwg.mxu0
        %v7945 = vmul.f32 %v7941, %v7160
        %v7946 = vmul.f32 %v7943, %v7161
        %v7948 = vsel %vm7746, %v7945, 0
        %v7951 = vsel %vm7746, %v7946, 0
        %7953 = vmatpush.msra.mxu0 0.0
        %7954 = vmatpush.msra.mxu0 0.0
        %7955 = vmatpush.msra.mxu0 0.0
        %7956 = vmatpush.msra.mxu0 %v7754
        %7957 = vmatpush.msra.mxu0 %v7173
        %7958 = vmatpush.msra.mxu0 %v7172
        %7959 = vmatpush.msra.mxu0 %v7171
        %7960 = vmatpush.msra.mxu0 %v7170
        %7961 = vmatpush.msra.mxu0 %v7169
        %7962 = vmatpush.msra.mxu0 %v7168
        %7963 = vmatpush.msra.mxu0 %v7167
        %7964 = vmatpush.msra.mxu0 %v7166
        %7965 = vmatpush.msra.mxu0 %v7165
        %7966 = vmatpush.msra.mxu0 %v7164
        %7967 = vmatpush.msra.mxu0 %v7163
        %7968 = vmatpush.msra.mxu0 %v7162
        %7969 = vmatmul.f32.gmra.mxu0 %v7948
        %v7970 = vpop.f32.mrf.mxu0
        %v7971 = vadd.f32 0.0, %v7970
        %7972 = vmatmul.f32.gmra.mxu0 %v7951
        %v7973 = vpop.f32.mrf.mxu0
        %v7974 = vadd.f32 0.0, %v7973
        %7975 = vdwg.mxu0
        %v7976 = vsel %vm7779, %v7971, 0.0
        %v7977 = vsel %vm7781, %v7974, 0.0
        %v7978 = vadd.f32 %v7976, %v7977
        %v7979 = vrot.slane %v7978, 4
        %v7980 = vadd.f32 %v7978, %v7979
        %v7981 = vrot.slane %v7980, 2
        %v7982 = vadd.f32 %v7980, %v7981
        %v7983 = vrot.slane %v7982, 1
        %v7984 = vadd.f32 %v7982, %v7983
        %v7985 = vadd.f32 %v7984, %v7175
        %7986 = vst.msk [vmem:[%s350 + $0x1] sm:$0x1] %vm7791, %v7985
        %v7995 = vunpack.c.l.b16 %v7184
        %v7996 = vunpack.c.h.b16 %v7184
        %v7997 = vunpack.c.l.b16 %v7185
        %v7998 = vunpack.c.h.b16 %v7185
        %v7999 = vunpack.c.l.b16 %v7186
        %v8000 = vunpack.c.h.b16 %v7186
        %v8001 = vunpack.c.l.b16 %v7187
        %v8002 = vunpack.c.h.b16 %v7187
        %v8003 = vunpack.c.l.b16 %v7200
        %v8004 = vunpack.c.h.b16 %v7200
        %v8005 = vunpack.c.l.b16 %v7201
        %v8006 = vunpack.c.h.b16 %v7201
        %v8007 = vunpack.c.l.b16 %v7202
        %v8008 = vunpack.c.h.b16 %v7202
        %v8009 = vunpack.c.l.b16 %v7203
        %v8010 = vunpack.c.h.b16 %v7203
        %v8011 = vpack.c.b16 %v8003, %v7995
        %v8012 = vpack.c.b16 %v8004, %v7996
        %v8013 = vpack.c.b16 %v8005, %v7997
        %v8014 = vpack.c.b16 %v8006, %v7998
        %v8015 = vpack.c.b16 %v8007, %v7999
        %v8016 = vpack.c.b16 %v8008, %v8000
        %v8017 = vpack.c.b16 %v8009, %v8001
        %v8018 = vpack.c.b16 %v8010, %v8002
        %8027 = vmatpush.bf16.msra.mxu0 %v7511
        %8028 = vmatpush.bf16.msra.mxu0 %v7510
        %8029 = vmatpush.bf16.msra.mxu0 %v7509
        %8030 = vmatpush.bf16.msra.mxu0 %v7508
        %8031 = vmatpush.bf16.msra.mxu0 %v7507
        %8032 = vmatpush.bf16.msra.mxu0 %v7506
        %8033 = vmatpush.bf16.msra.mxu0 %v7505
        %8034 = vmatpush.bf16.msra.mxu0 %v7504
        %8035 = vmatmul.bf16.gmra.mxu0 %v8011
        %v8036 = vpop.f32.mrf.mxu0
        %v8037 = vadd.f32 0.0, %v8036
        %v8038 = vpop.f32.mrf.mxu0
        %v8039 = vadd.f32 0.0, %v8038
        %8040 = vdwg.mxu0
        %8041 = vmatpush.bf16.msra.mxu0 %v7519
        %8042 = vmatpush.bf16.msra.mxu0 %v7518
        %8043 = vmatpush.bf16.msra.mxu0 %v7517
        %8044 = vmatpush.bf16.msra.mxu0 %v7516
        %8045 = vmatpush.bf16.msra.mxu0 %v7515
        %8046 = vmatpush.bf16.msra.mxu0 %v7514
        %8047 = vmatpush.bf16.msra.mxu0 %v7513
        %8048 = vmatpush.bf16.msra.mxu0 %v7512
        %8049 = vmatmul.bf16.gmra.mxu0 %v8012
        %v8050 = vpop.f32.mrf.mxu0
        %v8051 = vadd.f32 %v8037, %v8050
        %v8052 = vpop.f32.mrf.mxu0
        %v8053 = vadd.f32 %v8039, %v8052
        %8054 = vdwg.mxu0
        %8055 = vmatpush.bf16.msra.mxu0 %v7527
        %8056 = vmatpush.bf16.msra.mxu0 %v7526
        %8057 = vmatpush.bf16.msra.mxu0 %v7525
        %8058 = vmatpush.bf16.msra.mxu0 %v7524
        %8059 = vmatpush.bf16.msra.mxu0 %v7523
        %8060 = vmatpush.bf16.msra.mxu0 %v7522
        %8061 = vmatpush.bf16.msra.mxu0 %v7521
        %8062 = vmatpush.bf16.msra.mxu0 %v7520
        %8063 = vmatmul.bf16.gmra.mxu0 %v8013
        %v8064 = vpop.f32.mrf.mxu0
        %v8065 = vadd.f32 %v8051, %v8064
        %v8066 = vpop.f32.mrf.mxu0
        %v8067 = vadd.f32 %v8053, %v8066
        %8068 = vdwg.mxu0
        %8069 = vmatpush.bf16.msra.mxu0 %v7535
        %8070 = vmatpush.bf16.msra.mxu0 %v7534
        %8071 = vmatpush.bf16.msra.mxu0 %v7533
        %8072 = vmatpush.bf16.msra.mxu0 %v7532
        %8073 = vmatpush.bf16.msra.mxu0 %v7531
        %8074 = vmatpush.bf16.msra.mxu0 %v7530
        %8075 = vmatpush.bf16.msra.mxu0 %v7529
        %8076 = vmatpush.bf16.msra.mxu0 %v7528
        %8077 = vmatmul.bf16.gmra.mxu0 %v8014
        %v8078 = vpop.f32.mrf.mxu0
        %v8079 = vadd.f32 %v8065, %v8078
        %v8080 = vpop.f32.mrf.mxu0
        %v8081 = vadd.f32 %v8067, %v8080
        %8082 = vdwg.mxu0
        %8083 = vmatpush.bf16.msra.mxu0 %v7543
        %8084 = vmatpush.bf16.msra.mxu0 %v7542
        %8085 = vmatpush.bf16.msra.mxu0 %v7541
        %8086 = vmatpush.bf16.msra.mxu0 %v7540
        %8087 = vmatpush.bf16.msra.mxu0 %v7539
        %8088 = vmatpush.bf16.msra.mxu0 %v7538
        %8089 = vmatpush.bf16.msra.mxu0 %v7537
        %8090 = vmatpush.bf16.msra.mxu0 %v7536
        %8091 = vmatmul.bf16.gmra.mxu0 %v8015
        %v8092 = vpop.f32.mrf.mxu0
        %v8093 = vadd.f32 %v8079, %v8092
        %v8094 = vpop.f32.mrf.mxu0
        %v8095 = vadd.f32 %v8081, %v8094
        %8096 = vdwg.mxu0
        %8097 = vmatpush.bf16.msra.mxu0 %v7551
        %8098 = vmatpush.bf16.msra.mxu0 %v7550
        %8099 = vmatpush.bf16.msra.mxu0 %v7549
        %8100 = vmatpush.bf16.msra.mxu0 %v7548
        %8101 = vmatpush.bf16.msra.mxu0 %v7547
        %8102 = vmatpush.bf16.msra.mxu0 %v7546
        %8103 = vmatpush.bf16.msra.mxu0 %v7545
        %8104 = vmatpush.bf16.msra.mxu0 %v7544
        %8105 = vmatmul.bf16.gmra.mxu0 %v8016
        %v8106 = vpop.f32.mrf.mxu0
        %v8107 = vadd.f32 %v8093, %v8106
        %v8108 = vpop.f32.mrf.mxu0
        %v8109 = vadd.f32 %v8095, %v8108
        %8110 = vdwg.mxu0
        %8111 = vmatpush.bf16.msra.mxu0 %v7559
        %8112 = vmatpush.bf16.msra.mxu0 %v7558
        %8113 = vmatpush.bf16.msra.mxu0 %v7557
        %8114 = vmatpush.bf16.msra.mxu0 %v7556
        %8115 = vmatpush.bf16.msra.mxu0 %v7555
        %8116 = vmatpush.bf16.msra.mxu0 %v7554
        %8117 = vmatpush.bf16.msra.mxu0 %v7553
        %8118 = vmatpush.bf16.msra.mxu0 %v7552
        %8119 = vmatmul.bf16.gmra.mxu0 %v8017
        %v8120 = vpop.f32.mrf.mxu0
        %v8121 = vadd.f32 %v8107, %v8120
        %v8122 = vpop.f32.mrf.mxu0
        %v8123 = vadd.f32 %v8109, %v8122
        %8124 = vdwg.mxu0
        %8125 = vmatpush.bf16.msra.mxu0 %v7567
        %8126 = vmatpush.bf16.msra.mxu0 %v7566
        %8127 = vmatpush.bf16.msra.mxu0 %v7565
        %8128 = vmatpush.bf16.msra.mxu0 %v7564
        %8129 = vmatpush.bf16.msra.mxu0 %v7563
        %8130 = vmatpush.bf16.msra.mxu0 %v7562
        %8131 = vmatpush.bf16.msra.mxu0 %v7561
        %8132 = vmatpush.bf16.msra.mxu0 %v7560
        %8133 = vmatmul.bf16.gmra.mxu0 %v8018
        %v8134 = vpop.f32.mrf.mxu0
        %v8135 = vadd.f32 %v8121, %v8134
        %v8136 = vpop.f32.mrf.mxu0
        %v8137 = vadd.f32 %v8123, %v8136
        %8138 = vdwg.mxu0
        %v8139 = vmul.f32 %v8135, %v7160
        %v8140 = vmul.f32 %v8137, %v7161
        %v8142 = vsel %vm7746, %v8139, 0
        %v8145 = vsel %vm7746, %v8140, 0
        %8147 = vmatpush.msra.mxu0 0.0
        %8148 = vmatpush.msra.mxu0 0.0
        %8149 = vmatpush.msra.mxu0 0.0
        %8150 = vmatpush.msra.mxu0 %v7754
        %8151 = vmatpush.msra.mxu0 %v7173
        %8152 = vmatpush.msra.mxu0 %v7172
        %8153 = vmatpush.msra.mxu0 %v7171
        %8154 = vmatpush.msra.mxu0 %v7170
        %8155 = vmatpush.msra.mxu0 %v7169
        %8156 = vmatpush.msra.mxu0 %v7168
        %8157 = vmatpush.msra.mxu0 %v7167
        %8158 = vmatpush.msra.mxu0 %v7166
        %8159 = vmatpush.msra.mxu0 %v7165
        %8160 = vmatpush.msra.mxu0 %v7164
        %8161 = vmatpush.msra.mxu0 %v7163
        %8162 = vmatpush.msra.mxu0 %v7162
        %8163 = vmatmul.f32.gmra.mxu0 %v8142
        %v8164 = vpop.f32.mrf.mxu0
        %v8165 = vadd.f32 0.0, %v8164
        %8166 = vmatmul.f32.gmra.mxu0 %v8145
        %v8167 = vpop.f32.mrf.mxu0
        %v8168 = vadd.f32 0.0, %v8167
        %8169 = vdwg.mxu0
        %v8170 = vsel %vm7779, %v8165, 0.0
        %v8171 = vsel %vm7781, %v8168, 0.0
        %v8172 = vadd.f32 %v8170, %v8171
        %v8173 = vrot.slane %v8172, 4
        %v8174 = vadd.f32 %v8172, %v8173
        %v8175 = vrot.slane %v8174, 2
        %v8176 = vadd.f32 %v8174, %v8175
        %v8177 = vrot.slane %v8176, 1
        %v8178 = vadd.f32 %v8176, %v8177
        %v8179 = vadd.f32 %v8178, %v7175
        %8180 = vst.msk [vmem:[%s350 + $0x2] sm:$0x1] %vm7791, %v8179
        %v8189 = vunpack.c.l.b16 %v7188
        %v8190 = vunpack.c.h.b16 %v7188
        %v8191 = vunpack.c.l.b16 %v7189
        %v8192 = vunpack.c.h.b16 %v7189
        %v8193 = vunpack.c.l.b16 %v7190
        %v8194 = vunpack.c.h.b16 %v7190
        %v8195 = vunpack.c.l.b16 %v7191
        %v8196 = vunpack.c.h.b16 %v7191
        %v8197 = vunpack.c.l.b16 %v7204
        %v8198 = vunpack.c.h.b16 %v7204
        %v8199 = vunpack.c.l.b16 %v7205
        %v8200 = vunpack.c.h.b16 %v7205
        %v8201 = vunpack.c.l.b16 %v7206
        %v8202 = vunpack.c.h.b16 %v7206
        %v8203 = vunpack.c.l.b16 %v7207
        %v8204 = vunpack.c.h.b16 %v7207
        %v8205 = vpack.c.b16 %v8197, %v8189
        %v8206 = vpack.c.b16 %v8198, %v8190
        %v8207 = vpack.c.b16 %v8199, %v8191
        %v8208 = vpack.c.b16 %v8200, %v8192
        %v8209 = vpack.c.b16 %v8201, %v8193
        %v8210 = vpack.c.b16 %v8202, %v8194
        %v8211 = vpack.c.b16 %v8203, %v8195
        %v8212 = vpack.c.b16 %v8204, %v8196
        %8221 = vmatpush.bf16.msra.mxu0 %v7511
        %8222 = vmatpush.bf16.msra.mxu0 %v7510
        %8223 = vmatpush.bf16.msra.mxu0 %v7509
        %8224 = vmatpush.bf16.msra.mxu0 %v7508
        %8225 = vmatpush.bf16.msra.mxu0 %v7507
        %8226 = vmatpush.bf16.msra.mxu0 %v7506
        %8227 = vmatpush.bf16.msra.mxu0 %v7505
        %8228 = vmatpush.bf16.msra.mxu0 %v7504
        %8229 = vmatmul.bf16.gmra.mxu0 %v8205
        %v8230 = vpop.f32.mrf.mxu0
        %v8231 = vadd.f32 0.0, %v8230
        %v8232 = vpop.f32.mrf.mxu0
        %v8233 = vadd.f32 0.0, %v8232
        %8234 = vdwg.mxu0
        %8235 = vmatpush.bf16.msra.mxu0 %v7519
        %8236 = vmatpush.bf16.msra.mxu0 %v7518
        %8237 = vmatpush.bf16.msra.mxu0 %v7517
        %8238 = vmatpush.bf16.msra.mxu0 %v7516
        %8239 = vmatpush.bf16.msra.mxu0 %v7515
        %8240 = vmatpush.bf16.msra.mxu0 %v7514
        %8241 = vmatpush.bf16.msra.mxu0 %v7513
        %8242 = vmatpush.bf16.msra.mxu0 %v7512
        %8243 = vmatmul.bf16.gmra.mxu0 %v8206
        %v8244 = vpop.f32.mrf.mxu0
        %v8245 = vadd.f32 %v8231, %v8244
        %v8246 = vpop.f32.mrf.mxu0
        %v8247 = vadd.f32 %v8233, %v8246
        %8248 = vdwg.mxu0
        %8249 = vmatpush.bf16.msra.mxu0 %v7527
        %8250 = vmatpush.bf16.msra.mxu0 %v7526
        %8251 = vmatpush.bf16.msra.mxu0 %v7525
        %8252 = vmatpush.bf16.msra.mxu0 %v7524
        %8253 = vmatpush.bf16.msra.mxu0 %v7523
        %8254 = vmatpush.bf16.msra.mxu0 %v7522
        %8255 = vmatpush.bf16.msra.mxu0 %v7521
        %8256 = vmatpush.bf16.msra.mxu0 %v7520
        %8257 = vmatmul.bf16.gmra.mxu0 %v8207
        %v8258 = vpop.f32.mrf.mxu0
        %v8259 = vadd.f32 %v8245, %v8258
        %v8260 = vpop.f32.mrf.mxu0
        %v8261 = vadd.f32 %v8247, %v8260
        %8262 = vdwg.mxu0
        %8263 = vmatpush.bf16.msra.mxu0 %v7535
        %8264 = vmatpush.bf16.msra.mxu0 %v7534
        %8265 = vmatpush.bf16.msra.mxu0 %v7533
        %8266 = vmatpush.bf16.msra.mxu0 %v7532
        %8267 = vmatpush.bf16.msra.mxu0 %v7531
        %8268 = vmatpush.bf16.msra.mxu0 %v7530
        %8269 = vmatpush.bf16.msra.mxu0 %v7529
        %8270 = vmatpush.bf16.msra.mxu0 %v7528
        %8271 = vmatmul.bf16.gmra.mxu0 %v8208
        %v8272 = vpop.f32.mrf.mxu0
        %v8273 = vadd.f32 %v8259, %v8272
        %v8274 = vpop.f32.mrf.mxu0
        %v8275 = vadd.f32 %v8261, %v8274
        %8276 = vdwg.mxu0
        %8277 = vmatpush.bf16.msra.mxu0 %v7543
        %8278 = vmatpush.bf16.msra.mxu0 %v7542
        %8279 = vmatpush.bf16.msra.mxu0 %v7541
        %8280 = vmatpush.bf16.msra.mxu0 %v7540
        %8281 = vmatpush.bf16.msra.mxu0 %v7539
        %8282 = vmatpush.bf16.msra.mxu0 %v7538
        %8283 = vmatpush.bf16.msra.mxu0 %v7537
        %8284 = vmatpush.bf16.msra.mxu0 %v7536
        %8285 = vmatmul.bf16.gmra.mxu0 %v8209
        %v8286 = vpop.f32.mrf.mxu0
        %v8287 = vadd.f32 %v8273, %v8286
        %v8288 = vpop.f32.mrf.mxu0
        %v8289 = vadd.f32 %v8275, %v8288
        %8290 = vdwg.mxu0
        %8291 = vmatpush.bf16.msra.mxu0 %v7551
        %8292 = vmatpush.bf16.msra.mxu0 %v7550
        %8293 = vmatpush.bf16.msra.mxu0 %v7549
        %8294 = vmatpush.bf16.msra.mxu0 %v7548
        %8295 = vmatpush.bf16.msra.mxu0 %v7547
        %8296 = vmatpush.bf16.msra.mxu0 %v7546
        %8297 = vmatpush.bf16.msra.mxu0 %v7545
        %8298 = vmatpush.bf16.msra.mxu0 %v7544
        %8299 = vmatmul.bf16.gmra.mxu0 %v8210
        %v8300 = vpop.f32.mrf.mxu0
        %v8301 = vadd.f32 %v8287, %v8300
        %v8302 = vpop.f32.mrf.mxu0
        %v8303 = vadd.f32 %v8289, %v8302
        %8304 = vdwg.mxu0
        %8305 = vmatpush.bf16.msra.mxu0 %v7559
        %8306 = vmatpush.bf16.msra.mxu0 %v7558
        %8307 = vmatpush.bf16.msra.mxu0 %v7557
        %8308 = vmatpush.bf16.msra.mxu0 %v7556
        %8309 = vmatpush.bf16.msra.mxu0 %v7555
        %8310 = vmatpush.bf16.msra.mxu0 %v7554
        %8311 = vmatpush.bf16.msra.mxu0 %v7553
        %8312 = vmatpush.bf16.msra.mxu0 %v7552
        %8313 = vmatmul.bf16.gmra.mxu0 %v8211
        %v8314 = vpop.f32.mrf.mxu0
        %v8315 = vadd.f32 %v8301, %v8314
        %v8316 = vpop.f32.mrf.mxu0
        %v8317 = vadd.f32 %v8303, %v8316
        %8318 = vdwg.mxu0
        %8319 = vmatpush.bf16.msra.mxu0 %v7567
        %8320 = vmatpush.bf16.msra.mxu0 %v7566
        %8321 = vmatpush.bf16.msra.mxu0 %v7565
        %8322 = vmatpush.bf16.msra.mxu0 %v7564
        %8323 = vmatpush.bf16.msra.mxu0 %v7563
        %8324 = vmatpush.bf16.msra.mxu0 %v7562
        %8325 = vmatpush.bf16.msra.mxu0 %v7561
        %8326 = vmatpush.bf16.msra.mxu0 %v7560
        %8327 = vmatmul.bf16.gmra.mxu0 %v8212
        %v8328 = vpop.f32.mrf.mxu0
        %v8329 = vadd.f32 %v8315, %v8328
        %v8330 = vpop.f32.mrf.mxu0
        %v8331 = vadd.f32 %v8317, %v8330
        %8332 = vdwg.mxu0
        %v8333 = vmul.f32 %v8329, %v7160
        %v8334 = vmul.f32 %v8331, %v7161
        %v8336 = vsel %vm7746, %v8333, 0
        %v8339 = vsel %vm7746, %v8334, 0
        %8341 = vmatpush.msra.mxu0 0.0
        %8342 = vmatpush.msra.mxu0 0.0
        %8343 = vmatpush.msra.mxu0 0.0
        %8344 = vmatpush.msra.mxu0 %v7754
        %8345 = vmatpush.msra.mxu0 %v7173
        %8346 = vmatpush.msra.mxu0 %v7172
        %8347 = vmatpush.msra.mxu0 %v7171
        %8348 = vmatpush.msra.mxu0 %v7170
        %8349 = vmatpush.msra.mxu0 %v7169
        %8350 = vmatpush.msra.mxu0 %v7168
        %8351 = vmatpush.msra.mxu0 %v7167
        %8352 = vmatpush.msra.mxu0 %v7166
        %8353 = vmatpush.msra.mxu0 %v7165
        %8354 = vmatpush.msra.mxu0 %v7164
        %8355 = vmatpush.msra.mxu0 %v7163
        %8356 = vmatpush.msra.mxu0 %v7162
        %8357 = vmatmul.f32.gmra.mxu0 %v8336
        %v8358 = vpop.f32.mrf.mxu0
        %v8359 = vadd.f32 0.0, %v8358
        %8360 = vmatmul.f32.gmra.mxu0 %v8339
        %v8361 = vpop.f32.mrf.mxu0
        %v8362 = vadd.f32 0.0, %v8361
        %8363 = vdwg.mxu0
        %v8364 = vsel %vm7779, %v8359, 0.0
        %v8365 = vsel %vm7781, %v8362, 0.0
        %v8366 = vadd.f32 %v8364, %v8365
        %v8367 = vrot.slane %v8366, 4
        %v8368 = vadd.f32 %v8366, %v8367
        %v8369 = vrot.slane %v8368, 2
        %v8370 = vadd.f32 %v8368, %v8369
        %v8371 = vrot.slane %v8370, 1
        %v8372 = vadd.f32 %v8370, %v8371
        %v8373 = vadd.f32 %v8372, %v7175
        %8374 = vst.msk [vmem:[%s350 + $0x3] sm:$0x1] %vm7791, %v8373
        %s8375 = sand.u32 %s247, 1
        %s8376 = scalar_lea.sflag [#allocation4], %s8375
        %s8377 = sand.u32 %s247, 1
        %s8378 = smul.addr %s8377, 4
        %s8379 = scalar_lea.vmem [#allocation3], %s8378
        // Predicated region
        $region61: #{net_forward.1} parent=59 // pred_check
          %p8380 = pneg %p257
        $region62: #{net_forward.1} parent=59 // pred_check_branch
          %8382 = sbr.rel (%p8380) target = $region64
        $region63: #{net_forward.1} parent=59 // pred_region
          %8384 = vsyncadd %s8376, 0
          %s8385 = smul.addr %s24, 4
          %s8386 = scalar_lea.hbm %s10, %s8385
          %s8388 = sshll.u32 %s8379, 4
          %s8389 = int_to_ptr.vmem [resolvable:$true] %s8388
          %s8390 = sshll.u32 %s8386, 4
          %s8391 = int_to_ptr.hbm [resolvable:$true] %s8390
          %8393 = dma.vmem_to_hbm [thread:$0]  %s8389, 64, %s8391, %s8376
        $region64: #{net_forward.1} parent=59 // pred_fallthru
          _
      $region60: #{net_forward.1} parent=5 // pred_fallthru
        _
      %p8394 = scmp.le.s32.totalorder 2, %s19
      // Predicated region
      $region65: #{net_forward.1} parent=5 // pred_check
        %p8395 = pneg %p8394
      $region66: #{net_forward.1} parent=5 // pred_check_branch
        %8397 = sbr.rel (%p8395) target = $region68
      $region67: #{net_forward.1} parent=5 // pred_region
        %s8398 = ssub.s32 %s19, 2
        // Predicated region
        $region69: #{net_forward.1} parent=67 // pred_check
          %p8399 = pneg %p263
        $region70: #{net_forward.1} parent=67 // pred_check_branch
          %8401 = sbr.rel (%p8399) target = $region72
        $region71: #{net_forward.1} parent=67 // pred_region
          %s8402 = sand.u32 %s248, 1
          %s8403 = scalar_lea.sflag [#allocation4], %s8402
          %s8404 = sand.u32 %s248, 1
          %s8405 = smul.addr %s8404, 4
          %s8406 = scalar_lea.vmem [#allocation3], %s8405
          %8408 = dma.done %s8403, 64
        $region72: #{net_forward.1} parent=67 // pred_fallthru
          _
      $region68: #{net_forward.1} parent=5 // pred_fallthru
        _
    $region6: #{net_forward.1} parent=1 // loop_footer
      %s23 = sadd.s32 1, %s19
    $region7: #{net_forward.1} parent=1 // loop_footer_branch
      %18 = sbr.rel target = $region3
    $region8: #{net_forward.1} parent=1 // loop_exit
      _
    %8409 = vsyncpa [#allocation4], 1
    %s8410 = scalar_lea.sflag [#allocation4], 1
    %8411 = vsyncpa %s8410, 1

</llo_original>
